<compile_context>
chip_gen: v7x
topology: tpu7x:2x2x1
jax: 0.10.0
libtpu: 0.0.40
codegen_flags: <defaults>
</compile_context>

<pallas_src>
import jax
import jax.numpy as jnp
from jax.experimental import pallas as pl
from jax.experimental.pallas import tpu as pltpu

_LANE = 128
_BN_EPS = 1e-5


# ---------------------------------------------------------------------------
# Small helpers
# ---------------------------------------------------------------------------

def _pad_lane(c):
    return ((c + _LANE - 1) // _LANE) * _LANE


def _nbytes(shape, dtype):
    n = 1
    for d in shape:
        n *= int(d)
    return n * jnp.dtype(dtype).itemsize


def _vmem_capacity():
    try:
        return int(pltpu.get_tpu_info().vmem_capacity_bytes)
    except Exception:
        return 64 << 20          # v7x floor (smallest physical VMEM of current gens)


def _resident(block_shape, index_map):
    """BlockSpec for a block whose index never changes: single-buffer it."""
    try:
        return pl.BlockSpec(block_shape, index_map, pipeline_mode=pl.Buffered(1))
    except Exception:            # older jax without pipeline_mode / Buffered
        return pl.BlockSpec(block_shape, index_map)


def _pick_rows(m, cap=1024):
    """Largest divisor of m <= cap that keeps (16,128)/(8,128) tiling clean."""
    for step in (16, 8):
        start = (min(cap, m) // step) * step
        for cand in range(start, 0, -step):
            if m % cand == 0:
                return cand
    return m


# ---------------------------------------------------------------------------
# Standalone BN + ReLU (only used for block-first stride-2 layers)
# ---------------------------------------------------------------------------

def _bnrelu_kernel(x_ref, s_ref, h_ref, o_ref):
    y = x_ref[...].astype(jnp.float32) * s_ref[0, :] + h_ref[0, :]
    o_ref[...] = jnp.maximum(y, 0.0).astype(o_ref.dtype)


def pallas_bnrelu(x_flat, scale, shift, out_dtype=jnp.bfloat16):
    """x_flat: (M, C); scale/shift: (C,). Returns relu(x*scale+shift)."""
    m, c = x_flat.shape
    tm = _pick_rows(m)
    return pl.pallas_call(
        _bnrelu_kernel,
        out_shape=jax.ShapeDtypeStruct((m, c), out_dtype),
        grid=(m // tm,),
        in_specs=[pl.BlockSpec((tm, c), lambda i: (i, 0)),
                  _resident((1, c), lambda i: (0, 0)),
                  _resident((1, c), lambda i: (0, 0))],
        out_specs=pl.BlockSpec((tm, c), lambda i: (i, 0)),
        compiler_params=pltpu.CompilerParams(dimension_semantics=("parallel",)),
    )(x_flat, scale.reshape(1, c).astype(jnp.float32),
      shift.reshape(1, c).astype(jnp.float32))


# ---------------------------------------------------------------------------
# Fused 3x3 conv kernel (tap streaming, BN prologue/epilogue, residual, shortcut)
# ---------------------------------------------------------------------------

def _make_conv_kernel(*, stride, n_phase, has_prologue, has_epilogue,
                      has_residual, has_shortcut, h_in, w_in, th, wo,
                      cin_p, cout_p):
    taps = [(di, dj) for di in range(3) for dj in range(3)]
    # prologue chunk size: keep per-chunk register footprint ~32 vregs
    pro_rows = max(1, 32768 // max(1, w_in * cin_p))

    def kernel(*refs):
        it = iter(refs)
        if has_prologue:
            x_ref = next(it)
            phase_refs = None
        else:
            phase_refs = [next(it) for _ in range(n_phase)]
        w_ref = next(it)
        if has_prologue:
            p_scale = next(it)
            p_shift = next(it)
        if has_epilogue:
            e_scale = next(it)
            e_shift = next(it)
        r_ref = next(it) if has_residual else None
        ws_ref = next(it) if has_shortcut else None
        out_ref = next(it)
        short_ref = next(it) if has_shortcut else None
        a1_ref = next(it) if has_prologue else None

        j = pl.program_id(1)
        row0 = j * th

        if has_prologue:
            # bn1 + relu of the raw (unpadded) input slab into a zero-bordered,
            # spatially padded VMEM scratch -- computed once per image.
            @pl.when(j == 0)
            def _():
                a1_ref[...] = jnp.zeros_like(a1_ref)
                for r0 in range(0, h_in, pro_rows):
                    rr = min(pro_rows, h_in - r0)
                    xv = x_ref[0, pl.ds(r0, rr), :, :].astype(jnp.float32)
                    a1 = jnp.maximum(xv * p_scale[0, :] + p_shift[0, :], 0.0)
                    a1_ref[pl.ds(1 + r0, rr), pl.ds(1, w_in), :] = a1

        # 9 accumulated tap dots on the MXU.
        acc = jnp.zeros((th * wo, cout_p), jnp.float32)
        for t, (di, dj) in enumerate(taps):
            if has_prologue:            # stride == 1, taps read the a1 scratch
                tap = a1_ref[pl.ds(row0 + di, th), pl.ds(dj, wo), :]
            else:                       # stride == 2, taps read pre-split phases
                pr, pc = di % stride, dj % stride
                ph = phase_refs[pr * stride + pc]
                tap = ph[0, pl.ds(row0 + di // stride, th),
                         pl.ds(dj // stride, wo), :]
            tap = tap.reshape(th * wo, cin_p).astype(jnp.bfloat16)
            acc = acc + jnp.dot(tap, w_ref[t], preferred_element_type=jnp.float32)

        if has_residual:
            acc = acc + r_ref[...].reshape(th * wo, cout_p).astype(jnp.float32)

        if has_epilogue:
            res = jnp.maximum(acc * e_scale[0, :] + e_shift[0, :], 0.0)
        else:
            res = acc
        out_ref[...] = res.reshape(1, th, wo, cout_p).astype(out_ref.dtype)

        if has_shortcut:
            # 1x1 shortcut conv on a1 at the (strided) output centres.
            if has_prologue:            # stride == 1
                ctr = a1_ref[pl.ds(row0 + 1, th), pl.ds(1, wo), :]
            else:                       # stride == 2 -> phase (1, 1)
                ph = phase_refs[1 * stride + 1]
                ctr = ph[0, pl.ds(row0, th), pl.ds(0, wo), :]
            sc = jnp.dot(ctr.reshape(th * wo, cin_p).astype(jnp.bfloat16),
                         ws_ref[...], preferred_element_type=jnp.float32)
            short_ref[...] = sc.reshape(1, th, wo, cout_p).astype(short_ref.dtype)

    return kernel


def conv3x3_fused(x, w9, *, stride, prologue, epilogue=None, residual=None,
                  shortcut_w=None, out_dtype=jnp.bfloat16,
                  short_dtype=jnp.bfloat16):
    """Fused 3x3 conv (padding=1) in NHWC with lane-padded channels.

    stride == 1: x is the raw unpadded input slab (N, H, W, Cin_p); `prologue`
                 (scale, shift) is applied in-kernel (bn+relu, zero borders).
    stride == 2: x is a list of 4 pre-activated, zero-padded phase slabs
                 (N, Ho+1, Wo+1, Cin_p); `prologue` must be None.
    epilogue:    optional (scale, shift) -> relu(acc*scale+shift) on the output.
    residual:    optional (N, Ho, Wo, Cout_p) tensor added to the raw accumulator.
    shortcut_w:  optional (Cin_p, Cout_p) 1x1-conv weights -> second output.
    """
    if stride == 1:
        assert prologue is not None
        n, ho, wo, cin_p = x.shape
        phases = None
    else:
        assert stride == 2 and prologue is None
        phases = list(x)
        n, hph, wph, cin_p = phases[0].shape
        ho, wo = hph - 1, wph - 1
    cout_p = w9.shape[-1]

    # --- VMEM budgeting: pick row tile + explicit vmem limit per chip ---------
    phys = _vmem_capacity()
    if stride == 1:
        slab_bytes = 2 * _nbytes((ho, wo, cin_p), x.dtype)           # double-buffered
        scratch_bytes = _nbytes((ho + 2, wo + 2, cin_p), jnp.float32)
    else:
        slab_bytes = 2 * sum(_nbytes(p.shape[1:], p.dtype) for p in phases)
        scratch_bytes = 0
    weight_bytes = _nbytes(w9.shape, w9.dtype)
    if shortcut_w is not None:
        weight_bytes += _nbytes(shortcut_w.shape, shortcut_w.dtype)
    fixed = slab_bytes + scratch_bytes + weight_bytes + (64 << 10)

    th, need = 1, fixed
    for cand in range(ho, 0, -1):
        if ho % cand:
            continue
        per = cand * wo * cout_p
        nb = fixed + 2 * per * jnp.dtype(out_dtype).itemsize
        if shortcut_w is not None:
            nb += 2 * per * jnp.dtype(short_dtype).itemsize
        if residual is not None:
            nb += 2 * per * jnp.dtype(residual.dtype).itemsize
        th, need = cand, nb
        if nb <= 0.45 * phys:
            break
    vmem_limit = int(min(0.9 * phys, max(32 << 20, 2 * need)))

    # --- Cost estimate ---------------------------------------------------------
    m_total = n * ho * wo
    flops = 2 * m_total * 9 * cin_p * cout_p
    bytes_acc = weight_bytes + m_total * cout_p * jnp.dtype(out_dtype).itemsize
    if stride == 1:
        bytes_acc += _nbytes(x.shape, x.dtype)
    else:
        bytes_acc += sum(_nbytes(p.shape, p.dtype) for p in phases)
    if residual is not None:
        bytes_acc += _nbytes(residual.shape, residual.dtype)
    if shortcut_w is not None:
        flops += 2 * m_total * cin_p * cout_p
        bytes_acc += m_total * cout_p * jnp.dtype(short_dtype).itemsize
    cost = pl.CostEstimate(flops=int(flops), transcendentals=0,
                           bytes_accessed=int(bytes_acc))

    # --- Specs -----------------------------------------------------------------
    inputs, in_specs = [], []
    if stride == 1:
        inputs.append(x)
        in_specs.append(pl.BlockSpec((1, ho, wo, cin_p), lambda i, j: (i, 0, 0, 0)))
    else:
        for p in phases:
            inputs.append(p)
            in_specs.append(pl.BlockSpec((1, ho + 1, wo + 1, cin_p),
                                         lambda i, j: (i, 0, 0, 0)))
    inputs.append(w9)
    in_specs.append(_resident((9, cin_p, cout_p), lambda i, j: (0, 0, 0)))
    if prologue is not None:
        ps, ph_ = prologue
        inputs += [ps.reshape(1, cin_p).astype(jnp.float32),
                   ph_.reshape(1, cin_p).astype(jnp.float32)]
        in_specs += [_resident((1, cin_p), lambda i, j: (0, 0)),
                     _resident((1, cin_p), lambda i, j: (0, 0))]
    if epilogue is not None:
        es, eh = epilogue
        inputs += [es.reshape(1, cout_p).astype(jnp.float32),
                   eh.reshape(1, cout_p).astype(jnp.float32)]
        in_specs += [_resident((1, cout_p), lambda i, j: (0, 0)),
                     _resident((1, cout_p), lambda i, j: (0, 0))]
    if residual is not None:
        inputs.append(residual)
        in_specs.append(pl.BlockSpec((1, th, wo, cout_p), lambda i, j: (i, j, 0, 0)))
    if shortcut_w is not None:
        inputs.append(shortcut_w)
        in_specs.append(_resident((cin_p, cout_p), lambda i, j: (0, 0)))

    out_spec = pl.BlockSpec((1, th, wo, cout_p), lambda i, j: (i, j, 0, 0))
    if shortcut_w is not None:
        out_shape = (jax.ShapeDtypeStruct((n, ho, wo, cout_p), out_dtype),
                     jax.ShapeDtypeStruct((n, ho, wo, cout_p), short_dtype))
        out_specs = (out_spec, out_spec)
    else:
        out_shape = jax.ShapeDtypeStruct((n, ho, wo, cout_p), out_dtype)
        out_specs = out_spec

    scratch = []
    if prologue is not None:
        scratch.append(pltpu.VMEM((ho + 2, wo + 2, cin_p), jnp.float32))

    kernel = _make_conv_kernel(
        stride=stride, n_phase=(0 if phases is None else len(phases)),
        has_prologue=prologue is not None, has_epilogue=epilogue is not None,
        has_residual=residual is not None, has_shortcut=shortcut_w is not None,
        h_in=ho, w_in=wo, th=th, wo=wo, cin_p=cin_p, cout_p=cout_p)

    return pl.pallas_call(
        kernel,
        out_shape=out_shape,
        grid=(n, ho // th),
        in_specs=in_specs,
        out_specs=out_specs,
        scratch_shapes=scratch,
        compiler_params=pltpu.CompilerParams(
            dimension_semantics=("parallel", "arbitrary"),
            vmem_limit_bytes=vmem_limit),
        cost_estimate=cost,
    )(*inputs)


# ---------------------------------------------------------------------------
# XLA glue for stride-2 layers only: zero-pad + 2x2 phase split of a1
# ---------------------------------------------------------------------------

def _make_phases(a1, stride, ho, wo):
    ap = jnp.pad(a1, ((0, 0), (1, 1), (1, 1), (0, 0)))
    phases = []
    for pr in range(stride):
        for pc in range(stride):
            ph = ap[:, pr::stride, pc::stride, :][:, :ho + 1, :wo + 1, :]
            dh, dw = ho + 1 - ph.shape[1], wo + 1 - ph.shape[2]
            if dh > 0 or dw > 0:
                ph = jnp.pad(ph, ((0, 0), (0, max(dh, 0)), (0, max(dw, 0)), (0, 0)))
            phases.append(ph)
    return phases


# ---------------------------------------------------------------------------
# Parameter init (deterministic, synthetic, folded BN, lane-padded channels)
# ---------------------------------------------------------------------------

def _fold_bn(gamma, beta, mean, var):
    scale = gamma / jnp.sqrt(var + _BN_EPS)
    return scale, beta - mean * scale


def _pad_vec(v, size):
    return jnp.pad(v, (0, size - v.shape[0]))


def init_basic_block(key, in_planes, out_planes, stride):
    cin_p, cout_p = _pad_lane(in_planes), _pad_lane(out_planes)
    ks = jax.random.split(key, 11)
    g1 = 1.0 + 0.1 * jax.random.normal(ks[0], (in_planes,), jnp.float32)
    b1 = 0.1 * jax.random.normal(ks[1], (in_planes,), jnp.float32)
    m1 = 0.1 * jax.random.normal(ks[2], (in_planes,), jnp.float32)
    v1 = 1.0 + 0.1 * jnp.abs(jax.random.normal(ks[3], (in_planes,), jnp.float32))
    g2 = 1.0 + 0.1 * jax.random.normal(ks[4], (out_planes,), jnp.float32)
    b2 = 0.1 * jax.random.normal(ks[5], (out_planes,), jnp.float32)
    m2 = 0.1 * jax.random.normal(ks[6], (out_planes,), jnp.float32)
    v2 = 1.0 + 0.1 * jnp.abs(jax.random.normal(ks[7], (out_planes,), jnp.float32))
    s1, h1 = _fold_bn(g1, b1, m1, v1)
    s2, h2 = _fold_bn(g2, b2, m2, v2)

    w1 = jax.random.normal(ks[8], (3, 3, in_planes, out_planes), jnp.float32) \
        * (2.0 / (9 * in_planes)) ** 0.5
    w2 = jax.random.normal(ks[9], (3, 3, out_planes, out_planes), jnp.float32) \
        * (2.0 / (9 * out_planes)) ** 0.5

    def pad_w(w, ci, co, cip, cop):
        w = jnp.pad(w, ((0, 0), (0, 0), (0, cip - ci), (0, cop - co)))
        return w.reshape(9, cip, cop).astype(jnp.bfloat16)

    params = {
        "bn1_scale": _pad_vec(s1, cin_p), "bn1_shift": _pad_vec(h1, cin_p),
        "bn2_scale": _pad_vec(s2, cout_p), "bn2_shift": _pad_vec(h2, cout_p),
        "w1": pad_w(w1, in_planes, out_planes, cin_p, cout_p),
        "w2": pad_w(w2, out_planes, out_planes, cout_p, cout_p),
    }
    equal = in_planes == out_planes
    if not equal:
        ws = jax.random.normal(ks[10], (in_planes, out_planes), jnp.float32) \
            * (2.0 / in_planes) ** 0.5
        ws = jnp.pad(ws, ((0, cin_p - in_planes), (0, cout_p - out_planes)))
        params["ws"] = ws.astype(jnp.bfloat16)
    return params, stride, equal, in_planes, out_planes


def init_network_block(key, nb_layers, in_planes, out_planes, stride):
    keys = jax.random.split(key, nb_layers)
    layers = []
    for i in range(nb_layers):
        ip = in_planes if i == 0 else out_planes
        s = stride if i == 0 else 1
        layers.append(init_basic_block(keys[i], ip, out_planes, s))
    return layers


# ---------------------------------------------------------------------------
# Forward
# ---------------------------------------------------------------------------

def basic_block_forward(x, params, stride, equal, is_last):
    """x: (N, H, W, Cin_p) NHWC, lane-padded channels.  Returns (N, Ho, Wo, Cout_p)."""
    n, h, w, cin_p = x.shape
    cout_p = params["w1"].shape[-1]
    sw = params.get("ws")

    if stride == 1:
        # conv1: bn1+relu prologue, bn2+relu epilogue, optional fused 1x1 shortcut.
        res = conv3x3_fused(x, params["w1"], stride=1,
                            prologue=(params["bn1_scale"], params["bn1_shift"]),
                            epilogue=(params["bn2_scale"], params["bn2_shift"]),
                            shortcut_w=sw, out_dtype=jnp.bfloat16)
        a2, short = (res if sw is not None else (res, None))
    else:
        # Block-first stride-2 layer: standalone bn1+relu, then wrapper-side
        # zero-pad + 2x2 phase split so the conv kernel avoids strided sublane reads.
        a1 = pallas_bnrelu(x.reshape(n * h * w, cin_p),
                           params["bn1_scale"], params["bn1_shift"]
                           ).reshape(n, h, w, cin_p)
        ho = (h - 1) // stride + 1
        wo = (w - 1) // stride + 1
        phases = _make_phases(a1, stride, ho, wo)
        res = conv3x3_fused(phases, params["w1"], stride=stride, prologue=None,
                            epilogue=(params["bn2_scale"], params["bn2_shift"]),
                            shortcut_w=sw, out_dtype=jnp.bfloat16)
        a2, short = (res if sw is not None else (res, None))

    if equal:
        assert stride == 1
        residual = x                      # identity residual (raw layer input)
    else:
        residual = short                  # fused 1x1 shortcut conv output

    # conv2: identity prologue (a2 >= 0), raw output + residual in the accumulator.
    ident = (jnp.ones((cout_p,), jnp.float32), jnp.zeros((cout_p,), jnp.float32))
    out = conv3x3_fused(a2, params["w2"], stride=1,
                        prologue=ident, epilogue=None, residual=residual,
                        out_dtype=jnp.float32 if is_last else jnp.bfloat16)
    return out


def network_block_forward(x_nchw, layers):
    x = jnp.transpose(x_nchw, (0, 2, 3, 1)).astype(jnp.float32)     # NCHW -> NHWC
    n, h, w, c = x.shape
    cin_p = _pad_lane(c)
    x = jnp.pad(x, ((0, 0), (0, 0), (0, 0), (0, cin_p - c)))
    for idx, (params, stride, equal, _ip, _op) in enumerate(layers):
        x = basic_block_forward(x, params, stride, equal,
                                is_last=(idx == len(layers) - 1))
    out_planes = layers[-1][4]
    x = x[..., :out_planes].astype(jnp.float32)
    return jnp.transpose(x, (0, 3, 1, 2))                           # NHWC -> NCHW


# ---------------------------------------------------------------------------
# Demo
# ---------------------------------------------------------------------------

if __name__ == "__main__":
    key = jax.random.PRNGKey(0)
    kx, kp = jax.random.split(key)

    # NetworkBlock(nb_layers=2, in_planes=4, out_planes=8, block=BasicBlock, stride=2)
    layers = init_network_block(kp, nb_layers=2, in_planes=4, out_planes=8, stride=2)

    x = jax.random.normal(kx, (2, 4, 16, 16), jnp.float32)          # NCHW like PyTorch

    fwd = jax.jit(lambda xx: network_block_forward(xx, layers))
    out = jax.block_until_ready(fwd(x))

    assert out.shape == (2, 8, 8, 8), out.shape    # stride 2: 16x16 -> 8x8, 8 channels
    assert out.dtype == jnp.float32
    assert bool(jnp.all(jnp.isfinite(out)))
    print("KERNEL_OK")
</pallas_src>

<mosaic_0001>
module attributes {stable_mosaic.version = 11 : i64} {
  func.func @_bnrelu_kernel(%arg0: i32, %arg1: memref<512x128xf32, #tpu.memory_space<vmem>>, %arg2: memref<1x128xf32, #tpu.memory_space<vmem>>, %arg3: memref<1x128xf32, #tpu.memory_space<vmem>>, %arg4: memref<512x128xbf16, #tpu.memory_space<vmem>>) attributes {dimension_semantics = [#tpu.dimension_semantics<parallel>], iteration_bounds = array<i64: 1>, scalar_prefetch = 0 : i64, scratch_operands = 0 : i64, tpu.core_type = #tpu.core_type<tc>, window_params = [{transform_indices = @transform_0, window_bounds = array<i64: 512, 128>}, {pipeline_mode = #tpu.pipeline_mode<synchronous>, transform_indices = @transform_1, window_bounds = array<i64: 1, 128>}, {pipeline_mode = #tpu.pipeline_mode<synchronous>, transform_indices = @transform_2, window_bounds = array<i64: 1, 128>}, {transform_indices = @transform_3, window_bounds = array<i64: 512, 128>}]} {
    %c0 = arith.constant 0 : index
    %c0_0 = arith.constant 0 : index
    %0 = vector.load %arg1[%c0, %c0_0] : memref<512x128xf32, #tpu.memory_space<vmem>>, vector<512x128xf32>
    %c0_1 = arith.constant 0 : index
    %c0_2 = arith.constant 0 : index
    %1 = vector.load %arg2[%c0_1, %c0_2] : memref<1x128xf32, #tpu.memory_space<vmem>>, vector<1x128xf32>
    %2 = vector.shape_cast %1 : vector<1x128xf32> to vector<128xf32>
    %3 = vector.shape_cast %2 : vector<128xf32> to vector<1x128xf32>
    %4 = vector.broadcast %3 : vector<1x128xf32> to vector<512x128xf32>
    %5 = arith.mulf %0, %4 : vector<512x128xf32>
    %c0_3 = arith.constant 0 : index
    %c0_4 = arith.constant 0 : index
    %6 = vector.load %arg3[%c0_3, %c0_4] : memref<1x128xf32, #tpu.memory_space<vmem>>, vector<1x128xf32>
    %7 = vector.shape_cast %6 : vector<1x128xf32> to vector<128xf32>
    %8 = vector.shape_cast %7 : vector<128xf32> to vector<1x128xf32>
    %9 = vector.broadcast %8 : vector<1x128xf32> to vector<512x128xf32>
    %10 = arith.addf %5, %9 : vector<512x128xf32>
    %cst = arith.constant 0.000000e+00 : f32
    %11 = vector.broadcast %cst : f32 to vector<512x128xf32>
    %12 = arith.maximumf %10, %11 : vector<512x128xf32>
    %13 = arith.truncf %12 : vector<512x128xf32> to vector<512x128xbf16>
    %c0_5 = arith.constant 0 : index
    %c0_6 = arith.constant 0 : index
    %14 = vector.load %arg4[%c0_5, %c0_6] : memref<512x128xbf16, #tpu.memory_space<vmem>>, vector<512x128xbf16>
    tpu.vector_store %arg4[%c0_5, %c0_6], %13 {strides = array<i32>} : memref<512x128xbf16, #tpu.memory_space<vmem>>, vector<512x128xbf16>,
    return
  }
  func.func @transform_0(%arg0: i32) -> (i32, i32) {
    %c0_i32 = arith.constant 0 : i32
    %c0_i32_0 = arith.constant 0 : i32
    return %arg0, %c0_i32 : i32, i32
  }
  func.func @transform_1(%arg0: i32) -> (i32, i32) {
    %c0_i32 = arith.constant 0 : i32
    %c0_i32_0 = arith.constant 0 : i32
    %c0_i32_1 = arith.constant 0 : i32
    return %c0_i32, %c0_i32_0 : i32, i32
  }
  func.func @transform_2(%arg0: i32) -> (i32, i32) {
    %c0_i32 = arith.constant 0 : i32
    %c0_i32_0 = arith.constant 0 : i32
    %c0_i32_1 = arith.constant 0 : i32
    return %c0_i32, %c0_i32_0 : i32, i32
  }
  func.func @transform_3(%arg0: i32) -> (i32, i32) {
    %c0_i32 = arith.constant 0 : i32
    %c0_i32_0 = arith.constant 0 : i32
    return %arg0, %c0_i32 : i32, i32
  }
}

module attributes {stable_mosaic.version = 11 : i64} {
  func.func @kernel(%arg0: i32, %arg1: i32, %arg2: memref<1x9x9x128xbf16, #tpu.memory_space<vmem>>, %arg3: memref<1x9x9x128xbf16, #tpu.memory_space<vmem>>, %arg4: memref<1x9x9x128xbf16, #tpu.memory_space<vmem>>, %arg5: memref<1x9x9x128xbf16, #tpu.memory_space<vmem>>, %arg6: memref<9x128x128xbf16, #tpu.memory_space<vmem>>, %arg7: memref<1x128xf32, #tpu.memory_space<vmem>>, %arg8: memref<1x128xf32, #tpu.memory_space<vmem>>, %arg9: memref<128x128xbf16, #tpu.memory_space<vmem>>, %arg10: memref<1x8x8x128xbf16, #tpu.memory_space<vmem>>, %arg11: memref<1x8x8x128xbf16, #tpu.memory_space<vmem>>) attributes {dimension_semantics = [#tpu.dimension_semantics<parallel>, #tpu.dimension_semantics<arbitrary>], iteration_bounds = array<i64: 2, 1>, scalar_prefetch = 0 : i64, scratch_operands = 0 : i64, tpu.core_type = #tpu.core_type<tc>, window_params = [{transform_indices = @transform_0, window_bounds = array<i64: 1, 9, 9, 128>}, {transform_indices = @transform_1, window_bounds = array<i64: 1, 9, 9, 128>}, {transform_indices = @transform_2, window_bounds = array<i64: 1, 9, 9, 128>}, {transform_indices = @transform_3, window_bounds = array<i64: 1, 9, 9, 128>}, {pipeline_mode = #tpu.pipeline_mode<synchronous>, transform_indices = @transform_4, window_bounds = array<i64: 9, 128, 128>}, {pipeline_mode = #tpu.pipeline_mode<synchronous>, transform_indices = @transform_5, window_bounds = array<i64: 1, 128>}, {pipeline_mode = #tpu.pipeline_mode<synchronous>, transform_indices = @transform_6, window_bounds = array<i64: 1, 128>}, {pipeline_mode = #tpu.pipeline_mode<synchronous>, transform_indices = @transform_7, window_bounds = array<i64: 128, 128>}, {transform_indices = @transform_8, window_bounds = array<i64: 1, 8, 8, 128>}, {transform_indices = @transform_9, window_bounds = array<i64: 1, 8, 8, 128>}]} {
    %c8_i32 = arith.constant 8 : i32
    %0 = arith.muli %arg1, %c8_i32 : i32
    %cst = arith.constant 0.000000e+00 : f32
    %1 = vector.broadcast %cst : f32 to vector<64x128xf32>
    %c0_i32 = arith.constant 0 : i32
    %2 = arith.addi %0, %c0_i32 : i32
    %c0 = arith.constant 0 : index
    %3 = arith.index_cast %2 : i32 to index
    %c0_0 = arith.constant 0 : index
    %c0_1 = arith.constant 0 : index
    %4 = vector.load %arg2[%c0, %3, %c0_0, %c0_1] : memref<1x9x9x128xbf16, #tpu.memory_space<vmem>>, vector<1x8x8x128xbf16>
    %5 = vector.shape_cast %4 : vector<1x8x8x128xbf16> to vector<8x8x128xbf16>
    %6 = vector.shape_cast %5 : vector<8x8x128xbf16> to vector<64x128xbf16>
    %c0_2 = arith.constant 0 : index
    %c0_3 = arith.constant 0 : index
    %c0_4 = arith.constant 0 : index
    %7 = vector.load %arg6[%c0_2, %c0_3, %c0_4] : memref<9x128x128xbf16, #tpu.memory_space<vmem>>, vector<1x128x128xbf16>
    %8 = vector.shape_cast %7 : vector<1x128x128xbf16> to vector<128x128xbf16>
    %cst_5 = arith.constant dense<0.000000e+00> : vector<64x128xf32>
    %9 = tpu.matmul %6, %8, %cst_5 {dimension_numbers = #tpu.dot_dimension_numbers<[1], [0], [0], [1], [0, 0, 1, 1], [], []>} : vector<64x128xbf16>, vector<128x128xbf16>, vector<64x128xf32> -> vector<64x128xf32>
    %10 = arith.addf %1, %9 : vector<64x128xf32>
    %c0_i32_6 = arith.constant 0 : i32
    %11 = arith.addi %0, %c0_i32_6 : i32
    %c0_7 = arith.constant 0 : index
    %12 = arith.index_cast %11 : i32 to index
    %c0_8 = arith.constant 0 : index
    %c0_9 = arith.constant 0 : index
    %13 = vector.load %arg3[%c0_7, %12, %c0_8, %c0_9] : memref<1x9x9x128xbf16, #tpu.memory_space<vmem>>, vector<1x8x8x128xbf16>
    %14 = vector.shape_cast %13 : vector<1x8x8x128xbf16> to vector<8x8x128xbf16>
    %15 = vector.shape_cast %14 : vector<8x8x128xbf16> to vector<64x128xbf16>
    %c1 = arith.constant 1 : index
    %c0_10 = arith.constant 0 : index
    %c0_11 = arith.constant 0 : index
    %16 = vector.load %arg6[%c1, %c0_10, %c0_11] : memref<9x128x128xbf16, #tpu.memory_space<vmem>>, vector<1x128x128xbf16>
    %17 = vector.shape_cast %16 : vector<1x128x128xbf16> to vector<128x128xbf16>
    %cst_12 = arith.constant dense<0.000000e+00> : vector<64x128xf32>
    %18 = tpu.matmul %15, %17, %cst_12 {dimension_numbers = #tpu.dot_dimension_numbers<[1], [0], [0], [1], [0, 0, 1, 1], [], []>} : vector<64x128xbf16>, vector<128x128xbf16>, vector<64x128xf32> -> vector<64x128xf32>
    %19 = arith.addf %10, %18 : vector<64x128xf32>
    %c0_i32_13 = arith.constant 0 : i32
    %20 = arith.addi %0, %c0_i32_13 : i32
    %c0_14 = arith.constant 0 : index
    %21 = arith.index_cast %20 : i32 to index
    %c1_15 = arith.constant 1 : index
    %c0_16 = arith.constant 0 : index
    %22 = vector.load %arg2[%c0_14, %21, %c1_15, %c0_16] : memref<1x9x9x128xbf16, #tpu.memory_space<vmem>>, vector<1x8x8x128xbf16>
    %23 = vector.shape_cast %22 : vector<1x8x8x128xbf16> to vector<8x8x128xbf16>
    %24 = vector.shape_cast %23 : vector<8x8x128xbf16> to vector<64x128xbf16>
    %c2 = arith.constant 2 : index
    %c0_17 = arith.constant 0 : index
    %c0_18 = arith.constant 0 : index
    %25 = vector.load %arg6[%c2, %c0_17, %c0_18] : memref<9x128x128xbf16, #tpu.memory_space<vmem>>, vector<1x128x128xbf16>
    %26 = vector.shape_cast %25 : vector<1x128x128xbf16> to vector<128x128xbf16>
    %cst_19 = arith.constant dense<0.000000e+00> : vector<64x128xf32>
    %27 = tpu.matmul %24, %26, %cst_19 {dimension_numbers = #tpu.dot_dimension_numbers<[1], [0], [0], [1], [0, 0, 1, 1], [], []>} : vector<64x128xbf16>, vector<128x128xbf16>, vector<64x128xf32> -> vector<64x128xf32>
    %28 = arith.addf %19, %27 : vector<64x128xf32>
    %c0_i32_20 = arith.constant 0 : i32
    %29 = arith.addi %0, %c0_i32_20 : i32
    %c0_21 = arith.constant 0 : index
    %30 = arith.index_cast %29 : i32 to index
    %c0_22 = arith.constant 0 : index
    %c0_23 = arith.constant 0 : index
    %31 = vector.load %arg4[%c0_21, %30, %c0_22, %c0_23] : memref<1x9x9x128xbf16, #tpu.memory_space<vmem>>, vector<1x8x8x128xbf16>
    %32 = vector.shape_cast %31 : vector<1x8x8x128xbf16> to vector<8x8x128xbf16>
    %33 = vector.shape_cast %32 : vector<8x8x128xbf16> to vector<64x128xbf16>
    %c3 = arith.constant 3 : index
    %c0_24 = arith.constant 0 : index
    %c0_25 = arith.constant 0 : index
    %34 = vector.load %arg6[%c3, %c0_24, %c0_25] : memref<9x128x128xbf16, #tpu.memory_space<vmem>>, vector<1x128x128xbf16>
    %35 = vector.shape_cast %34 : vector<1x128x128xbf16> to vector<128x128xbf16>
    %cst_26 = arith.constant dense<0.000000e+00> : vector<64x128xf32>
    %36 = tpu.matmul %33, %35, %cst_26 {dimension_numbers = #tpu.dot_dimension_numbers<[1], [0], [0], [1], [0, 0, 1, 1], [], []>} : vector<64x128xbf16>, vector<128x128xbf16>, vector<64x128xf32> -> vector<64x128xf32>
    %37 = arith.addf %28, %36 : vector<64x128xf32>
    %c0_i32_27 = arith.constant 0 : i32
    %38 = arith.addi %0, %c0_i32_27 : i32
    %c0_28 = arith.constant 0 : index
    %39 = arith.index_cast %38 : i32 to index
    %c0_29 = arith.constant 0 : index
    %c0_30 = arith.constant 0 : index
    %40 = vector.load %arg5[%c0_28, %39, %c0_29, %c0_30] : memref<1x9x9x128xbf16, #tpu.memory_space<vmem>>, vector<1x8x8x128xbf16>
    %41 = vector.shape_cast %40 : vector<1x8x8x128xbf16> to vector<8x8x128xbf16>
    %42 = vector.shape_cast %41 : vector<8x8x128xbf16> to vector<64x128xbf16>
    %c4 = arith.constant 4 : index
    %c0_31 = arith.constant 0 : index
    %c0_32 = arith.constant 0 : index
    %43 = vector.load %arg6[%c4, %c0_31, %c0_32] : memref<9x128x128xbf16, #tpu.memory_space<vmem>>, vector<1x128x128xbf16>
    %44 = vector.shape_cast %43 : vector<1x128x128xbf16> to vector<128x128xbf16>
    %cst_33 = arith.constant dense<0.000000e+00> : vector<64x128xf32>
    %45 = tpu.matmul %42, %44, %cst_33 {dimension_numbers = #tpu.dot_dimension_numbers<[1], [0], [0], [1], [0, 0, 1, 1], [], []>} : vector<64x128xbf16>, vector<128x128xbf16>, vector<64x128xf32> -> vector<64x128xf32>
    %46 = arith.addf %37, %45 : vector<64x128xf32>
    %c0_i32_34 = arith.constant 0 : i32
    %47 = arith.addi %0, %c0_i32_34 : i32
    %c0_35 = arith.constant 0 : index
    %48 = arith.index_cast %47 : i32 to index
    %c1_36 = arith.constant 1 : index
    %c0_37 = arith.constant 0 : index
    %49 = vector.load %arg4[%c0_35, %48, %c1_36, %c0_37] : memref<1x9x9x128xbf16, #tpu.memory_space<vmem>>, vector<1x8x8x128xbf16>
    %50 = vector.shape_cast %49 : vector<1x8x8x128xbf16> to vector<8x8x128xbf16>
    %51 = vector.shape_cast %50 : vector<8x8x128xbf16> to vector<64x128xbf16>
    %c5 = arith.constant 5 : index
    %c0_38 = arith.constant 0 : index
    %c0_39 = arith.constant 0 : index
    %52 = vector.load %arg6[%c5, %c0_38, %c0_39] : memref<9x128x128xbf16, #tpu.memory_space<vmem>>, vector<1x128x128xbf16>
    %53 = vector.shape_cast %52 : vector<1x128x128xbf16> to vector<128x128xbf16>
    %cst_40 = arith.constant dense<0.000000e+00> : vector<64x128xf32>
    %54 = tpu.matmul %51, %53, %cst_40 {dimension_numbers = #tpu.dot_dimension_numbers<[1], [0], [0], [1], [0, 0, 1, 1], [], []>} : vector<64x128xbf16>, vector<128x128xbf16>, vector<64x128xf32> -> vector<64x128xf32>
    %55 = arith.addf %46, %54 : vector<64x128xf32>
    %c1_i32 = arith.constant 1 : i32
    %56 = arith.addi %0, %c1_i32 : i32
    %c0_41 = arith.constant 0 : index
    %57 = arith.index_cast %56 : i32 to index
    %c0_42 = arith.constant 0 : index
    %c0_43 = arith.constant 0 : index
    %58 = vector.load %arg2[%c0_41, %57, %c0_42, %c0_43] : memref<1x9x9x128xbf16, #tpu.memory_space<vmem>>, vector<1x8x8x128xbf16>
    %59 = vector.shape_cast %58 : vector<1x8x8x128xbf16> to vector<8x8x128xbf16>
    %60 = vector.shape_cast %59 : vector<8x8x128xbf16> to vector<64x128xbf16>
    %c6 = arith.constant 6 : index
    %c0_44 = arith.constant 0 : index
    %c0_45 = arith.constant 0 : index
    %61 = vector.load %arg6[%c6, %c0_44, %c0_45] : memref<9x128x128xbf16, #tpu.memory_space<vmem>>, vector<1x128x128xbf16>
    %62 = vector.shape_cast %61 : vector<1x128x128xbf16> to vector<128x128xbf16>
    %cst_46 = arith.constant dense<0.000000e+00> : vector<64x128xf32>
    %63 = tpu.matmul %60, %62, %cst_46 {dimension_numbers = #tpu.dot_dimension_numbers<[1], [0], [0], [1], [0, 0, 1, 1], [], []>} : vector<64x128xbf16>, vector<128x128xbf16>, vector<64x128xf32> -> vector<64x128xf32>
    %64 = arith.addf %55, %63 : vector<64x128xf32>
    %c1_i32_47 = arith.constant 1 : i32
    %65 = arith.addi %0, %c1_i32_47 : i32
    %c0_48 = arith.constant 0 : index
    %66 = arith.index_cast %65 : i32 to index
    %c0_49 = arith.constant 0 : index
    %c0_50 = arith.constant 0 : index
    %67 = vector.load %arg3[%c0_48, %66, %c0_49, %c0_50] : memref<1x9x9x128xbf16, #tpu.memory_space<vmem>>, vector<1x8x8x128xbf16>
    %68 = vector.shape_cast %67 : vector<1x8x8x128xbf16> to vector<8x8x128xbf16>
    %69 = vector.shape_cast %68 : vector<8x8x128xbf16> to vector<64x128xbf16>
    %c7 = arith.constant 7 : index
    %c0_51 = arith.constant 0 : index
    %c0_52 = arith.constant 0 : index
    %70 = vector.load %arg6[%c7, %c0_51, %c0_52] : memref<9x128x128xbf16, #tpu.memory_space<vmem>>, vector<1x128x128xbf16>
    %71 = vector.shape_cast %70 : vector<1x128x128xbf16> to vector<128x128xbf16>
    %cst_53 = arith.constant dense<0.000000e+00> : vector<64x128xf32>
    %72 = tpu.matmul %69, %71, %cst_53 {dimension_numbers = #tpu.dot_dimension_numbers<[1], [0], [0], [1], [0, 0, 1, 1], [], []>} : vector<64x128xbf16>, vector<128x128xbf16>, vector<64x128xf32> -> vector<64x128xf32>
    %73 = arith.addf %64, %72 : vector<64x128xf32>
    %c1_i32_54 = arith.constant 1 : i32
    %74 = arith.addi %0, %c1_i32_54 : i32
    %c0_55 = arith.constant 0 : index
    %75 = arith.index_cast %74 : i32 to index
    %c1_56 = arith.constant 1 : index
    %c0_57 = arith.constant 0 : index
    %76 = vector.load %arg2[%c0_55, %75, %c1_56, %c0_57] : memref<1x9x9x128xbf16, #tpu.memory_space<vmem>>, vector<1x8x8x128xbf16>
    %77 = vector.shape_cast %76 : vector<1x8x8x128xbf16> to vector<8x8x128xbf16>
    %78 = vector.shape_cast %77 : vector<8x8x128xbf16> to vector<64x128xbf16>
    %c8 = arith.constant 8 : index
    %c0_58 = arith.constant 0 : index
    %c0_59 = arith.constant 0 : index
    %79 = vector.load %arg6[%c8, %c0_58, %c0_59] : memref<9x128x128xbf16, #tpu.memory_space<vmem>>, vector<1x128x128xbf16>
    %80 = vector.shape_cast %79 : vector<1x128x128xbf16> to vector<128x128xbf16>
    %cst_60 = arith.constant dense<0.000000e+00> : vector<64x128xf32>
    %81 = tpu.matmul %78, %80, %cst_60 {dimension_numbers = #tpu.dot_dimension_numbers<[1], [0], [0], [1], [0, 0, 1, 1], [], []>} : vector<64x128xbf16>, vector<128x128xbf16>, vector<64x128xf32> -> vector<64x128xf32>
    %82 = arith.addf %73, %81 : vector<64x128xf32>
    %c0_61 = arith.constant 0 : index
    %c0_62 = arith.constant 0 : index
    %83 = vector.load %arg7[%c0_61, %c0_62] : memref<1x128xf32, #tpu.memory_space<vmem>>, vector<1x128xf32>
    %84 = vector.shape_cast %83 : vector<1x128xf32> to vector<128xf32>
    %85 = vector.shape_cast %84 : vector<128xf32> to vector<1x128xf32>
    %86 = vector.broadcast %85 : vector<1x128xf32> to vector<64x128xf32>
    %87 = arith.mulf %82, %86 : vector<64x128xf32>
    %c0_63 = arith.constant 0 : index
    %c0_64 = arith.constant 0 : index
    %88 = vector.load %arg8[%c0_63, %c0_64] : memref<1x128xf32, #tpu.memory_space<vmem>>, vector<1x128xf32>
    %89 = vector.shape_cast %88 : vector<1x128xf32> to vector<128xf32>
    %90 = vector.shape_cast %89 : vector<128xf32> to vector<1x128xf32>
    %91 = vector.broadcast %90 : vector<1x128xf32> to vector<64x128xf32>
    %92 = arith.addf %87, %91 : vector<64x128xf32>
    %cst_65 = arith.constant 0.000000e+00 : f32
    %93 = vector.broadcast %cst_65 : f32 to vector<64x128xf32>
    %94 = arith.maximumf %92, %93 : vector<64x128xf32>
    %95 = vector.shape_cast %94 : vector<64x128xf32> to vector<1x8x8x128xf32>
    %96 = arith.truncf %95 : vector<1x8x8x128xf32> to vector<1x8x8x128xbf16>
    %c0_66 = arith.constant 0 : index
    %c0_67 = arith.constant 0 : index
    %c0_68 = arith.constant 0 : index
    %c0_69 = arith.constant 0 : index
    %97 = vector.load %arg10[%c0_66, %c0_67, %c0_68, %c0_69] : memref<1x8x8x128xbf16, #tpu.memory_space<vmem>>, vector<1x8x8x128xbf16>
    tpu.vector_store %arg10[%c0_66, %c0_67, %c0_68, %c0_69], %96 {strides = array<i32>} : memref<1x8x8x128xbf16, #tpu.memory_space<vmem>>, vector<1x8x8x128xbf16>,
    %c0_70 = arith.constant 0 : index
    %98 = arith.index_cast %0 : i32 to index
    %c0_71 = arith.constant 0 : index
    %c0_72 = arith.constant 0 : index
    %99 = vector.load %arg5[%c0_70, %98, %c0_71, %c0_72] : memref<1x9x9x128xbf16, #tpu.memory_space<vmem>>, vector<1x8x8x128xbf16>
    %100 = vector.shape_cast %99 : vector<1x8x8x128xbf16> to vector<8x8x128xbf16>
    %101 = vector.shape_cast %100 : vector<8x8x128xbf16> to vector<64x128xbf16>
    %c0_73 = arith.constant 0 : index
    %c0_74 = arith.constant 0 : index
    %102 = vector.load %arg9[%c0_73, %c0_74] : memref<128x128xbf16, #tpu.memory_space<vmem>>, vector<128x128xbf16>
    %cst_75 = arith.constant dense<0.000000e+00> : vector<64x128xf32>
    %103 = tpu.matmul %101, %102, %cst_75 {dimension_numbers = #tpu.dot_dimension_numbers<[1], [0], [0], [1], [0, 0, 1, 1], [], []>} : vector<64x128xbf16>, vector<128x128xbf16>, vector<64x128xf32> -> vector<64x128xf32>
    %104 = vector.shape_cast %103 : vector<64x128xf32> to vector<1x8x8x128xf32>
    %105 = arith.truncf %104 : vector<1x8x8x128xf32> to vector<1x8x8x128xbf16>
    %c0_76 = arith.constant 0 : index
    %c0_77 = arith.constant 0 : index
    %c0_78 = arith.constant 0 : index
    %c0_79 = arith.constant 0 : index
    %106 = vector.load %arg11[%c0_76, %c0_77, %c0_78, %c0_79] : memref<1x8x8x128xbf16, #tpu.memory_space<vmem>>, vector<1x8x8x128xbf16>
    tpu.vector_store %arg11[%c0_76, %c0_77, %c0_78, %c0_79], %105 {strides = array<i32>} : memref<1x8x8x128xbf16, #tpu.memory_space<vmem>>, vector<1x8x8x128xbf16>,
    return
  }
  func.func @transform_0(%arg0: i32, %arg1: i32) -> (i32, i32, i32, i32) {
    %c0_i32 = arith.constant 0 : i32
    %c0_i32_0 = arith.constant 0 : i32
    %c0_i32_1 = arith.constant 0 : i32
    %c0_i32_2 = arith.constant 0 : i32
    return %arg0, %c0_i32, %c0_i32_0, %c0_i32_1 : i32, i32, i32, i32
  }
  func.func @transform_1(%arg0: i32, %arg1: i32) -> (i32, i32, i32, i32) {
    %c0_i32 = arith.constant 0 : i32
    %c0_i32_0 = arith.constant 0 : i32
    %c0_i32_1 = arith.constant 0 : i32
    %c0_i32_2 = arith.constant 0 : i32
    return %arg0, %c0_i32, %c0_i32_0, %c0_i32_1 : i32, i32, i32, i32
  }
  func.func @transform_2(%arg0: i32, %arg1: i32) -> (i32, i32, i32, i32) {
    %c0_i32 = arith.constant 0 : i32
    %c0_i32_0 = arith.constant 0 : i32
    %c0_i32_1 = arith.constant 0 : i32
    %c0_i32_2 = arith.constant 0 : i32
    return %arg0, %c0_i32, %c0_i32_0, %c0_i32_1 : i32, i32, i32, i32
  }
  func.func @transform_3(%arg0: i32, %arg1: i32) -> (i32, i32, i32, i32) {
    %c0_i32 = arith.constant 0 : i32
    %c0_i32_0 = arith.constant 0 : i32
    %c0_i32_1 = arith.constant 0 : i32
    %c0_i32_2 = arith.constant 0 : i32
    return %arg0, %c0_i32, %c0_i32_0, %c0_i32_1 : i32, i32, i32, i32
  }
  func.func @transform_4(%arg0: i32, %arg1: i32) -> (i32, i32, i32) {
    %c0_i32 = arith.constant 0 : i32
    %c0_i32_0 = arith.constant 0 : i32
    %c0_i32_1 = arith.constant 0 : i32
    %c0_i32_2 = arith.constant 0 : i32
    return %c0_i32, %c0_i32_0, %c0_i32_1 : i32, i32, i32
  }
  func.func @transform_5(%arg0: i32, %arg1: i32) -> (i32, i32) {
    %c0_i32 = arith.constant 0 : i32
    %c0_i32_0 = arith.constant 0 : i32
    %c0_i32_1 = arith.constant 0 : i32
    return %c0_i32, %c0_i32_0 : i32, i32
  }
  func.func @transform_6(%arg0: i32, %arg1: i32) -> (i32, i32) {
    %c0_i32 = arith.constant 0 : i32
    %c0_i32_0 = arith.constant 0 : i32
    %c0_i32_1 = arith.constant 0 : i32
    return %c0_i32, %c0_i32_0 : i32, i32
  }
  func.func @transform_7(%arg0: i32, %arg1: i32) -> (i32, i32) {
    %c0_i32 = arith.constant 0 : i32
    %c0_i32_0 = arith.constant 0 : i32
    %c0_i32_1 = arith.constant 0 : i32
    return %c0_i32, %c0_i32_0 : i32, i32
  }
  func.func @transform_8(%arg0: i32, %arg1: i32) -> (i32, i32, i32, i32) {
    %c0_i32 = arith.constant 0 : i32
    %c0_i32_0 = arith.constant 0 : i32
    %c0_i32_1 = arith.constant 0 : i32
    return %arg0, %arg1, %c0_i32, %c0_i32_0 : i32, i32, i32, i32
  }
  func.func @transform_9(%arg0: i32, %arg1: i32) -> (i32, i32, i32, i32) {
    %c0_i32 = arith.constant 0 : i32
    %c0_i32_0 = arith.constant 0 : i32
    %c0_i32_1 = arith.constant 0 : i32
    return %arg0, %arg1, %c0_i32, %c0_i32_0 : i32, i32, i32, i32
  }
}

module attributes {stable_mosaic.version = 11 : i64} {
  func.func @kernel(%arg0: i32, %arg1: i32, %arg2: memref<1x8x8x128xbf16, #tpu.memory_space<vmem>>, %arg3: memref<9x128x128xbf16, #tpu.memory_space<vmem>>, %arg4: memref<1x128xf32, #tpu.memory_space<vmem>>, %arg5: memref<1x128xf32, #tpu.memory_space<vmem>>, %arg6: memref<1x128xf32, #tpu.memory_space<vmem>>, %arg7: memref<1x128xf32, #tpu.memory_space<vmem>>, %arg8: memref<1x8x8x128xbf16, #tpu.memory_space<vmem>>, %arg9: memref<10x10x128xf32, #tpu.memory_space<vmem>>) attributes {dimension_semantics = [#tpu.dimension_semantics<parallel>, #tpu.dimension_semantics<arbitrary>], iteration_bounds = array<i64: 2, 1>, scalar_prefetch = 0 : i64, scratch_operands = 1 : i64, tpu.core_type = #tpu.core_type<tc>, window_params = [{transform_indices = @transform_0, window_bounds = array<i64: 1, 8, 8, 128>}, {pipeline_mode = #tpu.pipeline_mode<synchronous>, transform_indices = @transform_1, window_bounds = array<i64: 9, 128, 128>}, {pipeline_mode = #tpu.pipeline_mode<synchronous>, transform_indices = @transform_2, window_bounds = array<i64: 1, 128>}, {pipeline_mode = #tpu.pipeline_mode<synchronous>, transform_indices = @transform_3, window_bounds = array<i64: 1, 128>}, {pipeline_mode = #tpu.pipeline_mode<synchronous>, transform_indices = @transform_4, window_bounds = array<i64: 1, 128>}, {pipeline_mode = #tpu.pipeline_mode<synchronous>, transform_indices = @transform_5, window_bounds = array<i64: 1, 128>}, {transform_indices = @transform_6, window_bounds = array<i64: 1, 8, 8, 128>}]} {
    %c8_i32 = arith.constant 8 : i32
    %0 = arith.muli %arg1, %c8_i32 : i32
    %c0_i32 = arith.constant 0 : i32
    %1 = arith.cmpi eq, %arg1, %c0_i32 : i32
    %2 = arith.extui %1 : i1 to i32
    %c0_i32_0 = arith.constant 0 : i32
    %3 = arith.cmpi ne, %2, %c0_i32_0 : i32
    scf.if %3 {
      %cst_62 = arith.constant 0.000000e+00 : f32
      %101 = vector.broadcast %cst_62 : f32 to vector<10x10x128xf32>
      %c0_63 = arith.constant 0 : index
      %c0_64 = arith.constant 0 : index
      %c0_65 = arith.constant 0 : index
      %102 = vector.load %arg9[%c0_63, %c0_64, %c0_65] : memref<10x10x128xf32, #tpu.memory_space<vmem>>, vector<10x10x128xf32>
      tpu.vector_store %arg9[%c0_63, %c0_64, %c0_65], %101 {strides = array<i32>} : memref<10x10x128xf32, #tpu.memory_space<vmem>>, vector<10x10x128xf32>,
      %c0_66 = arith.constant 0 : index
      %c0_67 = arith.constant 0 : index
      %c0_68 = arith.constant 0 : index
      %c0_69 = arith.constant 0 : index
      %103 = vector.load %arg2[%c0_66, %c0_67, %c0_68, %c0_69] : memref<1x8x8x128xbf16, #tpu.memory_space<vmem>>, vector<1x8x8x128xbf16>
      %104 = vector.shape_cast %103 : vector<1x8x8x128xbf16> to vector<8x8x128xbf16>
      %105 = arith.extf %104 : vector<8x8x128xbf16> to vector<8x8x128xf32>
      %c0_70 = arith.constant 0 : index
      %c0_71 = arith.constant 0 : index
      %106 = vector.load %arg4[%c0_70, %c0_71] : memref<1x128xf32, #tpu.memory_space<vmem>>, vector<1x128xf32>
      %107 = vector.shape_cast %106 : vector<1x128xf32> to vector<128xf32>
      %108 = vector.shape_cast %107 : vector<128xf32> to vector<1x1x128xf32>
      %109 = vector.broadcast %108 : vector<1x1x128xf32> to vector<8x8x128xf32>
      %110 = arith.mulf %105, %109 : vector<8x8x128xf32>
      %c0_72 = arith.constant 0 : index
      %c0_73 = arith.constant 0 : index
      %111 = vector.load %arg5[%c0_72, %c0_73] : memref<1x128xf32, #tpu.memory_space<vmem>>, vector<1x128xf32>
      %112 = vector.shape_cast %111 : vector<1x128xf32> to vector<128xf32>
      %113 = vector.shape_cast %112 : vector<128xf32> to vector<1x1x128xf32>
      %114 = vector.broadcast %113 : vector<1x1x128xf32> to vector<8x8x128xf32>
      %115 = arith.addf %110, %114 : vector<8x8x128xf32>
      %cst_74 = arith.constant 0.000000e+00 : f32
      %116 = vector.broadcast %cst_74 : f32 to vector<8x8x128xf32>
      %117 = arith.maximumf %115, %116 : vector<8x8x128xf32>
      %c1_75 = arith.constant 1 : index
      %c1_76 = arith.constant 1 : index
      %c0_77 = arith.constant 0 : index
      %118 = vector.load %arg9[%c1_75, %c1_76, %c0_77] : memref<10x10x128xf32, #tpu.memory_space<vmem>>, vector<8x8x128xf32>
      tpu.vector_store %arg9[%c1_75, %c1_76, %c0_77], %117 {strides = array<i32>} : memref<10x10x128xf32, #tpu.memory_space<vmem>>, vector<8x8x128xf32>,
    } else {
    }
    %cst = arith.constant 0.000000e+00 : f32
    %4 = vector.broadcast %cst : f32 to vector<64x128xf32>
    %c0_i32_1 = arith.constant 0 : i32
    %5 = arith.addi %0, %c0_i32_1 : i32
    %6 = arith.index_cast %5 : i32 to index
    %c0 = arith.constant 0 : index
    %c0_2 = arith.constant 0 : index
    %7 = vector.load %arg9[%6, %c0, %c0_2] : memref<10x10x128xf32, #tpu.memory_space<vmem>>, vector<8x8x128xf32>
    %8 = vector.shape_cast %7 : vector<8x8x128xf32> to vector<64x128xf32>
    %9 = arith.truncf %8 : vector<64x128xf32> to vector<64x128xbf16>
    %c0_3 = arith.constant 0 : index
    %c0_4 = arith.constant 0 : index
    %c0_5 = arith.constant 0 : index
    %10 = vector.load %arg3[%c0_3, %c0_4, %c0_5] : memref<9x128x128xbf16, #tpu.memory_space<vmem>>, vector<1x128x128xbf16>
    %11 = vector.shape_cast %10 : vector<1x128x128xbf16> to vector<128x128xbf16>
    %cst_6 = arith.constant dense<0.000000e+00> : vector<64x128xf32>
    %12 = tpu.matmul %9, %11, %cst_6 {dimension_numbers = #tpu.dot_dimension_numbers<[1], [0], [0], [1], [0, 0, 1, 1], [], []>} : vector<64x128xbf16>, vector<128x128xbf16>, vector<64x128xf32> -> vector<64x128xf32>
    %13 = arith.addf %4, %12 : vector<64x128xf32>
    %c0_i32_7 = arith.constant 0 : i32
    %14 = arith.addi %0, %c0_i32_7 : i32
    %15 = arith.index_cast %14 : i32 to index
    %c1 = arith.constant 1 : index
    %c0_8 = arith.constant 0 : index
    %16 = vector.load %arg9[%15, %c1, %c0_8] : memref<10x10x128xf32, #tpu.memory_space<vmem>>, vector<8x8x128xf32>
    %17 = vector.shape_cast %16 : vector<8x8x128xf32> to vector<64x128xf32>
    %18 = arith.truncf %17 : vector<64x128xf32> to vector<64x128xbf16>
    %c1_9 = arith.constant 1 : index
    %c0_10 = arith.constant 0 : index
    %c0_11 = arith.constant 0 : index
    %19 = vector.load %arg3[%c1_9, %c0_10, %c0_11] : memref<9x128x128xbf16, #tpu.memory_space<vmem>>, vector<1x128x128xbf16>
    %20 = vector.shape_cast %19 : vector<1x128x128xbf16> to vector<128x128xbf16>
    %cst_12 = arith.constant dense<0.000000e+00> : vector<64x128xf32>
    %21 = tpu.matmul %18, %20, %cst_12 {dimension_numbers = #tpu.dot_dimension_numbers<[1], [0], [0], [1], [0, 0, 1, 1], [], []>} : vector<64x128xbf16>, vector<128x128xbf16>, vector<64x128xf32> -> vector<64x128xf32>
    %22 = arith.addf %13, %21 : vector<64x128xf32>
    %c0_i32_13 = arith.constant 0 : i32
    %23 = arith.addi %0, %c0_i32_13 : i32
    %24 = arith.index_cast %23 : i32 to index
    %c2 = arith.constant 2 : index
    %c0_14 = arith.constant 0 : index
    %25 = vector.load %arg9[%24, %c2, %c0_14] : memref<10x10x128xf32, #tpu.memory_space<vmem>>, vector<8x8x128xf32>
    %26 = vector.shape_cast %25 : vector<8x8x128xf32> to vector<64x128xf32>
    %27 = arith.truncf %26 : vector<64x128xf32> to vector<64x128xbf16>
    %c2_15 = arith.constant 2 : index
    %c0_16 = arith.constant 0 : index
    %c0_17 = arith.constant 0 : index
    %28 = vector.load %arg3[%c2_15, %c0_16, %c0_17] : memref<9x128x128xbf16, #tpu.memory_space<vmem>>, vector<1x128x128xbf16>
    %29 = vector.shape_cast %28 : vector<1x128x128xbf16> to vector<128x128xbf16>
    %cst_18 = arith.constant dense<0.000000e+00> : vector<64x128xf32>
    %30 = tpu.matmul %27, %29, %cst_18 {dimension_numbers = #tpu.dot_dimension_numbers<[1], [0], [0], [1], [0, 0, 1, 1], [], []>} : vector<64x128xbf16>, vector<128x128xbf16>, vector<64x128xf32> -> vector<64x128xf32>
    %31 = arith.addf %22, %30 : vector<64x128xf32>
    %c1_i32 = arith.constant 1 : i32
    %32 = arith.addi %0, %c1_i32 : i32
    %33 = arith.index_cast %32 : i32 to index
    %c0_19 = arith.constant 0 : index
    %c0_20 = arith.constant 0 : index
    %34 = vector.load %arg9[%33, %c0_19, %c0_20] : memref<10x10x128xf32, #tpu.memory_space<vmem>>, vector<8x8x128xf32>
    %35 = vector.shape_cast %34 : vector<8x8x128xf32> to vector<64x128xf32>
    %36 = arith.truncf %35 : vector<64x128xf32> to vector<64x128xbf16>
    %c3 = arith.constant 3 : index
    %c0_21 = arith.constant 0 : index
    %c0_22 = arith.constant 0 : index
    %37 = vector.load %arg3[%c3, %c0_21, %c0_22] : memref<9x128x128xbf16, #tpu.memory_space<vmem>>, vector<1x128x128xbf16>
    %38 = vector.shape_cast %37 : vector<1x128x128xbf16> to vector<128x128xbf16>
    %cst_23 = arith.constant dense<0.000000e+00> : vector<64x128xf32>
    %39 = tpu.matmul %36, %38, %cst_23 {dimension_numbers = #tpu.dot_dimension_numbers<[1], [0], [0], [1], [0, 0, 1, 1], [], []>} : vector<64x128xbf16>, vector<128x128xbf16>, vector<64x128xf32> -> vector<64x128xf32>
    %40 = arith.addf %31, %39 : vector<64x128xf32>
    %c1_i32_24 = arith.constant 1 : i32
    %41 = arith.addi %0, %c1_i32_24 : i32
    %42 = arith.index_cast %41 : i32 to index
    %c1_25 = arith.constant 1 : index
    %c0_26 = arith.constant 0 : index
    %43 = vector.load %arg9[%42, %c1_25, %c0_26] : memref<10x10x128xf32, #tpu.memory_space<vmem>>, vector<8x8x128xf32>
    %44 = vector.shape_cast %43 : vector<8x8x128xf32> to vector<64x128xf32>
    %45 = arith.truncf %44 : vector<64x128xf32> to vector<64x128xbf16>
    %c4 = arith.constant 4 : index
    %c0_27 = arith.constant 0 : index
    %c0_28 = arith.constant 0 : index
    %46 = vector.load %arg3[%c4, %c0_27, %c0_28] : memref<9x128x128xbf16, #tpu.memory_space<vmem>>, vector<1x128x128xbf16>
    %47 = vector.shape_cast %46 : vector<1x128x128xbf16> to vector<128x128xbf16>
    %cst_29 = arith.constant dense<0.000000e+00> : vector<64x128xf32>
    %48 = tpu.matmul %45, %47, %cst_29 {dimension_numbers = #tpu.dot_dimension_numbers<[1], [0], [0], [1], [0, 0, 1, 1], [], []>} : vector<64x128xbf16>, vector<128x128xbf16>, vector<64x128xf32> -> vector<64x128xf32>
    %49 = arith.addf %40, %48 : vector<64x128xf32>
    %c1_i32_30 = arith.constant 1 : i32
    %50 = arith.addi %0, %c1_i32_30 : i32
    %51 = arith.index_cast %50 : i32 to index
    %c2_31 = arith.constant 2 : index
    %c0_32 = arith.constant 0 : index
    %52 = vector.load %arg9[%51, %c2_31, %c0_32] : memref<10x10x128xf32, #tpu.memory_space<vmem>>, vector<8x8x128xf32>
    %53 = vector.shape_cast %52 : vector<8x8x128xf32> to vector<64x128xf32>
    %54 = arith.truncf %53 : vector<64x128xf32> to vector<64x128xbf16>
    %c5 = arith.constant 5 : index
    %c0_33 = arith.constant 0 : index
    %c0_34 = arith.constant 0 : index
    %55 = vector.load %arg3[%c5, %c0_33, %c0_34] : memref<9x128x128xbf16, #tpu.memory_space<vmem>>, vector<1x128x128xbf16>
    %56 = vector.shape_cast %55 : vector<1x128x128xbf16> to vector<128x128xbf16>
    %cst_35 = arith.constant dense<0.000000e+00> : vector<64x128xf32>
    %57 = tpu.matmul %54, %56, %cst_35 {dimension_numbers = #tpu.dot_dimension_numbers<[1], [0], [0], [1], [0, 0, 1, 1], [], []>} : vector<64x128xbf16>, vector<128x128xbf16>, vector<64x128xf32> -> vector<64x128xf32>
    %58 = arith.addf %49, %57 : vector<64x128xf32>
    %c2_i32 = arith.constant 2 : i32
    %59 = arith.addi %0, %c2_i32 : i32
    %60 = arith.index_cast %59 : i32 to index
    %c0_36 = arith.constant 0 : index
    %c0_37 = arith.constant 0 : index
    %61 = vector.load %arg9[%60, %c0_36, %c0_37] : memref<10x10x128xf32, #tpu.memory_space<vmem>>, vector<8x8x128xf32>
    %62 = vector.shape_cast %61 : vector<8x8x128xf32> to vector<64x128xf32>
    %63 = arith.truncf %62 : vector<64x128xf32> to vector<64x128xbf16>
    %c6 = arith.constant 6 : index
    %c0_38 = arith.constant 0 : index
    %c0_39 = arith.constant 0 : index
    %64 = vector.load %arg3[%c6, %c0_38, %c0_39] : memref<9x128x128xbf16, #tpu.memory_space<vmem>>, vector<1x128x128xbf16>
    %65 = vector.shape_cast %64 : vector<1x128x128xbf16> to vector<128x128xbf16>
    %cst_40 = arith.constant dense<0.000000e+00> : vector<64x128xf32>
    %66 = tpu.matmul %63, %65, %cst_40 {dimension_numbers = #tpu.dot_dimension_numbers<[1], [0], [0], [1], [0, 0, 1, 1], [], []>} : vector<64x128xbf16>, vector<128x128xbf16>, vector<64x128xf32> -> vector<64x128xf32>
    %67 = arith.addf %58, %66 : vector<64x128xf32>
    %c2_i32_41 = arith.constant 2 : i32
    %68 = arith.addi %0, %c2_i32_41 : i32
    %69 = arith.index_cast %68 : i32 to index
    %c1_42 = arith.constant 1 : index
    %c0_43 = arith.constant 0 : index
    %70 = vector.load %arg9[%69, %c1_42, %c0_43] : memref<10x10x128xf32, #tpu.memory_space<vmem>>, vector<8x8x128xf32>
    %71 = vector.shape_cast %70 : vector<8x8x128xf32> to vector<64x128xf32>
    %72 = arith.truncf %71 : vector<64x128xf32> to vector<64x128xbf16>
    %c7 = arith.constant 7 : index
    %c0_44 = arith.constant 0 : index
    %c0_45 = arith.constant 0 : index
    %73 = vector.load %arg3[%c7, %c0_44, %c0_45] : memref<9x128x128xbf16, #tpu.memory_space<vmem>>, vector<1x128x128xbf16>
    %74 = vector.shape_cast %73 : vector<1x128x128xbf16> to vector<128x128xbf16>
    %cst_46 = arith.constant dense<0.000000e+00> : vector<64x128xf32>
    %75 = tpu.matmul %72, %74, %cst_46 {dimension_numbers = #tpu.dot_dimension_numbers<[1], [0], [0], [1], [0, 0, 1, 1], [], []>} : vector<64x128xbf16>, vector<128x128xbf16>, vector<64x128xf32> -> vector<64x128xf32>
    %76 = arith.addf %67, %75 : vector<64x128xf32>
    %c2_i32_47 = arith.constant 2 : i32
    %77 = arith.addi %0, %c2_i32_47 : i32
    %78 = arith.index_cast %77 : i32 to index
    %c2_48 = arith.constant 2 : index
    %c0_49 = arith.constant 0 : index
    %79 = vector.load %arg9[%78, %c2_48, %c0_49] : memref<10x10x128xf32, #tpu.memory_space<vmem>>, vector<8x8x128xf32>
    %80 = vector.shape_cast %79 : vector<8x8x128xf32> to vector<64x128xf32>
    %81 = arith.truncf %80 : vector<64x128xf32> to vector<64x128xbf16>
    %c8 = arith.constant 8 : index
    %c0_50 = arith.constant 0 : index
    %c0_51 = arith.constant 0 : index
    %82 = vector.load %arg3[%c8, %c0_50, %c0_51] : memref<9x128x128xbf16, #tpu.memory_space<vmem>>, vector<1x128x128xbf16>
    %83 = vector.shape_cast %82 : vector<1x128x128xbf16> to vector<128x128xbf16>
    %cst_52 = arith.constant dense<0.000000e+00> : vector<64x128xf32>
    %84 = tpu.matmul %81, %83, %cst_52 {dimension_numbers = #tpu.dot_dimension_numbers<[1], [0], [0], [1], [0, 0, 1, 1], [], []>} : vector<64x128xbf16>, vector<128x128xbf16>, vector<64x128xf32> -> vector<64x128xf32>
    %85 = arith.addf %76, %84 : vector<64x128xf32>
    %c0_53 = arith.constant 0 : index
    %c0_54 = arith.constant 0 : index
    %86 = vector.load %arg6[%c0_53, %c0_54] : memref<1x128xf32, #tpu.memory_space<vmem>>, vector<1x128xf32>
    %87 = vector.shape_cast %86 : vector<1x128xf32> to vector<128xf32>
    %88 = vector.shape_cast %87 : vector<128xf32> to vector<1x128xf32>
    %89 = vector.broadcast %88 : vector<1x128xf32> to vector<64x128xf32>
    %90 = arith.mulf %85, %89 : vector<64x128xf32>
    %c0_55 = arith.constant 0 : index
    %c0_56 = arith.constant 0 : index
    %91 = vector.load %arg7[%c0_55, %c0_56] : memref<1x128xf32, #tpu.memory_space<vmem>>, vector<1x128xf32>
    %92 = vector.shape_cast %91 : vector<1x128xf32> to vector<128xf32>
    %93 = vector.shape_cast %92 : vector<128xf32> to vector<1x128xf32>
    %94 = vector.broadcast %93 : vector<1x128xf32> to vector<64x128xf32>
    %95 = arith.addf %90, %94 : vector<64x128xf32>
    %cst_57 = arith.constant 0.000000e+00 : f32
    %96 = vector.broadcast %cst_57 : f32 to vector<64x128xf32>
    %97 = arith.maximumf %95, %96 : vector<64x128xf32>
    %98 = vector.shape_cast %97 : vector<64x128xf32> to vector<1x8x8x128xf32>
    %99 = arith.truncf %98 : vector<1x8x8x128xf32> to vector<1x8x8x128xbf16>
    %c0_58 = arith.constant 0 : index
    %c0_59 = arith.constant 0 : index
    %c0_60 = arith.constant 0 : index
    %c0_61 = arith.constant 0 : index
    %100 = vector.load %arg8[%c0_58, %c0_59, %c0_60, %c0_61] : memref<1x8x8x128xbf16, #tpu.memory_space<vmem>>, vector<1x8x8x128xbf16>
    tpu.vector_store %arg8[%c0_58, %c0_59, %c0_60, %c0_61], %99 {strides = array<i32>} : memref<1x8x8x128xbf16, #tpu.memory_space<vmem>>, vector<1x8x8x128xbf16>,
    return
  }
  func.func @transform_0(%arg0: i32, %arg1: i32) -> (i32, i32, i32, i32) {
    %c0_i32 = arith.constant 0 : i32
    %c0_i32_0 = arith.constant 0 : i32
    %c0_i32_1 = arith.constant 0 : i32
    %c0_i32_2 = arith.constant 0 : i32
    return %arg0, %c0_i32, %c0_i32_0, %c0_i32_1 : i32, i32, i32, i32
  }
  func.func @transform_1(%arg0: i32, %arg1: i32) -> (i32, i32, i32) {
    %c0_i32 = arith.constant 0 : i32
    %c0_i32_0 = arith.constant 0 : i32
    %c0_i32_1 = arith.constant 0 : i32
    %c0_i32_2 = arith.constant 0 : i32
    return %c0_i32, %c0_i32_0, %c0_i32_1 : i32, i32, i32
  }
  func.func @transform_2(%arg0: i32, %arg1: i32) -> (i32, i32) {
    %c0_i32 = arith.constant 0 : i32
    %c0_i32_0 = arith.constant 0 : i32
    %c0_i32_1 = arith.constant 0 : i32
    return %c0_i32, %c0_i32_0 : i32, i32
  }
  func.func @transform_3(%arg0: i32, %arg1: i32) -> (i32, i32) {
    %c0_i32 = arith.constant 0 : i32
    %c0_i32_0 = arith.constant 0 : i32
    %c0_i32_1 = arith.constant 0 : i32
    return %c0_i32, %c0_i32_0 : i32, i32
  }
  func.func @transform_4(%arg0: i32, %arg1: i32) -> (i32, i32) {
    %c0_i32 = arith.constant 0 : i32
    %c0_i32_0 = arith.constant 0 : i32
    %c0_i32_1 = arith.constant 0 : i32
    return %c0_i32, %c0_i32_0 : i32, i32
  }
  func.func @transform_5(%arg0: i32, %arg1: i32) -> (i32, i32) {
    %c0_i32 = arith.constant 0 : i32
    %c0_i32_0 = arith.constant 0 : i32
    %c0_i32_1 = arith.constant 0 : i32
    return %c0_i32, %c0_i32_0 : i32, i32
  }
  func.func @transform_6(%arg0: i32, %arg1: i32) -> (i32, i32, i32, i32) {
    %c0_i32 = arith.constant 0 : i32
    %c0_i32_0 = arith.constant 0 : i32
    %c0_i32_1 = arith.constant 0 : i32
    return %arg0, %arg1, %c0_i32, %c0_i32_0 : i32, i32, i32, i32
  }
}

module attributes {stable_mosaic.version = 11 : i64} {
  func.func @kernel(%arg0: i32, %arg1: i32, %arg2: memref<1x8x8x128xbf16, #tpu.memory_space<vmem>>, %arg3: memref<9x128x128xbf16, #tpu.memory_space<vmem>>, %arg4: memref<1x128xf32, #tpu.memory_space<vmem>>, %arg5: memref<1x128xf32, #tpu.memory_space<vmem>>, %arg6: memref<1x8x8x128xbf16, #tpu.memory_space<vmem>>, %arg7: memref<1x8x8x128xbf16, #tpu.memory_space<vmem>>, %arg8: memref<10x10x128xf32, #tpu.memory_space<vmem>>) attributes {dimension_semantics = [#tpu.dimension_semantics<parallel>, #tpu.dimension_semantics<arbitrary>], iteration_bounds = array<i64: 2, 1>, scalar_prefetch = 0 : i64, scratch_operands = 1 : i64, tpu.core_type = #tpu.core_type<tc>, window_params = [{transform_indices = @transform_0, window_bounds = array<i64: 1, 8, 8, 128>}, {pipeline_mode = #tpu.pipeline_mode<synchronous>, transform_indices = @transform_1, window_bounds = array<i64: 9, 128, 128>}, {pipeline_mode = #tpu.pipeline_mode<synchronous>, transform_indices = @transform_2, window_bounds = array<i64: 1, 128>}, {pipeline_mode = #tpu.pipeline_mode<synchronous>, transform_indices = @transform_3, window_bounds = array<i64: 1, 128>}, {transform_indices = @transform_4, window_bounds = array<i64: 1, 8, 8, 128>}, {transform_indices = @transform_5, window_bounds = array<i64: 1, 8, 8, 128>}]} {
    %c8_i32 = arith.constant 8 : i32
    %0 = arith.muli %arg1, %c8_i32 : i32
    %c0_i32 = arith.constant 0 : i32
    %1 = arith.cmpi eq, %arg1, %c0_i32 : i32
    %2 = arith.extui %1 : i1 to i32
    %c0_i32_0 = arith.constant 0 : i32
    %3 = arith.cmpi ne, %2, %c0_i32_0 : i32
    scf.if %3 {
      %cst_61 = arith.constant 0.000000e+00 : f32
      %93 = vector.broadcast %cst_61 : f32 to vector<10x10x128xf32>
      %c0_62 = arith.constant 0 : index
      %c0_63 = arith.constant 0 : index
      %c0_64 = arith.constant 0 : index
      %94 = vector.load %arg8[%c0_62, %c0_63, %c0_64] : memref<10x10x128xf32, #tpu.memory_space<vmem>>, vector<10x10x128xf32>
      tpu.vector_store %arg8[%c0_62, %c0_63, %c0_64], %93 {strides = array<i32>} : memref<10x10x128xf32, #tpu.memory_space<vmem>>, vector<10x10x128xf32>,
      %c0_65 = arith.constant 0 : index
      %c0_66 = arith.constant 0 : index
      %c0_67 = arith.constant 0 : index
      %c0_68 = arith.constant 0 : index
      %95 = vector.load %arg2[%c0_65, %c0_66, %c0_67, %c0_68] : memref<1x8x8x128xbf16, #tpu.memory_space<vmem>>, vector<1x8x8x128xbf16>
      %96 = vector.shape_cast %95 : vector<1x8x8x128xbf16> to vector<8x8x128xbf16>
      %97 = arith.extf %96 : vector<8x8x128xbf16> to vector<8x8x128xf32>
      %c0_69 = arith.constant 0 : index
      %c0_70 = arith.constant 0 : index
      %98 = vector.load %arg4[%c0_69, %c0_70] : memref<1x128xf32, #tpu.memory_space<vmem>>, vector<1x128xf32>
      %99 = vector.shape_cast %98 : vector<1x128xf32> to vector<128xf32>
      %100 = vector.shape_cast %99 : vector<128xf32> to vector<1x1x128xf32>
      %101 = vector.broadcast %100 : vector<1x1x128xf32> to vector<8x8x128xf32>
      %102 = arith.mulf %97, %101 : vector<8x8x128xf32>
      %c0_71 = arith.constant 0 : index
      %c0_72 = arith.constant 0 : index
      %103 = vector.load %arg5[%c0_71, %c0_72] : memref<1x128xf32, #tpu.memory_space<vmem>>, vector<1x128xf32>
      %104 = vector.shape_cast %103 : vector<1x128xf32> to vector<128xf32>
      %105 = vector.shape_cast %104 : vector<128xf32> to vector<1x1x128xf32>
      %106 = vector.broadcast %105 : vector<1x1x128xf32> to vector<8x8x128xf32>
      %107 = arith.addf %102, %106 : vector<8x8x128xf32>
      %cst_73 = arith.constant 0.000000e+00 : f32
      %108 = vector.broadcast %cst_73 : f32 to vector<8x8x128xf32>
      %109 = arith.maximumf %107, %108 : vector<8x8x128xf32>
      %c1_74 = arith.constant 1 : index
      %c1_75 = arith.constant 1 : index
      %c0_76 = arith.constant 0 : index
      %110 = vector.load %arg8[%c1_74, %c1_75, %c0_76] : memref<10x10x128xf32, #tpu.memory_space<vmem>>, vector<8x8x128xf32>
      tpu.vector_store %arg8[%c1_74, %c1_75, %c0_76], %109 {strides = array<i32>} : memref<10x10x128xf32, #tpu.memory_space<vmem>>, vector<8x8x128xf32>,
    } else {
    }
    %cst = arith.constant 0.000000e+00 : f32
    %4 = vector.broadcast %cst : f32 to vector<64x128xf32>
    %c0_i32_1 = arith.constant 0 : i32
    %5 = arith.addi %0, %c0_i32_1 : i32
    %6 = arith.index_cast %5 : i32 to index
    %c0 = arith.constant 0 : index
    %c0_2 = arith.constant 0 : index
    %7 = vector.load %arg8[%6, %c0, %c0_2] : memref<10x10x128xf32, #tpu.memory_space<vmem>>, vector<8x8x128xf32>
    %8 = vector.shape_cast %7 : vector<8x8x128xf32> to vector<64x128xf32>
    %9 = arith.truncf %8 : vector<64x128xf32> to vector<64x128xbf16>
    %c0_3 = arith.constant 0 : index
    %c0_4 = arith.constant 0 : index
    %c0_5 = arith.constant 0 : index
    %10 = vector.load %arg3[%c0_3, %c0_4, %c0_5] : memref<9x128x128xbf16, #tpu.memory_space<vmem>>, vector<1x128x128xbf16>
    %11 = vector.shape_cast %10 : vector<1x128x128xbf16> to vector<128x128xbf16>
    %cst_6 = arith.constant dense<0.000000e+00> : vector<64x128xf32>
    %12 = tpu.matmul %9, %11, %cst_6 {dimension_numbers = #tpu.dot_dimension_numbers<[1], [0], [0], [1], [0, 0, 1, 1], [], []>} : vector<64x128xbf16>, vector<128x128xbf16>, vector<64x128xf32> -> vector<64x128xf32>
    %13 = arith.addf %4, %12 : vector<64x128xf32>
    %c0_i32_7 = arith.constant 0 : i32
    %14 = arith.addi %0, %c0_i32_7 : i32
    %15 = arith.index_cast %14 : i32 to index
    %c1 = arith.constant 1 : index
    %c0_8 = arith.constant 0 : index
    %16 = vector.load %arg8[%15, %c1, %c0_8] : memref<10x10x128xf32, #tpu.memory_space<vmem>>, vector<8x8x128xf32>
    %17 = vector.shape_cast %16 : vector<8x8x128xf32> to vector<64x128xf32>
    %18 = arith.truncf %17 : vector<64x128xf32> to vector<64x128xbf16>
    %c1_9 = arith.constant 1 : index
    %c0_10 = arith.constant 0 : index
    %c0_11 = arith.constant 0 : index
    %19 = vector.load %arg3[%c1_9, %c0_10, %c0_11] : memref<9x128x128xbf16, #tpu.memory_space<vmem>>, vector<1x128x128xbf16>
    %20 = vector.shape_cast %19 : vector<1x128x128xbf16> to vector<128x128xbf16>
    %cst_12 = arith.constant dense<0.000000e+00> : vector<64x128xf32>
    %21 = tpu.matmul %18, %20, %cst_12 {dimension_numbers = #tpu.dot_dimension_numbers<[1], [0], [0], [1], [0, 0, 1, 1], [], []>} : vector<64x128xbf16>, vector<128x128xbf16>, vector<64x128xf32> -> vector<64x128xf32>
    %22 = arith.addf %13, %21 : vector<64x128xf32>
    %c0_i32_13 = arith.constant 0 : i32
    %23 = arith.addi %0, %c0_i32_13 : i32
    %24 = arith.index_cast %23 : i32 to index
    %c2 = arith.constant 2 : index
    %c0_14 = arith.constant 0 : index
    %25 = vector.load %arg8[%24, %c2, %c0_14] : memref<10x10x128xf32, #tpu.memory_space<vmem>>, vector<8x8x128xf32>
    %26 = vector.shape_cast %25 : vector<8x8x128xf32> to vector<64x128xf32>
    %27 = arith.truncf %26 : vector<64x128xf32> to vector<64x128xbf16>
    %c2_15 = arith.constant 2 : index
    %c0_16 = arith.constant 0 : index
    %c0_17 = arith.constant 0 : index
    %28 = vector.load %arg3[%c2_15, %c0_16, %c0_17] : memref<9x128x128xbf16, #tpu.memory_space<vmem>>, vector<1x128x128xbf16>
    %29 = vector.shape_cast %28 : vector<1x128x128xbf16> to vector<128x128xbf16>
    %cst_18 = arith.constant dense<0.000000e+00> : vector<64x128xf32>
    %30 = tpu.matmul %27, %29, %cst_18 {dimension_numbers = #tpu.dot_dimension_numbers<[1], [0], [0], [1], [0, 0, 1, 1], [], []>} : vector<64x128xbf16>, vector<128x128xbf16>, vector<64x128xf32> -> vector<64x128xf32>
    %31 = arith.addf %22, %30 : vector<64x128xf32>
    %c1_i32 = arith.constant 1 : i32
    %32 = arith.addi %0, %c1_i32 : i32
    %33 = arith.index_cast %32 : i32 to index
    %c0_19 = arith.constant 0 : index
    %c0_20 = arith.constant 0 : index
    %34 = vector.load %arg8[%33, %c0_19, %c0_20] : memref<10x10x128xf32, #tpu.memory_space<vmem>>, vector<8x8x128xf32>
    %35 = vector.shape_cast %34 : vector<8x8x128xf32> to vector<64x128xf32>
    %36 = arith.truncf %35 : vector<64x128xf32> to vector<64x128xbf16>
    %c3 = arith.constant 3 : index
    %c0_21 = arith.constant 0 : index
    %c0_22 = arith.constant 0 : index
    %37 = vector.load %arg3[%c3, %c0_21, %c0_22] : memref<9x128x128xbf16, #tpu.memory_space<vmem>>, vector<1x128x128xbf16>
    %38 = vector.shape_cast %37 : vector<1x128x128xbf16> to vector<128x128xbf16>
    %cst_23 = arith.constant dense<0.000000e+00> : vector<64x128xf32>
    %39 = tpu.matmul %36, %38, %cst_23 {dimension_numbers = #tpu.dot_dimension_numbers<[1], [0], [0], [1], [0, 0, 1, 1], [], []>} : vector<64x128xbf16>, vector<128x128xbf16>, vector<64x128xf32> -> vector<64x128xf32>
    %40 = arith.addf %31, %39 : vector<64x128xf32>
    %c1_i32_24 = arith.constant 1 : i32
    %41 = arith.addi %0, %c1_i32_24 : i32
    %42 = arith.index_cast %41 : i32 to index
    %c1_25 = arith.constant 1 : index
    %c0_26 = arith.constant 0 : index
    %43 = vector.load %arg8[%42, %c1_25, %c0_26] : memref<10x10x128xf32, #tpu.memory_space<vmem>>, vector<8x8x128xf32>
    %44 = vector.shape_cast %43 : vector<8x8x128xf32> to vector<64x128xf32>
    %45 = arith.truncf %44 : vector<64x128xf32> to vector<64x128xbf16>
    %c4 = arith.constant 4 : index
    %c0_27 = arith.constant 0 : index
    %c0_28 = arith.constant 0 : index
    %46 = vector.load %arg3[%c4, %c0_27, %c0_28] : memref<9x128x128xbf16, #tpu.memory_space<vmem>>, vector<1x128x128xbf16>
    %47 = vector.shape_cast %46 : vector<1x128x128xbf16> to vector<128x128xbf16>
    %cst_29 = arith.constant dense<0.000000e+00> : vector<64x128xf32>
    %48 = tpu.matmul %45, %47, %cst_29 {dimension_numbers = #tpu.dot_dimension_numbers<[1], [0], [0], [1], [0, 0, 1, 1], [], []>} : vector<64x128xbf16>, vector<128x128xbf16>, vector<64x128xf32> -> vector<64x128xf32>
    %49 = arith.addf %40, %48 : vector<64x128xf32>
    %c1_i32_30 = arith.constant 1 : i32
    %50 = arith.addi %0, %c1_i32_30 : i32
    %51 = arith.index_cast %50 : i32 to index
    %c2_31 = arith.constant 2 : index
    %c0_32 = arith.constant 0 : index
    %52 = vector.load %arg8[%51, %c2_31, %c0_32] : memref<10x10x128xf32, #tpu.memory_space<vmem>>, vector<8x8x128xf32>
    %53 = vector.shape_cast %52 : vector<8x8x128xf32> to vector<64x128xf32>
    %54 = arith.truncf %53 : vector<64x128xf32> to vector<64x128xbf16>
    %c5 = arith.constant 5 : index
    %c0_33 = arith.constant 0 : index
    %c0_34 = arith.constant 0 : index
    %55 = vector.load %arg3[%c5, %c0_33, %c0_34] : memref<9x128x128xbf16, #tpu.memory_space<vmem>>, vector<1x128x128xbf16>
    %56 = vector.shape_cast %55 : vector<1x128x128xbf16> to vector<128x128xbf16>
    %cst_35 = arith.constant dense<0.000000e+00> : vector<64x128xf32>
    %57 = tpu.matmul %54, %56, %cst_35 {dimension_numbers = #tpu.dot_dimension_numbers<[1], [0], [0], [1], [0, 0, 1, 1], [], []>} : vector<64x128xbf16>, vector<128x128xbf16>, vector<64x128xf32> -> vector<64x128xf32>
    %58 = arith.addf %49, %57 : vector<64x128xf32>
    %c2_i32 = arith.constant 2 : i32
    %59 = arith.addi %0, %c2_i32 : i32
    %60 = arith.index_cast %59 : i32 to index
    %c0_36 = arith.constant 0 : index
    %c0_37 = arith.constant 0 : index
    %61 = vector.load %arg8[%60, %c0_36, %c0_37] : memref<10x10x128xf32, #tpu.memory_space<vmem>>, vector<8x8x128xf32>
    %62 = vector.shape_cast %61 : vector<8x8x128xf32> to vector<64x128xf32>
    %63 = arith.truncf %62 : vector<64x128xf32> to vector<64x128xbf16>
    %c6 = arith.constant 6 : index
    %c0_38 = arith.constant 0 : index
    %c0_39 = arith.constant 0 : index
    %64 = vector.load %arg3[%c6, %c0_38, %c0_39] : memref<9x128x128xbf16, #tpu.memory_space<vmem>>, vector<1x128x128xbf16>
    %65 = vector.shape_cast %64 : vector<1x128x128xbf16> to vector<128x128xbf16>
    %cst_40 = arith.constant dense<0.000000e+00> : vector<64x128xf32>
    %66 = tpu.matmul %63, %65, %cst_40 {dimension_numbers = #tpu.dot_dimension_numbers<[1], [0], [0], [1], [0, 0, 1, 1], [], []>} : vector<64x128xbf16>, vector<128x128xbf16>, vector<64x128xf32> -> vector<64x128xf32>
    %67 = arith.addf %58, %66 : vector<64x128xf32>
    %c2_i32_41 = arith.constant 2 : i32
    %68 = arith.addi %0, %c2_i32_41 : i32
    %69 = arith.index_cast %68 : i32 to index
    %c1_42 = arith.constant 1 : index
    %c0_43 = arith.constant 0 : index
    %70 = vector.load %arg8[%69, %c1_42, %c0_43] : memref<10x10x128xf32, #tpu.memory_space<vmem>>, vector<8x8x128xf32>
    %71 = vector.shape_cast %70 : vector<8x8x128xf32> to vector<64x128xf32>
    %72 = arith.truncf %71 : vector<64x128xf32> to vector<64x128xbf16>
    %c7 = arith.constant 7 : index
    %c0_44 = arith.constant 0 : index
    %c0_45 = arith.constant 0 : index
    %73 = vector.load %arg3[%c7, %c0_44, %c0_45] : memref<9x128x128xbf16, #tpu.memory_space<vmem>>, vector<1x128x128xbf16>
    %74 = vector.shape_cast %73 : vector<1x128x128xbf16> to vector<128x128xbf16>
    %cst_46 = arith.constant dense<0.000000e+00> : vector<64x128xf32>
    %75 = tpu.matmul %72, %74, %cst_46 {dimension_numbers = #tpu.dot_dimension_numbers<[1], [0], [0], [1], [0, 0, 1, 1], [], []>} : vector<64x128xbf16>, vector<128x128xbf16>, vector<64x128xf32> -> vector<64x128xf32>
    %76 = arith.addf %67, %75 : vector<64x128xf32>
    %c2_i32_47 = arith.constant 2 : i32
    %77 = arith.addi %0, %c2_i32_47 : i32
    %78 = arith.index_cast %77 : i32 to index
    %c2_48 = arith.constant 2 : index
    %c0_49 = arith.constant 0 : index
    %79 = vector.load %arg8[%78, %c2_48, %c0_49] : memref<10x10x128xf32, #tpu.memory_space<vmem>>, vector<8x8x128xf32>
    %80 = vector.shape_cast %79 : vector<8x8x128xf32> to vector<64x128xf32>
    %81 = arith.truncf %80 : vector<64x128xf32> to vector<64x128xbf16>
    %c8 = arith.constant 8 : index
    %c0_50 = arith.constant 0 : index
    %c0_51 = arith.constant 0 : index
    %82 = vector.load %arg3[%c8, %c0_50, %c0_51] : memref<9x128x128xbf16, #tpu.memory_space<vmem>>, vector<1x128x128xbf16>
    %83 = vector.shape_cast %82 : vector<1x128x128xbf16> to vector<128x128xbf16>
    %cst_52 = arith.constant dense<0.000000e+00> : vector<64x128xf32>
    %84 = tpu.matmul %81, %83, %cst_52 {dimension_numbers = #tpu.dot_dimension_numbers<[1], [0], [0], [1], [0, 0, 1, 1], [], []>} : vector<64x128xbf16>, vector<128x128xbf16>, vector<64x128xf32> -> vector<64x128xf32>
    %85 = arith.addf %76, %84 : vector<64x128xf32>
    %c0_53 = arith.constant 0 : index
    %c0_54 = arith.constant 0 : index
    %c0_55 = arith.constant 0 : index
    %c0_56 = arith.constant 0 : index
    %86 = vector.load %arg6[%c0_53, %c0_54, %c0_55, %c0_56] : memref<1x8x8x128xbf16, #tpu.memory_space<vmem>>, vector<1x8x8x128xbf16>
    %87 = vector.shape_cast %86 : vector<1x8x8x128xbf16> to vector<64x128xbf16>
    %88 = arith.extf %87 : vector<64x128xbf16> to vector<64x128xf32>
    %89 = arith.addf %85, %88 : vector<64x128xf32>
    %90 = vector.shape_cast %89 : vector<64x128xf32> to vector<1x8x8x128xf32>
    %91 = arith.truncf %90 : vector<1x8x8x128xf32> to vector<1x8x8x128xbf16>
    %c0_57 = arith.constant 0 : index
    %c0_58 = arith.constant 0 : index
    %c0_59 = arith.constant 0 : index
    %c0_60 = arith.constant 0 : index
    %92 = vector.load %arg7[%c0_57, %c0_58, %c0_59, %c0_60] : memref<1x8x8x128xbf16, #tpu.memory_space<vmem>>, vector<1x8x8x128xbf16>
    tpu.vector_store %arg7[%c0_57, %c0_58, %c0_59, %c0_60], %91 {strides = array<i32>} : memref<1x8x8x128xbf16, #tpu.memory_space<vmem>>, vector<1x8x8x128xbf16>,
    return
  }
  func.func @transform_0(%arg0: i32, %arg1: i32) -> (i32, i32, i32, i32) {
    %c0_i32 = arith.constant 0 : i32
    %c0_i32_0 = arith.constant 0 : i32
    %c0_i32_1 = arith.constant 0 : i32
    %c0_i32_2 = arith.constant 0 : i32
    return %arg0, %c0_i32, %c0_i32_0, %c0_i32_1 : i32, i32, i32, i32
  }
  func.func @transform_1(%arg0: i32, %arg1: i32) -> (i32, i32, i32) {
    %c0_i32 = arith.constant 0 : i32
    %c0_i32_0 = arith.constant 0 : i32
    %c0_i32_1 = arith.constant 0 : i32
    %c0_i32_2 = arith.constant 0 : i32
    return %c0_i32, %c0_i32_0, %c0_i32_1 : i32, i32, i32
  }
  func.func @transform_2(%arg0: i32, %arg1: i32) -> (i32, i32) {
    %c0_i32 = arith.constant 0 : i32
    %c0_i32_0 = arith.constant 0 : i32
    %c0_i32_1 = arith.constant 0 : i32
    return %c0_i32, %c0_i32_0 : i32, i32
  }
  func.func @transform_3(%arg0: i32, %arg1: i32) -> (i32, i32) {
    %c0_i32 = arith.constant 0 : i32
    %c0_i32_0 = arith.constant 0 : i32
    %c0_i32_1 = arith.constant 0 : i32
    return %c0_i32, %c0_i32_0 : i32, i32
  }
  func.func @transform_4(%arg0: i32, %arg1: i32) -> (i32, i32, i32, i32) {
    %c0_i32 = arith.constant 0 : i32
    %c0_i32_0 = arith.constant 0 : i32
    %c0_i32_1 = arith.constant 0 : i32
    return %arg0, %arg1, %c0_i32, %c0_i32_0 : i32, i32, i32, i32
  }
  func.func @transform_5(%arg0: i32, %arg1: i32) -> (i32, i32, i32, i32) {
    %c0_i32 = arith.constant 0 : i32
    %c0_i32_0 = arith.constant 0 : i32
    %c0_i32_1 = arith.constant 0 : i32
    return %arg0, %arg1, %c0_i32, %c0_i32_0 : i32, i32, i32, i32
  }
}

module attributes {stable_mosaic.version = 11 : i64} {
  func.func @kernel(%arg0: i32, %arg1: i32, %arg2: memref<1x8x8x128xbf16, #tpu.memory_space<vmem>>, %arg3: memref<9x128x128xbf16, #tpu.memory_space<vmem>>, %arg4: memref<1x128xf32, #tpu.memory_space<vmem>>, %arg5: memref<1x128xf32, #tpu.memory_space<vmem>>, %arg6: memref<1x8x8x128xbf16, #tpu.memory_space<vmem>>, %arg7: memref<1x8x8x128xf32, #tpu.memory_space<vmem>>, %arg8: memref<10x10x128xf32, #tpu.memory_space<vmem>>) attributes {dimension_semantics = [#tpu.dimension_semantics<parallel>, #tpu.dimension_semantics<arbitrary>], iteration_bounds = array<i64: 2, 1>, scalar_prefetch = 0 : i64, scratch_operands = 1 : i64, tpu.core_type = #tpu.core_type<tc>, window_params = [{transform_indices = @transform_0, window_bounds = array<i64: 1, 8, 8, 128>}, {pipeline_mode = #tpu.pipeline_mode<synchronous>, transform_indices = @transform_1, window_bounds = array<i64: 9, 128, 128>}, {pipeline_mode = #tpu.pipeline_mode<synchronous>, transform_indices = @transform_2, window_bounds = array<i64: 1, 128>}, {pipeline_mode = #tpu.pipeline_mode<synchronous>, transform_indices = @transform_3, window_bounds = array<i64: 1, 128>}, {transform_indices = @transform_4, window_bounds = array<i64: 1, 8, 8, 128>}, {transform_indices = @transform_5, window_bounds = array<i64: 1, 8, 8, 128>}]} {
    %c8_i32 = arith.constant 8 : i32
    %0 = arith.muli %arg1, %c8_i32 : i32
    %c0_i32 = arith.constant 0 : i32
    %1 = arith.cmpi eq, %arg1, %c0_i32 : i32
    %2 = arith.extui %1 : i1 to i32
    %c0_i32_0 = arith.constant 0 : i32
    %3 = arith.cmpi ne, %2, %c0_i32_0 : i32
    scf.if %3 {
      %cst_61 = arith.constant 0.000000e+00 : f32
      %92 = vector.broadcast %cst_61 : f32 to vector<10x10x128xf32>
      %c0_62 = arith.constant 0 : index
      %c0_63 = arith.constant 0 : index
      %c0_64 = arith.constant 0 : index
      %93 = vector.load %arg8[%c0_62, %c0_63, %c0_64] : memref<10x10x128xf32, #tpu.memory_space<vmem>>, vector<10x10x128xf32>
      tpu.vector_store %arg8[%c0_62, %c0_63, %c0_64], %92 {strides = array<i32>} : memref<10x10x128xf32, #tpu.memory_space<vmem>>, vector<10x10x128xf32>,
      %c0_65 = arith.constant 0 : index
      %c0_66 = arith.constant 0 : index
      %c0_67 = arith.constant 0 : index
      %c0_68 = arith.constant 0 : index
      %94 = vector.load %arg2[%c0_65, %c0_66, %c0_67, %c0_68] : memref<1x8x8x128xbf16, #tpu.memory_space<vmem>>, vector<1x8x8x128xbf16>
      %95 = vector.shape_cast %94 : vector<1x8x8x128xbf16> to vector<8x8x128xbf16>
      %96 = arith.extf %95 : vector<8x8x128xbf16> to vector<8x8x128xf32>
      %c0_69 = arith.constant 0 : index
      %c0_70 = arith.constant 0 : index
      %97 = vector.load %arg4[%c0_69, %c0_70] : memref<1x128xf32, #tpu.memory_space<vmem>>, vector<1x128xf32>
      %98 = vector.shape_cast %97 : vector<1x128xf32> to vector<128xf32>
      %99 = vector.shape_cast %98 : vector<128xf32> to vector<1x1x128xf32>
      %100 = vector.broadcast %99 : vector<1x1x128xf32> to vector<8x8x128xf32>
      %101 = arith.mulf %96, %100 : vector<8x8x128xf32>
      %c0_71 = arith.constant 0 : index
      %c0_72 = arith.constant 0 : index
      %102 = vector.load %arg5[%c0_71, %c0_72] : memref<1x128xf32, #tpu.memory_space<vmem>>, vector<1x128xf32>
      %103 = vector.shape_cast %102 : vector<1x128xf32> to vector<128xf32>
      %104 = vector.shape_cast %103 : vector<128xf32> to vector<1x1x128xf32>
      %105 = vector.broadcast %104 : vector<1x1x128xf32> to vector<8x8x128xf32>
      %106 = arith.addf %101, %105 : vector<8x8x128xf32>
      %cst_73 = arith.constant 0.000000e+00 : f32
      %107 = vector.broadcast %cst_73 : f32 to vector<8x8x128xf32>
      %108 = arith.maximumf %106, %107 : vector<8x8x128xf32>
      %c1_74 = arith.constant 1 : index
      %c1_75 = arith.constant 1 : index
      %c0_76 = arith.constant 0 : index
      %109 = vector.load %arg8[%c1_74, %c1_75, %c0_76] : memref<10x10x128xf32, #tpu.memory_space<vmem>>, vector<8x8x128xf32>
      tpu.vector_store %arg8[%c1_74, %c1_75, %c0_76], %108 {strides = array<i32>} : memref<10x10x128xf32, #tpu.memory_space<vmem>>, vector<8x8x128xf32>,
    } else {
    }
    %cst = arith.constant 0.000000e+00 : f32
    %4 = vector.broadcast %cst : f32 to vector<64x128xf32>
    %c0_i32_1 = arith.constant 0 : i32
    %5 = arith.addi %0, %c0_i32_1 : i32
    %6 = arith.index_cast %5 : i32 to index
    %c0 = arith.constant 0 : index
    %c0_2 = arith.constant 0 : index
    %7 = vector.load %arg8[%6, %c0, %c0_2] : memref<10x10x128xf32, #tpu.memory_space<vmem>>, vector<8x8x128xf32>
    %8 = vector.shape_cast %7 : vector<8x8x128xf32> to vector<64x128xf32>
    %9 = arith.truncf %8 : vector<64x128xf32> to vector<64x128xbf16>
    %c0_3 = arith.constant 0 : index
    %c0_4 = arith.constant 0 : index
    %c0_5 = arith.constant 0 : index
    %10 = vector.load %arg3[%c0_3, %c0_4, %c0_5] : memref<9x128x128xbf16, #tpu.memory_space<vmem>>, vector<1x128x128xbf16>
    %11 = vector.shape_cast %10 : vector<1x128x128xbf16> to vector<128x128xbf16>
    %cst_6 = arith.constant dense<0.000000e+00> : vector<64x128xf32>
    %12 = tpu.matmul %9, %11, %cst_6 {dimension_numbers = #tpu.dot_dimension_numbers<[1], [0], [0], [1], [0, 0, 1, 1], [], []>} : vector<64x128xbf16>, vector<128x128xbf16>, vector<64x128xf32> -> vector<64x128xf32>
    %13 = arith.addf %4, %12 : vector<64x128xf32>
    %c0_i32_7 = arith.constant 0 : i32
    %14 = arith.addi %0, %c0_i32_7 : i32
    %15 = arith.index_cast %14 : i32 to index
    %c1 = arith.constant 1 : index
    %c0_8 = arith.constant 0 : index
    %16 = vector.load %arg8[%15, %c1, %c0_8] : memref<10x10x128xf32, #tpu.memory_space<vmem>>, vector<8x8x128xf32>
    %17 = vector.shape_cast %16 : vector<8x8x128xf32> to vector<64x128xf32>
    %18 = arith.truncf %17 : vector<64x128xf32> to vector<64x128xbf16>
    %c1_9 = arith.constant 1 : index
    %c0_10 = arith.constant 0 : index
    %c0_11 = arith.constant 0 : index
    %19 = vector.load %arg3[%c1_9, %c0_10, %c0_11] : memref<9x128x128xbf16, #tpu.memory_space<vmem>>, vector<1x128x128xbf16>
    %20 = vector.shape_cast %19 : vector<1x128x128xbf16> to vector<128x128xbf16>
    %cst_12 = arith.constant dense<0.000000e+00> : vector<64x128xf32>
    %21 = tpu.matmul %18, %20, %cst_12 {dimension_numbers = #tpu.dot_dimension_numbers<[1], [0], [0], [1], [0, 0, 1, 1], [], []>} : vector<64x128xbf16>, vector<128x128xbf16>, vector<64x128xf32> -> vector<64x128xf32>
    %22 = arith.addf %13, %21 : vector<64x128xf32>
    %c0_i32_13 = arith.constant 0 : i32
    %23 = arith.addi %0, %c0_i32_13 : i32
    %24 = arith.index_cast %23 : i32 to index
    %c2 = arith.constant 2 : index
    %c0_14 = arith.constant 0 : index
    %25 = vector.load %arg8[%24, %c2, %c0_14] : memref<10x10x128xf32, #tpu.memory_space<vmem>>, vector<8x8x128xf32>
    %26 = vector.shape_cast %25 : vector<8x8x128xf32> to vector<64x128xf32>
    %27 = arith.truncf %26 : vector<64x128xf32> to vector<64x128xbf16>
    %c2_15 = arith.constant 2 : index
    %c0_16 = arith.constant 0 : index
    %c0_17 = arith.constant 0 : index
    %28 = vector.load %arg3[%c2_15, %c0_16, %c0_17] : memref<9x128x128xbf16, #tpu.memory_space<vmem>>, vector<1x128x128xbf16>
    %29 = vector.shape_cast %28 : vector<1x128x128xbf16> to vector<128x128xbf16>
    %cst_18 = arith.constant dense<0.000000e+00> : vector<64x128xf32>
    %30 = tpu.matmul %27, %29, %cst_18 {dimension_numbers = #tpu.dot_dimension_numbers<[1], [0], [0], [1], [0, 0, 1, 1], [], []>} : vector<64x128xbf16>, vector<128x128xbf16>, vector<64x128xf32> -> vector<64x128xf32>
    %31 = arith.addf %22, %30 : vector<64x128xf32>
    %c1_i32 = arith.constant 1 : i32
    %32 = arith.addi %0, %c1_i32 : i32
    %33 = arith.index_cast %32 : i32 to index
    %c0_19 = arith.constant 0 : index
    %c0_20 = arith.constant 0 : index
    %34 = vector.load %arg8[%33, %c0_19, %c0_20] : memref<10x10x128xf32, #tpu.memory_space<vmem>>, vector<8x8x128xf32>
    %35 = vector.shape_cast %34 : vector<8x8x128xf32> to vector<64x128xf32>
    %36 = arith.truncf %35 : vector<64x128xf32> to vector<64x128xbf16>
    %c3 = arith.constant 3 : index
    %c0_21 = arith.constant 0 : index
    %c0_22 = arith.constant 0 : index
    %37 = vector.load %arg3[%c3, %c0_21, %c0_22] : memref<9x128x128xbf16, #tpu.memory_space<vmem>>, vector<1x128x128xbf16>
    %38 = vector.shape_cast %37 : vector<1x128x128xbf16> to vector<128x128xbf16>
    %cst_23 = arith.constant dense<0.000000e+00> : vector<64x128xf32>
    %39 = tpu.matmul %36, %38, %cst_23 {dimension_numbers = #tpu.dot_dimension_numbers<[1], [0], [0], [1], [0, 0, 1, 1], [], []>} : vector<64x128xbf16>, vector<128x128xbf16>, vector<64x128xf32> -> vector<64x128xf32>
    %40 = arith.addf %31, %39 : vector<64x128xf32>
    %c1_i32_24 = arith.constant 1 : i32
    %41 = arith.addi %0, %c1_i32_24 : i32
    %42 = arith.index_cast %41 : i32 to index
    %c1_25 = arith.constant 1 : index
    %c0_26 = arith.constant 0 : index
    %43 = vector.load %arg8[%42, %c1_25, %c0_26] : memref<10x10x128xf32, #tpu.memory_space<vmem>>, vector<8x8x128xf32>
    %44 = vector.shape_cast %43 : vector<8x8x128xf32> to vector<64x128xf32>
    %45 = arith.truncf %44 : vector<64x128xf32> to vector<64x128xbf16>
    %c4 = arith.constant 4 : index
    %c0_27 = arith.constant 0 : index
    %c0_28 = arith.constant 0 : index
    %46 = vector.load %arg3[%c4, %c0_27, %c0_28] : memref<9x128x128xbf16, #tpu.memory_space<vmem>>, vector<1x128x128xbf16>
    %47 = vector.shape_cast %46 : vector<1x128x128xbf16> to vector<128x128xbf16>
    %cst_29 = arith.constant dense<0.000000e+00> : vector<64x128xf32>
    %48 = tpu.matmul %45, %47, %cst_29 {dimension_numbers = #tpu.dot_dimension_numbers<[1], [0], [0], [1], [0, 0, 1, 1], [], []>} : vector<64x128xbf16>, vector<128x128xbf16>, vector<64x128xf32> -> vector<64x128xf32>
    %49 = arith.addf %40, %48 : vector<64x128xf32>
    %c1_i32_30 = arith.constant 1 : i32
    %50 = arith.addi %0, %c1_i32_30 : i32
    %51 = arith.index_cast %50 : i32 to index
    %c2_31 = arith.constant 2 : index
    %c0_32 = arith.constant 0 : index
    %52 = vector.load %arg8[%51, %c2_31, %c0_32] : memref<10x10x128xf32, #tpu.memory_space<vmem>>, vector<8x8x128xf32>
    %53 = vector.shape_cast %52 : vector<8x8x128xf32> to vector<64x128xf32>
    %54 = arith.truncf %53 : vector<64x128xf32> to vector<64x128xbf16>
    %c5 = arith.constant 5 : index
    %c0_33 = arith.constant 0 : index
    %c0_34 = arith.constant 0 : index
    %55 = vector.load %arg3[%c5, %c0_33, %c0_34] : memref<9x128x128xbf16, #tpu.memory_space<vmem>>, vector<1x128x128xbf16>
    %56 = vector.shape_cast %55 : vector<1x128x128xbf16> to vector<128x128xbf16>
    %cst_35 = arith.constant dense<0.000000e+00> : vector<64x128xf32>
    %57 = tpu.matmul %54, %56, %cst_35 {dimension_numbers = #tpu.dot_dimension_numbers<[1], [0], [0], [1], [0, 0, 1, 1], [], []>} : vector<64x128xbf16>, vector<128x128xbf16>, vector<64x128xf32> -> vector<64x128xf32>
    %58 = arith.addf %49, %57 : vector<64x128xf32>
    %c2_i32 = arith.constant 2 : i32
    %59 = arith.addi %0, %c2_i32 : i32
    %60 = arith.index_cast %59 : i32 to index
    %c0_36 = arith.constant 0 : index
    %c0_37 = arith.constant 0 : index
    %61 = vector.load %arg8[%60, %c0_36, %c0_37] : memref<10x10x128xf32, #tpu.memory_space<vmem>>, vector<8x8x128xf32>
    %62 = vector.shape_cast %61 : vector<8x8x128xf32> to vector<64x128xf32>
    %63 = arith.truncf %62 : vector<64x128xf32> to vector<64x128xbf16>
    %c6 = arith.constant 6 : index
    %c0_38 = arith.constant 0 : index
    %c0_39 = arith.constant 0 : index
    %64 = vector.load %arg3[%c6, %c0_38, %c0_39] : memref<9x128x128xbf16, #tpu.memory_space<vmem>>, vector<1x128x128xbf16>
    %65 = vector.shape_cast %64 : vector<1x128x128xbf16> to vector<128x128xbf16>
    %cst_40 = arith.constant dense<0.000000e+00> : vector<64x128xf32>
    %66 = tpu.matmul %63, %65, %cst_40 {dimension_numbers = #tpu.dot_dimension_numbers<[1], [0], [0], [1], [0, 0, 1, 1], [], []>} : vector<64x128xbf16>, vector<128x128xbf16>, vector<64x128xf32> -> vector<64x128xf32>
    %67 = arith.addf %58, %66 : vector<64x128xf32>
    %c2_i32_41 = arith.constant 2 : i32
    %68 = arith.addi %0, %c2_i32_41 : i32
    %69 = arith.index_cast %68 : i32 to index
    %c1_42 = arith.constant 1 : index
    %c0_43 = arith.constant 0 : index
    %70 = vector.load %arg8[%69, %c1_42, %c0_43] : memref<10x10x128xf32, #tpu.memory_space<vmem>>, vector<8x8x128xf32>
    %71 = vector.shape_cast %70 : vector<8x8x128xf32> to vector<64x128xf32>
    %72 = arith.truncf %71 : vector<64x128xf32> to vector<64x128xbf16>
    %c7 = arith.constant 7 : index
    %c0_44 = arith.constant 0 : index
    %c0_45 = arith.constant 0 : index
    %73 = vector.load %arg3[%c7, %c0_44, %c0_45] : memref<9x128x128xbf16, #tpu.memory_space<vmem>>, vector<1x128x128xbf16>
    %74 = vector.shape_cast %73 : vector<1x128x128xbf16> to vector<128x128xbf16>
    %cst_46 = arith.constant dense<0.000000e+00> : vector<64x128xf32>
    %75 = tpu.matmul %72, %74, %cst_46 {dimension_numbers = #tpu.dot_dimension_numbers<[1], [0], [0], [1], [0, 0, 1, 1], [], []>} : vector<64x128xbf16>, vector<128x128xbf16>, vector<64x128xf32> -> vector<64x128xf32>
    %76 = arith.addf %67, %75 : vector<64x128xf32>
    %c2_i32_47 = arith.constant 2 : i32
    %77 = arith.addi %0, %c2_i32_47 : i32
    %78 = arith.index_cast %77 : i32 to index
    %c2_48 = arith.constant 2 : index
    %c0_49 = arith.constant 0 : index
    %79 = vector.load %arg8[%78, %c2_48, %c0_49] : memref<10x10x128xf32, #tpu.memory_space<vmem>>, vector<8x8x128xf32>
    %80 = vector.shape_cast %79 : vector<8x8x128xf32> to vector<64x128xf32>
    %81 = arith.truncf %80 : vector<64x128xf32> to vector<64x128xbf16>
    %c8 = arith.constant 8 : index
    %c0_50 = arith.constant 0 : index
    %c0_51 = arith.constant 0 : index
    %82 = vector.load %arg3[%c8, %c0_50, %c0_51] : memref<9x128x128xbf16, #tpu.memory_space<vmem>>, vector<1x128x128xbf16>
    %83 = vector.shape_cast %82 : vector<1x128x128xbf16> to vector<128x128xbf16>
    %cst_52 = arith.constant dense<0.000000e+00> : vector<64x128xf32>
    %84 = tpu.matmul %81, %83, %cst_52 {dimension_numbers = #tpu.dot_dimension_numbers<[1], [0], [0], [1], [0, 0, 1, 1], [], []>} : vector<64x128xbf16>, vector<128x128xbf16>, vector<64x128xf32> -> vector<64x128xf32>
    %85 = arith.addf %76, %84 : vector<64x128xf32>
    %c0_53 = arith.constant 0 : index
    %c0_54 = arith.constant 0 : index
    %c0_55 = arith.constant 0 : index
    %c0_56 = arith.constant 0 : index
    %86 = vector.load %arg6[%c0_53, %c0_54, %c0_55, %c0_56] : memref<1x8x8x128xbf16, #tpu.memory_space<vmem>>, vector<1x8x8x128xbf16>
    %87 = vector.shape_cast %86 : vector<1x8x8x128xbf16> to vector<64x128xbf16>
    %88 = arith.extf %87 : vector<64x128xbf16> to vector<64x128xf32>
    %89 = arith.addf %85, %88 : vector<64x128xf32>
    %90 = vector.shape_cast %89 : vector<64x128xf32> to vector<1x8x8x128xf32>
    %c0_57 = arith.constant 0 : index
    %c0_58 = arith.constant 0 : index
    %c0_59 = arith.constant 0 : index
    %c0_60 = arith.constant 0 : index
    %91 = vector.load %arg7[%c0_57, %c0_58, %c0_59, %c0_60] : memref<1x8x8x128xf32, #tpu.memory_space<vmem>>, vector<1x8x8x128xf32>
    tpu.vector_store %arg7[%c0_57, %c0_58, %c0_59, %c0_60], %90 {strides = array<i32>} : memref<1x8x8x128xf32, #tpu.memory_space<vmem>>, vector<1x8x8x128xf32>,
    return
  }
  func.func @transform_0(%arg0: i32, %arg1: i32) -> (i32, i32, i32, i32) {
    %c0_i32 = arith.constant 0 : i32
    %c0_i32_0 = arith.constant 0 : i32
    %c0_i32_1 = arith.constant 0 : i32
    %c0_i32_2 = arith.constant 0 : i32
    return %arg0, %c0_i32, %c0_i32_0, %c0_i32_1 : i32, i32, i32, i32
  }
  func.func @transform_1(%arg0: i32, %arg1: i32) -> (i32, i32, i32) {
    %c0_i32 = arith.constant 0 : i32
    %c0_i32_0 = arith.constant 0 : i32
    %c0_i32_1 = arith.constant 0 : i32
    %c0_i32_2 = arith.constant 0 : i32
    return %c0_i32, %c0_i32_0, %c0_i32_1 : i32, i32, i32
  }
  func.func @transform_2(%arg0: i32, %arg1: i32) -> (i32, i32) {
    %c0_i32 = arith.constant 0 : i32
    %c0_i32_0 = arith.constant 0 : i32
    %c0_i32_1 = arith.constant 0 : i32
    return %c0_i32, %c0_i32_0 : i32, i32
  }
  func.func @transform_3(%arg0: i32, %arg1: i32) -> (i32, i32) {
    %c0_i32 = arith.constant 0 : i32
    %c0_i32_0 = arith.constant 0 : i32
    %c0_i32_1 = arith.constant 0 : i32
    return %c0_i32, %c0_i32_0 : i32, i32
  }
  func.func @transform_4(%arg0: i32, %arg1: i32) -> (i32, i32, i32, i32) {
    %c0_i32 = arith.constant 0 : i32
    %c0_i32_0 = arith.constant 0 : i32
    %c0_i32_1 = arith.constant 0 : i32
    return %arg0, %arg1, %c0_i32, %c0_i32_0 : i32, i32, i32, i32
  }
  func.func @transform_5(%arg0: i32, %arg1: i32) -> (i32, i32, i32, i32) {
    %c0_i32 = arith.constant 0 : i32
    %c0_i32_0 = arith.constant 0 : i32
    %c0_i32_1 = arith.constant 0 : i32
    return %arg0, %arg1, %c0_i32, %c0_i32_0 : i32, i32, i32, i32
  }
}

</mosaic_0001>

<llo_original>
// kernel: _lambda_.5
$region0: #{_lambda_.5}
  #allocation0 [shape = 'u32[]', space=smem, size = 0x4, offset = 0x4, fixed_abs, tag = 'smem constant byte address 0x4 - core index']
  #allocation1 [shape = 'u32[144,128]{1,0:T(1,128)}', space=vmem, size = 0x12000, scoped, tag = 'internal scratch']
  %s0 = inlined_call_operand.vmem [shape: f32[512,128], index: 0, kind: input, shape index: {}]
  %s1 = inlined_call_operand.vmem [shape: f32[1,128], index: 1, kind: input, shape index: {}]
  %s2 = inlined_call_operand.vmem [shape: f32[1,128], index: 2, kind: input, shape index: {}]
  %s3 = inlined_call_operand.vmem [shape: bf16[512,128], index: 3, kind: output, shape index: {}]
  %s4 = sld [smem:[#allocation0]]
  $region22: #{_lambda_.5} parent=0
    _
  %s6 = ssub.s32 1, %s4
  %s7 = scalar_select 0, %s6, %s4
  // Predicated region
  $region2: #{_lambda_.5} parent=0 // pred_check
    _
  $region3: #{_lambda_.5} parent=0 // pred_check_branch
    %9 = sbr.rel (0) target = $region5
  $region4: #{_lambda_.5} parent=0 // pred_region
    _
  $region5: #{_lambda_.5} parent=0 // pred_fallthru
    _
  // Predicated region
  $region6: #{_lambda_.5} parent=0 // pred_check
    _
  $region7: #{_lambda_.5} parent=0 // pred_check_branch
    %11 = sbr.rel (0) target = $region9
  $region8: #{_lambda_.5} parent=0 // pred_region
    _
  $region9: #{_lambda_.5} parent=0 // pred_fallthru
    _
  // Predicated region
  $region10: #{_lambda_.5} parent=0 // pred_check
    _
  $region11: #{_lambda_.5} parent=0 // pred_check_branch
    %13 = sbr.rel (0) target = $region13
  $region12: #{_lambda_.5} parent=0 // pred_region
    _
  $region13: #{_lambda_.5} parent=0 // pred_fallthru
    _
  %v14 = vld [vmem:[%s0] sm:$0xff]
  %v15 = vld [vmem:[%s0 + $0x8] sm:$0xff]
  %v16 = vld [vmem:[%s0 + $0x10] sm:$0xff]
  %v17 = vld [vmem:[%s0 + $0x18] sm:$0xff]
  %v18 = vld [vmem:[%s0 + $0x20] sm:$0xff]
  %v19 = vld [vmem:[%s0 + $0x28] sm:$0xff]
  %v20 = vld [vmem:[%s0 + $0x30] sm:$0xff]
  %v21 = vld [vmem:[%s0 + $0x38] sm:$0xff]
  %v22 = vld [vmem:[%s0 + $0x40] sm:$0xff]
  %v23 = vld [vmem:[%s0 + $0x48] sm:$0xff]
  %v24 = vld [vmem:[%s0 + $0x50] sm:$0xff]
  %v25 = vld [vmem:[%s0 + $0x58] sm:$0xff]
  %v26 = vld [vmem:[%s0 + $0x60] sm:$0xff]
  %v27 = vld [vmem:[%s0 + $0x68] sm:$0xff]
  %v28 = vld [vmem:[%s0 + $0x70] sm:$0xff]
  %v29 = vld [vmem:[%s0 + $0x78] sm:$0xff]
  %v30 = vld [vmem:[%s0 + $0x80] sm:$0xff]
  %v31 = vld [vmem:[%s0 + $0x88] sm:$0xff]
  %v32 = vld [vmem:[%s0 + $0x90] sm:$0xff]
  %v33 = vld [vmem:[%s0 + $0x98] sm:$0xff]
  %v34 = vld [vmem:[%s0 + $0xa0] sm:$0xff]
  %v35 = vld [vmem:[%s0 + $0xa8] sm:$0xff]
  %v36 = vld [vmem:[%s0 + $0xb0] sm:$0xff]
  %v37 = vld [vmem:[%s0 + $0xb8] sm:$0xff]
  %v38 = vld [vmem:[%s0 + $0xc0] sm:$0xff]
  %v39 = vld [vmem:[%s0 + $0xc8] sm:$0xff]
  %v40 = vld [vmem:[%s0 + $0xd0] sm:$0xff]
  %v41 = vld [vmem:[%s0 + $0xd8] sm:$0xff]
  %v42 = vld [vmem:[%s0 + $0xe0] sm:$0xff]
  %v43 = vld [vmem:[%s0 + $0xe8] sm:$0xff]
  %v44 = vld [vmem:[%s0 + $0xf0] sm:$0xff]
  %v45 = vld [vmem:[%s0 + $0xf8] sm:$0xff]
  %v46 = vld [vmem:[%s0 + $0x100] sm:$0xff]
  %v47 = vld [vmem:[%s0 + $0x108] sm:$0xff]
  %v48 = vld [vmem:[%s0 + $0x110] sm:$0xff]
  %v49 = vld [vmem:[%s0 + $0x118] sm:$0xff]
  %v50 = vld [vmem:[%s0 + $0x120] sm:$0xff]
  %v51 = vld [vmem:[%s0 + $0x128] sm:$0xff]
  %v52 = vld [vmem:[%s0 + $0x130] sm:$0xff]
  %v53 = vld [vmem:[%s0 + $0x138] sm:$0xff]
  %v54 = vld [vmem:[%s0 + $0x140] sm:$0xff]
  %v55 = vld [vmem:[%s0 + $0x148] sm:$0xff]
  %v56 = vld [vmem:[%s0 + $0x150] sm:$0xff]
  %v57 = vld [vmem:[%s0 + $0x158] sm:$0xff]
  %v58 = vld [vmem:[%s0 + $0x160] sm:$0xff]
  %v59 = vld [vmem:[%s0 + $0x168] sm:$0xff]
  %v60 = vld [vmem:[%s0 + $0x170] sm:$0xff]
  %v61 = vld [vmem:[%s0 + $0x178] sm:$0xff]
  %v62 = vld [vmem:[%s0 + $0x180] sm:$0xff]
  %v63 = vld [vmem:[%s0 + $0x188] sm:$0xff]
  %v64 = vld [vmem:[%s0 + $0x190] sm:$0xff]
  %v65 = vld [vmem:[%s0 + $0x198] sm:$0xff]
  %v66 = vld [vmem:[%s0 + $0x1a0] sm:$0xff]
  %v67 = vld [vmem:[%s0 + $0x1a8] sm:$0xff]
  %v68 = vld [vmem:[%s0 + $0x1b0] sm:$0xff]
  %v69 = vld [vmem:[%s0 + $0x1b8] sm:$0xff]
  %v70 = vld [vmem:[%s0 + $0x1c0] sm:$0xff]
  %v71 = vld [vmem:[%s0 + $0x1c8] sm:$0xff]
  %v72 = vld [vmem:[%s0 + $0x1d0] sm:$0xff]
  %v73 = vld [vmem:[%s0 + $0x1d8] sm:$0xff]
  %v74 = vld [vmem:[%s0 + $0x1e0] sm:$0xff]
  %v75 = vld [vmem:[%s0 + $0x1e8] sm:$0xff]
  %v76 = vld [vmem:[%s0 + $0x1f0] sm:$0xff]
  %v77 = vld [vmem:[%s0 + $0x1f8] sm:$0xff]
  %v78 = vld [vmem:[%s1] sm:$0x1]
  %v80 = vlaneseq
  %v81 = vshrl.u32 %v80, 7
  %v82 = vsub.s32 0, %v81
  %v83 = vrot.slane %v78, %v82
  %v85 = vmul.f32 %v14, %v83
  %v86 = vmul.f32 %v15, %v83
  %v87 = vmul.f32 %v16, %v83
  %v88 = vmul.f32 %v17, %v83
  %v89 = vmul.f32 %v18, %v83
  %v90 = vmul.f32 %v19, %v83
  %v91 = vmul.f32 %v20, %v83
  %v92 = vmul.f32 %v21, %v83
  %v93 = vmul.f32 %v22, %v83
  %v94 = vmul.f32 %v23, %v83
  %v95 = vmul.f32 %v24, %v83
  %v96 = vmul.f32 %v25, %v83
  %v97 = vmul.f32 %v26, %v83
  %v98 = vmul.f32 %v27, %v83
  %v99 = vmul.f32 %v28, %v83
  %v100 = vmul.f32 %v29, %v83
  %v101 = vmul.f32 %v30, %v83
  %v102 = vmul.f32 %v31, %v83
  %v103 = vmul.f32 %v32, %v83
  %v104 = vmul.f32 %v33, %v83
  %v105 = vmul.f32 %v34, %v83
  %v106 = vmul.f32 %v35, %v83
  %v107 = vmul.f32 %v36, %v83
  %v108 = vmul.f32 %v37, %v83
  %v109 = vmul.f32 %v38, %v83
  %v110 = vmul.f32 %v39, %v83
  %v111 = vmul.f32 %v40, %v83
  %v112 = vmul.f32 %v41, %v83
  %v113 = vmul.f32 %v42, %v83
  %v114 = vmul.f32 %v43, %v83
  %v115 = vmul.f32 %v44, %v83
  %v116 = vmul.f32 %v45, %v83
  %v117 = vmul.f32 %v46, %v83
  %v118 = vmul.f32 %v47, %v83
  %v119 = vmul.f32 %v48, %v83
  %v120 = vmul.f32 %v49, %v83
  %v121 = vmul.f32 %v50, %v83
  %v122 = vmul.f32 %v51, %v83
  %v123 = vmul.f32 %v52, %v83
  %v124 = vmul.f32 %v53, %v83
  %v125 = vmul.f32 %v54, %v83
  %v126 = vmul.f32 %v55, %v83
  %v127 = vmul.f32 %v56, %v83
  %v128 = vmul.f32 %v57, %v83
  %v129 = vmul.f32 %v58, %v83
  %v130 = vmul.f32 %v59, %v83
  %v131 = vmul.f32 %v60, %v83
  %v132 = vmul.f32 %v61, %v83
  %v133 = vmul.f32 %v62, %v83
  %v134 = vmul.f32 %v63, %v83
  %v135 = vmul.f32 %v64, %v83
  %v136 = vmul.f32 %v65, %v83
  %v137 = vmul.f32 %v66, %v83
  %v138 = vmul.f32 %v67, %v83
  %v139 = vmul.f32 %v68, %v83
  %v140 = vmul.f32 %v69, %v83
  %v141 = vmul.f32 %v70, %v83
  %v142 = vmul.f32 %v71, %v83
  %v143 = vmul.f32 %v72, %v83
  %v144 = vmul.f32 %v73, %v83
  %v145 = vmul.f32 %v74, %v83
  %v146 = vmul.f32 %v75, %v83
  %v147 = vmul.f32 %v76, %v83
  %v148 = vmul.f32 %v77, %v83
  %v149 = vld [vmem:[%s2] sm:$0x1]
  %v151 = vlaneseq
  %v152 = vshrl.u32 %v151, 7
  %v153 = vsub.s32 0, %v152
  %v154 = vrot.slane %v149, %v153
  %v156 = vadd.f32 %v85, %v154
  %v157 = vadd.f32 %v86, %v154
  %v158 = vadd.f32 %v87, %v154
  %v159 = vadd.f32 %v88, %v154
  %v160 = vadd.f32 %v89, %v154
  %v161 = vadd.f32 %v90, %v154
  %v162 = vadd.f32 %v91, %v154
  %v163 = vadd.f32 %v92, %v154
  %v164 = vadd.f32 %v93, %v154
  %v165 = vadd.f32 %v94, %v154
  %v166 = vadd.f32 %v95, %v154
  %v167 = vadd.f32 %v96, %v154
  %v168 = vadd.f32 %v97, %v154
  %v169 = vadd.f32 %v98, %v154
  %v170 = vadd.f32 %v99, %v154
  %v171 = vadd.f32 %v100, %v154
  %v172 = vadd.f32 %v101, %v154
  %v173 = vadd.f32 %v102, %v154
  %v174 = vadd.f32 %v103, %v154
  %v175 = vadd.f32 %v104, %v154
  %v176 = vadd.f32 %v105, %v154
  %v177 = vadd.f32 %v106, %v154
  %v178 = vadd.f32 %v107, %v154
  %v179 = vadd.f32 %v108, %v154
  %v180 = vadd.f32 %v109, %v154
  %v181 = vadd.f32 %v110, %v154
  %v182 = vadd.f32 %v111, %v154
  %v183 = vadd.f32 %v112, %v154
  %v184 = vadd.f32 %v113, %v154
  %v185 = vadd.f32 %v114, %v154
  %v186 = vadd.f32 %v115, %v154
  %v187 = vadd.f32 %v116, %v154
  %v188 = vadd.f32 %v117, %v154
  %v189 = vadd.f32 %v118, %v154
  %v190 = vadd.f32 %v119, %v154
  %v191 = vadd.f32 %v120, %v154
  %v192 = vadd.f32 %v121, %v154
  %v193 = vadd.f32 %v122, %v154
  %v194 = vadd.f32 %v123, %v154
  %v195 = vadd.f32 %v124, %v154
  %v196 = vadd.f32 %v125, %v154
  %v197 = vadd.f32 %v126, %v154
  %v198 = vadd.f32 %v127, %v154
  %v199 = vadd.f32 %v128, %v154
  %v200 = vadd.f32 %v129, %v154
  %v201 = vadd.f32 %v130, %v154
  %v202 = vadd.f32 %v131, %v154
  %v203 = vadd.f32 %v132, %v154
  %v204 = vadd.f32 %v133, %v154
  %v205 = vadd.f32 %v134, %v154
  %v206 = vadd.f32 %v135, %v154
  %v207 = vadd.f32 %v136, %v154
  %v208 = vadd.f32 %v137, %v154
  %v209 = vadd.f32 %v138, %v154
  %v210 = vadd.f32 %v139, %v154
  %v211 = vadd.f32 %v140, %v154
  %v212 = vadd.f32 %v141, %v154
  %v213 = vadd.f32 %v142, %v154
  %v214 = vadd.f32 %v143, %v154
  %v215 = vadd.f32 %v144, %v154
  %v216 = vadd.f32 %v145, %v154
  %v217 = vadd.f32 %v146, %v154
  %v218 = vadd.f32 %v147, %v154
  %v219 = vadd.f32 %v148, %v154
  %v220 = vmax.f32 %v156, 0.0
  %v221 = vmax.f32 %v157, 0.0
  %v222 = vmax.f32 %v158, 0.0
  %v223 = vmax.f32 %v159, 0.0
  %v224 = vmax.f32 %v160, 0.0
  %v225 = vmax.f32 %v161, 0.0
  %v226 = vmax.f32 %v162, 0.0
  %v227 = vmax.f32 %v163, 0.0
  %v228 = vmax.f32 %v164, 0.0
  %v229 = vmax.f32 %v165, 0.0
  %v230 = vmax.f32 %v166, 0.0
  %v231 = vmax.f32 %v167, 0.0
  %v232 = vmax.f32 %v168, 0.0
  %v233 = vmax.f32 %v169, 0.0
  %v234 = vmax.f32 %v170, 0.0
  %v235 = vmax.f32 %v171, 0.0
  %v236 = vmax.f32 %v172, 0.0
  %v237 = vmax.f32 %v173, 0.0
  %v238 = vmax.f32 %v174, 0.0
  %v239 = vmax.f32 %v175, 0.0
  %v240 = vmax.f32 %v176, 0.0
  %v241 = vmax.f32 %v177, 0.0
  %v242 = vmax.f32 %v178, 0.0
  %v243 = vmax.f32 %v179, 0.0
  %v244 = vmax.f32 %v180, 0.0
  %v245 = vmax.f32 %v181, 0.0
  %v246 = vmax.f32 %v182, 0.0
  %v247 = vmax.f32 %v183, 0.0
  %v248 = vmax.f32 %v184, 0.0
  %v249 = vmax.f32 %v185, 0.0
  %v250 = vmax.f32 %v186, 0.0
  %v251 = vmax.f32 %v187, 0.0
  %v252 = vmax.f32 %v188, 0.0
  %v253 = vmax.f32 %v189, 0.0
  %v254 = vmax.f32 %v190, 0.0
  %v255 = vmax.f32 %v191, 0.0
  %v256 = vmax.f32 %v192, 0.0
  %v257 = vmax.f32 %v193, 0.0
  %v258 = vmax.f32 %v194, 0.0
  %v259 = vmax.f32 %v195, 0.0
  %v260 = vmax.f32 %v196, 0.0
  %v261 = vmax.f32 %v197, 0.0
  %v262 = vmax.f32 %v198, 0.0
  %v263 = vmax.f32 %v199, 0.0
  %v264 = vmax.f32 %v200, 0.0
  %v265 = vmax.f32 %v201, 0.0
  %v266 = vmax.f32 %v202, 0.0
  %v267 = vmax.f32 %v203, 0.0
  %v268 = vmax.f32 %v204, 0.0
  %v269 = vmax.f32 %v205, 0.0
  %v270 = vmax.f32 %v206, 0.0
  %v271 = vmax.f32 %v207, 0.0
  %v272 = vmax.f32 %v208, 0.0
  %v273 = vmax.f32 %v209, 0.0
  %v274 = vmax.f32 %v210, 0.0
  %v275 = vmax.f32 %v211, 0.0
  %v276 = vmax.f32 %v212, 0.0
  %v277 = vmax.f32 %v213, 0.0
  %v278 = vmax.f32 %v214, 0.0
  %v279 = vmax.f32 %v215, 0.0
  %v280 = vmax.f32 %v216, 0.0
  %v281 = vmax.f32 %v217, 0.0
  %v282 = vmax.f32 %v218, 0.0
  %v283 = vmax.f32 %v219, 0.0
  %v284 = vpack.c.bf16 %v221, %v220
  %v285 = vpack.c.bf16 %v223, %v222
  %v286 = vpack.c.bf16 %v225, %v224
  %v287 = vpack.c.bf16 %v227, %v226
  %v288 = vpack.c.bf16 %v229, %v228
  %v289 = vpack.c.bf16 %v231, %v230
  %v290 = vpack.c.bf16 %v233, %v232
  %v291 = vpack.c.bf16 %v235, %v234
  %v292 = vpack.c.bf16 %v237, %v236
  %v293 = vpack.c.bf16 %v239, %v238
  %v294 = vpack.c.bf16 %v241, %v240
  %v295 = vpack.c.bf16 %v243, %v242
  %v296 = vpack.c.bf16 %v245, %v244
  %v297 = vpack.c.bf16 %v247, %v246
  %v298 = vpack.c.bf16 %v249, %v248
  %v299 = vpack.c.bf16 %v251, %v250
  %v300 = vpack.c.bf16 %v253, %v252
  %v301 = vpack.c.bf16 %v255, %v254
  %v302 = vpack.c.bf16 %v257, %v256
  %v303 = vpack.c.bf16 %v259, %v258
  %v304 = vpack.c.bf16 %v261, %v260
  %v305 = vpack.c.bf16 %v263, %v262
  %v306 = vpack.c.bf16 %v265, %v264
  %v307 = vpack.c.bf16 %v267, %v266
  %v308 = vpack.c.bf16 %v269, %v268
  %v309 = vpack.c.bf16 %v271, %v270
  %v310 = vpack.c.bf16 %v273, %v272
  %v311 = vpack.c.bf16 %v275, %v274
  %v312 = vpack.c.bf16 %v277, %v276
  %v313 = vpack.c.bf16 %v279, %v278
  %v314 = vpack.c.bf16 %v281, %v280
  %v315 = vpack.c.bf16 %v283, %v282
  %v348 = vunpack.c.l.b16 %v284
  %v349 = vunpack.c.h.b16 %v284
  %v350 = vunpack.c.l.b16 %v285
  %v351 = vunpack.c.h.b16 %v285
  %v352 = vunpack.c.l.b16 %v286
  %v353 = vunpack.c.h.b16 %v286
  %v354 = vunpack.c.l.b16 %v287
  %v355 = vunpack.c.h.b16 %v287
  %v356 = vunpack.c.l.b16 %v288
  %v357 = vunpack.c.h.b16 %v288
  %v358 = vunpack.c.l.b16 %v289
  %v359 = vunpack.c.h.b16 %v289
  %v360 = vunpack.c.l.b16 %v290
  %v361 = vunpack.c.h.b16 %v290
  %v362 = vunpack.c.l.b16 %v291
  %v363 = vunpack.c.h.b16 %v291
  %v364 = vunpack.c.l.b16 %v292
  %v365 = vunpack.c.h.b16 %v292
  %v366 = vunpack.c.l.b16 %v293
  %v367 = vunpack.c.h.b16 %v293
  %v368 = vunpack.c.l.b16 %v294
  %v369 = vunpack.c.h.b16 %v294
  %v370 = vunpack.c.l.b16 %v295
  %v371 = vunpack.c.h.b16 %v295
  %v372 = vunpack.c.l.b16 %v296
  %v373 = vunpack.c.h.b16 %v296
  %v374 = vunpack.c.l.b16 %v297
  %v375 = vunpack.c.h.b16 %v297
  %v376 = vunpack.c.l.b16 %v298
  %v377 = vunpack.c.h.b16 %v298
  %v378 = vunpack.c.l.b16 %v299
  %v379 = vunpack.c.h.b16 %v299
  %v380 = vunpack.c.l.b16 %v300
  %v381 = vunpack.c.h.b16 %v300
  %v382 = vunpack.c.l.b16 %v301
  %v383 = vunpack.c.h.b16 %v301
  %v384 = vunpack.c.l.b16 %v302
  %v385 = vunpack.c.h.b16 %v302
  %v386 = vunpack.c.l.b16 %v303
  %v387 = vunpack.c.h.b16 %v303
  %v388 = vunpack.c.l.b16 %v304
  %v389 = vunpack.c.h.b16 %v304
  %v390 = vunpack.c.l.b16 %v305
  %v391 = vunpack.c.h.b16 %v305
  %v392 = vunpack.c.l.b16 %v306
  %v393 = vunpack.c.h.b16 %v306
  %v394 = vunpack.c.l.b16 %v307
  %v395 = vunpack.c.h.b16 %v307
  %v396 = vunpack.c.l.b16 %v308
  %v397 = vunpack.c.h.b16 %v308
  %v398 = vunpack.c.l.b16 %v309
  %v399 = vunpack.c.h.b16 %v309
  %v400 = vunpack.c.l.b16 %v310
  %v401 = vunpack.c.h.b16 %v310
  %v402 = vunpack.c.l.b16 %v311
  %v403 = vunpack.c.h.b16 %v311
  %v404 = vunpack.c.l.b16 %v312
  %v405 = vunpack.c.h.b16 %v312
  %v406 = vunpack.c.l.b16 %v313
  %v407 = vunpack.c.h.b16 %v313
  %v408 = vunpack.c.l.b16 %v314
  %v409 = vunpack.c.h.b16 %v314
  %v410 = vunpack.c.l.b16 %v315
  %v411 = vunpack.c.h.b16 %v315
  %v412 = vpack.c.b16 %v348, %v348
  %v413 = vpack.c.b16 %v349, %v349
  %v414 = vpack.c.b16 %v350, %v350
  %v415 = vpack.c.b16 %v351, %v351
  %v416 = vpack.c.b16 %v352, %v352
  %v417 = vpack.c.b16 %v353, %v353
  %v418 = vpack.c.b16 %v354, %v354
  %v419 = vpack.c.b16 %v355, %v355
  %v420 = vpack.c.b16 %v356, %v356
  %v421 = vpack.c.b16 %v357, %v357
  %v422 = vpack.c.b16 %v358, %v358
  %v423 = vpack.c.b16 %v359, %v359
  %v424 = vpack.c.b16 %v360, %v360
  %v425 = vpack.c.b16 %v361, %v361
  %v426 = vpack.c.b16 %v362, %v362
  %v427 = vpack.c.b16 %v363, %v363
  %v428 = vpack.c.b16 %v364, %v364
  %v429 = vpack.c.b16 %v365, %v365
  %v430 = vpack.c.b16 %v366, %v366
  %v431 = vpack.c.b16 %v367, %v367
  %v432 = vpack.c.b16 %v368, %v368
  %v433 = vpack.c.b16 %v369, %v369
  %v434 = vpack.c.b16 %v370, %v370
  %v435 = vpack.c.b16 %v371, %v371
  %v436 = vpack.c.b16 %v372, %v372
  %v437 = vpack.c.b16 %v373, %v373
  %v438 = vpack.c.b16 %v374, %v374
  %v439 = vpack.c.b16 %v375, %v375
  %v440 = vpack.c.b16 %v376, %v376
  %v441 = vpack.c.b16 %v377, %v377
  %v442 = vpack.c.b16 %v378, %v378
  %v443 = vpack.c.b16 %v379, %v379
  %v444 = vpack.c.b16 %v380, %v380
  %v445 = vpack.c.b16 %v381, %v381
  %v446 = vpack.c.b16 %v382, %v382
  %v447 = vpack.c.b16 %v383, %v383
  %v448 = vpack.c.b16 %v384, %v384
  %v449 = vpack.c.b16 %v385, %v385
  %v450 = vpack.c.b16 %v386, %v386
  %v451 = vpack.c.b16 %v387, %v387
  %v452 = vpack.c.b16 %v388, %v388
  %v453 = vpack.c.b16 %v389, %v389
  %v454 = vpack.c.b16 %v390, %v390
  %v455 = vpack.c.b16 %v391, %v391
  %v456 = vpack.c.b16 %v392, %v392
  %v457 = vpack.c.b16 %v393, %v393
  %v458 = vpack.c.b16 %v394, %v394
  %v459 = vpack.c.b16 %v395, %v395
  %v460 = vpack.c.b16 %v396, %v396
  %v461 = vpack.c.b16 %v397, %v397
  %v462 = vpack.c.b16 %v398, %v398
  %v463 = vpack.c.b16 %v399, %v399
  %v464 = vpack.c.b16 %v400, %v400
  %v465 = vpack.c.b16 %v401, %v401
  %v466 = vpack.c.b16 %v402, %v402
  %v467 = vpack.c.b16 %v403, %v403
  %v468 = vpack.c.b16 %v404, %v404
  %v469 = vpack.c.b16 %v405, %v405
  %v470 = vpack.c.b16 %v406, %v406
  %v471 = vpack.c.b16 %v407, %v407
  %v472 = vpack.c.b16 %v408, %v408
  %v473 = vpack.c.b16 %v409, %v409
  %v474 = vpack.c.b16 %v410, %v410
  %v475 = vpack.c.b16 %v411, %v411
  %540 = vst [vmem:[%s3] sm:$0xf] %v412
  %541 = vst [vmem:[%s3 + $0x4] sm:$0xf] %v413
  %542 = vst [vmem:[%s3 + $0x8] sm:$0xf] %v414
  %543 = vst [vmem:[%s3 + $0xc] sm:$0xf] %v415
  %544 = vst [vmem:[%s3 + $0x10] sm:$0xf] %v416
  %545 = vst [vmem:[%s3 + $0x14] sm:$0xf] %v417
  %546 = vst [vmem:[%s3 + $0x18] sm:$0xf] %v418
  %547 = vst [vmem:[%s3 + $0x1c] sm:$0xf] %v419
  %548 = vst [vmem:[%s3 + $0x20] sm:$0xf] %v420
  %549 = vst [vmem:[%s3 + $0x24] sm:$0xf] %v421
  %550 = vst [vmem:[%s3 + $0x28] sm:$0xf] %v422
  %551 = vst [vmem:[%s3 + $0x2c] sm:$0xf] %v423
  %552 = vst [vmem:[%s3 + $0x30] sm:$0xf] %v424
  %553 = vst [vmem:[%s3 + $0x34] sm:$0xf] %v425
  %554 = vst [vmem:[%s3 + $0x38] sm:$0xf] %v426
  %555 = vst [vmem:[%s3 + $0x3c] sm:$0xf] %v427
  %556 = vst [vmem:[%s3 + $0x40] sm:$0xf] %v428
  %557 = vst [vmem:[%s3 + $0x44] sm:$0xf] %v429
  %558 = vst [vmem:[%s3 + $0x48] sm:$0xf] %v430
  %559 = vst [vmem:[%s3 + $0x4c] sm:$0xf] %v431
  %560 = vst [vmem:[%s3 + $0x50] sm:$0xf] %v432
  %561 = vst [vmem:[%s3 + $0x54] sm:$0xf] %v433
  %562 = vst [vmem:[%s3 + $0x58] sm:$0xf] %v434
  %563 = vst [vmem:[%s3 + $0x5c] sm:$0xf] %v435
  %564 = vst [vmem:[%s3 + $0x60] sm:$0xf] %v436
  %565 = vst [vmem:[%s3 + $0x64] sm:$0xf] %v437
  %566 = vst [vmem:[%s3 + $0x68] sm:$0xf] %v438
  %567 = vst [vmem:[%s3 + $0x6c] sm:$0xf] %v439
  %568 = vst [vmem:[%s3 + $0x70] sm:$0xf] %v440
  %569 = vst [vmem:[%s3 + $0x74] sm:$0xf] %v441
  %570 = vst [vmem:[%s3 + $0x78] sm:$0xf] %v442
  %571 = vst [vmem:[%s3 + $0x7c] sm:$0xf] %v443
  %572 = vst [vmem:[%s3 + $0x80] sm:$0xf] %v444
  %573 = vst [vmem:[%s3 + $0x84] sm:$0xf] %v445
  %574 = vst [vmem:[%s3 + $0x88] sm:$0xf] %v446
  %575 = vst [vmem:[%s3 + $0x8c] sm:$0xf] %v447
  %576 = vst [vmem:[%s3 + $0x90] sm:$0xf] %v448
  %577 = vst [vmem:[%s3 + $0x94] sm:$0xf] %v449
  %578 = vst [vmem:[%s3 + $0x98] sm:$0xf] %v450
  %579 = vst [vmem:[%s3 + $0x9c] sm:$0xf] %v451
  %580 = vst [vmem:[%s3 + $0xa0] sm:$0xf] %v452
  %581 = vst [vmem:[%s3 + $0xa4] sm:$0xf] %v453
  %582 = vst [vmem:[%s3 + $0xa8] sm:$0xf] %v454
  %583 = vst [vmem:[%s3 + $0xac] sm:$0xf] %v455
  %584 = vst [vmem:[%s3 + $0xb0] sm:$0xf] %v456
  %585 = vst [vmem:[%s3 + $0xb4] sm:$0xf] %v457
  %586 = vst [vmem:[%s3 + $0xb8] sm:$0xf] %v458
  %587 = vst [vmem:[%s3 + $0xbc] sm:$0xf] %v459
  %588 = vst [vmem:[%s3 + $0xc0] sm:$0xf] %v460
  %589 = vst [vmem:[%s3 + $0xc4] sm:$0xf] %v461
  %590 = vst [vmem:[%s3 + $0xc8] sm:$0xf] %v462
  %591 = vst [vmem:[%s3 + $0xcc] sm:$0xf] %v463
  %592 = vst [vmem:[%s3 + $0xd0] sm:$0xf] %v464
  %593 = vst [vmem:[%s3 + $0xd4] sm:$0xf] %v465
  %594 = vst [vmem:[%s3 + $0xd8] sm:$0xf] %v466
  %595 = vst [vmem:[%s3 + $0xdc] sm:$0xf] %v467
  %596 = vst [vmem:[%s3 + $0xe0] sm:$0xf] %v468
  %597 = vst [vmem:[%s3 + $0xe4] sm:$0xf] %v469
  %598 = vst [vmem:[%s3 + $0xe8] sm:$0xf] %v470
  %599 = vst [vmem:[%s3 + $0xec] sm:$0xf] %v471
  %600 = vst [vmem:[%s3 + $0xf0] sm:$0xf] %v472
  %601 = vst [vmem:[%s3 + $0xf4] sm:$0xf] %v473
  %602 = vst [vmem:[%s3 + $0xf8] sm:$0xf] %v474
  %603 = vst [vmem:[%s3 + $0xfc] sm:$0xf] %v475
  // Predicated region
  $region14: #{_lambda_.5} parent=0 // pred_check
    _
  $region15: #{_lambda_.5} parent=0 // pred_check_branch
    %605 = sbr.rel (0) target = $region17
  $region16: #{_lambda_.5} parent=0 // pred_region
    _
  $region17: #{_lambda_.5} parent=0 // pred_fallthru
    _
  // Predicated region
  $region18: #{_lambda_.5} parent=0 // pred_check
    _
  $region19: #{_lambda_.5} parent=0 // pred_check_branch
    %607 = sbr.rel (0) target = $region21
  $region20: #{_lambda_.5} parent=0 // pred_region
    _
  $region21: #{_lambda_.5} parent=0 // pred_fallthru
    _

// kernel: _lambda_.7
$region0: #{_lambda_.7}
  #allocation0 [shape = 'u32[]', space=smem, size = 0x4, offset = 0x4, fixed_abs, tag = 'smem constant byte address 0x4 - core index']
  #allocation1 [shape = 'u32[144,128]{1,0:T(1,128)}', space=vmem, size = 0x12000, scoped, tag = 'internal scratch']
  #allocation2 [shape = 'f32[10,10,128]{2,1,0:T(8,128)}', space=vmem, size = 0x14000, scoped, tag = 'scratch operand']
  %s0 = inlined_call_operand.vmem [shape: bf16[2,8,8,128], index: 0, kind: input, shape index: {}]
  %s1 = inlined_call_operand.vmem [shape: bf16[9,128,128], index: 1, kind: input, shape index: {}]
  %s2 = inlined_call_operand.vmem [shape: f32[1,128], index: 2, kind: input, shape index: {}]
  %s3 = inlined_call_operand.vmem [shape: f32[1,128], index: 3, kind: input, shape index: {}]
  %s4 = inlined_call_operand.vmem [shape: bf16[2,8,8,128], index: 4, kind: input, shape index: {}]
  %s5 = inlined_call_operand.vmem [shape: bf16[2,8,8,128], index: 5, kind: output, shape index: {}]
  %s6 = sld [smem:[#allocation0]]
  $region57: #{_lambda_.7} parent=0
    _
  %s8 = ssub.s32 1, %s6
  %s9 = scalar_select 0, %s8, %s6
  loop: start=0, step=1, limit=4
  $region2: #{_lambda_.7} parent=0 // loop_pre_header
    _
  $region3: #{_lambda_.7} parent=0 // loop_header
    %s11 = sphi 0, %s15
    %p12 = scmp.ge.s32.totalorder %s11, 4
    %s18 = sphi 0, %s30
    %s19 = sphi 0, %s26
    %s20 = sphi 0, %s18
    %s21 = sphi 0, %s19
    %s22 = sphi 0, %s20
    %s23 = sphi 0, %s21
    %s33 = sphi 0, %s35
    %s36 = sphi 0, %s33
    %s37 = sphi 0, %s36
    %s53 = sphi 0, %s37
    %s57 = sphi 0, %s57
    %s59 = sphi 0, %s57
    %s60 = sphi 0, %s59
    %s74 = sphi 0, %s60
    %s78 = sphi 0, %s78
    %s80 = sphi 0, %s78
    %s81 = sphi 0, %s80
    %s95 = sphi 0, %s81
    %s99 = sphi 0, %s99
    %s101 = sphi 0, %s99
    %s102 = sphi 0, %s101
    %s116 = sphi 0, %s102
    %s124 = sphi 0, %s126
    %s127 = sphi 0, %s124
    %s128 = sphi 0, %s127
    %s144 = sphi 0, %s128
    %s152 = sphi 0, %s154
    %s155 = sphi 0, %s152
    %s156 = sphi 0, %s155
    %s172 = sphi 0, %s156
  $region4: #{_lambda_.7} parent=0 // loop_header_branch
    %14 = sbr.rel (%p12) target = $region8
  $region5: #{_lambda_.7} parent=0 // loop_body
    %s16 = ssub.s32 %s11, 1
    %s17 = ssub.s32 %s11, 2
    %s24 = sadd.s32 1, %s19
    %p25 = scmp.ge.s32.totalorder %s24, 1
    %s26 = scalar_select %p25, 0, %s24
    %s27 = sadd.s32 1, %s18
    %s28 = scalar_select %p25, %s27, %s18
    %p29 = scmp.ge.s32.totalorder %s28, 2
    %s30 = scalar_select %p29, 0, %s28
    %s31 = ssub.s32 %s18, %s30
    %p32 = scmp.eq.s32.totalorder %s31, 0
    %s34 = sadd.s32 %s33, 1
    %s35 = scalar_select %p32, %s33, %s34
    %p38 = pneg %p32
    %p39 = scmp.eq.s32.totalorder %s11, 1
    %p40 = por %p38, %p39
    %p41 = scmp.ne.s32.totalorder %s33, %s36
    %p42 = scmp.eq.s32.totalorder %s11, 0
    %p43 = por %p41, %p42
    %p44 = scmp.ne.s32.totalorder %s33, %s36
    %p45 = scmp.eq.s32.totalorder %s16, 1
    %p46 = por %p44, %p45
    %p47 = scmp.ne.s32.totalorder %s36, %s37
    %p48 = scmp.eq.s32.totalorder %s16, 0
    %p49 = por %p47, %p48
    %p50 = scmp.ne.s32.totalorder %s36, %s37
    %p51 = scmp.eq.s32.totalorder %s17, 1
    %p52 = por %p50, %p51
    %p54 = scmp.ne.s32.totalorder %s37, %s53
    %p55 = scmp.eq.s32.totalorder %s17, 0
    %p56 = por %p54, %p55
    %s58 = sadd.s32 %s57, 1
    %p61 = scmp.eq.s32.totalorder %s11, 1
    %p62 = scmp.ne.s32.totalorder %s57, %s59
    %p63 = scmp.eq.s32.totalorder %s11, 0
    %p64 = por %p62, %p63
    %p65 = scmp.ne.s32.totalorder %s57, %s59
    %p66 = scmp.eq.s32.totalorder %s16, 1
    %p67 = por %p65, %p66
    %p68 = scmp.ne.s32.totalorder %s59, %s60
    %p69 = scmp.eq.s32.totalorder %s16, 0
    %p70 = por %p68, %p69
    %p71 = scmp.ne.s32.totalorder %s59, %s60
    %p72 = scmp.eq.s32.totalorder %s17, 1
    %p73 = por %p71, %p72
    %p75 = scmp.ne.s32.totalorder %s60, %s74
    %p76 = scmp.eq.s32.totalorder %s17, 0
    %p77 = por %p75, %p76
    %s79 = sadd.s32 %s78, 1
    %p82 = scmp.eq.s32.totalorder %s11, 1
    %p83 = scmp.ne.s32.totalorder %s78, %s80
    %p84 = scmp.eq.s32.totalorder %s11, 0
    %p85 = por %p83, %p84
    %p86 = scmp.ne.s32.totalorder %s78, %s80
    %p87 = scmp.eq.s32.totalorder %s16, 1
    %p88 = por %p86, %p87
    %p89 = scmp.ne.s32.totalorder %s80, %s81
    %p90 = scmp.eq.s32.totalorder %s16, 0
    %p91 = por %p89, %p90
    %p92 = scmp.ne.s32.totalorder %s80, %s81
    %p93 = scmp.eq.s32.totalorder %s17, 1
    %p94 = por %p92, %p93
    %p96 = scmp.ne.s32.totalorder %s81, %s95
    %p97 = scmp.eq.s32.totalorder %s17, 0
    %p98 = por %p96, %p97
    %s100 = sadd.s32 %s99, 1
    %p103 = scmp.eq.s32.totalorder %s11, 1
    %p104 = scmp.ne.s32.totalorder %s99, %s101
    %p105 = scmp.eq.s32.totalorder %s11, 0
    %p106 = por %p104, %p105
    %p107 = scmp.ne.s32.totalorder %s99, %s101
    %p108 = scmp.eq.s32.totalorder %s16, 1
    %p109 = por %p107, %p108
    %p110 = scmp.ne.s32.totalorder %s101, %s102
    %p111 = scmp.eq.s32.totalorder %s16, 0
    %p112 = por %p110, %p111
    %p113 = scmp.ne.s32.totalorder %s101, %s102
    %p114 = scmp.eq.s32.totalorder %s17, 1
    %p115 = por %p113, %p114
    %p117 = scmp.ne.s32.totalorder %s102, %s116
    %p118 = scmp.eq.s32.totalorder %s17, 0
    %p119 = por %p117, %p118
    %s120 = ssub.s32 %s18, %s30
    %s121 = ssub.s32 %s19, %s26
    %s122 = sor.u32 %s120, %s121
    %p123 = scmp.eq.s32.totalorder %s122, 0
    %s125 = sadd.s32 %s124, 1
    %s126 = scalar_select %p123, %s124, %s125
    %p129 = pneg %p123
    %p130 = scmp.eq.s32.totalorder %s11, 1
    %p131 = por %p129, %p130
    %p132 = scmp.ne.s32.totalorder %s124, %s127
    %p133 = scmp.eq.s32.totalorder %s11, 0
    %p134 = por %p132, %p133
    %p135 = scmp.ne.s32.totalorder %s124, %s127
    %p136 = scmp.eq.s32.totalorder %s16, 1
    %p137 = por %p135, %p136
    %p138 = scmp.ne.s32.totalorder %s127, %s128
    %p139 = scmp.eq.s32.totalorder %s16, 0
    %p140 = por %p138, %p139
    %p141 = scmp.ne.s32.totalorder %s127, %s128
    %p142 = scmp.eq.s32.totalorder %s17, 1
    %p143 = por %p141, %p142
    %p145 = scmp.ne.s32.totalorder %s128, %s144
    %p146 = scmp.eq.s32.totalorder %s17, 0
    %p147 = por %p145, %p146
    %s148 = ssub.s32 %s18, %s30
    %s149 = ssub.s32 %s19, %s26
    %s150 = sor.u32 %s148, %s149
    %p151 = scmp.eq.s32.totalorder %s150, 0
    %s153 = sadd.s32 %s152, 1
    %s154 = scalar_select %p151, %s152, %s153
    %p157 = pneg %p151
    %p158 = scmp.eq.s32.totalorder %s11, 1
    %p159 = por %p157, %p158
    %p160 = scmp.ne.s32.totalorder %s152, %s155
    %p161 = scmp.eq.s32.totalorder %s11, 0
    %p162 = por %p160, %p161
    %p163 = scmp.ne.s32.totalorder %s152, %s155
    %p164 = scmp.eq.s32.totalorder %s16, 1
    %p165 = por %p163, %p164
    %p166 = scmp.ne.s32.totalorder %s155, %s156
    %p167 = scmp.eq.s32.totalorder %s16, 0
    %p168 = por %p166, %p167
    %p169 = scmp.ne.s32.totalorder %s155, %s156
    %p170 = scmp.eq.s32.totalorder %s17, 1
    %p171 = por %p169, %p170
    %p173 = scmp.ne.s32.totalorder %s156, %s172
    %p174 = scmp.eq.s32.totalorder %s17, 0
    %p175 = por %p173, %p174
    %p176 = scmp.le.s32.totalorder 1, %s11
    %p177 = scmp.lt.s32.totalorder %s11, 3
    %p178 = pnand %p176, %p177
    %p179 = pneg %p178
    // Predicated region
    $region9: #{_lambda_.7} parent=5 // pred_check
      _
    $region10: #{_lambda_.7} parent=5 // pred_check_branch
      %181 = sbr.rel (%p178) target = $region12
    $region11: #{_lambda_.7} parent=5 // pred_region
      %s182 = ssub.s32 %s11, 1
      // Predicated region
      $region13: #{_lambda_.7} parent=11 // pred_check
        %p183 = pneg %p70
      $region14: #{_lambda_.7} parent=11 // pred_check_branch
        %185 = sbr.rel (%p183) target = $region16
      $region15: #{_lambda_.7} parent=11 // pred_region
        _
      $region16: #{_lambda_.7} parent=11 // pred_fallthru
        _
      // Predicated region
      $region17: #{_lambda_.7} parent=11 // pred_check
        %p186 = pneg %p91
      $region18: #{_lambda_.7} parent=11 // pred_check_branch
        %188 = sbr.rel (%p186) target = $region20
      $region19: #{_lambda_.7} parent=11 // pred_region
        _
      $region20: #{_lambda_.7} parent=11 // pred_fallthru
        _
      // Predicated region
      $region21: #{_lambda_.7} parent=11 // pred_check
        %p189 = pneg %p112
      $region22: #{_lambda_.7} parent=11 // pred_check_branch
        %191 = sbr.rel (%p189) target = $region24
      $region23: #{_lambda_.7} parent=11 // pred_region
        _
      $region24: #{_lambda_.7} parent=11 // pred_fallthru
        _
    $region12: #{_lambda_.7} parent=5 // pred_fallthru
      _
    %p192 = scmp.lt.s32.totalorder %s11, 2
    // Predicated region
    $region25: #{_lambda_.7} parent=5 // pred_check
      %p193 = pneg %p192
    $region26: #{_lambda_.7} parent=5 // pred_check_branch
      %195 = sbr.rel (%p193) target = $region28
    $region27: #{_lambda_.7} parent=5 // pred_region
      // Predicated region
      $region29: #{_lambda_.7} parent=27 // pred_check
        %p196 = pneg %p43
      $region30: #{_lambda_.7} parent=27 // pred_check_branch
        %198 = sbr.rel (%p196) target = $region32
      $region31: #{_lambda_.7} parent=27 // pred_region
        %p199 = scmp.lt.s32.totalorder %s18, 1
        %s200 = scalar_select %p199, %s18, 1
        %s201 = smul.addr %s200, 8
        %s202 = smul.addr %s201, 4
        %s203 = scalar_lea.vmem %s0, %s202
      $region32: #{_lambda_.7} parent=27 // pred_fallthru
        _
      // Predicated region
      $region33: #{_lambda_.7} parent=27 // pred_check
        %p204 = pneg %p134
      $region34: #{_lambda_.7} parent=27 // pred_check_branch
        %206 = sbr.rel (%p204) target = $region36
      $region35: #{_lambda_.7} parent=27 // pred_region
        %s207 = smul.u32 8, %s19
        %p208 = scmp.lt.s32.totalorder %s18, 1
        %s209 = scalar_select %p208, %s18, 1
        %p210 = scmp.lt.s32.totalorder %s207, 7
        %s211 = scalar_select %p210, %s207, 7
        %s212 = smul.addr %s209, 8
        %s213 = sadd.s32 %s211, %s212
        %s214 = smul.addr %s213, 4
        %s215 = scalar_lea.vmem %s4, %s214
        %s216 = smul.u32 8, %s19
      $region36: #{_lambda_.7} parent=27 // pred_fallthru
        _
    $region28: #{_lambda_.7} parent=5 // pred_fallthru
      _
    %p217 = scmp.le.s32.totalorder 1, %s11
    %p218 = scmp.lt.s32.totalorder %s11, 3
    %p219 = pnand %p217, %p218
    %p220 = pneg %p219
    // Predicated region
    $region37: #{_lambda_.7} parent=5 // pred_check
      _
    $region38: #{_lambda_.7} parent=5 // pred_check_branch
      %222 = sbr.rel (%p219) target = $region40
    $region39: #{_lambda_.7} parent=5 // pred_region
      %s223 = ssub.s32 %s11, 1
      %p224 = scmp.lt.s32.totalorder %s20, 1
      %s225 = scalar_select %p224, %s20, 1
      %s226 = smul.addr %s225, 8
      %s227 = smul.addr %s226, 4
      %s228 = scalar_lea.vmem %s0, %s227
      %p229 = pneg %p49
      %p230 = pneg %p46
      %p231 = pneg %p70
      %p232 = pneg %p67
      %p233 = pneg %p91
      %p234 = pneg %p88
      %p235 = pneg %p112
      %p236 = pneg %p109
      %s237 = smul.u32 8, %s21
      %p238 = scmp.lt.s32.totalorder %s20, 1
      %s239 = scalar_select %p238, %s20, 1
      %p240 = scmp.lt.s32.totalorder %s237, 7
      %s241 = scalar_select %p240, %s237, 7
      %s242 = smul.addr %s239, 8
      %s243 = sadd.s32 %s241, %s242
      %s244 = smul.addr %s243, 4
      %s245 = scalar_lea.vmem %s4, %s244
      %p246 = pneg %p140
      %p247 = pneg %p137
      %p248 = pneg %p168
      %p249 = pneg %p165
      %s250 = smul.u32 8, %s21
      %p251 = scmp.lt.s32.totalorder %s20, 1
      %s252 = scalar_select %p251, %s20, 1
      %p253 = scmp.lt.s32.totalorder %s250, 7
      %s254 = scalar_select %p253, %s250, 7
      %s255 = smul.addr %s252, 8
      %s256 = sadd.s32 %s254, %s255
      %s257 = smul.addr %s256, 4
      %s258 = scalar_lea.vmem %s5, %s257
      %p259 = scmp.lt.s32.totalorder %s20, 1
      %s260 = scalar_select %p259, %s20, 1
      %s261 = smul.addr %s260, 8
      %s262 = smul.addr %s261, 4
      %s263 = scalar_lea.vmem %s0, %s262
      %s264 = smul.u32 8, %s21
      %p265 = scmp.lt.s32.totalorder %s20, 1
      %s266 = scalar_select %p265, %s20, 1
      %p267 = scmp.lt.s32.totalorder %s264, 7
      %s268 = scalar_select %p267, %s264, 7
      %s269 = smul.addr %s266, 8
      %s270 = sadd.s32 %s268, %s269
      %s271 = smul.addr %s270, 4
      %s272 = scalar_lea.vmem %s4, %s271
      %s273 = smul.u32 8, %s21
      %s274 = smul.u32 8, %s21
      %p275 = scmp.lt.s32.totalorder %s20, 1
      %s276 = scalar_select %p275, %s20, 1
      %p277 = scmp.lt.s32.totalorder %s274, 7
      %s278 = scalar_select %p277, %s274, 7
      %s279 = smul.addr %s276, 8
      %s280 = sadd.s32 %s278, %s279
      %s281 = smul.addr %s280, 4
      %s282 = scalar_lea.vmem %s5, %s281
      %s283 = smul.u32 8, %s21
      %s285 = smul.u32 %s21, 8
      %p286 = scmp.eq.s32.totalorder %s21, 0
      // Predicated region
      $region41: #{_lambda_.7} parent=39 // pred_check
        %p287 = pneg %p286
      $region42: #{_lambda_.7} parent=39 // pred_check_branch
        %289 = sbr.rel (%p287) target = $region44
      $region43: #{_lambda_.7} parent=39 // pred_region
        %290 = vst [vmem:[#allocation2] sm:$0xff] 0.0
        %291 = vst [vmem:[#allocation2 + $0x8] sm:$0x3] 0.0
        %292 = vst [vmem:[#allocation2 + $0x10] sm:$0xff] 0.0
        %293 = vst [vmem:[#allocation2 + $0x18] sm:$0x3] 0.0
        %294 = vst [vmem:[#allocation2 + $0x20] sm:$0xff] 0.0
        %295 = vst [vmem:[#allocation2 + $0x28] sm:$0x3] 0.0
        %296 = vst [vmem:[#allocation2 + $0x30] sm:$0xff] 0.0
        %297 = vst [vmem:[#allocation2 + $0x38] sm:$0x3] 0.0
        %298 = vst [vmem:[#allocation2 + $0x40] sm:$0xff] 0.0
        %299 = vst [vmem:[#allocation2 + $0x48] sm:$0x3] 0.0
        %300 = vst [vmem:[#allocation2 + $0x50] sm:$0xff] 0.0
        %301 = vst [vmem:[#allocation2 + $0x58] sm:$0x3] 0.0
        %302 = vst [vmem:[#allocation2 + $0x60] sm:$0xff] 0.0
        %303 = vst [vmem:[#allocation2 + $0x68] sm:$0x3] 0.0
        %304 = vst [vmem:[#allocation2 + $0x70] sm:$0xff] 0.0
        %305 = vst [vmem:[#allocation2 + $0x78] sm:$0x3] 0.0
        %306 = vst [vmem:[#allocation2 + $0x80] sm:$0xff] 0.0
        %307 = vst [vmem:[#allocation2 + $0x88] sm:$0x3] 0.0
        %308 = vst [vmem:[#allocation2 + $0x90] sm:$0xff] 0.0
        %309 = vst [vmem:[#allocation2 + $0x98] sm:$0x3] 0.0
        %v310 = vld [vmem:[%s263] sm:$0xf]
        %v311 = vld [vmem:[%s263 + $0x4] sm:$0xf]
        %v312 = vld [vmem:[%s263 + $0x8] sm:$0xf]
        %v313 = vld [vmem:[%s263 + $0xc] sm:$0xf]
        %v314 = vld [vmem:[%s263 + $0x10] sm:$0xf]
        %v315 = vld [vmem:[%s263 + $0x14] sm:$0xf]
        %v316 = vld [vmem:[%s263 + $0x18] sm:$0xf]
        %v317 = vld [vmem:[%s263 + $0x1c] sm:$0xf]
        %v318 = vunpack.c.l.bf16 %v310
        %v319 = vunpack.c.l.bf16 %v311
        %v320 = vunpack.c.l.bf16 %v312
        %v321 = vunpack.c.l.bf16 %v313
        %v322 = vunpack.c.l.bf16 %v314
        %v323 = vunpack.c.l.bf16 %v315
        %v324 = vunpack.c.l.bf16 %v316
        %v325 = vunpack.c.l.bf16 %v317
        %v326 = vld [vmem:[%s2] sm:$0x1]
        %v328 = vlaneseq
        %v329 = vshrl.u32 %v328, 7
        %v330 = vsub.s32 0, %v329
        %v331 = vrot.slane %v326, %v330
        %v333 = vmul.f32 %v318, %v331
        %v334 = vmul.f32 %v319, %v331
        %v335 = vmul.f32 %v320, %v331
        %v336 = vmul.f32 %v321, %v331
        %v337 = vmul.f32 %v322, %v331
        %v338 = vmul.f32 %v323, %v331
        %v339 = vmul.f32 %v324, %v331
        %v340 = vmul.f32 %v325, %v331
        %v341 = vld [vmem:[%s3] sm:$0x1]
        %v343 = vlaneseq
        %v344 = vshrl.u32 %v343, 7
        %v345 = vsub.s32 0, %v344
        %v346 = vrot.slane %v341, %v345
        %v348 = vadd.f32 %v333, %v346
        %v349 = vadd.f32 %v334, %v346
        %v350 = vadd.f32 %v335, %v346
        %v351 = vadd.f32 %v336, %v346
        %v352 = vadd.f32 %v337, %v346
        %v353 = vadd.f32 %v338, %v346
        %v354 = vadd.f32 %v339, %v346
        %v355 = vadd.f32 %v340, %v346
        %v356 = vmax.f32 %v348, 0.0
        %v357 = vmax.f32 %v349, 0.0
        %v358 = vmax.f32 %v350, 0.0
        %v359 = vmax.f32 %v351, 0.0
        %v360 = vmax.f32 %v352, 0.0
        %v361 = vmax.f32 %v353, 0.0
        %v362 = vmax.f32 %v354, 0.0
        %v363 = vmax.f32 %v355, 0.0
        %s364 = scalar_lea.vmem [#allocation2], 16
        %365 = vst [vmem:[%s364 + $0x1] sm:$0xff] %v356
        %366 = vst [vmem:[%s364 + $0x11] sm:$0xff] %v357
        %367 = vst [vmem:[%s364 + $0x21] sm:$0xff] %v358
        %368 = vst [vmem:[%s364 + $0x31] sm:$0xff] %v359
        %369 = vst [vmem:[%s364 + $0x41] sm:$0xff] %v360
        %370 = vst [vmem:[%s364 + $0x51] sm:$0xff] %v361
        %371 = vst [vmem:[%s364 + $0x61] sm:$0xff] %v362
        %372 = vst [vmem:[%s364 + $0x71] sm:$0xff] %v363
      $region44: #{_lambda_.7} parent=39 // pred_fallthru
        _
      %s373 = smul.u32 %s285, 16
      %s374 = scalar_lea.vmem [#allocation2], %s373
      %v375 = vld [vmem:[%s374] sm:$0xff]
      %v376 = vld [vmem:[%s374 + $0x10] sm:$0xff]
      %v377 = vld [vmem:[%s374 + $0x20] sm:$0xff]
      %v378 = vld [vmem:[%s374 + $0x30] sm:$0xff]
      %v379 = vld [vmem:[%s374 + $0x40] sm:$0xff]
      %v380 = vld [vmem:[%s374 + $0x50] sm:$0xff]
      %v381 = vld [vmem:[%s374 + $0x60] sm:$0xff]
      %v382 = vld [vmem:[%s374 + $0x70] sm:$0xff]
      %v383 = vpack.c.bf16 %v376, %v375
      %v384 = vpack.c.bf16 %v378, %v377
      %v385 = vpack.c.bf16 %v380, %v379
      %v386 = vpack.c.bf16 %v382, %v381
      %v387 = vld [vmem:[%s1] sm:$0xf]
      %v388 = vld [vmem:[%s1 + $0x4] sm:$0xf]
      %v389 = vld [vmem:[%s1 + $0x8] sm:$0xf]
      %v390 = vld [vmem:[%s1 + $0xc] sm:$0xf]
      %v391 = vld [vmem:[%s1 + $0x10] sm:$0xf]
      %v392 = vld [vmem:[%s1 + $0x14] sm:$0xf]
      %v393 = vld [vmem:[%s1 + $0x18] sm:$0xf]
      %v394 = vld [vmem:[%s1 + $0x1c] sm:$0xf]
      %v395 = vld [vmem:[%s1 + $0x20] sm:$0xf]
      %v396 = vld [vmem:[%s1 + $0x24] sm:$0xf]
      %v397 = vld [vmem:[%s1 + $0x28] sm:$0xf]
      %v398 = vld [vmem:[%s1 + $0x2c] sm:$0xf]
      %v399 = vld [vmem:[%s1 + $0x30] sm:$0xf]
      %v400 = vld [vmem:[%s1 + $0x34] sm:$0xf]
      %v401 = vld [vmem:[%s1 + $0x38] sm:$0xf]
      %v402 = vld [vmem:[%s1 + $0x3c] sm:$0xf]
      %v403 = vld [vmem:[%s374 + $0x1] sm:$0xff]
      %v404 = vld [vmem:[%s374 + $0x11] sm:$0xff]
      %v405 = vld [vmem:[%s374 + $0x21] sm:$0xff]
      %v406 = vld [vmem:[%s374 + $0x31] sm:$0xff]
      %v407 = vld [vmem:[%s374 + $0x41] sm:$0xff]
      %v408 = vld [vmem:[%s374 + $0x51] sm:$0xff]
      %v409 = vld [vmem:[%s374 + $0x61] sm:$0xff]
      %v410 = vld [vmem:[%s374 + $0x71] sm:$0xff]
      %v411 = vpack.c.bf16 %v404, %v403
      %v412 = vpack.c.bf16 %v406, %v405
      %v413 = vpack.c.bf16 %v408, %v407
      %v414 = vpack.c.bf16 %v410, %v409
      %s415 = scalar_lea.vmem %s1, 64
      %v416 = vld [vmem:[%s415] sm:$0xf]
      %v417 = vld [vmem:[%s415 + $0x4] sm:$0xf]
      %v418 = vld [vmem:[%s415 + $0x8] sm:$0xf]
      %v419 = vld [vmem:[%s415 + $0xc] sm:$0xf]
      %v420 = vld [vmem:[%s415 + $0x10] sm:$0xf]
      %v421 = vld [vmem:[%s415 + $0x14] sm:$0xf]
      %v422 = vld [vmem:[%s415 + $0x18] sm:$0xf]
      %v423 = vld [vmem:[%s415 + $0x1c] sm:$0xf]
      %v424 = vld [vmem:[%s415 + $0x20] sm:$0xf]
      %v425 = vld [vmem:[%s415 + $0x24] sm:$0xf]
      %v426 = vld [vmem:[%s415 + $0x28] sm:$0xf]
      %v427 = vld [vmem:[%s415 + $0x2c] sm:$0xf]
      %v428 = vld [vmem:[%s415 + $0x30] sm:$0xf]
      %v429 = vld [vmem:[%s415 + $0x34] sm:$0xf]
      %v430 = vld [vmem:[%s415 + $0x38] sm:$0xf]
      %v431 = vld [vmem:[%s415 + $0x3c] sm:$0xf]
      %v448 = vunpack.c.l.b16 %v416
      %v449 = vunpack.c.l.b16 %v417
      %v450 = vunpack.c.l.b16 %v418
      %v451 = vunpack.c.l.b16 %v419
      %v452 = vunpack.c.l.b16 %v420
      %v453 = vunpack.c.l.b16 %v421
      %v454 = vunpack.c.l.b16 %v422
      %v455 = vunpack.c.l.b16 %v423
      %v456 = vunpack.c.l.b16 %v424
      %v457 = vunpack.c.l.b16 %v425
      %v458 = vunpack.c.l.b16 %v426
      %v459 = vunpack.c.l.b16 %v427
      %v460 = vunpack.c.l.b16 %v428
      %v461 = vunpack.c.l.b16 %v429
      %v462 = vunpack.c.l.b16 %v430
      %v463 = vunpack.c.l.b16 %v431
      %v464 = vpack.c.b16 %v449, %v448
      %v465 = vpack.c.b16 %v451, %v450
      %v466 = vpack.c.b16 %v453, %v452
      %v467 = vpack.c.b16 %v455, %v454
      %v468 = vpack.c.b16 %v457, %v456
      %v469 = vpack.c.b16 %v459, %v458
      %v470 = vpack.c.b16 %v461, %v460
      %v471 = vpack.c.b16 %v463, %v462
      %480 = vmatprep.subr.bf16.mxu0 0
      %481 = vmatpush1.bf16.msra.mxu0 %v464
      %482 = vmatprep.subr.bf16.mxu0 0
      %483 = vmatpush1.bf16.msra.mxu0 %v465
      %484 = vmatprep.subr.bf16.mxu0 0
      %485 = vmatpush1.bf16.msra.mxu0 %v466
      %486 = vmatprep.subr.bf16.mxu0 0
      %487 = vmatpush1.bf16.msra.mxu0 %v467
      %488 = vmatprep.subr.bf16.mxu0 0
      %489 = vmatpush1.bf16.msra.mxu0 %v468
      %490 = vmatprep.subr.bf16.mxu0 0
      %491 = vmatpush1.bf16.msra.mxu0 %v469
      %492 = vmatprep.subr.bf16.mxu0 0
      %493 = vmatpush1.bf16.msra.mxu0 %v470
      %494 = vmatprep.subr.bf16.mxu0 0
      %495 = vmatpush1.bf16.msra.mxu0 %v471
      %496 = vmatprep.subr.bf16.mxu0 0
      %497 = vmatpush1.bf16.msra.mxu0 0
      %498 = vmatprep.subr.bf16.mxu0 0
      %499 = vmatpush1.bf16.msra.mxu0 0
      %500 = vmatprep.subr.bf16.mxu0 0
      %501 = vmatpush1.bf16.msra.mxu0 0
      %502 = vmatprep.subr.bf16.mxu0 0
      %503 = vmatpush1.bf16.msra.mxu0 0
      %504 = vmatprep.subr.bf16.mxu0 0
      %505 = vmatpush1.bf16.msra.mxu0 0
      %506 = vmatprep.subr.bf16.mxu0 0
      %507 = vmatpush1.bf16.msra.mxu0 0
      %508 = vmatprep.subr.bf16.mxu0 0
      %509 = vmatpush1.bf16.msra.mxu0 0
      %510 = vmatprep.subr.bf16.mxu0 0
      %511 = vmatpush1.bf16.msra.mxu0 0
      %512 = vmatprep.mubr.bf16.mxu0 0
      %513 = vmatmul.mubr.bf16.gmra.mrb[0].mxu0 %v411
      %v514 = vpop.f32.mrb[0].mxu0
      %v515 = vadd.f32 0.0, %v514
      %v516 = vpop.f32.mrb[0].mxu0
      %v517 = vpop.f32.mrb[0].mxu0
      %v518 = vadd.f32 0.0, %v517
      %v519 = vpop.f32.mrb[0].mxu0
      %520 = vmatprep.mubr.bf16.mxu0 0
      %521 = vmatmul.mubr.bf16.gmra.mrb[0].mxu0 %v412
      %v522 = vpop.f32.mrb[0].mxu0
      %v523 = vadd.f32 0.0, %v522
      %v524 = vpop.f32.mrb[0].mxu0
      %v525 = vpop.f32.mrb[0].mxu0
      %v526 = vadd.f32 0.0, %v525
      %v527 = vpop.f32.mrb[0].mxu0
      %528 = vmatprep.mubr.bf16.mxu0 0
      %529 = vmatmul.mubr.bf16.gmra.mrb[0].mxu0 %v413
      %v530 = vpop.f32.mrb[0].mxu0
      %v531 = vadd.f32 0.0, %v530
      %v532 = vpop.f32.mrb[0].mxu0
      %v533 = vpop.f32.mrb[0].mxu0
      %v534 = vadd.f32 0.0, %v533
      %v535 = vpop.f32.mrb[0].mxu0
      %536 = vmatprep.mubr.bf16.mxu0 0
      %537 = vmatmul.mubr.bf16.gmra.mrb[0].mxu0 %v414
      %v538 = vpop.f32.mrb[0].mxu0
      %v539 = vadd.f32 0.0, %v538
      %v540 = vpop.f32.mrb[0].mxu0
      %v541 = vpop.f32.mrb[0].mxu0
      %v542 = vadd.f32 0.0, %v541
      %v543 = vpop.f32.mrb[0].mxu0
      %544 = vdwg.mxu0
      %v561 = vunpack.c.l.b16 %v387
      %v562 = vunpack.c.l.b16 %v388
      %v563 = vunpack.c.l.b16 %v389
      %v564 = vunpack.c.l.b16 %v390
      %v565 = vunpack.c.l.b16 %v391
      %v566 = vunpack.c.l.b16 %v392
      %v567 = vunpack.c.l.b16 %v393
      %v568 = vunpack.c.l.b16 %v394
      %v569 = vunpack.c.l.b16 %v395
      %v570 = vunpack.c.l.b16 %v396
      %v571 = vunpack.c.l.b16 %v397
      %v572 = vunpack.c.l.b16 %v398
      %v573 = vunpack.c.l.b16 %v399
      %v574 = vunpack.c.l.b16 %v400
      %v575 = vunpack.c.l.b16 %v401
      %v576 = vunpack.c.l.b16 %v402
      %v577 = vpack.c.b16 %v562, %v561
      %v578 = vpack.c.b16 %v564, %v563
      %v579 = vpack.c.b16 %v566, %v565
      %v580 = vpack.c.b16 %v568, %v567
      %v581 = vpack.c.b16 %v570, %v569
      %v582 = vpack.c.b16 %v572, %v571
      %v583 = vpack.c.b16 %v574, %v573
      %v584 = vpack.c.b16 %v576, %v575
      %593 = vmatprep.subr.bf16.mxu0 0
      %594 = vmatpush1.bf16.msra.mxu0 %v577
      %595 = vmatprep.subr.bf16.mxu0 0
      %596 = vmatpush1.bf16.msra.mxu0 %v578
      %597 = vmatprep.subr.bf16.mxu0 0
      %598 = vmatpush1.bf16.msra.mxu0 %v579
      %599 = vmatprep.subr.bf16.mxu0 0
      %600 = vmatpush1.bf16.msra.mxu0 %v580
      %601 = vmatprep.subr.bf16.mxu0 0
      %602 = vmatpush1.bf16.msra.mxu0 %v581
      %603 = vmatprep.subr.bf16.mxu0 0
      %604 = vmatpush1.bf16.msra.mxu0 %v582
      %605 = vmatprep.subr.bf16.mxu0 0
      %606 = vmatpush1.bf16.msra.mxu0 %v583
      %607 = vmatprep.subr.bf16.mxu0 0
      %608 = vmatpush1.bf16.msra.mxu0 %v584
      %609 = vmatprep.subr.bf16.mxu0 0
      %610 = vmatpush1.bf16.msra.mxu0 0
      %611 = vmatprep.subr.bf16.mxu0 0
      %612 = vmatpush1.bf16.msra.mxu0 0
      %613 = vmatprep.subr.bf16.mxu0 0
      %614 = vmatpush1.bf16.msra.mxu0 0
      %615 = vmatprep.subr.bf16.mxu0 0
      %616 = vmatpush1.bf16.msra.mxu0 0
      %617 = vmatprep.subr.bf16.mxu0 0
      %618 = vmatpush1.bf16.msra.mxu0 0
      %619 = vmatprep.subr.bf16.mxu0 0
      %620 = vmatpush1.bf16.msra.mxu0 0
      %621 = vmatprep.subr.bf16.mxu0 0
      %622 = vmatpush1.bf16.msra.mxu0 0
      %623 = vmatprep.subr.bf16.mxu0 0
      %624 = vmatpush1.bf16.msra.mxu0 0
      %625 = vmatprep.mubr.bf16.mxu0 0
      %626 = vmatmul.mubr.bf16.gmra.mrb[0].mxu0 %v383
      %v627 = vpop.f32.mrb[0].mxu0
      %v628 = vadd.f32 %v515, %v627
      %v629 = vpop.f32.mrb[0].mxu0
      %v630 = vpop.f32.mrb[0].mxu0
      %v631 = vadd.f32 %v518, %v630
      %v632 = vpop.f32.mrb[0].mxu0
      %633 = vmatprep.mubr.bf16.mxu0 0
      %634 = vmatmul.mubr.bf16.gmra.mrb[0].mxu0 %v384
      %v635 = vpop.f32.mrb[0].mxu0
      %v636 = vadd.f32 %v523, %v635
      %v637 = vpop.f32.mrb[0].mxu0
      %v638 = vpop.f32.mrb[0].mxu0
      %v639 = vadd.f32 %v526, %v638
      %v640 = vpop.f32.mrb[0].mxu0
      %641 = vmatprep.mubr.bf16.mxu0 0
      %642 = vmatmul.mubr.bf16.gmra.mrb[0].mxu0 %v385
      %v643 = vpop.f32.mrb[0].mxu0
      %v644 = vadd.f32 %v531, %v643
      %v645 = vpop.f32.mrb[0].mxu0
      %v646 = vpop.f32.mrb[0].mxu0
      %v647 = vadd.f32 %v534, %v646
      %v648 = vpop.f32.mrb[0].mxu0
      %649 = vmatprep.mubr.bf16.mxu0 0
      %650 = vmatmul.mubr.bf16.gmra.mrb[0].mxu0 %v386
      %v651 = vpop.f32.mrb[0].mxu0
      %v652 = vadd.f32 %v539, %v651
      %v653 = vpop.f32.mrb[0].mxu0
      %v654 = vpop.f32.mrb[0].mxu0
      %v655 = vadd.f32 %v542, %v654
      %v656 = vpop.f32.mrb[0].mxu0
      %657 = vdwg.mxu0
      %v658 = vld [vmem:[%s374 + $0x2] sm:$0xff]
      %v659 = vld [vmem:[%s374 + $0x12] sm:$0xff]
      %v660 = vld [vmem:[%s374 + $0x22] sm:$0xff]
      %v661 = vld [vmem:[%s374 + $0x32] sm:$0xff]
      %v662 = vld [vmem:[%s374 + $0x42] sm:$0xff]
      %v663 = vld [vmem:[%s374 + $0x52] sm:$0xff]
      %v664 = vld [vmem:[%s374 + $0x62] sm:$0xff]
      %v665 = vld [vmem:[%s374 + $0x72] sm:$0xff]
      %v666 = vpack.c.bf16 %v659, %v658
      %v667 = vpack.c.bf16 %v661, %v660
      %v668 = vpack.c.bf16 %v663, %v662
      %v669 = vpack.c.bf16 %v665, %v664
      %s670 = scalar_lea.vmem %s1, 128
      %v671 = vld [vmem:[%s670] sm:$0xf]
      %v672 = vld [vmem:[%s670 + $0x4] sm:$0xf]
      %v673 = vld [vmem:[%s670 + $0x8] sm:$0xf]
      %v674 = vld [vmem:[%s670 + $0xc] sm:$0xf]
      %v675 = vld [vmem:[%s670 + $0x10] sm:$0xf]
      %v676 = vld [vmem:[%s670 + $0x14] sm:$0xf]
      %v677 = vld [vmem:[%s670 + $0x18] sm:$0xf]
      %v678 = vld [vmem:[%s670 + $0x1c] sm:$0xf]
      %v679 = vld [vmem:[%s670 + $0x20] sm:$0xf]
      %v680 = vld [vmem:[%s670 + $0x24] sm:$0xf]
      %v681 = vld [vmem:[%s670 + $0x28] sm:$0xf]
      %v682 = vld [vmem:[%s670 + $0x2c] sm:$0xf]
      %v683 = vld [vmem:[%s670 + $0x30] sm:$0xf]
      %v684 = vld [vmem:[%s670 + $0x34] sm:$0xf]
      %v685 = vld [vmem:[%s670 + $0x38] sm:$0xf]
      %v686 = vld [vmem:[%s670 + $0x3c] sm:$0xf]
      %v703 = vunpack.c.l.b16 %v671
      %v704 = vunpack.c.l.b16 %v672
      %v705 = vunpack.c.l.b16 %v673
      %v706 = vunpack.c.l.b16 %v674
      %v707 = vunpack.c.l.b16 %v675
      %v708 = vunpack.c.l.b16 %v676
      %v709 = vunpack.c.l.b16 %v677
      %v710 = vunpack.c.l.b16 %v678
      %v711 = vunpack.c.l.b16 %v679
      %v712 = vunpack.c.l.b16 %v680
      %v713 = vunpack.c.l.b16 %v681
      %v714 = vunpack.c.l.b16 %v682
      %v715 = vunpack.c.l.b16 %v683
      %v716 = vunpack.c.l.b16 %v684
      %v717 = vunpack.c.l.b16 %v685
      %v718 = vunpack.c.l.b16 %v686
      %v719 = vpack.c.b16 %v704, %v703
      %v720 = vpack.c.b16 %v706, %v705
      %v721 = vpack.c.b16 %v708, %v707
      %v722 = vpack.c.b16 %v710, %v709
      %v723 = vpack.c.b16 %v712, %v711
      %v724 = vpack.c.b16 %v714, %v713
      %v725 = vpack.c.b16 %v716, %v715
      %v726 = vpack.c.b16 %v718, %v717
      %735 = vmatprep.subr.bf16.mxu0 0
      %736 = vmatpush1.bf16.msra.mxu0 %v719
      %737 = vmatprep.subr.bf16.mxu0 0
      %738 = vmatpush1.bf16.msra.mxu0 %v720
      %739 = vmatprep.subr.bf16.mxu0 0
      %740 = vmatpush1.bf16.msra.mxu0 %v721
      %741 = vmatprep.subr.bf16.mxu0 0
      %742 = vmatpush1.bf16.msra.mxu0 %v722
      %743 = vmatprep.subr.bf16.mxu0 0
      %744 = vmatpush1.bf16.msra.mxu0 %v723
      %745 = vmatprep.subr.bf16.mxu0 0
      %746 = vmatpush1.bf16.msra.mxu0 %v724
      %747 = vmatprep.subr.bf16.mxu0 0
      %748 = vmatpush1.bf16.msra.mxu0 %v725
      %749 = vmatprep.subr.bf16.mxu0 0
      %750 = vmatpush1.bf16.msra.mxu0 %v726
      %751 = vmatprep.subr.bf16.mxu0 0
      %752 = vmatpush1.bf16.msra.mxu0 0
      %753 = vmatprep.subr.bf16.mxu0 0
      %754 = vmatpush1.bf16.msra.mxu0 0
      %755 = vmatprep.subr.bf16.mxu0 0
      %756 = vmatpush1.bf16.msra.mxu0 0
      %757 = vmatprep.subr.bf16.mxu0 0
      %758 = vmatpush1.bf16.msra.mxu0 0
      %759 = vmatprep.subr.bf16.mxu0 0
      %760 = vmatpush1.bf16.msra.mxu0 0
      %761 = vmatprep.subr.bf16.mxu0 0
      %762 = vmatpush1.bf16.msra.mxu0 0
      %763 = vmatprep.subr.bf16.mxu0 0
      %764 = vmatpush1.bf16.msra.mxu0 0
      %765 = vmatprep.subr.bf16.mxu0 0
      %766 = vmatpush1.bf16.msra.mxu0 0
      %767 = vmatprep.mubr.bf16.mxu0 0
      %768 = vmatmul.mubr.bf16.gmra.mrb[0].mxu0 %v666
      %v769 = vpop.f32.mrb[0].mxu0
      %v770 = vadd.f32 0.0, %v769
      %v771 = vpop.f32.mrb[0].mxu0
      %v772 = vpop.f32.mrb[0].mxu0
      %v773 = vadd.f32 0.0, %v772
      %v774 = vpop.f32.mrb[0].mxu0
      %775 = vmatprep.mubr.bf16.mxu0 0
      %776 = vmatmul.mubr.bf16.gmra.mrb[0].mxu0 %v667
      %v777 = vpop.f32.mrb[0].mxu0
      %v778 = vadd.f32 0.0, %v777
      %v779 = vpop.f32.mrb[0].mxu0
      %v780 = vpop.f32.mrb[0].mxu0
      %v781 = vadd.f32 0.0, %v780
      %v782 = vpop.f32.mrb[0].mxu0
      %783 = vmatprep.mubr.bf16.mxu0 0
      %784 = vmatmul.mubr.bf16.gmra.mrb[0].mxu0 %v668
      %v785 = vpop.f32.mrb[0].mxu0
      %v786 = vadd.f32 0.0, %v785
      %v787 = vpop.f32.mrb[0].mxu0
      %v788 = vpop.f32.mrb[0].mxu0
      %v789 = vadd.f32 0.0, %v788
      %v790 = vpop.f32.mrb[0].mxu0
      %791 = vmatprep.mubr.bf16.mxu0 0
      %792 = vmatmul.mubr.bf16.gmra.mrb[0].mxu0 %v669
      %v793 = vpop.f32.mrb[0].mxu0
      %v794 = vadd.f32 0.0, %v793
      %v795 = vpop.f32.mrb[0].mxu0
      %v796 = vpop.f32.mrb[0].mxu0
      %v797 = vadd.f32 0.0, %v796
      %v798 = vpop.f32.mrb[0].mxu0
      %799 = vdwg.mxu0
      %v800 = vadd.f32 %v628, %v770
      %v801 = vadd.f32 %v631, %v773
      %v802 = vadd.f32 %v636, %v778
      %v803 = vadd.f32 %v639, %v781
      %v804 = vadd.f32 %v644, %v786
      %v805 = vadd.f32 %v647, %v789
      %v806 = vadd.f32 %v652, %v794
      %v807 = vadd.f32 %v655, %v797
      %s808 = sadd.s32 %s285, 1
      %s809 = smul.u32 %s808, 16
      %s810 = scalar_lea.vmem [#allocation2], %s809
      %v811 = vld [vmem:[%s810] sm:$0xff]
      %v812 = vld [vmem:[%s810 + $0x10] sm:$0xff]
      %v813 = vld [vmem:[%s810 + $0x20] sm:$0xff]
      %v814 = vld [vmem:[%s810 + $0x30] sm:$0xff]
      %v815 = vld [vmem:[%s810 + $0x40] sm:$0xff]
      %v816 = vld [vmem:[%s810 + $0x50] sm:$0xff]
      %v817 = vld [vmem:[%s810 + $0x60] sm:$0xff]
      %v818 = vld [vmem:[%s810 + $0x70] sm:$0xff]
      %v819 = vpack.c.bf16 %v812, %v811
      %v820 = vpack.c.bf16 %v814, %v813
      %v821 = vpack.c.bf16 %v816, %v815
      %v822 = vpack.c.bf16 %v818, %v817
      %s823 = scalar_lea.vmem %s1, 192
      %v824 = vld [vmem:[%s823] sm:$0xf]
      %v825 = vld [vmem:[%s823 + $0x4] sm:$0xf]
      %v826 = vld [vmem:[%s823 + $0x8] sm:$0xf]
      %v827 = vld [vmem:[%s823 + $0xc] sm:$0xf]
      %v828 = vld [vmem:[%s823 + $0x10] sm:$0xf]
      %v829 = vld [vmem:[%s823 + $0x14] sm:$0xf]
      %v830 = vld [vmem:[%s823 + $0x18] sm:$0xf]
      %v831 = vld [vmem:[%s823 + $0x1c] sm:$0xf]
      %v832 = vld [vmem:[%s823 + $0x20] sm:$0xf]
      %v833 = vld [vmem:[%s823 + $0x24] sm:$0xf]
      %v834 = vld [vmem:[%s823 + $0x28] sm:$0xf]
      %v835 = vld [vmem:[%s823 + $0x2c] sm:$0xf]
      %v836 = vld [vmem:[%s823 + $0x30] sm:$0xf]
      %v837 = vld [vmem:[%s823 + $0x34] sm:$0xf]
      %v838 = vld [vmem:[%s823 + $0x38] sm:$0xf]
      %v839 = vld [vmem:[%s823 + $0x3c] sm:$0xf]
      %v856 = vunpack.c.l.b16 %v824
      %v857 = vunpack.c.l.b16 %v825
      %v858 = vunpack.c.l.b16 %v826
      %v859 = vunpack.c.l.b16 %v827
      %v860 = vunpack.c.l.b16 %v828
      %v861 = vunpack.c.l.b16 %v829
      %v862 = vunpack.c.l.b16 %v830
      %v863 = vunpack.c.l.b16 %v831
      %v864 = vunpack.c.l.b16 %v832
      %v865 = vunpack.c.l.b16 %v833
      %v866 = vunpack.c.l.b16 %v834
      %v867 = vunpack.c.l.b16 %v835
      %v868 = vunpack.c.l.b16 %v836
      %v869 = vunpack.c.l.b16 %v837
      %v870 = vunpack.c.l.b16 %v838
      %v871 = vunpack.c.l.b16 %v839
      %v872 = vpack.c.b16 %v857, %v856
      %v873 = vpack.c.b16 %v859, %v858
      %v874 = vpack.c.b16 %v861, %v860
      %v875 = vpack.c.b16 %v863, %v862
      %v876 = vpack.c.b16 %v865, %v864
      %v877 = vpack.c.b16 %v867, %v866
      %v878 = vpack.c.b16 %v869, %v868
      %v879 = vpack.c.b16 %v871, %v870
      %888 = vmatprep.subr.bf16.mxu0 0
      %889 = vmatpush1.bf16.msra.mxu0 %v872
      %890 = vmatprep.subr.bf16.mxu0 0
      %891 = vmatpush1.bf16.msra.mxu0 %v873
      %892 = vmatprep.subr.bf16.mxu0 0
      %893 = vmatpush1.bf16.msra.mxu0 %v874
      %894 = vmatprep.subr.bf16.mxu0 0
      %895 = vmatpush1.bf16.msra.mxu0 %v875
      %896 = vmatprep.subr.bf16.mxu0 0
      %897 = vmatpush1.bf16.msra.mxu0 %v876
      %898 = vmatprep.subr.bf16.mxu0 0
      %899 = vmatpush1.bf16.msra.mxu0 %v877
      %900 = vmatprep.subr.bf16.mxu0 0
      %901 = vmatpush1.bf16.msra.mxu0 %v878
      %902 = vmatprep.subr.bf16.mxu0 0
      %903 = vmatpush1.bf16.msra.mxu0 %v879
      %904 = vmatprep.subr.bf16.mxu0 0
      %905 = vmatpush1.bf16.msra.mxu0 0
      %906 = vmatprep.subr.bf16.mxu0 0
      %907 = vmatpush1.bf16.msra.mxu0 0
      %908 = vmatprep.subr.bf16.mxu0 0
      %909 = vmatpush1.bf16.msra.mxu0 0
      %910 = vmatprep.subr.bf16.mxu0 0
      %911 = vmatpush1.bf16.msra.mxu0 0
      %912 = vmatprep.subr.bf16.mxu0 0
      %913 = vmatpush1.bf16.msra.mxu0 0
      %914 = vmatprep.subr.bf16.mxu0 0
      %915 = vmatpush1.bf16.msra.mxu0 0
      %916 = vmatprep.subr.bf16.mxu0 0
      %917 = vmatpush1.bf16.msra.mxu0 0
      %918 = vmatprep.subr.bf16.mxu0 0
      %919 = vmatpush1.bf16.msra.mxu0 0
      %920 = vmatprep.mubr.bf16.mxu0 0
      %921 = vmatmul.mubr.bf16.gmra.mrb[0].mxu0 %v819
      %v922 = vpop.f32.mrb[0].mxu0
      %v923 = vadd.f32 0.0, %v922
      %v924 = vpop.f32.mrb[0].mxu0
      %v925 = vpop.f32.mrb[0].mxu0
      %v926 = vadd.f32 0.0, %v925
      %v927 = vpop.f32.mrb[0].mxu0
      %928 = vmatprep.mubr.bf16.mxu0 0
      %929 = vmatmul.mubr.bf16.gmra.mrb[0].mxu0 %v820
      %v930 = vpop.f32.mrb[0].mxu0
      %v931 = vadd.f32 0.0, %v930
      %v932 = vpop.f32.mrb[0].mxu0
      %v933 = vpop.f32.mrb[0].mxu0
      %v934 = vadd.f32 0.0, %v933
      %v935 = vpop.f32.mrb[0].mxu0
      %936 = vmatprep.mubr.bf16.mxu0 0
      %937 = vmatmul.mubr.bf16.gmra.mrb[0].mxu0 %v821
      %v938 = vpop.f32.mrb[0].mxu0
      %v939 = vadd.f32 0.0, %v938
      %v940 = vpop.f32.mrb[0].mxu0
      %v941 = vpop.f32.mrb[0].mxu0
      %v942 = vadd.f32 0.0, %v941
      %v943 = vpop.f32.mrb[0].mxu0
      %944 = vmatprep.mubr.bf16.mxu0 0
      %945 = vmatmul.mubr.bf16.gmra.mrb[0].mxu0 %v822
      %v946 = vpop.f32.mrb[0].mxu0
      %v947 = vadd.f32 0.0, %v946
      %v948 = vpop.f32.mrb[0].mxu0
      %v949 = vpop.f32.mrb[0].mxu0
      %v950 = vadd.f32 0.0, %v949
      %v951 = vpop.f32.mrb[0].mxu0
      %952 = vdwg.mxu0
      %v953 = vadd.f32 %v800, %v923
      %v954 = vadd.f32 %v801, %v926
      %v955 = vadd.f32 %v802, %v931
      %v956 = vadd.f32 %v803, %v934
      %v957 = vadd.f32 %v804, %v939
      %v958 = vadd.f32 %v805, %v942
      %v959 = vadd.f32 %v806, %v947
      %v960 = vadd.f32 %v807, %v950
      %v961 = vld [vmem:[%s810 + $0x1] sm:$0xff]
      %v962 = vld [vmem:[%s810 + $0x11] sm:$0xff]
      %v963 = vld [vmem:[%s810 + $0x21] sm:$0xff]
      %v964 = vld [vmem:[%s810 + $0x31] sm:$0xff]
      %v965 = vld [vmem:[%s810 + $0x41] sm:$0xff]
      %v966 = vld [vmem:[%s810 + $0x51] sm:$0xff]
      %v967 = vld [vmem:[%s810 + $0x61] sm:$0xff]
      %v968 = vld [vmem:[%s810 + $0x71] sm:$0xff]
      %v969 = vpack.c.bf16 %v962, %v961
      %v970 = vpack.c.bf16 %v964, %v963
      %v971 = vpack.c.bf16 %v966, %v965
      %v972 = vpack.c.bf16 %v968, %v967
      %s973 = scalar_lea.vmem %s1, 256
      %v974 = vld [vmem:[%s973] sm:$0xf]
      %v975 = vld [vmem:[%s973 + $0x4] sm:$0xf]
      %v976 = vld [vmem:[%s973 + $0x8] sm:$0xf]
      %v977 = vld [vmem:[%s973 + $0xc] sm:$0xf]
      %v978 = vld [vmem:[%s973 + $0x10] sm:$0xf]
      %v979 = vld [vmem:[%s973 + $0x14] sm:$0xf]
      %v980 = vld [vmem:[%s973 + $0x18] sm:$0xf]
      %v981 = vld [vmem:[%s973 + $0x1c] sm:$0xf]
      %v982 = vld [vmem:[%s973 + $0x20] sm:$0xf]
      %v983 = vld [vmem:[%s973 + $0x24] sm:$0xf]
      %v984 = vld [vmem:[%s973 + $0x28] sm:$0xf]
      %v985 = vld [vmem:[%s973 + $0x2c] sm:$0xf]
      %v986 = vld [vmem:[%s973 + $0x30] sm:$0xf]
      %v987 = vld [vmem:[%s973 + $0x34] sm:$0xf]
      %v988 = vld [vmem:[%s973 + $0x38] sm:$0xf]
      %v989 = vld [vmem:[%s973 + $0x3c] sm:$0xf]
      %v1006 = vunpack.c.l.b16 %v974
      %v1007 = vunpack.c.l.b16 %v975
      %v1008 = vunpack.c.l.b16 %v976
      %v1009 = vunpack.c.l.b16 %v977
      %v1010 = vunpack.c.l.b16 %v978
      %v1011 = vunpack.c.l.b16 %v979
      %v1012 = vunpack.c.l.b16 %v980
      %v1013 = vunpack.c.l.b16 %v981
      %v1014 = vunpack.c.l.b16 %v982
      %v1015 = vunpack.c.l.b16 %v983
      %v1016 = vunpack.c.l.b16 %v984
      %v1017 = vunpack.c.l.b16 %v985
      %v1018 = vunpack.c.l.b16 %v986
      %v1019 = vunpack.c.l.b16 %v987
      %v1020 = vunpack.c.l.b16 %v988
      %v1021 = vunpack.c.l.b16 %v989
      %v1022 = vpack.c.b16 %v1007, %v1006
      %v1023 = vpack.c.b16 %v1009, %v1008
      %v1024 = vpack.c.b16 %v1011, %v1010
      %v1025 = vpack.c.b16 %v1013, %v1012
      %v1026 = vpack.c.b16 %v1015, %v1014
      %v1027 = vpack.c.b16 %v1017, %v1016
      %v1028 = vpack.c.b16 %v1019, %v1018
      %v1029 = vpack.c.b16 %v1021, %v1020
      %1038 = vmatprep.subr.bf16.mxu0 0
      %1039 = vmatpush1.bf16.msra.mxu0 %v1022
      %1040 = vmatprep.subr.bf16.mxu0 0
      %1041 = vmatpush1.bf16.msra.mxu0 %v1023
      %1042 = vmatprep.subr.bf16.mxu0 0
      %1043 = vmatpush1.bf16.msra.mxu0 %v1024
      %1044 = vmatprep.subr.bf16.mxu0 0
      %1045 = vmatpush1.bf16.msra.mxu0 %v1025
      %1046 = vmatprep.subr.bf16.mxu0 0
      %1047 = vmatpush1.bf16.msra.mxu0 %v1026
      %1048 = vmatprep.subr.bf16.mxu0 0
      %1049 = vmatpush1.bf16.msra.mxu0 %v1027
      %1050 = vmatprep.subr.bf16.mxu0 0
      %1051 = vmatpush1.bf16.msra.mxu0 %v1028
      %1052 = vmatprep.subr.bf16.mxu0 0
      %1053 = vmatpush1.bf16.msra.mxu0 %v1029
      %1054 = vmatprep.subr.bf16.mxu0 0
      %1055 = vmatpush1.bf16.msra.mxu0 0
      %1056 = vmatprep.subr.bf16.mxu0 0
      %1057 = vmatpush1.bf16.msra.mxu0 0
      %1058 = vmatprep.subr.bf16.mxu0 0
      %1059 = vmatpush1.bf16.msra.mxu0 0
      %1060 = vmatprep.subr.bf16.mxu0 0
      %1061 = vmatpush1.bf16.msra.mxu0 0
      %1062 = vmatprep.subr.bf16.mxu0 0
      %1063 = vmatpush1.bf16.msra.mxu0 0
      %1064 = vmatprep.subr.bf16.mxu0 0
      %1065 = vmatpush1.bf16.msra.mxu0 0
      %1066 = vmatprep.subr.bf16.mxu0 0
      %1067 = vmatpush1.bf16.msra.mxu0 0
      %1068 = vmatprep.subr.bf16.mxu0 0
      %1069 = vmatpush1.bf16.msra.mxu0 0
      %1070 = vmatprep.mubr.bf16.mxu0 0
      %1071 = vmatmul.mubr.bf16.gmra.mrb[0].mxu0 %v969
      %v1072 = vpop.f32.mrb[0].mxu0
      %v1073 = vadd.f32 0.0, %v1072
      %v1074 = vpop.f32.mrb[0].mxu0
      %v1075 = vpop.f32.mrb[0].mxu0
      %v1076 = vadd.f32 0.0, %v1075
      %v1077 = vpop.f32.mrb[0].mxu0
      %1078 = vmatprep.mubr.bf16.mxu0 0
      %1079 = vmatmul.mubr.bf16.gmra.mrb[0].mxu0 %v970
      %v1080 = vpop.f32.mrb[0].mxu0
      %v1081 = vadd.f32 0.0, %v1080
      %v1082 = vpop.f32.mrb[0].mxu0
      %v1083 = vpop.f32.mrb[0].mxu0
      %v1084 = vadd.f32 0.0, %v1083
      %v1085 = vpop.f32.mrb[0].mxu0
      %1086 = vmatprep.mubr.bf16.mxu0 0
      %1087 = vmatmul.mubr.bf16.gmra.mrb[0].mxu0 %v971
      %v1088 = vpop.f32.mrb[0].mxu0
      %v1089 = vadd.f32 0.0, %v1088
      %v1090 = vpop.f32.mrb[0].mxu0
      %v1091 = vpop.f32.mrb[0].mxu0
      %v1092 = vadd.f32 0.0, %v1091
      %v1093 = vpop.f32.mrb[0].mxu0
      %1094 = vmatprep.mubr.bf16.mxu0 0
      %1095 = vmatmul.mubr.bf16.gmra.mrb[0].mxu0 %v972
      %v1096 = vpop.f32.mrb[0].mxu0
      %v1097 = vadd.f32 0.0, %v1096
      %v1098 = vpop.f32.mrb[0].mxu0
      %v1099 = vpop.f32.mrb[0].mxu0
      %v1100 = vadd.f32 0.0, %v1099
      %v1101 = vpop.f32.mrb[0].mxu0
      %1102 = vdwg.mxu0
      %v1103 = vadd.f32 %v953, %v1073
      %v1104 = vadd.f32 %v954, %v1076
      %v1105 = vadd.f32 %v955, %v1081
      %v1106 = vadd.f32 %v956, %v1084
      %v1107 = vadd.f32 %v957, %v1089
      %v1108 = vadd.f32 %v958, %v1092
      %v1109 = vadd.f32 %v959, %v1097
      %v1110 = vadd.f32 %v960, %v1100
      %v1111 = vld [vmem:[%s810 + $0x2] sm:$0xff]
      %v1112 = vld [vmem:[%s810 + $0x12] sm:$0xff]
      %v1113 = vld [vmem:[%s810 + $0x22] sm:$0xff]
      %v1114 = vld [vmem:[%s810 + $0x32] sm:$0xff]
      %v1115 = vld [vmem:[%s810 + $0x42] sm:$0xff]
      %v1116 = vld [vmem:[%s810 + $0x52] sm:$0xff]
      %v1117 = vld [vmem:[%s810 + $0x62] sm:$0xff]
      %v1118 = vld [vmem:[%s810 + $0x72] sm:$0xff]
      %v1119 = vpack.c.bf16 %v1112, %v1111
      %v1120 = vpack.c.bf16 %v1114, %v1113
      %v1121 = vpack.c.bf16 %v1116, %v1115
      %v1122 = vpack.c.bf16 %v1118, %v1117
      %s1123 = scalar_lea.vmem %s1, 320
      %v1124 = vld [vmem:[%s1123] sm:$0xf]
      %v1125 = vld [vmem:[%s1123 + $0x4] sm:$0xf]
      %v1126 = vld [vmem:[%s1123 + $0x8] sm:$0xf]
      %v1127 = vld [vmem:[%s1123 + $0xc] sm:$0xf]
      %v1128 = vld [vmem:[%s1123 + $0x10] sm:$0xf]
      %v1129 = vld [vmem:[%s1123 + $0x14] sm:$0xf]
      %v1130 = vld [vmem:[%s1123 + $0x18] sm:$0xf]
      %v1131 = vld [vmem:[%s1123 + $0x1c] sm:$0xf]
      %v1132 = vld [vmem:[%s1123 + $0x20] sm:$0xf]
      %v1133 = vld [vmem:[%s1123 + $0x24] sm:$0xf]
      %v1134 = vld [vmem:[%s1123 + $0x28] sm:$0xf]
      %v1135 = vld [vmem:[%s1123 + $0x2c] sm:$0xf]
      %v1136 = vld [vmem:[%s1123 + $0x30] sm:$0xf]
      %v1137 = vld [vmem:[%s1123 + $0x34] sm:$0xf]
      %v1138 = vld [vmem:[%s1123 + $0x38] sm:$0xf]
      %v1139 = vld [vmem:[%s1123 + $0x3c] sm:$0xf]
      %v1156 = vunpack.c.l.b16 %v1124
      %v1157 = vunpack.c.l.b16 %v1125
      %v1158 = vunpack.c.l.b16 %v1126
      %v1159 = vunpack.c.l.b16 %v1127
      %v1160 = vunpack.c.l.b16 %v1128
      %v1161 = vunpack.c.l.b16 %v1129
      %v1162 = vunpack.c.l.b16 %v1130
      %v1163 = vunpack.c.l.b16 %v1131
      %v1164 = vunpack.c.l.b16 %v1132
      %v1165 = vunpack.c.l.b16 %v1133
      %v1166 = vunpack.c.l.b16 %v1134
      %v1167 = vunpack.c.l.b16 %v1135
      %v1168 = vunpack.c.l.b16 %v1136
      %v1169 = vunpack.c.l.b16 %v1137
      %v1170 = vunpack.c.l.b16 %v1138
      %v1171 = vunpack.c.l.b16 %v1139
      %v1172 = vpack.c.b16 %v1157, %v1156
      %v1173 = vpack.c.b16 %v1159, %v1158
      %v1174 = vpack.c.b16 %v1161, %v1160
      %v1175 = vpack.c.b16 %v1163, %v1162
      %v1176 = vpack.c.b16 %v1165, %v1164
      %v1177 = vpack.c.b16 %v1167, %v1166
      %v1178 = vpack.c.b16 %v1169, %v1168
      %v1179 = vpack.c.b16 %v1171, %v1170
      %1188 = vmatprep.subr.bf16.mxu0 0
      %1189 = vmatpush1.bf16.msra.mxu0 %v1172
      %1190 = vmatprep.subr.bf16.mxu0 0
      %1191 = vmatpush1.bf16.msra.mxu0 %v1173
      %1192 = vmatprep.subr.bf16.mxu0 0
      %1193 = vmatpush1.bf16.msra.mxu0 %v1174
      %1194 = vmatprep.subr.bf16.mxu0 0
      %1195 = vmatpush1.bf16.msra.mxu0 %v1175
      %1196 = vmatprep.subr.bf16.mxu0 0
      %1197 = vmatpush1.bf16.msra.mxu0 %v1176
      %1198 = vmatprep.subr.bf16.mxu0 0
      %1199 = vmatpush1.bf16.msra.mxu0 %v1177
      %1200 = vmatprep.subr.bf16.mxu0 0
      %1201 = vmatpush1.bf16.msra.mxu0 %v1178
      %1202 = vmatprep.subr.bf16.mxu0 0
      %1203 = vmatpush1.bf16.msra.mxu0 %v1179
      %1204 = vmatprep.subr.bf16.mxu0 0
      %1205 = vmatpush1.bf16.msra.mxu0 0
      %1206 = vmatprep.subr.bf16.mxu0 0
      %1207 = vmatpush1.bf16.msra.mxu0 0
      %1208 = vmatprep.subr.bf16.mxu0 0
      %1209 = vmatpush1.bf16.msra.mxu0 0
      %1210 = vmatprep.subr.bf16.mxu0 0
      %1211 = vmatpush1.bf16.msra.mxu0 0
      %1212 = vmatprep.subr.bf16.mxu0 0
      %1213 = vmatpush1.bf16.msra.mxu0 0
      %1214 = vmatprep.subr.bf16.mxu0 0
      %1215 = vmatpush1.bf16.msra.mxu0 0
      %1216 = vmatprep.subr.bf16.mxu0 0
      %1217 = vmatpush1.bf16.msra.mxu0 0
      %1218 = vmatprep.subr.bf16.mxu0 0
      %1219 = vmatpush1.bf16.msra.mxu0 0
      %1220 = vmatprep.mubr.bf16.mxu0 0
      %1221 = vmatmul.mubr.bf16.gmra.mrb[0].mxu0 %v1119
      %v1222 = vpop.f32.mrb[0].mxu0
      %v1223 = vadd.f32 0.0, %v1222
      %v1224 = vpop.f32.mrb[0].mxu0
      %v1225 = vpop.f32.mrb[0].mxu0
      %v1226 = vadd.f32 0.0, %v1225
      %v1227 = vpop.f32.mrb[0].mxu0
      %1228 = vmatprep.mubr.bf16.mxu0 0
      %1229 = vmatmul.mubr.bf16.gmra.mrb[0].mxu0 %v1120
      %v1230 = vpop.f32.mrb[0].mxu0
      %v1231 = vadd.f32 0.0, %v1230
      %v1232 = vpop.f32.mrb[0].mxu0
      %v1233 = vpop.f32.mrb[0].mxu0
      %v1234 = vadd.f32 0.0, %v1233
      %v1235 = vpop.f32.mrb[0].mxu0
      %1236 = vmatprep.mubr.bf16.mxu0 0
      %1237 = vmatmul.mubr.bf16.gmra.mrb[0].mxu0 %v1121
      %v1238 = vpop.f32.mrb[0].mxu0
      %v1239 = vadd.f32 0.0, %v1238
      %v1240 = vpop.f32.mrb[0].mxu0
      %v1241 = vpop.f32.mrb[0].mxu0
      %v1242 = vadd.f32 0.0, %v1241
      %v1243 = vpop.f32.mrb[0].mxu0
      %1244 = vmatprep.mubr.bf16.mxu0 0
      %1245 = vmatmul.mubr.bf16.gmra.mrb[0].mxu0 %v1122
      %v1246 = vpop.f32.mrb[0].mxu0
      %v1247 = vadd.f32 0.0, %v1246
      %v1248 = vpop.f32.mrb[0].mxu0
      %v1249 = vpop.f32.mrb[0].mxu0
      %v1250 = vadd.f32 0.0, %v1249
      %v1251 = vpop.f32.mrb[0].mxu0
      %1252 = vdwg.mxu0
      %v1253 = vadd.f32 %v1103, %v1223
      %v1254 = vadd.f32 %v1104, %v1226
      %v1255 = vadd.f32 %v1105, %v1231
      %v1256 = vadd.f32 %v1106, %v1234
      %v1257 = vadd.f32 %v1107, %v1239
      %v1258 = vadd.f32 %v1108, %v1242
      %v1259 = vadd.f32 %v1109, %v1247
      %v1260 = vadd.f32 %v1110, %v1250
      %s1261 = sadd.s32 %s285, 2
      %s1262 = smul.u32 %s1261, 16
      %s1263 = scalar_lea.vmem [#allocation2], %s1262
      %v1264 = vld [vmem:[%s1263] sm:$0xff]
      %v1265 = vld [vmem:[%s1263 + $0x10] sm:$0xff]
      %v1266 = vld [vmem:[%s1263 + $0x20] sm:$0xff]
      %v1267 = vld [vmem:[%s1263 + $0x30] sm:$0xff]
      %v1268 = vld [vmem:[%s1263 + $0x40] sm:$0xff]
      %v1269 = vld [vmem:[%s1263 + $0x50] sm:$0xff]
      %v1270 = vld [vmem:[%s1263 + $0x60] sm:$0xff]
      %v1271 = vld [vmem:[%s1263 + $0x70] sm:$0xff]
      %v1272 = vpack.c.bf16 %v1265, %v1264
      %v1273 = vpack.c.bf16 %v1267, %v1266
      %v1274 = vpack.c.bf16 %v1269, %v1268
      %v1275 = vpack.c.bf16 %v1271, %v1270
      %s1276 = scalar_lea.vmem %s1, 384
      %v1277 = vld [vmem:[%s1276] sm:$0xf]
      %v1278 = vld [vmem:[%s1276 + $0x4] sm:$0xf]
      %v1279 = vld [vmem:[%s1276 + $0x8] sm:$0xf]
      %v1280 = vld [vmem:[%s1276 + $0xc] sm:$0xf]
      %v1281 = vld [vmem:[%s1276 + $0x10] sm:$0xf]
      %v1282 = vld [vmem:[%s1276 + $0x14] sm:$0xf]
      %v1283 = vld [vmem:[%s1276 + $0x18] sm:$0xf]
      %v1284 = vld [vmem:[%s1276 + $0x1c] sm:$0xf]
      %v1285 = vld [vmem:[%s1276 + $0x20] sm:$0xf]
      %v1286 = vld [vmem:[%s1276 + $0x24] sm:$0xf]
      %v1287 = vld [vmem:[%s1276 + $0x28] sm:$0xf]
      %v1288 = vld [vmem:[%s1276 + $0x2c] sm:$0xf]
      %v1289 = vld [vmem:[%s1276 + $0x30] sm:$0xf]
      %v1290 = vld [vmem:[%s1276 + $0x34] sm:$0xf]
      %v1291 = vld [vmem:[%s1276 + $0x38] sm:$0xf]
      %v1292 = vld [vmem:[%s1276 + $0x3c] sm:$0xf]
      %v1309 = vunpack.c.l.b16 %v1277
      %v1310 = vunpack.c.l.b16 %v1278
      %v1311 = vunpack.c.l.b16 %v1279
      %v1312 = vunpack.c.l.b16 %v1280
      %v1313 = vunpack.c.l.b16 %v1281
      %v1314 = vunpack.c.l.b16 %v1282
      %v1315 = vunpack.c.l.b16 %v1283
      %v1316 = vunpack.c.l.b16 %v1284
      %v1317 = vunpack.c.l.b16 %v1285
      %v1318 = vunpack.c.l.b16 %v1286
      %v1319 = vunpack.c.l.b16 %v1287
      %v1320 = vunpack.c.l.b16 %v1288
      %v1321 = vunpack.c.l.b16 %v1289
      %v1322 = vunpack.c.l.b16 %v1290
      %v1323 = vunpack.c.l.b16 %v1291
      %v1324 = vunpack.c.l.b16 %v1292
      %v1325 = vpack.c.b16 %v1310, %v1309
      %v1326 = vpack.c.b16 %v1312, %v1311
      %v1327 = vpack.c.b16 %v1314, %v1313
      %v1328 = vpack.c.b16 %v1316, %v1315
      %v1329 = vpack.c.b16 %v1318, %v1317
      %v1330 = vpack.c.b16 %v1320, %v1319
      %v1331 = vpack.c.b16 %v1322, %v1321
      %v1332 = vpack.c.b16 %v1324, %v1323
      %1341 = vmatprep.subr.bf16.mxu0 0
      %1342 = vmatpush1.bf16.msra.mxu0 %v1325
      %1343 = vmatprep.subr.bf16.mxu0 0
      %1344 = vmatpush1.bf16.msra.mxu0 %v1326
      %1345 = vmatprep.subr.bf16.mxu0 0
      %1346 = vmatpush1.bf16.msra.mxu0 %v1327
      %1347 = vmatprep.subr.bf16.mxu0 0
      %1348 = vmatpush1.bf16.msra.mxu0 %v1328
      %1349 = vmatprep.subr.bf16.mxu0 0
      %1350 = vmatpush1.bf16.msra.mxu0 %v1329
      %1351 = vmatprep.subr.bf16.mxu0 0
      %1352 = vmatpush1.bf16.msra.mxu0 %v1330
      %1353 = vmatprep.subr.bf16.mxu0 0
      %1354 = vmatpush1.bf16.msra.mxu0 %v1331
      %1355 = vmatprep.subr.bf16.mxu0 0
      %1356 = vmatpush1.bf16.msra.mxu0 %v1332
      %1357 = vmatprep.subr.bf16.mxu0 0
      %1358 = vmatpush1.bf16.msra.mxu0 0
      %1359 = vmatprep.subr.bf16.mxu0 0
      %1360 = vmatpush1.bf16.msra.mxu0 0
      %1361 = vmatprep.subr.bf16.mxu0 0
      %1362 = vmatpush1.bf16.msra.mxu0 0
      %1363 = vmatprep.subr.bf16.mxu0 0
      %1364 = vmatpush1.bf16.msra.mxu0 0
      %1365 = vmatprep.subr.bf16.mxu0 0
      %1366 = vmatpush1.bf16.msra.mxu0 0
      %1367 = vmatprep.subr.bf16.mxu0 0
      %1368 = vmatpush1.bf16.msra.mxu0 0
      %1369 = vmatprep.subr.bf16.mxu0 0
      %1370 = vmatpush1.bf16.msra.mxu0 0
      %1371 = vmatprep.subr.bf16.mxu0 0
      %1372 = vmatpush1.bf16.msra.mxu0 0
      %1373 = vmatprep.mubr.bf16.mxu0 0
      %1374 = vmatmul.mubr.bf16.gmra.mrb[0].mxu0 %v1272
      %v1375 = vpop.f32.mrb[0].mxu0
      %v1376 = vadd.f32 0.0, %v1375
      %v1377 = vpop.f32.mrb[0].mxu0
      %v1378 = vpop.f32.mrb[0].mxu0
      %v1379 = vadd.f32 0.0, %v1378
      %v1380 = vpop.f32.mrb[0].mxu0
      %1381 = vmatprep.mubr.bf16.mxu0 0
      %1382 = vmatmul.mubr.bf16.gmra.mrb[0].mxu0 %v1273
      %v1383 = vpop.f32.mrb[0].mxu0
      %v1384 = vadd.f32 0.0, %v1383
      %v1385 = vpop.f32.mrb[0].mxu0
      %v1386 = vpop.f32.mrb[0].mxu0
      %v1387 = vadd.f32 0.0, %v1386
      %v1388 = vpop.f32.mrb[0].mxu0
      %1389 = vmatprep.mubr.bf16.mxu0 0
      %1390 = vmatmul.mubr.bf16.gmra.mrb[0].mxu0 %v1274
      %v1391 = vpop.f32.mrb[0].mxu0
      %v1392 = vadd.f32 0.0, %v1391
      %v1393 = vpop.f32.mrb[0].mxu0
      %v1394 = vpop.f32.mrb[0].mxu0
      %v1395 = vadd.f32 0.0, %v1394
      %v1396 = vpop.f32.mrb[0].mxu0
      %1397 = vmatprep.mubr.bf16.mxu0 0
      %1398 = vmatmul.mubr.bf16.gmra.mrb[0].mxu0 %v1275
      %v1399 = vpop.f32.mrb[0].mxu0
      %v1400 = vadd.f32 0.0, %v1399
      %v1401 = vpop.f32.mrb[0].mxu0
      %v1402 = vpop.f32.mrb[0].mxu0
      %v1403 = vadd.f32 0.0, %v1402
      %v1404 = vpop.f32.mrb[0].mxu0
      %1405 = vdwg.mxu0
      %v1406 = vadd.f32 %v1253, %v1376
      %v1407 = vadd.f32 %v1254, %v1379
      %v1408 = vadd.f32 %v1255, %v1384
      %v1409 = vadd.f32 %v1256, %v1387
      %v1410 = vadd.f32 %v1257, %v1392
      %v1411 = vadd.f32 %v1258, %v1395
      %v1412 = vadd.f32 %v1259, %v1400
      %v1413 = vadd.f32 %v1260, %v1403
      %v1414 = vld [vmem:[%s1263 + $0x1] sm:$0xff]
      %v1415 = vld [vmem:[%s1263 + $0x11] sm:$0xff]
      %v1416 = vld [vmem:[%s1263 + $0x21] sm:$0xff]
      %v1417 = vld [vmem:[%s1263 + $0x31] sm:$0xff]
      %v1418 = vld [vmem:[%s1263 + $0x41] sm:$0xff]
      %v1419 = vld [vmem:[%s1263 + $0x51] sm:$0xff]
      %v1420 = vld [vmem:[%s1263 + $0x61] sm:$0xff]
      %v1421 = vld [vmem:[%s1263 + $0x71] sm:$0xff]
      %v1422 = vpack.c.bf16 %v1415, %v1414
      %v1423 = vpack.c.bf16 %v1417, %v1416
      %v1424 = vpack.c.bf16 %v1419, %v1418
      %v1425 = vpack.c.bf16 %v1421, %v1420
      %s1426 = scalar_lea.vmem %s1, 448
      %v1427 = vld [vmem:[%s1426] sm:$0xf]
      %v1428 = vld [vmem:[%s1426 + $0x4] sm:$0xf]
      %v1429 = vld [vmem:[%s1426 + $0x8] sm:$0xf]
      %v1430 = vld [vmem:[%s1426 + $0xc] sm:$0xf]
      %v1431 = vld [vmem:[%s1426 + $0x10] sm:$0xf]
      %v1432 = vld [vmem:[%s1426 + $0x14] sm:$0xf]
      %v1433 = vld [vmem:[%s1426 + $0x18] sm:$0xf]
      %v1434 = vld [vmem:[%s1426 + $0x1c] sm:$0xf]
      %v1435 = vld [vmem:[%s1426 + $0x20] sm:$0xf]
      %v1436 = vld [vmem:[%s1426 + $0x24] sm:$0xf]
      %v1437 = vld [vmem:[%s1426 + $0x28] sm:$0xf]
      %v1438 = vld [vmem:[%s1426 + $0x2c] sm:$0xf]
      %v1439 = vld [vmem:[%s1426 + $0x30] sm:$0xf]
      %v1440 = vld [vmem:[%s1426 + $0x34] sm:$0xf]
      %v1441 = vld [vmem:[%s1426 + $0x38] sm:$0xf]
      %v1442 = vld [vmem:[%s1426 + $0x3c] sm:$0xf]
      %v1459 = vunpack.c.l.b16 %v1427
      %v1460 = vunpack.c.l.b16 %v1428
      %v1461 = vunpack.c.l.b16 %v1429
      %v1462 = vunpack.c.l.b16 %v1430
      %v1463 = vunpack.c.l.b16 %v1431
      %v1464 = vunpack.c.l.b16 %v1432
      %v1465 = vunpack.c.l.b16 %v1433
      %v1466 = vunpack.c.l.b16 %v1434
      %v1467 = vunpack.c.l.b16 %v1435
      %v1468 = vunpack.c.l.b16 %v1436
      %v1469 = vunpack.c.l.b16 %v1437
      %v1470 = vunpack.c.l.b16 %v1438
      %v1471 = vunpack.c.l.b16 %v1439
      %v1472 = vunpack.c.l.b16 %v1440
      %v1473 = vunpack.c.l.b16 %v1441
      %v1474 = vunpack.c.l.b16 %v1442
      %v1475 = vpack.c.b16 %v1460, %v1459
      %v1476 = vpack.c.b16 %v1462, %v1461
      %v1477 = vpack.c.b16 %v1464, %v1463
      %v1478 = vpack.c.b16 %v1466, %v1465
      %v1479 = vpack.c.b16 %v1468, %v1467
      %v1480 = vpack.c.b16 %v1470, %v1469
      %v1481 = vpack.c.b16 %v1472, %v1471
      %v1482 = vpack.c.b16 %v1474, %v1473
      %1491 = vmatprep.subr.bf16.mxu0 0
      %1492 = vmatpush1.bf16.msra.mxu0 %v1475
      %1493 = vmatprep.subr.bf16.mxu0 0
      %1494 = vmatpush1.bf16.msra.mxu0 %v1476
      %1495 = vmatprep.subr.bf16.mxu0 0
      %1496 = vmatpush1.bf16.msra.mxu0 %v1477
      %1497 = vmatprep.subr.bf16.mxu0 0
      %1498 = vmatpush1.bf16.msra.mxu0 %v1478
      %1499 = vmatprep.subr.bf16.mxu0 0
      %1500 = vmatpush1.bf16.msra.mxu0 %v1479
      %1501 = vmatprep.subr.bf16.mxu0 0
      %1502 = vmatpush1.bf16.msra.mxu0 %v1480
      %1503 = vmatprep.subr.bf16.mxu0 0
      %1504 = vmatpush1.bf16.msra.mxu0 %v1481
      %1505 = vmatprep.subr.bf16.mxu0 0
      %1506 = vmatpush1.bf16.msra.mxu0 %v1482
      %1507 = vmatprep.subr.bf16.mxu0 0
      %1508 = vmatpush1.bf16.msra.mxu0 0
      %1509 = vmatprep.subr.bf16.mxu0 0
      %1510 = vmatpush1.bf16.msra.mxu0 0
      %1511 = vmatprep.subr.bf16.mxu0 0
      %1512 = vmatpush1.bf16.msra.mxu0 0
      %1513 = vmatprep.subr.bf16.mxu0 0
      %1514 = vmatpush1.bf16.msra.mxu0 0
      %1515 = vmatprep.subr.bf16.mxu0 0
      %1516 = vmatpush1.bf16.msra.mxu0 0
      %1517 = vmatprep.subr.bf16.mxu0 0
      %1518 = vmatpush1.bf16.msra.mxu0 0
      %1519 = vmatprep.subr.bf16.mxu0 0
      %1520 = vmatpush1.bf16.msra.mxu0 0
      %1521 = vmatprep.subr.bf16.mxu0 0
      %1522 = vmatpush1.bf16.msra.mxu0 0
      %1523 = vmatprep.mubr.bf16.mxu0 0
      %1524 = vmatmul.mubr.bf16.gmra.mrb[0].mxu0 %v1422
      %v1525 = vpop.f32.mrb[0].mxu0
      %v1526 = vadd.f32 0.0, %v1525
      %v1527 = vpop.f32.mrb[0].mxu0
      %v1528 = vpop.f32.mrb[0].mxu0
      %v1529 = vadd.f32 0.0, %v1528
      %v1530 = vpop.f32.mrb[0].mxu0
      %1531 = vmatprep.mubr.bf16.mxu0 0
      %1532 = vmatmul.mubr.bf16.gmra.mrb[0].mxu0 %v1423
      %v1533 = vpop.f32.mrb[0].mxu0
      %v1534 = vadd.f32 0.0, %v1533
      %v1535 = vpop.f32.mrb[0].mxu0
      %v1536 = vpop.f32.mrb[0].mxu0
      %v1537 = vadd.f32 0.0, %v1536
      %v1538 = vpop.f32.mrb[0].mxu0
      %1539 = vmatprep.mubr.bf16.mxu0 0
      %1540 = vmatmul.mubr.bf16.gmra.mrb[0].mxu0 %v1424
      %v1541 = vpop.f32.mrb[0].mxu0
      %v1542 = vadd.f32 0.0, %v1541
      %v1543 = vpop.f32.mrb[0].mxu0
      %v1544 = vpop.f32.mrb[0].mxu0
      %v1545 = vadd.f32 0.0, %v1544
      %v1546 = vpop.f32.mrb[0].mxu0
      %1547 = vmatprep.mubr.bf16.mxu0 0
      %1548 = vmatmul.mubr.bf16.gmra.mrb[0].mxu0 %v1425
      %v1549 = vpop.f32.mrb[0].mxu0
      %v1550 = vadd.f32 0.0, %v1549
      %v1551 = vpop.f32.mrb[0].mxu0
      %v1552 = vpop.f32.mrb[0].mxu0
      %v1553 = vadd.f32 0.0, %v1552
      %v1554 = vpop.f32.mrb[0].mxu0
      %1555 = vdwg.mxu0
      %v1556 = vadd.f32 %v1406, %v1526
      %v1557 = vadd.f32 %v1407, %v1529
      %v1558 = vadd.f32 %v1408, %v1534
      %v1559 = vadd.f32 %v1409, %v1537
      %v1560 = vadd.f32 %v1410, %v1542
      %v1561 = vadd.f32 %v1411, %v1545
      %v1562 = vadd.f32 %v1412, %v1550
      %v1563 = vadd.f32 %v1413, %v1553
      %v1564 = vld [vmem:[%s1263 + $0x2] sm:$0xff]
      %v1565 = vld [vmem:[%s1263 + $0x12] sm:$0xff]
      %v1566 = vld [vmem:[%s1263 + $0x22] sm:$0xff]
      %v1567 = vld [vmem:[%s1263 + $0x32] sm:$0xff]
      %v1568 = vld [vmem:[%s1263 + $0x42] sm:$0xff]
      %v1569 = vld [vmem:[%s1263 + $0x52] sm:$0xff]
      %v1570 = vld [vmem:[%s1263 + $0x62] sm:$0xff]
      %v1571 = vld [vmem:[%s1263 + $0x72] sm:$0xff]
      %v1572 = vpack.c.bf16 %v1565, %v1564
      %v1573 = vpack.c.bf16 %v1567, %v1566
      %v1574 = vpack.c.bf16 %v1569, %v1568
      %v1575 = vpack.c.bf16 %v1571, %v1570
      %s1576 = scalar_lea.vmem %s1, 512
      %v1577 = vld [vmem:[%s1576] sm:$0xf]
      %v1578 = vld [vmem:[%s1576 + $0x4] sm:$0xf]
      %v1579 = vld [vmem:[%s1576 + $0x8] sm:$0xf]
      %v1580 = vld [vmem:[%s1576 + $0xc] sm:$0xf]
      %v1581 = vld [vmem:[%s1576 + $0x10] sm:$0xf]
      %v1582 = vld [vmem:[%s1576 + $0x14] sm:$0xf]
      %v1583 = vld [vmem:[%s1576 + $0x18] sm:$0xf]
      %v1584 = vld [vmem:[%s1576 + $0x1c] sm:$0xf]
      %v1585 = vld [vmem:[%s1576 + $0x20] sm:$0xf]
      %v1586 = vld [vmem:[%s1576 + $0x24] sm:$0xf]
      %v1587 = vld [vmem:[%s1576 + $0x28] sm:$0xf]
      %v1588 = vld [vmem:[%s1576 + $0x2c] sm:$0xf]
      %v1589 = vld [vmem:[%s1576 + $0x30] sm:$0xf]
      %v1590 = vld [vmem:[%s1576 + $0x34] sm:$0xf]
      %v1591 = vld [vmem:[%s1576 + $0x38] sm:$0xf]
      %v1592 = vld [vmem:[%s1576 + $0x3c] sm:$0xf]
      %v1609 = vunpack.c.l.b16 %v1577
      %v1610 = vunpack.c.l.b16 %v1578
      %v1611 = vunpack.c.l.b16 %v1579
      %v1612 = vunpack.c.l.b16 %v1580
      %v1613 = vunpack.c.l.b16 %v1581
      %v1614 = vunpack.c.l.b16 %v1582
      %v1615 = vunpack.c.l.b16 %v1583
      %v1616 = vunpack.c.l.b16 %v1584
      %v1617 = vunpack.c.l.b16 %v1585
      %v1618 = vunpack.c.l.b16 %v1586
      %v1619 = vunpack.c.l.b16 %v1587
      %v1620 = vunpack.c.l.b16 %v1588
      %v1621 = vunpack.c.l.b16 %v1589
      %v1622 = vunpack.c.l.b16 %v1590
      %v1623 = vunpack.c.l.b16 %v1591
      %v1624 = vunpack.c.l.b16 %v1592
      %v1625 = vpack.c.b16 %v1610, %v1609
      %v1626 = vpack.c.b16 %v1612, %v1611
      %v1627 = vpack.c.b16 %v1614, %v1613
      %v1628 = vpack.c.b16 %v1616, %v1615
      %v1629 = vpack.c.b16 %v1618, %v1617
      %v1630 = vpack.c.b16 %v1620, %v1619
      %v1631 = vpack.c.b16 %v1622, %v1621
      %v1632 = vpack.c.b16 %v1624, %v1623
      %1641 = vmatprep.subr.bf16.mxu0 0
      %1642 = vmatpush1.bf16.msra.mxu0 %v1625
      %1643 = vmatprep.subr.bf16.mxu0 0
      %1644 = vmatpush1.bf16.msra.mxu0 %v1626
      %1645 = vmatprep.subr.bf16.mxu0 0
      %1646 = vmatpush1.bf16.msra.mxu0 %v1627
      %1647 = vmatprep.subr.bf16.mxu0 0
      %1648 = vmatpush1.bf16.msra.mxu0 %v1628
      %1649 = vmatprep.subr.bf16.mxu0 0
      %1650 = vmatpush1.bf16.msra.mxu0 %v1629
      %1651 = vmatprep.subr.bf16.mxu0 0
      %1652 = vmatpush1.bf16.msra.mxu0 %v1630
      %1653 = vmatprep.subr.bf16.mxu0 0
      %1654 = vmatpush1.bf16.msra.mxu0 %v1631
      %1655 = vmatprep.subr.bf16.mxu0 0
      %1656 = vmatpush1.bf16.msra.mxu0 %v1632
      %1657 = vmatprep.subr.bf16.mxu0 0
      %1658 = vmatpush1.bf16.msra.mxu0 0
      %1659 = vmatprep.subr.bf16.mxu0 0
      %1660 = vmatpush1.bf16.msra.mxu0 0
      %1661 = vmatprep.subr.bf16.mxu0 0
      %1662 = vmatpush1.bf16.msra.mxu0 0
      %1663 = vmatprep.subr.bf16.mxu0 0
      %1664 = vmatpush1.bf16.msra.mxu0 0
      %1665 = vmatprep.subr.bf16.mxu0 0
      %1666 = vmatpush1.bf16.msra.mxu0 0
      %1667 = vmatprep.subr.bf16.mxu0 0
      %1668 = vmatpush1.bf16.msra.mxu0 0
      %1669 = vmatprep.subr.bf16.mxu0 0
      %1670 = vmatpush1.bf16.msra.mxu0 0
      %1671 = vmatprep.subr.bf16.mxu0 0
      %1672 = vmatpush1.bf16.msra.mxu0 0
      %1673 = vmatprep.mubr.bf16.mxu0 0
      %1674 = vmatmul.mubr.bf16.gmra.mrb[0].mxu0 %v1572
      %v1675 = vpop.f32.mrb[0].mxu0
      %v1676 = vadd.f32 0.0, %v1675
      %v1677 = vpop.f32.mrb[0].mxu0
      %v1678 = vpop.f32.mrb[0].mxu0
      %v1679 = vadd.f32 0.0, %v1678
      %v1680 = vpop.f32.mrb[0].mxu0
      %1681 = vmatprep.mubr.bf16.mxu0 0
      %1682 = vmatmul.mubr.bf16.gmra.mrb[0].mxu0 %v1573
      %v1683 = vpop.f32.mrb[0].mxu0
      %v1684 = vadd.f32 0.0, %v1683
      %v1685 = vpop.f32.mrb[0].mxu0
      %v1686 = vpop.f32.mrb[0].mxu0
      %v1687 = vadd.f32 0.0, %v1686
      %v1688 = vpop.f32.mrb[0].mxu0
      %1689 = vmatprep.mubr.bf16.mxu0 0
      %1690 = vmatmul.mubr.bf16.gmra.mrb[0].mxu0 %v1574
      %v1691 = vpop.f32.mrb[0].mxu0
      %v1692 = vadd.f32 0.0, %v1691
      %v1693 = vpop.f32.mrb[0].mxu0
      %v1694 = vpop.f32.mrb[0].mxu0
      %v1695 = vadd.f32 0.0, %v1694
      %v1696 = vpop.f32.mrb[0].mxu0
      %1697 = vmatprep.mubr.bf16.mxu0 0
      %1698 = vmatmul.mubr.bf16.gmra.mrb[0].mxu0 %v1575
      %v1699 = vpop.f32.mrb[0].mxu0
      %v1700 = vadd.f32 0.0, %v1699
      %v1701 = vpop.f32.mrb[0].mxu0
      %v1702 = vpop.f32.mrb[0].mxu0
      %v1703 = vadd.f32 0.0, %v1702
      %v1704 = vpop.f32.mrb[0].mxu0
      %1705 = vdwg.mxu0
      %v1706 = vadd.f32 %v1556, %v1676
      %v1707 = vadd.f32 %v1557, %v1679
      %v1708 = vadd.f32 %v1558, %v1684
      %v1709 = vadd.f32 %v1559, %v1687
      %v1710 = vadd.f32 %v1560, %v1692
      %v1711 = vadd.f32 %v1561, %v1695
      %v1712 = vadd.f32 %v1562, %v1700
      %v1713 = vadd.f32 %v1563, %v1703
      %v1714 = vld [vmem:[%s272] sm:$0xf]
      %v1715 = vld [vmem:[%s272 + $0x4] sm:$0xf]
      %v1716 = vld [vmem:[%s272 + $0x8] sm:$0xf]
      %v1717 = vld [vmem:[%s272 + $0xc] sm:$0xf]
      %v1718 = vld [vmem:[%s272 + $0x10] sm:$0xf]
      %v1719 = vld [vmem:[%s272 + $0x14] sm:$0xf]
      %v1720 = vld [vmem:[%s272 + $0x18] sm:$0xf]
      %v1721 = vld [vmem:[%s272 + $0x1c] sm:$0xf]
      %v1722 = vunpack.c.l.bf16 %v1714
      %v1723 = vunpack.c.l.bf16 %v1715
      %v1724 = vunpack.c.l.bf16 %v1716
      %v1725 = vunpack.c.l.bf16 %v1717
      %v1726 = vunpack.c.l.bf16 %v1718
      %v1727 = vunpack.c.l.bf16 %v1719
      %v1728 = vunpack.c.l.bf16 %v1720
      %v1729 = vunpack.c.l.bf16 %v1721
      %v1730 = vadd.f32 %v1706, %v1722
      %v1731 = vadd.f32 %v1707, %v1723
      %v1732 = vadd.f32 %v1708, %v1724
      %v1733 = vadd.f32 %v1709, %v1725
      %v1734 = vadd.f32 %v1710, %v1726
      %v1735 = vadd.f32 %v1711, %v1727
      %v1736 = vadd.f32 %v1712, %v1728
      %v1737 = vadd.f32 %v1713, %v1729
      %v1738 = vpack.c.bf16 %v1730, %v1730
      %v1739 = vpack.c.bf16 %v1731, %v1731
      %v1740 = vpack.c.bf16 %v1732, %v1732
      %v1741 = vpack.c.bf16 %v1733, %v1733
      %v1742 = vpack.c.bf16 %v1734, %v1734
      %v1743 = vpack.c.bf16 %v1735, %v1735
      %v1744 = vpack.c.bf16 %v1736, %v1736
      %v1745 = vpack.c.bf16 %v1737, %v1737
      %1746 = vst [vmem:[%s282] sm:$0xf] %v1738
      %1747 = vst [vmem:[%s282 + $0x4] sm:$0xf] %v1739
      %1748 = vst [vmem:[%s282 + $0x8] sm:$0xf] %v1740
      %1749 = vst [vmem:[%s282 + $0xc] sm:$0xf] %v1741
      %1750 = vst [vmem:[%s282 + $0x10] sm:$0xf] %v1742
      %1751 = vst [vmem:[%s282 + $0x14] sm:$0xf] %v1743
      %1752 = vst [vmem:[%s282 + $0x18] sm:$0xf] %v1744
      %1753 = vst [vmem:[%s282 + $0x1c] sm:$0xf] %v1745
      %s1754 = smul.u32 8, %s21
      %p1755 = scmp.lt.s32.totalorder %s20, 1
      %s1756 = scalar_select %p1755, %s20, 1
      %p1757 = scmp.lt.s32.totalorder %s1754, 7
      %s1758 = scalar_select %p1757, %s1754, 7
      %s1759 = smul.addr %s1756, 8
      %s1760 = sadd.s32 %s1758, %s1759
      %s1761 = smul.addr %s1760, 4
      %s1762 = scalar_lea.vmem %s5, %s1761
      // Predicated region
      $region45: #{_lambda_.7} parent=39 // pred_check
        %p1763 = pneg %p165
      $region46: #{_lambda_.7} parent=39 // pred_check_branch
        %1765 = sbr.rel (%p1763) target = $region48
      $region47: #{_lambda_.7} parent=39 // pred_region
        %s1766 = smul.u32 8, %s21
      $region48: #{_lambda_.7} parent=39 // pred_fallthru
        _
    $region40: #{_lambda_.7} parent=5 // pred_fallthru
      _
    %p1767 = scmp.le.s32.totalorder 2, %s11
    // Predicated region
    $region49: #{_lambda_.7} parent=5 // pred_check
      %p1768 = pneg %p1767
    $region50: #{_lambda_.7} parent=5 // pred_check_branch
      %1770 = sbr.rel (%p1768) target = $region52
    $region51: #{_lambda_.7} parent=5 // pred_region
      %s1771 = ssub.s32 %s11, 2
      // Predicated region
      $region53: #{_lambda_.7} parent=51 // pred_check
        %p1772 = pneg %p171
      $region54: #{_lambda_.7} parent=51 // pred_check_branch
        %1774 = sbr.rel (%p1772) target = $region56
      $region55: #{_lambda_.7} parent=51 // pred_region
        %s1775 = smul.u32 8, %s23
        %p1776 = scmp.lt.s32.totalorder %s22, 1
        %s1777 = scalar_select %p1776, %s22, 1
        %p1778 = scmp.lt.s32.totalorder %s1775, 7
        %s1779 = scalar_select %p1778, %s1775, 7
        %s1780 = smul.addr %s1777, 8
        %s1781 = sadd.s32 %s1779, %s1780
        %s1782 = smul.addr %s1781, 4
        %s1783 = scalar_lea.vmem %s5, %s1782
      $region56: #{_lambda_.7} parent=51 // pred_fallthru
        _
    $region52: #{_lambda_.7} parent=5 // pred_fallthru
      _
  $region6: #{_lambda_.7} parent=0 // loop_footer
    %s15 = sadd.s32 1, %s11
  $region7: #{_lambda_.7} parent=0 // loop_footer_branch
    %10 = sbr.rel target = $region3
  $region8: #{_lambda_.7} parent=0 // loop_exit
    _

// kernel: _lambda_.8
$region0: #{_lambda_.8}
  #allocation0 [shape = 'u32[]', space=smem, size = 0x4, offset = 0x4, fixed_abs, tag = 'smem constant byte address 0x4 - core index']
  #allocation1 [shape = 'u32[144,128]{1,0:T(1,128)}', space=vmem, size = 0x12000, scoped, tag = 'internal scratch']
  #allocation2 [shape = 'f32[10,10,128]{2,1,0:T(8,128)}', space=vmem, size = 0x14000, scoped, tag = 'scratch operand']
  %s0 = inlined_call_operand.vmem [shape: bf16[2,8,8,128], index: 0, kind: input, shape index: {}]
  %s1 = inlined_call_operand.vmem [shape: bf16[9,128,128], index: 1, kind: input, shape index: {}]
  %s2 = inlined_call_operand.vmem [shape: f32[1,128], index: 2, kind: input, shape index: {}]
  %s3 = inlined_call_operand.vmem [shape: f32[1,128], index: 3, kind: input, shape index: {}]
  %s4 = inlined_call_operand.vmem [shape: f32[1,128], index: 4, kind: input, shape index: {}]
  %s5 = inlined_call_operand.vmem [shape: f32[1,128], index: 5, kind: input, shape index: {}]
  %s6 = inlined_call_operand.vmem [shape: bf16[2,8,8,128], index: 6, kind: output, shape index: {}]
  %s7 = sld [smem:[#allocation0]]
  $region61: #{_lambda_.8} parent=0
    _
  %s9 = ssub.s32 1, %s7
  %s10 = scalar_select 0, %s9, %s7
  loop: start=0, step=1, limit=4
  $region2: #{_lambda_.8} parent=0 // loop_pre_header
    _
  $region3: #{_lambda_.8} parent=0 // loop_header
    %s12 = sphi 0, %s16
    %p13 = scmp.ge.s32.totalorder %s12, 4
    %s19 = sphi 0, %s31
    %s20 = sphi 0, %s27
    %s21 = sphi 0, %s19
    %s22 = sphi 0, %s20
    %s23 = sphi 0, %s21
    %s24 = sphi 0, %s22
    %s34 = sphi 0, %s36
    %s37 = sphi 0, %s34
    %s38 = sphi 0, %s37
    %s54 = sphi 0, %s38
    %s58 = sphi 0, %s58
    %s60 = sphi 0, %s58
    %s61 = sphi 0, %s60
    %s75 = sphi 0, %s61
    %s79 = sphi 0, %s79
    %s81 = sphi 0, %s79
    %s82 = sphi 0, %s81
    %s96 = sphi 0, %s82
    %s100 = sphi 0, %s100
    %s102 = sphi 0, %s100
    %s103 = sphi 0, %s102
    %s117 = sphi 0, %s103
    %s121 = sphi 0, %s121
    %s123 = sphi 0, %s121
    %s124 = sphi 0, %s123
    %s138 = sphi 0, %s124
    %s142 = sphi 0, %s142
    %s144 = sphi 0, %s142
    %s145 = sphi 0, %s144
    %s159 = sphi 0, %s145
    %s167 = sphi 0, %s169
    %s170 = sphi 0, %s167
    %s171 = sphi 0, %s170
    %s187 = sphi 0, %s171
  $region4: #{_lambda_.8} parent=0 // loop_header_branch
    %15 = sbr.rel (%p13) target = $region8
  $region5: #{_lambda_.8} parent=0 // loop_body
    %s17 = ssub.s32 %s12, 1
    %s18 = ssub.s32 %s12, 2
    %s25 = sadd.s32 1, %s20
    %p26 = scmp.ge.s32.totalorder %s25, 1
    %s27 = scalar_select %p26, 0, %s25
    %s28 = sadd.s32 1, %s19
    %s29 = scalar_select %p26, %s28, %s19
    %p30 = scmp.ge.s32.totalorder %s29, 2
    %s31 = scalar_select %p30, 0, %s29
    %s32 = ssub.s32 %s19, %s31
    %p33 = scmp.eq.s32.totalorder %s32, 0
    %s35 = sadd.s32 %s34, 1
    %s36 = scalar_select %p33, %s34, %s35
    %p39 = pneg %p33
    %p40 = scmp.eq.s32.totalorder %s12, 1
    %p41 = por %p39, %p40
    %p42 = scmp.ne.s32.totalorder %s34, %s37
    %p43 = scmp.eq.s32.totalorder %s12, 0
    %p44 = por %p42, %p43
    %p45 = scmp.ne.s32.totalorder %s34, %s37
    %p46 = scmp.eq.s32.totalorder %s17, 1
    %p47 = por %p45, %p46
    %p48 = scmp.ne.s32.totalorder %s37, %s38
    %p49 = scmp.eq.s32.totalorder %s17, 0
    %p50 = por %p48, %p49
    %p51 = scmp.ne.s32.totalorder %s37, %s38
    %p52 = scmp.eq.s32.totalorder %s18, 1
    %p53 = por %p51, %p52
    %p55 = scmp.ne.s32.totalorder %s38, %s54
    %p56 = scmp.eq.s32.totalorder %s18, 0
    %p57 = por %p55, %p56
    %s59 = sadd.s32 %s58, 1
    %p62 = scmp.eq.s32.totalorder %s12, 1
    %p63 = scmp.ne.s32.totalorder %s58, %s60
    %p64 = scmp.eq.s32.totalorder %s12, 0
    %p65 = por %p63, %p64
    %p66 = scmp.ne.s32.totalorder %s58, %s60
    %p67 = scmp.eq.s32.totalorder %s17, 1
    %p68 = por %p66, %p67
    %p69 = scmp.ne.s32.totalorder %s60, %s61
    %p70 = scmp.eq.s32.totalorder %s17, 0
    %p71 = por %p69, %p70
    %p72 = scmp.ne.s32.totalorder %s60, %s61
    %p73 = scmp.eq.s32.totalorder %s18, 1
    %p74 = por %p72, %p73
    %p76 = scmp.ne.s32.totalorder %s61, %s75
    %p77 = scmp.eq.s32.totalorder %s18, 0
    %p78 = por %p76, %p77
    %s80 = sadd.s32 %s79, 1
    %p83 = scmp.eq.s32.totalorder %s12, 1
    %p84 = scmp.ne.s32.totalorder %s79, %s81
    %p85 = scmp.eq.s32.totalorder %s12, 0
    %p86 = por %p84, %p85
    %p87 = scmp.ne.s32.totalorder %s79, %s81
    %p88 = scmp.eq.s32.totalorder %s17, 1
    %p89 = por %p87, %p88
    %p90 = scmp.ne.s32.totalorder %s81, %s82
    %p91 = scmp.eq.s32.totalorder %s17, 0
    %p92 = por %p90, %p91
    %p93 = scmp.ne.s32.totalorder %s81, %s82
    %p94 = scmp.eq.s32.totalorder %s18, 1
    %p95 = por %p93, %p94
    %p97 = scmp.ne.s32.totalorder %s82, %s96
    %p98 = scmp.eq.s32.totalorder %s18, 0
    %p99 = por %p97, %p98
    %s101 = sadd.s32 %s100, 1
    %p104 = scmp.eq.s32.totalorder %s12, 1
    %p105 = scmp.ne.s32.totalorder %s100, %s102
    %p106 = scmp.eq.s32.totalorder %s12, 0
    %p107 = por %p105, %p106
    %p108 = scmp.ne.s32.totalorder %s100, %s102
    %p109 = scmp.eq.s32.totalorder %s17, 1
    %p110 = por %p108, %p109
    %p111 = scmp.ne.s32.totalorder %s102, %s103
    %p112 = scmp.eq.s32.totalorder %s17, 0
    %p113 = por %p111, %p112
    %p114 = scmp.ne.s32.totalorder %s102, %s103
    %p115 = scmp.eq.s32.totalorder %s18, 1
    %p116 = por %p114, %p115
    %p118 = scmp.ne.s32.totalorder %s103, %s117
    %p119 = scmp.eq.s32.totalorder %s18, 0
    %p120 = por %p118, %p119
    %s122 = sadd.s32 %s121, 1
    %p125 = scmp.eq.s32.totalorder %s12, 1
    %p126 = scmp.ne.s32.totalorder %s121, %s123
    %p127 = scmp.eq.s32.totalorder %s12, 0
    %p128 = por %p126, %p127
    %p129 = scmp.ne.s32.totalorder %s121, %s123
    %p130 = scmp.eq.s32.totalorder %s17, 1
    %p131 = por %p129, %p130
    %p132 = scmp.ne.s32.totalorder %s123, %s124
    %p133 = scmp.eq.s32.totalorder %s17, 0
    %p134 = por %p132, %p133
    %p135 = scmp.ne.s32.totalorder %s123, %s124
    %p136 = scmp.eq.s32.totalorder %s18, 1
    %p137 = por %p135, %p136
    %p139 = scmp.ne.s32.totalorder %s124, %s138
    %p140 = scmp.eq.s32.totalorder %s18, 0
    %p141 = por %p139, %p140
    %s143 = sadd.s32 %s142, 1
    %p146 = scmp.eq.s32.totalorder %s12, 1
    %p147 = scmp.ne.s32.totalorder %s142, %s144
    %p148 = scmp.eq.s32.totalorder %s12, 0
    %p149 = por %p147, %p148
    %p150 = scmp.ne.s32.totalorder %s142, %s144
    %p151 = scmp.eq.s32.totalorder %s17, 1
    %p152 = por %p150, %p151
    %p153 = scmp.ne.s32.totalorder %s144, %s145
    %p154 = scmp.eq.s32.totalorder %s17, 0
    %p155 = por %p153, %p154
    %p156 = scmp.ne.s32.totalorder %s144, %s145
    %p157 = scmp.eq.s32.totalorder %s18, 1
    %p158 = por %p156, %p157
    %p160 = scmp.ne.s32.totalorder %s145, %s159
    %p161 = scmp.eq.s32.totalorder %s18, 0
    %p162 = por %p160, %p161
    %s163 = ssub.s32 %s19, %s31
    %s164 = ssub.s32 %s20, %s27
    %s165 = sor.u32 %s163, %s164
    %p166 = scmp.eq.s32.totalorder %s165, 0
    %s168 = sadd.s32 %s167, 1
    %s169 = scalar_select %p166, %s167, %s168
    %p172 = pneg %p166
    %p173 = scmp.eq.s32.totalorder %s12, 1
    %p174 = por %p172, %p173
    %p175 = scmp.ne.s32.totalorder %s167, %s170
    %p176 = scmp.eq.s32.totalorder %s12, 0
    %p177 = por %p175, %p176
    %p178 = scmp.ne.s32.totalorder %s167, %s170
    %p179 = scmp.eq.s32.totalorder %s17, 1
    %p180 = por %p178, %p179
    %p181 = scmp.ne.s32.totalorder %s170, %s171
    %p182 = scmp.eq.s32.totalorder %s17, 0
    %p183 = por %p181, %p182
    %p184 = scmp.ne.s32.totalorder %s170, %s171
    %p185 = scmp.eq.s32.totalorder %s18, 1
    %p186 = por %p184, %p185
    %p188 = scmp.ne.s32.totalorder %s171, %s187
    %p189 = scmp.eq.s32.totalorder %s18, 0
    %p190 = por %p188, %p189
    %p191 = scmp.le.s32.totalorder 1, %s12
    %p192 = scmp.lt.s32.totalorder %s12, 3
    %p193 = pnand %p191, %p192
    %p194 = pneg %p193
    // Predicated region
    $region9: #{_lambda_.8} parent=5 // pred_check
      _
    $region10: #{_lambda_.8} parent=5 // pred_check_branch
      %196 = sbr.rel (%p193) target = $region12
    $region11: #{_lambda_.8} parent=5 // pred_region
      %s197 = ssub.s32 %s12, 1
      // Predicated region
      $region13: #{_lambda_.8} parent=11 // pred_check
        %p198 = pneg %p71
      $region14: #{_lambda_.8} parent=11 // pred_check_branch
        %200 = sbr.rel (%p198) target = $region16
      $region15: #{_lambda_.8} parent=11 // pred_region
        _
      $region16: #{_lambda_.8} parent=11 // pred_fallthru
        _
      // Predicated region
      $region17: #{_lambda_.8} parent=11 // pred_check
        %p201 = pneg %p92
      $region18: #{_lambda_.8} parent=11 // pred_check_branch
        %203 = sbr.rel (%p201) target = $region20
      $region19: #{_lambda_.8} parent=11 // pred_region
        _
      $region20: #{_lambda_.8} parent=11 // pred_fallthru
        _
      // Predicated region
      $region21: #{_lambda_.8} parent=11 // pred_check
        %p204 = pneg %p113
      $region22: #{_lambda_.8} parent=11 // pred_check_branch
        %206 = sbr.rel (%p204) target = $region24
      $region23: #{_lambda_.8} parent=11 // pred_region
        _
      $region24: #{_lambda_.8} parent=11 // pred_fallthru
        _
      // Predicated region
      $region25: #{_lambda_.8} parent=11 // pred_check
        %p207 = pneg %p134
      $region26: #{_lambda_.8} parent=11 // pred_check_branch
        %209 = sbr.rel (%p207) target = $region28
      $region27: #{_lambda_.8} parent=11 // pred_region
        _
      $region28: #{_lambda_.8} parent=11 // pred_fallthru
        _
      // Predicated region
      $region29: #{_lambda_.8} parent=11 // pred_check
        %p210 = pneg %p155
      $region30: #{_lambda_.8} parent=11 // pred_check_branch
        %212 = sbr.rel (%p210) target = $region32
      $region31: #{_lambda_.8} parent=11 // pred_region
        _
      $region32: #{_lambda_.8} parent=11 // pred_fallthru
        _
    $region12: #{_lambda_.8} parent=5 // pred_fallthru
      _
    %p213 = scmp.lt.s32.totalorder %s12, 2
    // Predicated region
    $region33: #{_lambda_.8} parent=5 // pred_check
      %p214 = pneg %p213
    $region34: #{_lambda_.8} parent=5 // pred_check_branch
      %216 = sbr.rel (%p214) target = $region36
    $region35: #{_lambda_.8} parent=5 // pred_region
      // Predicated region
      $region37: #{_lambda_.8} parent=35 // pred_check
        %p217 = pneg %p44
      $region38: #{_lambda_.8} parent=35 // pred_check_branch
        %219 = sbr.rel (%p217) target = $region40
      $region39: #{_lambda_.8} parent=35 // pred_region
        %p220 = scmp.lt.s32.totalorder %s19, 1
        %s221 = scalar_select %p220, %s19, 1
        %s222 = smul.addr %s221, 8
        %s223 = smul.addr %s222, 4
        %s224 = scalar_lea.vmem %s0, %s223
      $region40: #{_lambda_.8} parent=35 // pred_fallthru
        _
    $region36: #{_lambda_.8} parent=5 // pred_fallthru
      _
    %p225 = scmp.le.s32.totalorder 1, %s12
    %p226 = scmp.lt.s32.totalorder %s12, 3
    %p227 = pnand %p225, %p226
    %p228 = pneg %p227
    // Predicated region
    $region41: #{_lambda_.8} parent=5 // pred_check
      _
    $region42: #{_lambda_.8} parent=5 // pred_check_branch
      %230 = sbr.rel (%p227) target = $region44
    $region43: #{_lambda_.8} parent=5 // pred_region
      %s231 = ssub.s32 %s12, 1
      %p232 = scmp.lt.s32.totalorder %s21, 1
      %s233 = scalar_select %p232, %s21, 1
      %s234 = smul.addr %s233, 8
      %s235 = smul.addr %s234, 4
      %s236 = scalar_lea.vmem %s0, %s235
      %p237 = pneg %p50
      %p238 = pneg %p47
      %p239 = pneg %p71
      %p240 = pneg %p68
      %p241 = pneg %p92
      %p242 = pneg %p89
      %p243 = pneg %p113
      %p244 = pneg %p110
      %p245 = pneg %p134
      %p246 = pneg %p131
      %p247 = pneg %p155
      %p248 = pneg %p152
      %p249 = pneg %p183
      %p250 = pneg %p180
      %s251 = smul.u32 8, %s22
      %p252 = scmp.lt.s32.totalorder %s21, 1
      %s253 = scalar_select %p252, %s21, 1
      %p254 = scmp.lt.s32.totalorder %s251, 7
      %s255 = scalar_select %p254, %s251, 7
      %s256 = smul.addr %s253, 8
      %s257 = sadd.s32 %s255, %s256
      %s258 = smul.addr %s257, 4
      %s259 = scalar_lea.vmem %s6, %s258
      %p260 = scmp.lt.s32.totalorder %s21, 1
      %s261 = scalar_select %p260, %s21, 1
      %s262 = smul.addr %s261, 8
      %s263 = smul.addr %s262, 4
      %s264 = scalar_lea.vmem %s0, %s263
      %s265 = smul.u32 8, %s22
      %p266 = scmp.lt.s32.totalorder %s21, 1
      %s267 = scalar_select %p266, %s21, 1
      %p268 = scmp.lt.s32.totalorder %s265, 7
      %s269 = scalar_select %p268, %s265, 7
      %s270 = smul.addr %s267, 8
      %s271 = sadd.s32 %s269, %s270
      %s272 = smul.addr %s271, 4
      %s273 = scalar_lea.vmem %s6, %s272
      %s274 = smul.u32 8, %s22
      %s276 = smul.u32 %s22, 8
      %p277 = scmp.eq.s32.totalorder %s22, 0
      // Predicated region
      $region45: #{_lambda_.8} parent=43 // pred_check
        %p278 = pneg %p277
      $region46: #{_lambda_.8} parent=43 // pred_check_branch
        %280 = sbr.rel (%p278) target = $region48
      $region47: #{_lambda_.8} parent=43 // pred_region
        %281 = vst [vmem:[#allocation2] sm:$0xff] 0.0
        %282 = vst [vmem:[#allocation2 + $0x8] sm:$0x3] 0.0
        %283 = vst [vmem:[#allocation2 + $0x10] sm:$0xff] 0.0
        %284 = vst [vmem:[#allocation2 + $0x18] sm:$0x3] 0.0
        %285 = vst [vmem:[#allocation2 + $0x20] sm:$0xff] 0.0
        %286 = vst [vmem:[#allocation2 + $0x28] sm:$0x3] 0.0
        %287 = vst [vmem:[#allocation2 + $0x30] sm:$0xff] 0.0
        %288 = vst [vmem:[#allocation2 + $0x38] sm:$0x3] 0.0
        %289 = vst [vmem:[#allocation2 + $0x40] sm:$0xff] 0.0
        %290 = vst [vmem:[#allocation2 + $0x48] sm:$0x3] 0.0
        %291 = vst [vmem:[#allocation2 + $0x50] sm:$0xff] 0.0
        %292 = vst [vmem:[#allocation2 + $0x58] sm:$0x3] 0.0
        %293 = vst [vmem:[#allocation2 + $0x60] sm:$0xff] 0.0
        %294 = vst [vmem:[#allocation2 + $0x68] sm:$0x3] 0.0
        %295 = vst [vmem:[#allocation2 + $0x70] sm:$0xff] 0.0
        %296 = vst [vmem:[#allocation2 + $0x78] sm:$0x3] 0.0
        %297 = vst [vmem:[#allocation2 + $0x80] sm:$0xff] 0.0
        %298 = vst [vmem:[#allocation2 + $0x88] sm:$0x3] 0.0
        %299 = vst [vmem:[#allocation2 + $0x90] sm:$0xff] 0.0
        %300 = vst [vmem:[#allocation2 + $0x98] sm:$0x3] 0.0
        %v301 = vld [vmem:[%s264] sm:$0xf]
        %v302 = vld [vmem:[%s264 + $0x4] sm:$0xf]
        %v303 = vld [vmem:[%s264 + $0x8] sm:$0xf]
        %v304 = vld [vmem:[%s264 + $0xc] sm:$0xf]
        %v305 = vld [vmem:[%s264 + $0x10] sm:$0xf]
        %v306 = vld [vmem:[%s264 + $0x14] sm:$0xf]
        %v307 = vld [vmem:[%s264 + $0x18] sm:$0xf]
        %v308 = vld [vmem:[%s264 + $0x1c] sm:$0xf]
        %v309 = vunpack.c.l.bf16 %v301
        %v310 = vunpack.c.l.bf16 %v302
        %v311 = vunpack.c.l.bf16 %v303
        %v312 = vunpack.c.l.bf16 %v304
        %v313 = vunpack.c.l.bf16 %v305
        %v314 = vunpack.c.l.bf16 %v306
        %v315 = vunpack.c.l.bf16 %v307
        %v316 = vunpack.c.l.bf16 %v308
        %v317 = vld [vmem:[%s2] sm:$0x1]
        %v319 = vlaneseq
        %v320 = vshrl.u32 %v319, 7
        %v321 = vsub.s32 0, %v320
        %v322 = vrot.slane %v317, %v321
        %v324 = vmul.f32 %v309, %v322
        %v325 = vmul.f32 %v310, %v322
        %v326 = vmul.f32 %v311, %v322
        %v327 = vmul.f32 %v312, %v322
        %v328 = vmul.f32 %v313, %v322
        %v329 = vmul.f32 %v314, %v322
        %v330 = vmul.f32 %v315, %v322
        %v331 = vmul.f32 %v316, %v322
        %v332 = vld [vmem:[%s3] sm:$0x1]
        %v334 = vlaneseq
        %v335 = vshrl.u32 %v334, 7
        %v336 = vsub.s32 0, %v335
        %v337 = vrot.slane %v332, %v336
        %v339 = vadd.f32 %v324, %v337
        %v340 = vadd.f32 %v325, %v337
        %v341 = vadd.f32 %v326, %v337
        %v342 = vadd.f32 %v327, %v337
        %v343 = vadd.f32 %v328, %v337
        %v344 = vadd.f32 %v329, %v337
        %v345 = vadd.f32 %v330, %v337
        %v346 = vadd.f32 %v331, %v337
        %v347 = vmax.f32 %v339, 0.0
        %v348 = vmax.f32 %v340, 0.0
        %v349 = vmax.f32 %v341, 0.0
        %v350 = vmax.f32 %v342, 0.0
        %v351 = vmax.f32 %v343, 0.0
        %v352 = vmax.f32 %v344, 0.0
        %v353 = vmax.f32 %v345, 0.0
        %v354 = vmax.f32 %v346, 0.0
        %s355 = scalar_lea.vmem [#allocation2], 16
        %356 = vst [vmem:[%s355 + $0x1] sm:$0xff] %v347
        %357 = vst [vmem:[%s355 + $0x11] sm:$0xff] %v348
        %358 = vst [vmem:[%s355 + $0x21] sm:$0xff] %v349
        %359 = vst [vmem:[%s355 + $0x31] sm:$0xff] %v350
        %360 = vst [vmem:[%s355 + $0x41] sm:$0xff] %v351
        %361 = vst [vmem:[%s355 + $0x51] sm:$0xff] %v352
        %362 = vst [vmem:[%s355 + $0x61] sm:$0xff] %v353
        %363 = vst [vmem:[%s355 + $0x71] sm:$0xff] %v354
      $region48: #{_lambda_.8} parent=43 // pred_fallthru
        _
      %s364 = smul.u32 %s276, 16
      %s365 = scalar_lea.vmem [#allocation2], %s364
      %v366 = vld [vmem:[%s365] sm:$0xff]
      %v367 = vld [vmem:[%s365 + $0x10] sm:$0xff]
      %v368 = vld [vmem:[%s365 + $0x20] sm:$0xff]
      %v369 = vld [vmem:[%s365 + $0x30] sm:$0xff]
      %v370 = vld [vmem:[%s365 + $0x40] sm:$0xff]
      %v371 = vld [vmem:[%s365 + $0x50] sm:$0xff]
      %v372 = vld [vmem:[%s365 + $0x60] sm:$0xff]
      %v373 = vld [vmem:[%s365 + $0x70] sm:$0xff]
      %v374 = vpack.c.bf16 %v367, %v366
      %v375 = vpack.c.bf16 %v369, %v368
      %v376 = vpack.c.bf16 %v371, %v370
      %v377 = vpack.c.bf16 %v373, %v372
      %v378 = vld [vmem:[%s1] sm:$0xf]
      %v379 = vld [vmem:[%s1 + $0x4] sm:$0xf]
      %v380 = vld [vmem:[%s1 + $0x8] sm:$0xf]
      %v381 = vld [vmem:[%s1 + $0xc] sm:$0xf]
      %v382 = vld [vmem:[%s1 + $0x10] sm:$0xf]
      %v383 = vld [vmem:[%s1 + $0x14] sm:$0xf]
      %v384 = vld [vmem:[%s1 + $0x18] sm:$0xf]
      %v385 = vld [vmem:[%s1 + $0x1c] sm:$0xf]
      %v386 = vld [vmem:[%s1 + $0x20] sm:$0xf]
      %v387 = vld [vmem:[%s1 + $0x24] sm:$0xf]
      %v388 = vld [vmem:[%s1 + $0x28] sm:$0xf]
      %v389 = vld [vmem:[%s1 + $0x2c] sm:$0xf]
      %v390 = vld [vmem:[%s1 + $0x30] sm:$0xf]
      %v391 = vld [vmem:[%s1 + $0x34] sm:$0xf]
      %v392 = vld [vmem:[%s1 + $0x38] sm:$0xf]
      %v393 = vld [vmem:[%s1 + $0x3c] sm:$0xf]
      %v394 = vld [vmem:[%s365 + $0x1] sm:$0xff]
      %v395 = vld [vmem:[%s365 + $0x11] sm:$0xff]
      %v396 = vld [vmem:[%s365 + $0x21] sm:$0xff]
      %v397 = vld [vmem:[%s365 + $0x31] sm:$0xff]
      %v398 = vld [vmem:[%s365 + $0x41] sm:$0xff]
      %v399 = vld [vmem:[%s365 + $0x51] sm:$0xff]
      %v400 = vld [vmem:[%s365 + $0x61] sm:$0xff]
      %v401 = vld [vmem:[%s365 + $0x71] sm:$0xff]
      %v402 = vpack.c.bf16 %v395, %v394
      %v403 = vpack.c.bf16 %v397, %v396
      %v404 = vpack.c.bf16 %v399, %v398
      %v405 = vpack.c.bf16 %v401, %v400
      %s406 = scalar_lea.vmem %s1, 64
      %v407 = vld [vmem:[%s406] sm:$0xf]
      %v408 = vld [vmem:[%s406 + $0x4] sm:$0xf]
      %v409 = vld [vmem:[%s406 + $0x8] sm:$0xf]
      %v410 = vld [vmem:[%s406 + $0xc] sm:$0xf]
      %v411 = vld [vmem:[%s406 + $0x10] sm:$0xf]
      %v412 = vld [vmem:[%s406 + $0x14] sm:$0xf]
      %v413 = vld [vmem:[%s406 + $0x18] sm:$0xf]
      %v414 = vld [vmem:[%s406 + $0x1c] sm:$0xf]
      %v415 = vld [vmem:[%s406 + $0x20] sm:$0xf]
      %v416 = vld [vmem:[%s406 + $0x24] sm:$0xf]
      %v417 = vld [vmem:[%s406 + $0x28] sm:$0xf]
      %v418 = vld [vmem:[%s406 + $0x2c] sm:$0xf]
      %v419 = vld [vmem:[%s406 + $0x30] sm:$0xf]
      %v420 = vld [vmem:[%s406 + $0x34] sm:$0xf]
      %v421 = vld [vmem:[%s406 + $0x38] sm:$0xf]
      %v422 = vld [vmem:[%s406 + $0x3c] sm:$0xf]
      %v439 = vunpack.c.l.b16 %v407
      %v440 = vunpack.c.l.b16 %v408
      %v441 = vunpack.c.l.b16 %v409
      %v442 = vunpack.c.l.b16 %v410
      %v443 = vunpack.c.l.b16 %v411
      %v444 = vunpack.c.l.b16 %v412
      %v445 = vunpack.c.l.b16 %v413
      %v446 = vunpack.c.l.b16 %v414
      %v447 = vunpack.c.l.b16 %v415
      %v448 = vunpack.c.l.b16 %v416
      %v449 = vunpack.c.l.b16 %v417
      %v450 = vunpack.c.l.b16 %v418
      %v451 = vunpack.c.l.b16 %v419
      %v452 = vunpack.c.l.b16 %v420
      %v453 = vunpack.c.l.b16 %v421
      %v454 = vunpack.c.l.b16 %v422
      %v455 = vpack.c.b16 %v440, %v439
      %v456 = vpack.c.b16 %v442, %v441
      %v457 = vpack.c.b16 %v444, %v443
      %v458 = vpack.c.b16 %v446, %v445
      %v459 = vpack.c.b16 %v448, %v447
      %v460 = vpack.c.b16 %v450, %v449
      %v461 = vpack.c.b16 %v452, %v451
      %v462 = vpack.c.b16 %v454, %v453
      %471 = vmatprep.subr.bf16.mxu0 0
      %472 = vmatpush1.bf16.msra.mxu0 %v455
      %473 = vmatprep.subr.bf16.mxu0 0
      %474 = vmatpush1.bf16.msra.mxu0 %v456
      %475 = vmatprep.subr.bf16.mxu0 0
      %476 = vmatpush1.bf16.msra.mxu0 %v457
      %477 = vmatprep.subr.bf16.mxu0 0
      %478 = vmatpush1.bf16.msra.mxu0 %v458
      %479 = vmatprep.subr.bf16.mxu0 0
      %480 = vmatpush1.bf16.msra.mxu0 %v459
      %481 = vmatprep.subr.bf16.mxu0 0
      %482 = vmatpush1.bf16.msra.mxu0 %v460
      %483 = vmatprep.subr.bf16.mxu0 0
      %484 = vmatpush1.bf16.msra.mxu0 %v461
      %485 = vmatprep.subr.bf16.mxu0 0
      %486 = vmatpush1.bf16.msra.mxu0 %v462
      %487 = vmatprep.subr.bf16.mxu0 0
      %488 = vmatpush1.bf16.msra.mxu0 0
      %489 = vmatprep.subr.bf16.mxu0 0
      %490 = vmatpush1.bf16.msra.mxu0 0
      %491 = vmatprep.subr.bf16.mxu0 0
      %492 = vmatpush1.bf16.msra.mxu0 0
      %493 = vmatprep.subr.bf16.mxu0 0
      %494 = vmatpush1.bf16.msra.mxu0 0
      %495 = vmatprep.subr.bf16.mxu0 0
      %496 = vmatpush1.bf16.msra.mxu0 0
      %497 = vmatprep.subr.bf16.mxu0 0
      %498 = vmatpush1.bf16.msra.mxu0 0
      %499 = vmatprep.subr.bf16.mxu0 0
      %500 = vmatpush1.bf16.msra.mxu0 0
      %501 = vmatprep.subr.bf16.mxu0 0
      %502 = vmatpush1.bf16.msra.mxu0 0
      %503 = vmatprep.mubr.bf16.mxu0 0
      %504 = vmatmul.mubr.bf16.gmra.mrb[0].mxu0 %v402
      %v505 = vpop.f32.mrb[0].mxu0
      %v506 = vadd.f32 0.0, %v505
      %v507 = vpop.f32.mrb[0].mxu0
      %v508 = vpop.f32.mrb[0].mxu0
      %v509 = vadd.f32 0.0, %v508
      %v510 = vpop.f32.mrb[0].mxu0
      %511 = vmatprep.mubr.bf16.mxu0 0
      %512 = vmatmul.mubr.bf16.gmra.mrb[0].mxu0 %v403
      %v513 = vpop.f32.mrb[0].mxu0
      %v514 = vadd.f32 0.0, %v513
      %v515 = vpop.f32.mrb[0].mxu0
      %v516 = vpop.f32.mrb[0].mxu0
      %v517 = vadd.f32 0.0, %v516
      %v518 = vpop.f32.mrb[0].mxu0
      %519 = vmatprep.mubr.bf16.mxu0 0
      %520 = vmatmul.mubr.bf16.gmra.mrb[0].mxu0 %v404
      %v521 = vpop.f32.mrb[0].mxu0
      %v522 = vadd.f32 0.0, %v521
      %v523 = vpop.f32.mrb[0].mxu0
      %v524 = vpop.f32.mrb[0].mxu0
      %v525 = vadd.f32 0.0, %v524
      %v526 = vpop.f32.mrb[0].mxu0
      %527 = vmatprep.mubr.bf16.mxu0 0
      %528 = vmatmul.mubr.bf16.gmra.mrb[0].mxu0 %v405
      %v529 = vpop.f32.mrb[0].mxu0
      %v530 = vadd.f32 0.0, %v529
      %v531 = vpop.f32.mrb[0].mxu0
      %v532 = vpop.f32.mrb[0].mxu0
      %v533 = vadd.f32 0.0, %v532
      %v534 = vpop.f32.mrb[0].mxu0
      %535 = vdwg.mxu0
      %v552 = vunpack.c.l.b16 %v378
      %v553 = vunpack.c.l.b16 %v379
      %v554 = vunpack.c.l.b16 %v380
      %v555 = vunpack.c.l.b16 %v381
      %v556 = vunpack.c.l.b16 %v382
      %v557 = vunpack.c.l.b16 %v383
      %v558 = vunpack.c.l.b16 %v384
      %v559 = vunpack.c.l.b16 %v385
      %v560 = vunpack.c.l.b16 %v386
      %v561 = vunpack.c.l.b16 %v387
      %v562 = vunpack.c.l.b16 %v388
      %v563 = vunpack.c.l.b16 %v389
      %v564 = vunpack.c.l.b16 %v390
      %v565 = vunpack.c.l.b16 %v391
      %v566 = vunpack.c.l.b16 %v392
      %v567 = vunpack.c.l.b16 %v393
      %v568 = vpack.c.b16 %v553, %v552
      %v569 = vpack.c.b16 %v555, %v554
      %v570 = vpack.c.b16 %v557, %v556
      %v571 = vpack.c.b16 %v559, %v558
      %v572 = vpack.c.b16 %v561, %v560
      %v573 = vpack.c.b16 %v563, %v562
      %v574 = vpack.c.b16 %v565, %v564
      %v575 = vpack.c.b16 %v567, %v566
      %584 = vmatprep.subr.bf16.mxu0 0
      %585 = vmatpush1.bf16.msra.mxu0 %v568
      %586 = vmatprep.subr.bf16.mxu0 0
      %587 = vmatpush1.bf16.msra.mxu0 %v569
      %588 = vmatprep.subr.bf16.mxu0 0
      %589 = vmatpush1.bf16.msra.mxu0 %v570
      %590 = vmatprep.subr.bf16.mxu0 0
      %591 = vmatpush1.bf16.msra.mxu0 %v571
      %592 = vmatprep.subr.bf16.mxu0 0
      %593 = vmatpush1.bf16.msra.mxu0 %v572
      %594 = vmatprep.subr.bf16.mxu0 0
      %595 = vmatpush1.bf16.msra.mxu0 %v573
      %596 = vmatprep.subr.bf16.mxu0 0
      %597 = vmatpush1.bf16.msra.mxu0 %v574
      %598 = vmatprep.subr.bf16.mxu0 0
      %599 = vmatpush1.bf16.msra.mxu0 %v575
      %600 = vmatprep.subr.bf16.mxu0 0
      %601 = vmatpush1.bf16.msra.mxu0 0
      %602 = vmatprep.subr.bf16.mxu0 0
      %603 = vmatpush1.bf16.msra.mxu0 0
      %604 = vmatprep.subr.bf16.mxu0 0
      %605 = vmatpush1.bf16.msra.mxu0 0
      %606 = vmatprep.subr.bf16.mxu0 0
      %607 = vmatpush1.bf16.msra.mxu0 0
      %608 = vmatprep.subr.bf16.mxu0 0
      %609 = vmatpush1.bf16.msra.mxu0 0
      %610 = vmatprep.subr.bf16.mxu0 0
      %611 = vmatpush1.bf16.msra.mxu0 0
      %612 = vmatprep.subr.bf16.mxu0 0
      %613 = vmatpush1.bf16.msra.mxu0 0
      %614 = vmatprep.subr.bf16.mxu0 0
      %615 = vmatpush1.bf16.msra.mxu0 0
      %616 = vmatprep.mubr.bf16.mxu0 0
      %617 = vmatmul.mubr.bf16.gmra.mrb[0].mxu0 %v374
      %v618 = vpop.f32.mrb[0].mxu0
      %v619 = vadd.f32 %v506, %v618
      %v620 = vpop.f32.mrb[0].mxu0
      %v621 = vpop.f32.mrb[0].mxu0
      %v622 = vadd.f32 %v509, %v621
      %v623 = vpop.f32.mrb[0].mxu0
      %624 = vmatprep.mubr.bf16.mxu0 0
      %625 = vmatmul.mubr.bf16.gmra.mrb[0].mxu0 %v375
      %v626 = vpop.f32.mrb[0].mxu0
      %v627 = vadd.f32 %v514, %v626
      %v628 = vpop.f32.mrb[0].mxu0
      %v629 = vpop.f32.mrb[0].mxu0
      %v630 = vadd.f32 %v517, %v629
      %v631 = vpop.f32.mrb[0].mxu0
      %632 = vmatprep.mubr.bf16.mxu0 0
      %633 = vmatmul.mubr.bf16.gmra.mrb[0].mxu0 %v376
      %v634 = vpop.f32.mrb[0].mxu0
      %v635 = vadd.f32 %v522, %v634
      %v636 = vpop.f32.mrb[0].mxu0
      %v637 = vpop.f32.mrb[0].mxu0
      %v638 = vadd.f32 %v525, %v637
      %v639 = vpop.f32.mrb[0].mxu0
      %640 = vmatprep.mubr.bf16.mxu0 0
      %641 = vmatmul.mubr.bf16.gmra.mrb[0].mxu0 %v377
      %v642 = vpop.f32.mrb[0].mxu0
      %v643 = vadd.f32 %v530, %v642
      %v644 = vpop.f32.mrb[0].mxu0
      %v645 = vpop.f32.mrb[0].mxu0
      %v646 = vadd.f32 %v533, %v645
      %v647 = vpop.f32.mrb[0].mxu0
      %648 = vdwg.mxu0
      %v649 = vld [vmem:[%s365 + $0x2] sm:$0xff]
      %v650 = vld [vmem:[%s365 + $0x12] sm:$0xff]
      %v651 = vld [vmem:[%s365 + $0x22] sm:$0xff]
      %v652 = vld [vmem:[%s365 + $0x32] sm:$0xff]
      %v653 = vld [vmem:[%s365 + $0x42] sm:$0xff]
      %v654 = vld [vmem:[%s365 + $0x52] sm:$0xff]
      %v655 = vld [vmem:[%s365 + $0x62] sm:$0xff]
      %v656 = vld [vmem:[%s365 + $0x72] sm:$0xff]
      %v657 = vpack.c.bf16 %v650, %v649
      %v658 = vpack.c.bf16 %v652, %v651
      %v659 = vpack.c.bf16 %v654, %v653
      %v660 = vpack.c.bf16 %v656, %v655
      %s661 = scalar_lea.vmem %s1, 128
      %v662 = vld [vmem:[%s661] sm:$0xf]
      %v663 = vld [vmem:[%s661 + $0x4] sm:$0xf]
      %v664 = vld [vmem:[%s661 + $0x8] sm:$0xf]
      %v665 = vld [vmem:[%s661 + $0xc] sm:$0xf]
      %v666 = vld [vmem:[%s661 + $0x10] sm:$0xf]
      %v667 = vld [vmem:[%s661 + $0x14] sm:$0xf]
      %v668 = vld [vmem:[%s661 + $0x18] sm:$0xf]
      %v669 = vld [vmem:[%s661 + $0x1c] sm:$0xf]
      %v670 = vld [vmem:[%s661 + $0x20] sm:$0xf]
      %v671 = vld [vmem:[%s661 + $0x24] sm:$0xf]
      %v672 = vld [vmem:[%s661 + $0x28] sm:$0xf]
      %v673 = vld [vmem:[%s661 + $0x2c] sm:$0xf]
      %v674 = vld [vmem:[%s661 + $0x30] sm:$0xf]
      %v675 = vld [vmem:[%s661 + $0x34] sm:$0xf]
      %v676 = vld [vmem:[%s661 + $0x38] sm:$0xf]
      %v677 = vld [vmem:[%s661 + $0x3c] sm:$0xf]
      %v694 = vunpack.c.l.b16 %v662
      %v695 = vunpack.c.l.b16 %v663
      %v696 = vunpack.c.l.b16 %v664
      %v697 = vunpack.c.l.b16 %v665
      %v698 = vunpack.c.l.b16 %v666
      %v699 = vunpack.c.l.b16 %v667
      %v700 = vunpack.c.l.b16 %v668
      %v701 = vunpack.c.l.b16 %v669
      %v702 = vunpack.c.l.b16 %v670
      %v703 = vunpack.c.l.b16 %v671
      %v704 = vunpack.c.l.b16 %v672
      %v705 = vunpack.c.l.b16 %v673
      %v706 = vunpack.c.l.b16 %v674
      %v707 = vunpack.c.l.b16 %v675
      %v708 = vunpack.c.l.b16 %v676
      %v709 = vunpack.c.l.b16 %v677
      %v710 = vpack.c.b16 %v695, %v694
      %v711 = vpack.c.b16 %v697, %v696
      %v712 = vpack.c.b16 %v699, %v698
      %v713 = vpack.c.b16 %v701, %v700
      %v714 = vpack.c.b16 %v703, %v702
      %v715 = vpack.c.b16 %v705, %v704
      %v716 = vpack.c.b16 %v707, %v706
      %v717 = vpack.c.b16 %v709, %v708
      %726 = vmatprep.subr.bf16.mxu0 0
      %727 = vmatpush1.bf16.msra.mxu0 %v710
      %728 = vmatprep.subr.bf16.mxu0 0
      %729 = vmatpush1.bf16.msra.mxu0 %v711
      %730 = vmatprep.subr.bf16.mxu0 0
      %731 = vmatpush1.bf16.msra.mxu0 %v712
      %732 = vmatprep.subr.bf16.mxu0 0
      %733 = vmatpush1.bf16.msra.mxu0 %v713
      %734 = vmatprep.subr.bf16.mxu0 0
      %735 = vmatpush1.bf16.msra.mxu0 %v714
      %736 = vmatprep.subr.bf16.mxu0 0
      %737 = vmatpush1.bf16.msra.mxu0 %v715
      %738 = vmatprep.subr.bf16.mxu0 0
      %739 = vmatpush1.bf16.msra.mxu0 %v716
      %740 = vmatprep.subr.bf16.mxu0 0
      %741 = vmatpush1.bf16.msra.mxu0 %v717
      %742 = vmatprep.subr.bf16.mxu0 0
      %743 = vmatpush1.bf16.msra.mxu0 0
      %744 = vmatprep.subr.bf16.mxu0 0
      %745 = vmatpush1.bf16.msra.mxu0 0
      %746 = vmatprep.subr.bf16.mxu0 0
      %747 = vmatpush1.bf16.msra.mxu0 0
      %748 = vmatprep.subr.bf16.mxu0 0
      %749 = vmatpush1.bf16.msra.mxu0 0
      %750 = vmatprep.subr.bf16.mxu0 0
      %751 = vmatpush1.bf16.msra.mxu0 0
      %752 = vmatprep.subr.bf16.mxu0 0
      %753 = vmatpush1.bf16.msra.mxu0 0
      %754 = vmatprep.subr.bf16.mxu0 0
      %755 = vmatpush1.bf16.msra.mxu0 0
      %756 = vmatprep.subr.bf16.mxu0 0
      %757 = vmatpush1.bf16.msra.mxu0 0
      %758 = vmatprep.mubr.bf16.mxu0 0
      %759 = vmatmul.mubr.bf16.gmra.mrb[0].mxu0 %v657
      %v760 = vpop.f32.mrb[0].mxu0
      %v761 = vadd.f32 0.0, %v760
      %v762 = vpop.f32.mrb[0].mxu0
      %v763 = vpop.f32.mrb[0].mxu0
      %v764 = vadd.f32 0.0, %v763
      %v765 = vpop.f32.mrb[0].mxu0
      %766 = vmatprep.mubr.bf16.mxu0 0
      %767 = vmatmul.mubr.bf16.gmra.mrb[0].mxu0 %v658
      %v768 = vpop.f32.mrb[0].mxu0
      %v769 = vadd.f32 0.0, %v768
      %v770 = vpop.f32.mrb[0].mxu0
      %v771 = vpop.f32.mrb[0].mxu0
      %v772 = vadd.f32 0.0, %v771
      %v773 = vpop.f32.mrb[0].mxu0
      %774 = vmatprep.mubr.bf16.mxu0 0
      %775 = vmatmul.mubr.bf16.gmra.mrb[0].mxu0 %v659
      %v776 = vpop.f32.mrb[0].mxu0
      %v777 = vadd.f32 0.0, %v776
      %v778 = vpop.f32.mrb[0].mxu0
      %v779 = vpop.f32.mrb[0].mxu0
      %v780 = vadd.f32 0.0, %v779
      %v781 = vpop.f32.mrb[0].mxu0
      %782 = vmatprep.mubr.bf16.mxu0 0
      %783 = vmatmul.mubr.bf16.gmra.mrb[0].mxu0 %v660
      %v784 = vpop.f32.mrb[0].mxu0
      %v785 = vadd.f32 0.0, %v784
      %v786 = vpop.f32.mrb[0].mxu0
      %v787 = vpop.f32.mrb[0].mxu0
      %v788 = vadd.f32 0.0, %v787
      %v789 = vpop.f32.mrb[0].mxu0
      %790 = vdwg.mxu0
      %v791 = vadd.f32 %v619, %v761
      %v792 = vadd.f32 %v622, %v764
      %v793 = vadd.f32 %v627, %v769
      %v794 = vadd.f32 %v630, %v772
      %v795 = vadd.f32 %v635, %v777
      %v796 = vadd.f32 %v638, %v780
      %v797 = vadd.f32 %v643, %v785
      %v798 = vadd.f32 %v646, %v788
      %s799 = sadd.s32 %s276, 1
      %s800 = smul.u32 %s799, 16
      %s801 = scalar_lea.vmem [#allocation2], %s800
      %v802 = vld [vmem:[%s801] sm:$0xff]
      %v803 = vld [vmem:[%s801 + $0x10] sm:$0xff]
      %v804 = vld [vmem:[%s801 + $0x20] sm:$0xff]
      %v805 = vld [vmem:[%s801 + $0x30] sm:$0xff]
      %v806 = vld [vmem:[%s801 + $0x40] sm:$0xff]
      %v807 = vld [vmem:[%s801 + $0x50] sm:$0xff]
      %v808 = vld [vmem:[%s801 + $0x60] sm:$0xff]
      %v809 = vld [vmem:[%s801 + $0x70] sm:$0xff]
      %v810 = vpack.c.bf16 %v803, %v802
      %v811 = vpack.c.bf16 %v805, %v804
      %v812 = vpack.c.bf16 %v807, %v806
      %v813 = vpack.c.bf16 %v809, %v808
      %s814 = scalar_lea.vmem %s1, 192
      %v815 = vld [vmem:[%s814] sm:$0xf]
      %v816 = vld [vmem:[%s814 + $0x4] sm:$0xf]
      %v817 = vld [vmem:[%s814 + $0x8] sm:$0xf]
      %v818 = vld [vmem:[%s814 + $0xc] sm:$0xf]
      %v819 = vld [vmem:[%s814 + $0x10] sm:$0xf]
      %v820 = vld [vmem:[%s814 + $0x14] sm:$0xf]
      %v821 = vld [vmem:[%s814 + $0x18] sm:$0xf]
      %v822 = vld [vmem:[%s814 + $0x1c] sm:$0xf]
      %v823 = vld [vmem:[%s814 + $0x20] sm:$0xf]
      %v824 = vld [vmem:[%s814 + $0x24] sm:$0xf]
      %v825 = vld [vmem:[%s814 + $0x28] sm:$0xf]
      %v826 = vld [vmem:[%s814 + $0x2c] sm:$0xf]
      %v827 = vld [vmem:[%s814 + $0x30] sm:$0xf]
      %v828 = vld [vmem:[%s814 + $0x34] sm:$0xf]
      %v829 = vld [vmem:[%s814 + $0x38] sm:$0xf]
      %v830 = vld [vmem:[%s814 + $0x3c] sm:$0xf]
      %v847 = vunpack.c.l.b16 %v815
      %v848 = vunpack.c.l.b16 %v816
      %v849 = vunpack.c.l.b16 %v817
      %v850 = vunpack.c.l.b16 %v818
      %v851 = vunpack.c.l.b16 %v819
      %v852 = vunpack.c.l.b16 %v820
      %v853 = vunpack.c.l.b16 %v821
      %v854 = vunpack.c.l.b16 %v822
      %v855 = vunpack.c.l.b16 %v823
      %v856 = vunpack.c.l.b16 %v824
      %v857 = vunpack.c.l.b16 %v825
      %v858 = vunpack.c.l.b16 %v826
      %v859 = vunpack.c.l.b16 %v827
      %v860 = vunpack.c.l.b16 %v828
      %v861 = vunpack.c.l.b16 %v829
      %v862 = vunpack.c.l.b16 %v830
      %v863 = vpack.c.b16 %v848, %v847
      %v864 = vpack.c.b16 %v850, %v849
      %v865 = vpack.c.b16 %v852, %v851
      %v866 = vpack.c.b16 %v854, %v853
      %v867 = vpack.c.b16 %v856, %v855
      %v868 = vpack.c.b16 %v858, %v857
      %v869 = vpack.c.b16 %v860, %v859
      %v870 = vpack.c.b16 %v862, %v861
      %879 = vmatprep.subr.bf16.mxu0 0
      %880 = vmatpush1.bf16.msra.mxu0 %v863
      %881 = vmatprep.subr.bf16.mxu0 0
      %882 = vmatpush1.bf16.msra.mxu0 %v864
      %883 = vmatprep.subr.bf16.mxu0 0
      %884 = vmatpush1.bf16.msra.mxu0 %v865
      %885 = vmatprep.subr.bf16.mxu0 0
      %886 = vmatpush1.bf16.msra.mxu0 %v866
      %887 = vmatprep.subr.bf16.mxu0 0
      %888 = vmatpush1.bf16.msra.mxu0 %v867
      %889 = vmatprep.subr.bf16.mxu0 0
      %890 = vmatpush1.bf16.msra.mxu0 %v868
      %891 = vmatprep.subr.bf16.mxu0 0
      %892 = vmatpush1.bf16.msra.mxu0 %v869
      %893 = vmatprep.subr.bf16.mxu0 0
      %894 = vmatpush1.bf16.msra.mxu0 %v870
      %895 = vmatprep.subr.bf16.mxu0 0
      %896 = vmatpush1.bf16.msra.mxu0 0
      %897 = vmatprep.subr.bf16.mxu0 0
      %898 = vmatpush1.bf16.msra.mxu0 0
      %899 = vmatprep.subr.bf16.mxu0 0
      %900 = vmatpush1.bf16.msra.mxu0 0
      %901 = vmatprep.subr.bf16.mxu0 0
      %902 = vmatpush1.bf16.msra.mxu0 0
      %903 = vmatprep.subr.bf16.mxu0 0
      %904 = vmatpush1.bf16.msra.mxu0 0
      %905 = vmatprep.subr.bf16.mxu0 0
      %906 = vmatpush1.bf16.msra.mxu0 0
      %907 = vmatprep.subr.bf16.mxu0 0
      %908 = vmatpush1.bf16.msra.mxu0 0
      %909 = vmatprep.subr.bf16.mxu0 0
      %910 = vmatpush1.bf16.msra.mxu0 0
      %911 = vmatprep.mubr.bf16.mxu0 0
      %912 = vmatmul.mubr.bf16.gmra.mrb[0].mxu0 %v810
      %v913 = vpop.f32.mrb[0].mxu0
      %v914 = vadd.f32 0.0, %v913
      %v915 = vpop.f32.mrb[0].mxu0
      %v916 = vpop.f32.mrb[0].mxu0
      %v917 = vadd.f32 0.0, %v916
      %v918 = vpop.f32.mrb[0].mxu0
      %919 = vmatprep.mubr.bf16.mxu0 0
      %920 = vmatmul.mubr.bf16.gmra.mrb[0].mxu0 %v811
      %v921 = vpop.f32.mrb[0].mxu0
      %v922 = vadd.f32 0.0, %v921
      %v923 = vpop.f32.mrb[0].mxu0
      %v924 = vpop.f32.mrb[0].mxu0
      %v925 = vadd.f32 0.0, %v924
      %v926 = vpop.f32.mrb[0].mxu0
      %927 = vmatprep.mubr.bf16.mxu0 0
      %928 = vmatmul.mubr.bf16.gmra.mrb[0].mxu0 %v812
      %v929 = vpop.f32.mrb[0].mxu0
      %v930 = vadd.f32 0.0, %v929
      %v931 = vpop.f32.mrb[0].mxu0
      %v932 = vpop.f32.mrb[0].mxu0
      %v933 = vadd.f32 0.0, %v932
      %v934 = vpop.f32.mrb[0].mxu0
      %935 = vmatprep.mubr.bf16.mxu0 0
      %936 = vmatmul.mubr.bf16.gmra.mrb[0].mxu0 %v813
      %v937 = vpop.f32.mrb[0].mxu0
      %v938 = vadd.f32 0.0, %v937
      %v939 = vpop.f32.mrb[0].mxu0
      %v940 = vpop.f32.mrb[0].mxu0
      %v941 = vadd.f32 0.0, %v940
      %v942 = vpop.f32.mrb[0].mxu0
      %943 = vdwg.mxu0
      %v944 = vadd.f32 %v791, %v914
      %v945 = vadd.f32 %v792, %v917
      %v946 = vadd.f32 %v793, %v922
      %v947 = vadd.f32 %v794, %v925
      %v948 = vadd.f32 %v795, %v930
      %v949 = vadd.f32 %v796, %v933
      %v950 = vadd.f32 %v797, %v938
      %v951 = vadd.f32 %v798, %v941
      %v952 = vld [vmem:[%s801 + $0x1] sm:$0xff]
      %v953 = vld [vmem:[%s801 + $0x11] sm:$0xff]
      %v954 = vld [vmem:[%s801 + $0x21] sm:$0xff]
      %v955 = vld [vmem:[%s801 + $0x31] sm:$0xff]
      %v956 = vld [vmem:[%s801 + $0x41] sm:$0xff]
      %v957 = vld [vmem:[%s801 + $0x51] sm:$0xff]
      %v958 = vld [vmem:[%s801 + $0x61] sm:$0xff]
      %v959 = vld [vmem:[%s801 + $0x71] sm:$0xff]
      %v960 = vpack.c.bf16 %v953, %v952
      %v961 = vpack.c.bf16 %v955, %v954
      %v962 = vpack.c.bf16 %v957, %v956
      %v963 = vpack.c.bf16 %v959, %v958
      %s964 = scalar_lea.vmem %s1, 256
      %v965 = vld [vmem:[%s964] sm:$0xf]
      %v966 = vld [vmem:[%s964 + $0x4] sm:$0xf]
      %v967 = vld [vmem:[%s964 + $0x8] sm:$0xf]
      %v968 = vld [vmem:[%s964 + $0xc] sm:$0xf]
      %v969 = vld [vmem:[%s964 + $0x10] sm:$0xf]
      %v970 = vld [vmem:[%s964 + $0x14] sm:$0xf]
      %v971 = vld [vmem:[%s964 + $0x18] sm:$0xf]
      %v972 = vld [vmem:[%s964 + $0x1c] sm:$0xf]
      %v973 = vld [vmem:[%s964 + $0x20] sm:$0xf]
      %v974 = vld [vmem:[%s964 + $0x24] sm:$0xf]
      %v975 = vld [vmem:[%s964 + $0x28] sm:$0xf]
      %v976 = vld [vmem:[%s964 + $0x2c] sm:$0xf]
      %v977 = vld [vmem:[%s964 + $0x30] sm:$0xf]
      %v978 = vld [vmem:[%s964 + $0x34] sm:$0xf]
      %v979 = vld [vmem:[%s964 + $0x38] sm:$0xf]
      %v980 = vld [vmem:[%s964 + $0x3c] sm:$0xf]
      %v997 = vunpack.c.l.b16 %v965
      %v998 = vunpack.c.l.b16 %v966
      %v999 = vunpack.c.l.b16 %v967
      %v1000 = vunpack.c.l.b16 %v968
      %v1001 = vunpack.c.l.b16 %v969
      %v1002 = vunpack.c.l.b16 %v970
      %v1003 = vunpack.c.l.b16 %v971
      %v1004 = vunpack.c.l.b16 %v972
      %v1005 = vunpack.c.l.b16 %v973
      %v1006 = vunpack.c.l.b16 %v974
      %v1007 = vunpack.c.l.b16 %v975
      %v1008 = vunpack.c.l.b16 %v976
      %v1009 = vunpack.c.l.b16 %v977
      %v1010 = vunpack.c.l.b16 %v978
      %v1011 = vunpack.c.l.b16 %v979
      %v1012 = vunpack.c.l.b16 %v980
      %v1013 = vpack.c.b16 %v998, %v997
      %v1014 = vpack.c.b16 %v1000, %v999
      %v1015 = vpack.c.b16 %v1002, %v1001
      %v1016 = vpack.c.b16 %v1004, %v1003
      %v1017 = vpack.c.b16 %v1006, %v1005
      %v1018 = vpack.c.b16 %v1008, %v1007
      %v1019 = vpack.c.b16 %v1010, %v1009
      %v1020 = vpack.c.b16 %v1012, %v1011
      %1029 = vmatprep.subr.bf16.mxu0 0
      %1030 = vmatpush1.bf16.msra.mxu0 %v1013
      %1031 = vmatprep.subr.bf16.mxu0 0
      %1032 = vmatpush1.bf16.msra.mxu0 %v1014
      %1033 = vmatprep.subr.bf16.mxu0 0
      %1034 = vmatpush1.bf16.msra.mxu0 %v1015
      %1035 = vmatprep.subr.bf16.mxu0 0
      %1036 = vmatpush1.bf16.msra.mxu0 %v1016
      %1037 = vmatprep.subr.bf16.mxu0 0
      %1038 = vmatpush1.bf16.msra.mxu0 %v1017
      %1039 = vmatprep.subr.bf16.mxu0 0
      %1040 = vmatpush1.bf16.msra.mxu0 %v1018
      %1041 = vmatprep.subr.bf16.mxu0 0
      %1042 = vmatpush1.bf16.msra.mxu0 %v1019
      %1043 = vmatprep.subr.bf16.mxu0 0
      %1044 = vmatpush1.bf16.msra.mxu0 %v1020
      %1045 = vmatprep.subr.bf16.mxu0 0
      %1046 = vmatpush1.bf16.msra.mxu0 0
      %1047 = vmatprep.subr.bf16.mxu0 0
      %1048 = vmatpush1.bf16.msra.mxu0 0
      %1049 = vmatprep.subr.bf16.mxu0 0
      %1050 = vmatpush1.bf16.msra.mxu0 0
      %1051 = vmatprep.subr.bf16.mxu0 0
      %1052 = vmatpush1.bf16.msra.mxu0 0
      %1053 = vmatprep.subr.bf16.mxu0 0
      %1054 = vmatpush1.bf16.msra.mxu0 0
      %1055 = vmatprep.subr.bf16.mxu0 0
      %1056 = vmatpush1.bf16.msra.mxu0 0
      %1057 = vmatprep.subr.bf16.mxu0 0
      %1058 = vmatpush1.bf16.msra.mxu0 0
      %1059 = vmatprep.subr.bf16.mxu0 0
      %1060 = vmatpush1.bf16.msra.mxu0 0
      %1061 = vmatprep.mubr.bf16.mxu0 0
      %1062 = vmatmul.mubr.bf16.gmra.mrb[0].mxu0 %v960
      %v1063 = vpop.f32.mrb[0].mxu0
      %v1064 = vadd.f32 0.0, %v1063
      %v1065 = vpop.f32.mrb[0].mxu0
      %v1066 = vpop.f32.mrb[0].mxu0
      %v1067 = vadd.f32 0.0, %v1066
      %v1068 = vpop.f32.mrb[0].mxu0
      %1069 = vmatprep.mubr.bf16.mxu0 0
      %1070 = vmatmul.mubr.bf16.gmra.mrb[0].mxu0 %v961
      %v1071 = vpop.f32.mrb[0].mxu0
      %v1072 = vadd.f32 0.0, %v1071
      %v1073 = vpop.f32.mrb[0].mxu0
      %v1074 = vpop.f32.mrb[0].mxu0
      %v1075 = vadd.f32 0.0, %v1074
      %v1076 = vpop.f32.mrb[0].mxu0
      %1077 = vmatprep.mubr.bf16.mxu0 0
      %1078 = vmatmul.mubr.bf16.gmra.mrb[0].mxu0 %v962
      %v1079 = vpop.f32.mrb[0].mxu0
      %v1080 = vadd.f32 0.0, %v1079
      %v1081 = vpop.f32.mrb[0].mxu0
      %v1082 = vpop.f32.mrb[0].mxu0
      %v1083 = vadd.f32 0.0, %v1082
      %v1084 = vpop.f32.mrb[0].mxu0
      %1085 = vmatprep.mubr.bf16.mxu0 0
      %1086 = vmatmul.mubr.bf16.gmra.mrb[0].mxu0 %v963
      %v1087 = vpop.f32.mrb[0].mxu0
      %v1088 = vadd.f32 0.0, %v1087
      %v1089 = vpop.f32.mrb[0].mxu0
      %v1090 = vpop.f32.mrb[0].mxu0
      %v1091 = vadd.f32 0.0, %v1090
      %v1092 = vpop.f32.mrb[0].mxu0
      %1093 = vdwg.mxu0
      %v1094 = vadd.f32 %v944, %v1064
      %v1095 = vadd.f32 %v945, %v1067
      %v1096 = vadd.f32 %v946, %v1072
      %v1097 = vadd.f32 %v947, %v1075
      %v1098 = vadd.f32 %v948, %v1080
      %v1099 = vadd.f32 %v949, %v1083
      %v1100 = vadd.f32 %v950, %v1088
      %v1101 = vadd.f32 %v951, %v1091
      %v1102 = vld [vmem:[%s801 + $0x2] sm:$0xff]
      %v1103 = vld [vmem:[%s801 + $0x12] sm:$0xff]
      %v1104 = vld [vmem:[%s801 + $0x22] sm:$0xff]
      %v1105 = vld [vmem:[%s801 + $0x32] sm:$0xff]
      %v1106 = vld [vmem:[%s801 + $0x42] sm:$0xff]
      %v1107 = vld [vmem:[%s801 + $0x52] sm:$0xff]
      %v1108 = vld [vmem:[%s801 + $0x62] sm:$0xff]
      %v1109 = vld [vmem:[%s801 + $0x72] sm:$0xff]
      %v1110 = vpack.c.bf16 %v1103, %v1102
      %v1111 = vpack.c.bf16 %v1105, %v1104
      %v1112 = vpack.c.bf16 %v1107, %v1106
      %v1113 = vpack.c.bf16 %v1109, %v1108
      %s1114 = scalar_lea.vmem %s1, 320
      %v1115 = vld [vmem:[%s1114] sm:$0xf]
      %v1116 = vld [vmem:[%s1114 + $0x4] sm:$0xf]
      %v1117 = vld [vmem:[%s1114 + $0x8] sm:$0xf]
      %v1118 = vld [vmem:[%s1114 + $0xc] sm:$0xf]
      %v1119 = vld [vmem:[%s1114 + $0x10] sm:$0xf]
      %v1120 = vld [vmem:[%s1114 + $0x14] sm:$0xf]
      %v1121 = vld [vmem:[%s1114 + $0x18] sm:$0xf]
      %v1122 = vld [vmem:[%s1114 + $0x1c] sm:$0xf]
      %v1123 = vld [vmem:[%s1114 + $0x20] sm:$0xf]
      %v1124 = vld [vmem:[%s1114 + $0x24] sm:$0xf]
      %v1125 = vld [vmem:[%s1114 + $0x28] sm:$0xf]
      %v1126 = vld [vmem:[%s1114 + $0x2c] sm:$0xf]
      %v1127 = vld [vmem:[%s1114 + $0x30] sm:$0xf]
      %v1128 = vld [vmem:[%s1114 + $0x34] sm:$0xf]
      %v1129 = vld [vmem:[%s1114 + $0x38] sm:$0xf]
      %v1130 = vld [vmem:[%s1114 + $0x3c] sm:$0xf]
      %v1147 = vunpack.c.l.b16 %v1115
      %v1148 = vunpack.c.l.b16 %v1116
      %v1149 = vunpack.c.l.b16 %v1117
      %v1150 = vunpack.c.l.b16 %v1118
      %v1151 = vunpack.c.l.b16 %v1119
      %v1152 = vunpack.c.l.b16 %v1120
      %v1153 = vunpack.c.l.b16 %v1121
      %v1154 = vunpack.c.l.b16 %v1122
      %v1155 = vunpack.c.l.b16 %v1123
      %v1156 = vunpack.c.l.b16 %v1124
      %v1157 = vunpack.c.l.b16 %v1125
      %v1158 = vunpack.c.l.b16 %v1126
      %v1159 = vunpack.c.l.b16 %v1127
      %v1160 = vunpack.c.l.b16 %v1128
      %v1161 = vunpack.c.l.b16 %v1129
      %v1162 = vunpack.c.l.b16 %v1130
      %v1163 = vpack.c.b16 %v1148, %v1147
      %v1164 = vpack.c.b16 %v1150, %v1149
      %v1165 = vpack.c.b16 %v1152, %v1151
      %v1166 = vpack.c.b16 %v1154, %v1153
      %v1167 = vpack.c.b16 %v1156, %v1155
      %v1168 = vpack.c.b16 %v1158, %v1157
      %v1169 = vpack.c.b16 %v1160, %v1159
      %v1170 = vpack.c.b16 %v1162, %v1161
      %1179 = vmatprep.subr.bf16.mxu0 0
      %1180 = vmatpush1.bf16.msra.mxu0 %v1163
      %1181 = vmatprep.subr.bf16.mxu0 0
      %1182 = vmatpush1.bf16.msra.mxu0 %v1164
      %1183 = vmatprep.subr.bf16.mxu0 0
      %1184 = vmatpush1.bf16.msra.mxu0 %v1165
      %1185 = vmatprep.subr.bf16.mxu0 0
      %1186 = vmatpush1.bf16.msra.mxu0 %v1166
      %1187 = vmatprep.subr.bf16.mxu0 0
      %1188 = vmatpush1.bf16.msra.mxu0 %v1167
      %1189 = vmatprep.subr.bf16.mxu0 0
      %1190 = vmatpush1.bf16.msra.mxu0 %v1168
      %1191 = vmatprep.subr.bf16.mxu0 0
      %1192 = vmatpush1.bf16.msra.mxu0 %v1169
      %1193 = vmatprep.subr.bf16.mxu0 0
      %1194 = vmatpush1.bf16.msra.mxu0 %v1170
      %1195 = vmatprep.subr.bf16.mxu0 0
      %1196 = vmatpush1.bf16.msra.mxu0 0
      %1197 = vmatprep.subr.bf16.mxu0 0
      %1198 = vmatpush1.bf16.msra.mxu0 0
      %1199 = vmatprep.subr.bf16.mxu0 0
      %1200 = vmatpush1.bf16.msra.mxu0 0
      %1201 = vmatprep.subr.bf16.mxu0 0
      %1202 = vmatpush1.bf16.msra.mxu0 0
      %1203 = vmatprep.subr.bf16.mxu0 0
      %1204 = vmatpush1.bf16.msra.mxu0 0
      %1205 = vmatprep.subr.bf16.mxu0 0
      %1206 = vmatpush1.bf16.msra.mxu0 0
      %1207 = vmatprep.subr.bf16.mxu0 0
      %1208 = vmatpush1.bf16.msra.mxu0 0
      %1209 = vmatprep.subr.bf16.mxu0 0
      %1210 = vmatpush1.bf16.msra.mxu0 0
      %1211 = vmatprep.mubr.bf16.mxu0 0
      %1212 = vmatmul.mubr.bf16.gmra.mrb[0].mxu0 %v1110
      %v1213 = vpop.f32.mrb[0].mxu0
      %v1214 = vadd.f32 0.0, %v1213
      %v1215 = vpop.f32.mrb[0].mxu0
      %v1216 = vpop.f32.mrb[0].mxu0
      %v1217 = vadd.f32 0.0, %v1216
      %v1218 = vpop.f32.mrb[0].mxu0
      %1219 = vmatprep.mubr.bf16.mxu0 0
      %1220 = vmatmul.mubr.bf16.gmra.mrb[0].mxu0 %v1111
      %v1221 = vpop.f32.mrb[0].mxu0
      %v1222 = vadd.f32 0.0, %v1221
      %v1223 = vpop.f32.mrb[0].mxu0
      %v1224 = vpop.f32.mrb[0].mxu0
      %v1225 = vadd.f32 0.0, %v1224
      %v1226 = vpop.f32.mrb[0].mxu0
      %1227 = vmatprep.mubr.bf16.mxu0 0
      %1228 = vmatmul.mubr.bf16.gmra.mrb[0].mxu0 %v1112
      %v1229 = vpop.f32.mrb[0].mxu0
      %v1230 = vadd.f32 0.0, %v1229
      %v1231 = vpop.f32.mrb[0].mxu0
      %v1232 = vpop.f32.mrb[0].mxu0
      %v1233 = vadd.f32 0.0, %v1232
      %v1234 = vpop.f32.mrb[0].mxu0
      %1235 = vmatprep.mubr.bf16.mxu0 0
      %1236 = vmatmul.mubr.bf16.gmra.mrb[0].mxu0 %v1113
      %v1237 = vpop.f32.mrb[0].mxu0
      %v1238 = vadd.f32 0.0, %v1237
      %v1239 = vpop.f32.mrb[0].mxu0
      %v1240 = vpop.f32.mrb[0].mxu0
      %v1241 = vadd.f32 0.0, %v1240
      %v1242 = vpop.f32.mrb[0].mxu0
      %1243 = vdwg.mxu0
      %v1244 = vadd.f32 %v1094, %v1214
      %v1245 = vadd.f32 %v1095, %v1217
      %v1246 = vadd.f32 %v1096, %v1222
      %v1247 = vadd.f32 %v1097, %v1225
      %v1248 = vadd.f32 %v1098, %v1230
      %v1249 = vadd.f32 %v1099, %v1233
      %v1250 = vadd.f32 %v1100, %v1238
      %v1251 = vadd.f32 %v1101, %v1241
      %s1252 = sadd.s32 %s276, 2
      %s1253 = smul.u32 %s1252, 16
      %s1254 = scalar_lea.vmem [#allocation2], %s1253
      %v1255 = vld [vmem:[%s1254] sm:$0xff]
      %v1256 = vld [vmem:[%s1254 + $0x10] sm:$0xff]
      %v1257 = vld [vmem:[%s1254 + $0x20] sm:$0xff]
      %v1258 = vld [vmem:[%s1254 + $0x30] sm:$0xff]
      %v1259 = vld [vmem:[%s1254 + $0x40] sm:$0xff]
      %v1260 = vld [vmem:[%s1254 + $0x50] sm:$0xff]
      %v1261 = vld [vmem:[%s1254 + $0x60] sm:$0xff]
      %v1262 = vld [vmem:[%s1254 + $0x70] sm:$0xff]
      %v1263 = vpack.c.bf16 %v1256, %v1255
      %v1264 = vpack.c.bf16 %v1258, %v1257
      %v1265 = vpack.c.bf16 %v1260, %v1259
      %v1266 = vpack.c.bf16 %v1262, %v1261
      %s1267 = scalar_lea.vmem %s1, 384
      %v1268 = vld [vmem:[%s1267] sm:$0xf]
      %v1269 = vld [vmem:[%s1267 + $0x4] sm:$0xf]
      %v1270 = vld [vmem:[%s1267 + $0x8] sm:$0xf]
      %v1271 = vld [vmem:[%s1267 + $0xc] sm:$0xf]
      %v1272 = vld [vmem:[%s1267 + $0x10] sm:$0xf]
      %v1273 = vld [vmem:[%s1267 + $0x14] sm:$0xf]
      %v1274 = vld [vmem:[%s1267 + $0x18] sm:$0xf]
      %v1275 = vld [vmem:[%s1267 + $0x1c] sm:$0xf]
      %v1276 = vld [vmem:[%s1267 + $0x20] sm:$0xf]
      %v1277 = vld [vmem:[%s1267 + $0x24] sm:$0xf]
      %v1278 = vld [vmem:[%s1267 + $0x28] sm:$0xf]
      %v1279 = vld [vmem:[%s1267 + $0x2c] sm:$0xf]
      %v1280 = vld [vmem:[%s1267 + $0x30] sm:$0xf]
      %v1281 = vld [vmem:[%s1267 + $0x34] sm:$0xf]
      %v1282 = vld [vmem:[%s1267 + $0x38] sm:$0xf]
      %v1283 = vld [vmem:[%s1267 + $0x3c] sm:$0xf]
      %v1300 = vunpack.c.l.b16 %v1268
      %v1301 = vunpack.c.l.b16 %v1269
      %v1302 = vunpack.c.l.b16 %v1270
      %v1303 = vunpack.c.l.b16 %v1271
      %v1304 = vunpack.c.l.b16 %v1272
      %v1305 = vunpack.c.l.b16 %v1273
      %v1306 = vunpack.c.l.b16 %v1274
      %v1307 = vunpack.c.l.b16 %v1275
      %v1308 = vunpack.c.l.b16 %v1276
      %v1309 = vunpack.c.l.b16 %v1277
      %v1310 = vunpack.c.l.b16 %v1278
      %v1311 = vunpack.c.l.b16 %v1279
      %v1312 = vunpack.c.l.b16 %v1280
      %v1313 = vunpack.c.l.b16 %v1281
      %v1314 = vunpack.c.l.b16 %v1282
      %v1315 = vunpack.c.l.b16 %v1283
      %v1316 = vpack.c.b16 %v1301, %v1300
      %v1317 = vpack.c.b16 %v1303, %v1302
      %v1318 = vpack.c.b16 %v1305, %v1304
      %v1319 = vpack.c.b16 %v1307, %v1306
      %v1320 = vpack.c.b16 %v1309, %v1308
      %v1321 = vpack.c.b16 %v1311, %v1310
      %v1322 = vpack.c.b16 %v1313, %v1312
      %v1323 = vpack.c.b16 %v1315, %v1314
      %1332 = vmatprep.subr.bf16.mxu0 0
      %1333 = vmatpush1.bf16.msra.mxu0 %v1316
      %1334 = vmatprep.subr.bf16.mxu0 0
      %1335 = vmatpush1.bf16.msra.mxu0 %v1317
      %1336 = vmatprep.subr.bf16.mxu0 0
      %1337 = vmatpush1.bf16.msra.mxu0 %v1318
      %1338 = vmatprep.subr.bf16.mxu0 0
      %1339 = vmatpush1.bf16.msra.mxu0 %v1319
      %1340 = vmatprep.subr.bf16.mxu0 0
      %1341 = vmatpush1.bf16.msra.mxu0 %v1320
      %1342 = vmatprep.subr.bf16.mxu0 0
      %1343 = vmatpush1.bf16.msra.mxu0 %v1321
      %1344 = vmatprep.subr.bf16.mxu0 0
      %1345 = vmatpush1.bf16.msra.mxu0 %v1322
      %1346 = vmatprep.subr.bf16.mxu0 0
      %1347 = vmatpush1.bf16.msra.mxu0 %v1323
      %1348 = vmatprep.subr.bf16.mxu0 0
      %1349 = vmatpush1.bf16.msra.mxu0 0
      %1350 = vmatprep.subr.bf16.mxu0 0
      %1351 = vmatpush1.bf16.msra.mxu0 0
      %1352 = vmatprep.subr.bf16.mxu0 0
      %1353 = vmatpush1.bf16.msra.mxu0 0
      %1354 = vmatprep.subr.bf16.mxu0 0
      %1355 = vmatpush1.bf16.msra.mxu0 0
      %1356 = vmatprep.subr.bf16.mxu0 0
      %1357 = vmatpush1.bf16.msra.mxu0 0
      %1358 = vmatprep.subr.bf16.mxu0 0
      %1359 = vmatpush1.bf16.msra.mxu0 0
      %1360 = vmatprep.subr.bf16.mxu0 0
      %1361 = vmatpush1.bf16.msra.mxu0 0
      %1362 = vmatprep.subr.bf16.mxu0 0
      %1363 = vmatpush1.bf16.msra.mxu0 0
      %1364 = vmatprep.mubr.bf16.mxu0 0
      %1365 = vmatmul.mubr.bf16.gmra.mrb[0].mxu0 %v1263
      %v1366 = vpop.f32.mrb[0].mxu0
      %v1367 = vadd.f32 0.0, %v1366
      %v1368 = vpop.f32.mrb[0].mxu0
      %v1369 = vpop.f32.mrb[0].mxu0
      %v1370 = vadd.f32 0.0, %v1369
      %v1371 = vpop.f32.mrb[0].mxu0
      %1372 = vmatprep.mubr.bf16.mxu0 0
      %1373 = vmatmul.mubr.bf16.gmra.mrb[0].mxu0 %v1264
      %v1374 = vpop.f32.mrb[0].mxu0
      %v1375 = vadd.f32 0.0, %v1374
      %v1376 = vpop.f32.mrb[0].mxu0
      %v1377 = vpop.f32.mrb[0].mxu0
      %v1378 = vadd.f32 0.0, %v1377
      %v1379 = vpop.f32.mrb[0].mxu0
      %1380 = vmatprep.mubr.bf16.mxu0 0
      %1381 = vmatmul.mubr.bf16.gmra.mrb[0].mxu0 %v1265
      %v1382 = vpop.f32.mrb[0].mxu0
      %v1383 = vadd.f32 0.0, %v1382
      %v1384 = vpop.f32.mrb[0].mxu0
      %v1385 = vpop.f32.mrb[0].mxu0
      %v1386 = vadd.f32 0.0, %v1385
      %v1387 = vpop.f32.mrb[0].mxu0
      %1388 = vmatprep.mubr.bf16.mxu0 0
      %1389 = vmatmul.mubr.bf16.gmra.mrb[0].mxu0 %v1266
      %v1390 = vpop.f32.mrb[0].mxu0
      %v1391 = vadd.f32 0.0, %v1390
      %v1392 = vpop.f32.mrb[0].mxu0
      %v1393 = vpop.f32.mrb[0].mxu0
      %v1394 = vadd.f32 0.0, %v1393
      %v1395 = vpop.f32.mrb[0].mxu0
      %1396 = vdwg.mxu0
      %v1397 = vadd.f32 %v1244, %v1367
      %v1398 = vadd.f32 %v1245, %v1370
      %v1399 = vadd.f32 %v1246, %v1375
      %v1400 = vadd.f32 %v1247, %v1378
      %v1401 = vadd.f32 %v1248, %v1383
      %v1402 = vadd.f32 %v1249, %v1386
      %v1403 = vadd.f32 %v1250, %v1391
      %v1404 = vadd.f32 %v1251, %v1394
      %v1405 = vld [vmem:[%s1254 + $0x1] sm:$0xff]
      %v1406 = vld [vmem:[%s1254 + $0x11] sm:$0xff]
      %v1407 = vld [vmem:[%s1254 + $0x21] sm:$0xff]
      %v1408 = vld [vmem:[%s1254 + $0x31] sm:$0xff]
      %v1409 = vld [vmem:[%s1254 + $0x41] sm:$0xff]
      %v1410 = vld [vmem:[%s1254 + $0x51] sm:$0xff]
      %v1411 = vld [vmem:[%s1254 + $0x61] sm:$0xff]
      %v1412 = vld [vmem:[%s1254 + $0x71] sm:$0xff]
      %v1413 = vpack.c.bf16 %v1406, %v1405
      %v1414 = vpack.c.bf16 %v1408, %v1407
      %v1415 = vpack.c.bf16 %v1410, %v1409
      %v1416 = vpack.c.bf16 %v1412, %v1411
      %s1417 = scalar_lea.vmem %s1, 448
      %v1418 = vld [vmem:[%s1417] sm:$0xf]
      %v1419 = vld [vmem:[%s1417 + $0x4] sm:$0xf]
      %v1420 = vld [vmem:[%s1417 + $0x8] sm:$0xf]
      %v1421 = vld [vmem:[%s1417 + $0xc] sm:$0xf]
      %v1422 = vld [vmem:[%s1417 + $0x10] sm:$0xf]
      %v1423 = vld [vmem:[%s1417 + $0x14] sm:$0xf]
      %v1424 = vld [vmem:[%s1417 + $0x18] sm:$0xf]
      %v1425 = vld [vmem:[%s1417 + $0x1c] sm:$0xf]
      %v1426 = vld [vmem:[%s1417 + $0x20] sm:$0xf]
      %v1427 = vld [vmem:[%s1417 + $0x24] sm:$0xf]
      %v1428 = vld [vmem:[%s1417 + $0x28] sm:$0xf]
      %v1429 = vld [vmem:[%s1417 + $0x2c] sm:$0xf]
      %v1430 = vld [vmem:[%s1417 + $0x30] sm:$0xf]
      %v1431 = vld [vmem:[%s1417 + $0x34] sm:$0xf]
      %v1432 = vld [vmem:[%s1417 + $0x38] sm:$0xf]
      %v1433 = vld [vmem:[%s1417 + $0x3c] sm:$0xf]
      %v1450 = vunpack.c.l.b16 %v1418
      %v1451 = vunpack.c.l.b16 %v1419
      %v1452 = vunpack.c.l.b16 %v1420
      %v1453 = vunpack.c.l.b16 %v1421
      %v1454 = vunpack.c.l.b16 %v1422
      %v1455 = vunpack.c.l.b16 %v1423
      %v1456 = vunpack.c.l.b16 %v1424
      %v1457 = vunpack.c.l.b16 %v1425
      %v1458 = vunpack.c.l.b16 %v1426
      %v1459 = vunpack.c.l.b16 %v1427
      %v1460 = vunpack.c.l.b16 %v1428
      %v1461 = vunpack.c.l.b16 %v1429
      %v1462 = vunpack.c.l.b16 %v1430
      %v1463 = vunpack.c.l.b16 %v1431
      %v1464 = vunpack.c.l.b16 %v1432
      %v1465 = vunpack.c.l.b16 %v1433
      %v1466 = vpack.c.b16 %v1451, %v1450
      %v1467 = vpack.c.b16 %v1453, %v1452
      %v1468 = vpack.c.b16 %v1455, %v1454
      %v1469 = vpack.c.b16 %v1457, %v1456
      %v1470 = vpack.c.b16 %v1459, %v1458
      %v1471 = vpack.c.b16 %v1461, %v1460
      %v1472 = vpack.c.b16 %v1463, %v1462
      %v1473 = vpack.c.b16 %v1465, %v1464
      %1482 = vmatprep.subr.bf16.mxu0 0
      %1483 = vmatpush1.bf16.msra.mxu0 %v1466
      %1484 = vmatprep.subr.bf16.mxu0 0
      %1485 = vmatpush1.bf16.msra.mxu0 %v1467
      %1486 = vmatprep.subr.bf16.mxu0 0
      %1487 = vmatpush1.bf16.msra.mxu0 %v1468
      %1488 = vmatprep.subr.bf16.mxu0 0
      %1489 = vmatpush1.bf16.msra.mxu0 %v1469
      %1490 = vmatprep.subr.bf16.mxu0 0
      %1491 = vmatpush1.bf16.msra.mxu0 %v1470
      %1492 = vmatprep.subr.bf16.mxu0 0
      %1493 = vmatpush1.bf16.msra.mxu0 %v1471
      %1494 = vmatprep.subr.bf16.mxu0 0
      %1495 = vmatpush1.bf16.msra.mxu0 %v1472
      %1496 = vmatprep.subr.bf16.mxu0 0
      %1497 = vmatpush1.bf16.msra.mxu0 %v1473
      %1498 = vmatprep.subr.bf16.mxu0 0
      %1499 = vmatpush1.bf16.msra.mxu0 0
      %1500 = vmatprep.subr.bf16.mxu0 0
      %1501 = vmatpush1.bf16.msra.mxu0 0
      %1502 = vmatprep.subr.bf16.mxu0 0
      %1503 = vmatpush1.bf16.msra.mxu0 0
      %1504 = vmatprep.subr.bf16.mxu0 0
      %1505 = vmatpush1.bf16.msra.mxu0 0
      %1506 = vmatprep.subr.bf16.mxu0 0
      %1507 = vmatpush1.bf16.msra.mxu0 0
      %1508 = vmatprep.subr.bf16.mxu0 0
      %1509 = vmatpush1.bf16.msra.mxu0 0
      %1510 = vmatprep.subr.bf16.mxu0 0
      %1511 = vmatpush1.bf16.msra.mxu0 0
      %1512 = vmatprep.subr.bf16.mxu0 0
      %1513 = vmatpush1.bf16.msra.mxu0 0
      %1514 = vmatprep.mubr.bf16.mxu0 0
      %1515 = vmatmul.mubr.bf16.gmra.mrb[0].mxu0 %v1413
      %v1516 = vpop.f32.mrb[0].mxu0
      %v1517 = vadd.f32 0.0, %v1516
      %v1518 = vpop.f32.mrb[0].mxu0
      %v1519 = vpop.f32.mrb[0].mxu0
      %v1520 = vadd.f32 0.0, %v1519
      %v1521 = vpop.f32.mrb[0].mxu0
      %1522 = vmatprep.mubr.bf16.mxu0 0
      %1523 = vmatmul.mubr.bf16.gmra.mrb[0].mxu0 %v1414
      %v1524 = vpop.f32.mrb[0].mxu0
      %v1525 = vadd.f32 0.0, %v1524
      %v1526 = vpop.f32.mrb[0].mxu0
      %v1527 = vpop.f32.mrb[0].mxu0
      %v1528 = vadd.f32 0.0, %v1527
      %v1529 = vpop.f32.mrb[0].mxu0
      %1530 = vmatprep.mubr.bf16.mxu0 0
      %1531 = vmatmul.mubr.bf16.gmra.mrb[0].mxu0 %v1415
      %v1532 = vpop.f32.mrb[0].mxu0
      %v1533 = vadd.f32 0.0, %v1532
      %v1534 = vpop.f32.mrb[0].mxu0
      %v1535 = vpop.f32.mrb[0].mxu0
      %v1536 = vadd.f32 0.0, %v1535
      %v1537 = vpop.f32.mrb[0].mxu0
      %1538 = vmatprep.mubr.bf16.mxu0 0
      %1539 = vmatmul.mubr.bf16.gmra.mrb[0].mxu0 %v1416
      %v1540 = vpop.f32.mrb[0].mxu0
      %v1541 = vadd.f32 0.0, %v1540
      %v1542 = vpop.f32.mrb[0].mxu0
      %v1543 = vpop.f32.mrb[0].mxu0
      %v1544 = vadd.f32 0.0, %v1543
      %v1545 = vpop.f32.mrb[0].mxu0
      %1546 = vdwg.mxu0
      %v1547 = vadd.f32 %v1397, %v1517
      %v1548 = vadd.f32 %v1398, %v1520
      %v1549 = vadd.f32 %v1399, %v1525
      %v1550 = vadd.f32 %v1400, %v1528
      %v1551 = vadd.f32 %v1401, %v1533
      %v1552 = vadd.f32 %v1402, %v1536
      %v1553 = vadd.f32 %v1403, %v1541
      %v1554 = vadd.f32 %v1404, %v1544
      %v1555 = vld [vmem:[%s1254 + $0x2] sm:$0xff]
      %v1556 = vld [vmem:[%s1254 + $0x12] sm:$0xff]
      %v1557 = vld [vmem:[%s1254 + $0x22] sm:$0xff]
      %v1558 = vld [vmem:[%s1254 + $0x32] sm:$0xff]
      %v1559 = vld [vmem:[%s1254 + $0x42] sm:$0xff]
      %v1560 = vld [vmem:[%s1254 + $0x52] sm:$0xff]
      %v1561 = vld [vmem:[%s1254 + $0x62] sm:$0xff]
      %v1562 = vld [vmem:[%s1254 + $0x72] sm:$0xff]
      %v1563 = vpack.c.bf16 %v1556, %v1555
      %v1564 = vpack.c.bf16 %v1558, %v1557
      %v1565 = vpack.c.bf16 %v1560, %v1559
      %v1566 = vpack.c.bf16 %v1562, %v1561
      %s1567 = scalar_lea.vmem %s1, 512
      %v1568 = vld [vmem:[%s1567] sm:$0xf]
      %v1569 = vld [vmem:[%s1567 + $0x4] sm:$0xf]
      %v1570 = vld [vmem:[%s1567 + $0x8] sm:$0xf]
      %v1571 = vld [vmem:[%s1567 + $0xc] sm:$0xf]
      %v1572 = vld [vmem:[%s1567 + $0x10] sm:$0xf]
      %v1573 = vld [vmem:[%s1567 + $0x14] sm:$0xf]
      %v1574 = vld [vmem:[%s1567 + $0x18] sm:$0xf]
      %v1575 = vld [vmem:[%s1567 + $0x1c] sm:$0xf]
      %v1576 = vld [vmem:[%s1567 + $0x20] sm:$0xf]
      %v1577 = vld [vmem:[%s1567 + $0x24] sm:$0xf]
      %v1578 = vld [vmem:[%s1567 + $0x28] sm:$0xf]
      %v1579 = vld [vmem:[%s1567 + $0x2c] sm:$0xf]
      %v1580 = vld [vmem:[%s1567 + $0x30] sm:$0xf]
      %v1581 = vld [vmem:[%s1567 + $0x34] sm:$0xf]
      %v1582 = vld [vmem:[%s1567 + $0x38] sm:$0xf]
      %v1583 = vld [vmem:[%s1567 + $0x3c] sm:$0xf]
      %v1600 = vunpack.c.l.b16 %v1568
      %v1601 = vunpack.c.l.b16 %v1569
      %v1602 = vunpack.c.l.b16 %v1570
      %v1603 = vunpack.c.l.b16 %v1571
      %v1604 = vunpack.c.l.b16 %v1572
      %v1605 = vunpack.c.l.b16 %v1573
      %v1606 = vunpack.c.l.b16 %v1574
      %v1607 = vunpack.c.l.b16 %v1575
      %v1608 = vunpack.c.l.b16 %v1576
      %v1609 = vunpack.c.l.b16 %v1577
      %v1610 = vunpack.c.l.b16 %v1578
      %v1611 = vunpack.c.l.b16 %v1579
      %v1612 = vunpack.c.l.b16 %v1580
      %v1613 = vunpack.c.l.b16 %v1581
      %v1614 = vunpack.c.l.b16 %v1582
      %v1615 = vunpack.c.l.b16 %v1583
      %v1616 = vpack.c.b16 %v1601, %v1600
      %v1617 = vpack.c.b16 %v1603, %v1602
      %v1618 = vpack.c.b16 %v1605, %v1604
      %v1619 = vpack.c.b16 %v1607, %v1606
      %v1620 = vpack.c.b16 %v1609, %v1608
      %v1621 = vpack.c.b16 %v1611, %v1610
      %v1622 = vpack.c.b16 %v1613, %v1612
      %v1623 = vpack.c.b16 %v1615, %v1614
      %1632 = vmatprep.subr.bf16.mxu0 0
      %1633 = vmatpush1.bf16.msra.mxu0 %v1616
      %1634 = vmatprep.subr.bf16.mxu0 0
      %1635 = vmatpush1.bf16.msra.mxu0 %v1617
      %1636 = vmatprep.subr.bf16.mxu0 0
      %1637 = vmatpush1.bf16.msra.mxu0 %v1618
      %1638 = vmatprep.subr.bf16.mxu0 0
      %1639 = vmatpush1.bf16.msra.mxu0 %v1619
      %1640 = vmatprep.subr.bf16.mxu0 0
      %1641 = vmatpush1.bf16.msra.mxu0 %v1620
      %1642 = vmatprep.subr.bf16.mxu0 0
      %1643 = vmatpush1.bf16.msra.mxu0 %v1621
      %1644 = vmatprep.subr.bf16.mxu0 0
      %1645 = vmatpush1.bf16.msra.mxu0 %v1622
      %1646 = vmatprep.subr.bf16.mxu0 0
      %1647 = vmatpush1.bf16.msra.mxu0 %v1623
      %1648 = vmatprep.subr.bf16.mxu0 0
      %1649 = vmatpush1.bf16.msra.mxu0 0
      %1650 = vmatprep.subr.bf16.mxu0 0
      %1651 = vmatpush1.bf16.msra.mxu0 0
      %1652 = vmatprep.subr.bf16.mxu0 0
      %1653 = vmatpush1.bf16.msra.mxu0 0
      %1654 = vmatprep.subr.bf16.mxu0 0
      %1655 = vmatpush1.bf16.msra.mxu0 0
      %1656 = vmatprep.subr.bf16.mxu0 0
      %1657 = vmatpush1.bf16.msra.mxu0 0
      %1658 = vmatprep.subr.bf16.mxu0 0
      %1659 = vmatpush1.bf16.msra.mxu0 0
      %1660 = vmatprep.subr.bf16.mxu0 0
      %1661 = vmatpush1.bf16.msra.mxu0 0
      %1662 = vmatprep.subr.bf16.mxu0 0
      %1663 = vmatpush1.bf16.msra.mxu0 0
      %1664 = vmatprep.mubr.bf16.mxu0 0
      %1665 = vmatmul.mubr.bf16.gmra.mrb[0].mxu0 %v1563
      %v1666 = vpop.f32.mrb[0].mxu0
      %v1667 = vadd.f32 0.0, %v1666
      %v1668 = vpop.f32.mrb[0].mxu0
      %v1669 = vpop.f32.mrb[0].mxu0
      %v1670 = vadd.f32 0.0, %v1669
      %v1671 = vpop.f32.mrb[0].mxu0
      %1672 = vmatprep.mubr.bf16.mxu0 0
      %1673 = vmatmul.mubr.bf16.gmra.mrb[0].mxu0 %v1564
      %v1674 = vpop.f32.mrb[0].mxu0
      %v1675 = vadd.f32 0.0, %v1674
      %v1676 = vpop.f32.mrb[0].mxu0
      %v1677 = vpop.f32.mrb[0].mxu0
      %v1678 = vadd.f32 0.0, %v1677
      %v1679 = vpop.f32.mrb[0].mxu0
      %1680 = vmatprep.mubr.bf16.mxu0 0
      %1681 = vmatmul.mubr.bf16.gmra.mrb[0].mxu0 %v1565
      %v1682 = vpop.f32.mrb[0].mxu0
      %v1683 = vadd.f32 0.0, %v1682
      %v1684 = vpop.f32.mrb[0].mxu0
      %v1685 = vpop.f32.mrb[0].mxu0
      %v1686 = vadd.f32 0.0, %v1685
      %v1687 = vpop.f32.mrb[0].mxu0
      %1688 = vmatprep.mubr.bf16.mxu0 0
      %1689 = vmatmul.mubr.bf16.gmra.mrb[0].mxu0 %v1566
      %v1690 = vpop.f32.mrb[0].mxu0
      %v1691 = vadd.f32 0.0, %v1690
      %v1692 = vpop.f32.mrb[0].mxu0
      %v1693 = vpop.f32.mrb[0].mxu0
      %v1694 = vadd.f32 0.0, %v1693
      %v1695 = vpop.f32.mrb[0].mxu0
      %1696 = vdwg.mxu0
      %v1697 = vadd.f32 %v1547, %v1667
      %v1698 = vadd.f32 %v1548, %v1670
      %v1699 = vadd.f32 %v1549, %v1675
      %v1700 = vadd.f32 %v1550, %v1678
      %v1701 = vadd.f32 %v1551, %v1683
      %v1702 = vadd.f32 %v1552, %v1686
      %v1703 = vadd.f32 %v1553, %v1691
      %v1704 = vadd.f32 %v1554, %v1694
      %v1705 = vld [vmem:[%s4] sm:$0x1]
      %v1707 = vlaneseq
      %v1708 = vshrl.u32 %v1707, 7
      %v1709 = vsub.s32 0, %v1708
      %v1710 = vrot.slane %v1705, %v1709
      %v1712 = vmul.f32 %v1697, %v1710
      %v1713 = vmul.f32 %v1698, %v1710
      %v1714 = vmul.f32 %v1699, %v1710
      %v1715 = vmul.f32 %v1700, %v1710
      %v1716 = vmul.f32 %v1701, %v1710
      %v1717 = vmul.f32 %v1702, %v1710
      %v1718 = vmul.f32 %v1703, %v1710
      %v1719 = vmul.f32 %v1704, %v1710
      %v1720 = vld [vmem:[%s5] sm:$0x1]
      %v1722 = vlaneseq
      %v1723 = vshrl.u32 %v1722, 7
      %v1724 = vsub.s32 0, %v1723
      %v1725 = vrot.slane %v1720, %v1724
      %v1727 = vadd.f32 %v1712, %v1725
      %v1728 = vadd.f32 %v1713, %v1725
      %v1729 = vadd.f32 %v1714, %v1725
      %v1730 = vadd.f32 %v1715, %v1725
      %v1731 = vadd.f32 %v1716, %v1725
      %v1732 = vadd.f32 %v1717, %v1725
      %v1733 = vadd.f32 %v1718, %v1725
      %v1734 = vadd.f32 %v1719, %v1725
      %v1735 = vmax.f32 %v1727, 0.0
      %v1736 = vmax.f32 %v1728, 0.0
      %v1737 = vmax.f32 %v1729, 0.0
      %v1738 = vmax.f32 %v1730, 0.0
      %v1739 = vmax.f32 %v1731, 0.0
      %v1740 = vmax.f32 %v1732, 0.0
      %v1741 = vmax.f32 %v1733, 0.0
      %v1742 = vmax.f32 %v1734, 0.0
      %v1743 = vpack.c.bf16 %v1735, %v1735
      %v1744 = vpack.c.bf16 %v1736, %v1736
      %v1745 = vpack.c.bf16 %v1737, %v1737
      %v1746 = vpack.c.bf16 %v1738, %v1738
      %v1747 = vpack.c.bf16 %v1739, %v1739
      %v1748 = vpack.c.bf16 %v1740, %v1740
      %v1749 = vpack.c.bf16 %v1741, %v1741
      %v1750 = vpack.c.bf16 %v1742, %v1742
      %1751 = vst [vmem:[%s273] sm:$0xf] %v1743
      %1752 = vst [vmem:[%s273 + $0x4] sm:$0xf] %v1744
      %1753 = vst [vmem:[%s273 + $0x8] sm:$0xf] %v1745
      %1754 = vst [vmem:[%s273 + $0xc] sm:$0xf] %v1746
      %1755 = vst [vmem:[%s273 + $0x10] sm:$0xf] %v1747
      %1756 = vst [vmem:[%s273 + $0x14] sm:$0xf] %v1748
      %1757 = vst [vmem:[%s273 + $0x18] sm:$0xf] %v1749
      %1758 = vst [vmem:[%s273 + $0x1c] sm:$0xf] %v1750
      %s1759 = smul.u32 8, %s22
      %p1760 = scmp.lt.s32.totalorder %s21, 1
      %s1761 = scalar_select %p1760, %s21, 1
      %p1762 = scmp.lt.s32.totalorder %s1759, 7
      %s1763 = scalar_select %p1762, %s1759, 7
      %s1764 = smul.addr %s1761, 8
      %s1765 = sadd.s32 %s1763, %s1764
      %s1766 = smul.addr %s1765, 4
      %s1767 = scalar_lea.vmem %s6, %s1766
      // Predicated region
      $region49: #{_lambda_.8} parent=43 // pred_check
        %p1768 = pneg %p180
      $region50: #{_lambda_.8} parent=43 // pred_check_branch
        %1770 = sbr.rel (%p1768) target = $region52
      $region51: #{_lambda_.8} parent=43 // pred_region
        %s1771 = smul.u32 8, %s22
      $region52: #{_lambda_.8} parent=43 // pred_fallthru
        _
    $region44: #{_lambda_.8} parent=5 // pred_fallthru
      _
    %p1772 = scmp.le.s32.totalorder 2, %s12
    // Predicated region
    $region53: #{_lambda_.8} parent=5 // pred_check
      %p1773 = pneg %p1772
    $region54: #{_lambda_.8} parent=5 // pred_check_branch
      %1775 = sbr.rel (%p1773) target = $region56
    $region55: #{_lambda_.8} parent=5 // pred_region
      %s1776 = ssub.s32 %s12, 2
      // Predicated region
      $region57: #{_lambda_.8} parent=55 // pred_check
        %p1777 = pneg %p186
      $region58: #{_lambda_.8} parent=55 // pred_check_branch
        %1779 = sbr.rel (%p1777) target = $region60
      $region59: #{_lambda_.8} parent=55 // pred_region
        %s1780 = smul.u32 8, %s24
        %p1781 = scmp.lt.s32.totalorder %s23, 1
        %s1782 = scalar_select %p1781, %s23, 1
        %p1783 = scmp.lt.s32.totalorder %s1780, 7
        %s1784 = scalar_select %p1783, %s1780, 7
        %s1785 = smul.addr %s1782, 8
        %s1786 = sadd.s32 %s1784, %s1785
        %s1787 = smul.addr %s1786, 4
        %s1788 = scalar_lea.vmem %s6, %s1787
      $region60: #{_lambda_.8} parent=55 // pred_fallthru
        _
    $region56: #{_lambda_.8} parent=5 // pred_fallthru
      _
  $region6: #{_lambda_.8} parent=0 // loop_footer
    %s16 = sadd.s32 1, %s12
  $region7: #{_lambda_.8} parent=0 // loop_footer_branch
    %11 = sbr.rel target = $region3
  $region8: #{_lambda_.8} parent=0 // loop_exit
    _

// kernel: _lambda_.9
$region0: #{_lambda_.9}
  #allocation0 [shape = 'u32[]', space=smem, size = 0x4, offset = 0x4, fixed_abs, tag = 'smem constant byte address 0x4 - core index']
  #allocation1 [shape = 'u32[144,128]{1,0:T(1,128)}', space=vmem, size = 0x12000, scoped, tag = 'internal scratch']
  #allocation2 [shape = 'f32[10,10,128]{2,1,0:T(8,128)}', space=vmem, size = 0x14000, scoped, tag = 'scratch operand']
  %s0 = inlined_call_operand.vmem [shape: bf16[2,8,8,128], index: 0, kind: input, shape index: {}]
  %s1 = inlined_call_operand.vmem [shape: bf16[9,128,128], index: 1, kind: input, shape index: {}]
  %s2 = inlined_call_operand.vmem [shape: f32[1,128], index: 2, kind: input, shape index: {}]
  %s3 = inlined_call_operand.vmem [shape: f32[1,128], index: 3, kind: input, shape index: {}]
  %s4 = inlined_call_operand.vmem [shape: bf16[2,8,8,128], index: 4, kind: input, shape index: {}]
  %s5 = inlined_call_operand.vmem [shape: f32[2,8,8,128], index: 5, kind: output, shape index: {}]
  %s6 = sld [smem:[#allocation0]]
  $region57: #{_lambda_.9} parent=0
    _
  %s8 = ssub.s32 1, %s6
  %s9 = scalar_select 0, %s8, %s6
  loop: start=0, step=1, limit=4
  $region2: #{_lambda_.9} parent=0 // loop_pre_header
    _
  $region3: #{_lambda_.9} parent=0 // loop_header
    %s11 = sphi 0, %s15
    %p12 = scmp.ge.s32.totalorder %s11, 4
    %s18 = sphi 0, %s30
    %s19 = sphi 0, %s26
    %s20 = sphi 0, %s18
    %s21 = sphi 0, %s19
    %s22 = sphi 0, %s20
    %s23 = sphi 0, %s21
    %s33 = sphi 0, %s35
    %s36 = sphi 0, %s33
    %s37 = sphi 0, %s36
    %s53 = sphi 0, %s37
    %s57 = sphi 0, %s57
    %s59 = sphi 0, %s57
    %s60 = sphi 0, %s59
    %s74 = sphi 0, %s60
    %s78 = sphi 0, %s78
    %s80 = sphi 0, %s78
    %s81 = sphi 0, %s80
    %s95 = sphi 0, %s81
    %s99 = sphi 0, %s99
    %s101 = sphi 0, %s99
    %s102 = sphi 0, %s101
    %s116 = sphi 0, %s102
    %s124 = sphi 0, %s126
    %s127 = sphi 0, %s124
    %s128 = sphi 0, %s127
    %s144 = sphi 0, %s128
    %s152 = sphi 0, %s154
    %s155 = sphi 0, %s152
    %s156 = sphi 0, %s155
    %s172 = sphi 0, %s156
  $region4: #{_lambda_.9} parent=0 // loop_header_branch
    %14 = sbr.rel (%p12) target = $region8
  $region5: #{_lambda_.9} parent=0 // loop_body
    %s16 = ssub.s32 %s11, 1
    %s17 = ssub.s32 %s11, 2
    %s24 = sadd.s32 1, %s19
    %p25 = scmp.ge.s32.totalorder %s24, 1
    %s26 = scalar_select %p25, 0, %s24
    %s27 = sadd.s32 1, %s18
    %s28 = scalar_select %p25, %s27, %s18
    %p29 = scmp.ge.s32.totalorder %s28, 2
    %s30 = scalar_select %p29, 0, %s28
    %s31 = ssub.s32 %s18, %s30
    %p32 = scmp.eq.s32.totalorder %s31, 0
    %s34 = sadd.s32 %s33, 1
    %s35 = scalar_select %p32, %s33, %s34
    %p38 = pneg %p32
    %p39 = scmp.eq.s32.totalorder %s11, 1
    %p40 = por %p38, %p39
    %p41 = scmp.ne.s32.totalorder %s33, %s36
    %p42 = scmp.eq.s32.totalorder %s11, 0
    %p43 = por %p41, %p42
    %p44 = scmp.ne.s32.totalorder %s33, %s36
    %p45 = scmp.eq.s32.totalorder %s16, 1
    %p46 = por %p44, %p45
    %p47 = scmp.ne.s32.totalorder %s36, %s37
    %p48 = scmp.eq.s32.totalorder %s16, 0
    %p49 = por %p47, %p48
    %p50 = scmp.ne.s32.totalorder %s36, %s37
    %p51 = scmp.eq.s32.totalorder %s17, 1
    %p52 = por %p50, %p51
    %p54 = scmp.ne.s32.totalorder %s37, %s53
    %p55 = scmp.eq.s32.totalorder %s17, 0
    %p56 = por %p54, %p55
    %s58 = sadd.s32 %s57, 1
    %p61 = scmp.eq.s32.totalorder %s11, 1
    %p62 = scmp.ne.s32.totalorder %s57, %s59
    %p63 = scmp.eq.s32.totalorder %s11, 0
    %p64 = por %p62, %p63
    %p65 = scmp.ne.s32.totalorder %s57, %s59
    %p66 = scmp.eq.s32.totalorder %s16, 1
    %p67 = por %p65, %p66
    %p68 = scmp.ne.s32.totalorder %s59, %s60
    %p69 = scmp.eq.s32.totalorder %s16, 0
    %p70 = por %p68, %p69
    %p71 = scmp.ne.s32.totalorder %s59, %s60
    %p72 = scmp.eq.s32.totalorder %s17, 1
    %p73 = por %p71, %p72
    %p75 = scmp.ne.s32.totalorder %s60, %s74
    %p76 = scmp.eq.s32.totalorder %s17, 0
    %p77 = por %p75, %p76
    %s79 = sadd.s32 %s78, 1
    %p82 = scmp.eq.s32.totalorder %s11, 1
    %p83 = scmp.ne.s32.totalorder %s78, %s80
    %p84 = scmp.eq.s32.totalorder %s11, 0
    %p85 = por %p83, %p84
    %p86 = scmp.ne.s32.totalorder %s78, %s80
    %p87 = scmp.eq.s32.totalorder %s16, 1
    %p88 = por %p86, %p87
    %p89 = scmp.ne.s32.totalorder %s80, %s81
    %p90 = scmp.eq.s32.totalorder %s16, 0
    %p91 = por %p89, %p90
    %p92 = scmp.ne.s32.totalorder %s80, %s81
    %p93 = scmp.eq.s32.totalorder %s17, 1
    %p94 = por %p92, %p93
    %p96 = scmp.ne.s32.totalorder %s81, %s95
    %p97 = scmp.eq.s32.totalorder %s17, 0
    %p98 = por %p96, %p97
    %s100 = sadd.s32 %s99, 1
    %p103 = scmp.eq.s32.totalorder %s11, 1
    %p104 = scmp.ne.s32.totalorder %s99, %s101
    %p105 = scmp.eq.s32.totalorder %s11, 0
    %p106 = por %p104, %p105
    %p107 = scmp.ne.s32.totalorder %s99, %s101
    %p108 = scmp.eq.s32.totalorder %s16, 1
    %p109 = por %p107, %p108
    %p110 = scmp.ne.s32.totalorder %s101, %s102
    %p111 = scmp.eq.s32.totalorder %s16, 0
    %p112 = por %p110, %p111
    %p113 = scmp.ne.s32.totalorder %s101, %s102
    %p114 = scmp.eq.s32.totalorder %s17, 1
    %p115 = por %p113, %p114
    %p117 = scmp.ne.s32.totalorder %s102, %s116
    %p118 = scmp.eq.s32.totalorder %s17, 0
    %p119 = por %p117, %p118
    %s120 = ssub.s32 %s18, %s30
    %s121 = ssub.s32 %s19, %s26
    %s122 = sor.u32 %s120, %s121
    %p123 = scmp.eq.s32.totalorder %s122, 0
    %s125 = sadd.s32 %s124, 1
    %s126 = scalar_select %p123, %s124, %s125
    %p129 = pneg %p123
    %p130 = scmp.eq.s32.totalorder %s11, 1
    %p131 = por %p129, %p130
    %p132 = scmp.ne.s32.totalorder %s124, %s127
    %p133 = scmp.eq.s32.totalorder %s11, 0
    %p134 = por %p132, %p133
    %p135 = scmp.ne.s32.totalorder %s124, %s127
    %p136 = scmp.eq.s32.totalorder %s16, 1
    %p137 = por %p135, %p136
    %p138 = scmp.ne.s32.totalorder %s127, %s128
    %p139 = scmp.eq.s32.totalorder %s16, 0
    %p140 = por %p138, %p139
    %p141 = scmp.ne.s32.totalorder %s127, %s128
    %p142 = scmp.eq.s32.totalorder %s17, 1
    %p143 = por %p141, %p142
    %p145 = scmp.ne.s32.totalorder %s128, %s144
    %p146 = scmp.eq.s32.totalorder %s17, 0
    %p147 = por %p145, %p146
    %s148 = ssub.s32 %s18, %s30
    %s149 = ssub.s32 %s19, %s26
    %s150 = sor.u32 %s148, %s149
    %p151 = scmp.eq.s32.totalorder %s150, 0
    %s153 = sadd.s32 %s152, 1
    %s154 = scalar_select %p151, %s152, %s153
    %p157 = pneg %p151
    %p158 = scmp.eq.s32.totalorder %s11, 1
    %p159 = por %p157, %p158
    %p160 = scmp.ne.s32.totalorder %s152, %s155
    %p161 = scmp.eq.s32.totalorder %s11, 0
    %p162 = por %p160, %p161
    %p163 = scmp.ne.s32.totalorder %s152, %s155
    %p164 = scmp.eq.s32.totalorder %s16, 1
    %p165 = por %p163, %p164
    %p166 = scmp.ne.s32.totalorder %s155, %s156
    %p167 = scmp.eq.s32.totalorder %s16, 0
    %p168 = por %p166, %p167
    %p169 = scmp.ne.s32.totalorder %s155, %s156
    %p170 = scmp.eq.s32.totalorder %s17, 1
    %p171 = por %p169, %p170
    %p173 = scmp.ne.s32.totalorder %s156, %s172
    %p174 = scmp.eq.s32.totalorder %s17, 0
    %p175 = por %p173, %p174
    %p176 = scmp.le.s32.totalorder 1, %s11
    %p177 = scmp.lt.s32.totalorder %s11, 3
    %p178 = pnand %p176, %p177
    %p179 = pneg %p178
    // Predicated region
    $region9: #{_lambda_.9} parent=5 // pred_check
      _
    $region10: #{_lambda_.9} parent=5 // pred_check_branch
      %181 = sbr.rel (%p178) target = $region12
    $region11: #{_lambda_.9} parent=5 // pred_region
      %s182 = ssub.s32 %s11, 1
      // Predicated region
      $region13: #{_lambda_.9} parent=11 // pred_check
        %p183 = pneg %p70
      $region14: #{_lambda_.9} parent=11 // pred_check_branch
        %185 = sbr.rel (%p183) target = $region16
      $region15: #{_lambda_.9} parent=11 // pred_region
        _
      $region16: #{_lambda_.9} parent=11 // pred_fallthru
        _
      // Predicated region
      $region17: #{_lambda_.9} parent=11 // pred_check
        %p186 = pneg %p91
      $region18: #{_lambda_.9} parent=11 // pred_check_branch
        %188 = sbr.rel (%p186) target = $region20
      $region19: #{_lambda_.9} parent=11 // pred_region
        _
      $region20: #{_lambda_.9} parent=11 // pred_fallthru
        _
      // Predicated region
      $region21: #{_lambda_.9} parent=11 // pred_check
        %p189 = pneg %p112
      $region22: #{_lambda_.9} parent=11 // pred_check_branch
        %191 = sbr.rel (%p189) target = $region24
      $region23: #{_lambda_.9} parent=11 // pred_region
        _
      $region24: #{_lambda_.9} parent=11 // pred_fallthru
        _
    $region12: #{_lambda_.9} parent=5 // pred_fallthru
      _
    %p192 = scmp.lt.s32.totalorder %s11, 2
    // Predicated region
    $region25: #{_lambda_.9} parent=5 // pred_check
      %p193 = pneg %p192
    $region26: #{_lambda_.9} parent=5 // pred_check_branch
      %195 = sbr.rel (%p193) target = $region28
    $region27: #{_lambda_.9} parent=5 // pred_region
      // Predicated region
      $region29: #{_lambda_.9} parent=27 // pred_check
        %p196 = pneg %p43
      $region30: #{_lambda_.9} parent=27 // pred_check_branch
        %198 = sbr.rel (%p196) target = $region32
      $region31: #{_lambda_.9} parent=27 // pred_region
        %p199 = scmp.lt.s32.totalorder %s18, 1
        %s200 = scalar_select %p199, %s18, 1
        %s201 = smul.addr %s200, 8
        %s202 = smul.addr %s201, 4
        %s203 = scalar_lea.vmem %s0, %s202
      $region32: #{_lambda_.9} parent=27 // pred_fallthru
        _
      // Predicated region
      $region33: #{_lambda_.9} parent=27 // pred_check
        %p204 = pneg %p134
      $region34: #{_lambda_.9} parent=27 // pred_check_branch
        %206 = sbr.rel (%p204) target = $region36
      $region35: #{_lambda_.9} parent=27 // pred_region
        %s207 = smul.u32 8, %s19
        %p208 = scmp.lt.s32.totalorder %s18, 1
        %s209 = scalar_select %p208, %s18, 1
        %p210 = scmp.lt.s32.totalorder %s207, 7
        %s211 = scalar_select %p210, %s207, 7
        %s212 = smul.addr %s209, 8
        %s213 = sadd.s32 %s211, %s212
        %s214 = smul.addr %s213, 4
        %s215 = scalar_lea.vmem %s4, %s214
        %s216 = smul.u32 8, %s19
      $region36: #{_lambda_.9} parent=27 // pred_fallthru
        _
    $region28: #{_lambda_.9} parent=5 // pred_fallthru
      _
    %p217 = scmp.le.s32.totalorder 1, %s11
    %p218 = scmp.lt.s32.totalorder %s11, 3
    %p219 = pnand %p217, %p218
    %p220 = pneg %p219
    // Predicated region
    $region37: #{_lambda_.9} parent=5 // pred_check
      _
    $region38: #{_lambda_.9} parent=5 // pred_check_branch
      %222 = sbr.rel (%p219) target = $region40
    $region39: #{_lambda_.9} parent=5 // pred_region
      %s223 = ssub.s32 %s11, 1
      %p224 = scmp.lt.s32.totalorder %s20, 1
      %s225 = scalar_select %p224, %s20, 1
      %s226 = smul.addr %s225, 8
      %s227 = smul.addr %s226, 4
      %s228 = scalar_lea.vmem %s0, %s227
      %p229 = pneg %p49
      %p230 = pneg %p46
      %p231 = pneg %p70
      %p232 = pneg %p67
      %p233 = pneg %p91
      %p234 = pneg %p88
      %p235 = pneg %p112
      %p236 = pneg %p109
      %s237 = smul.u32 8, %s21
      %p238 = scmp.lt.s32.totalorder %s20, 1
      %s239 = scalar_select %p238, %s20, 1
      %p240 = scmp.lt.s32.totalorder %s237, 7
      %s241 = scalar_select %p240, %s237, 7
      %s242 = smul.addr %s239, 8
      %s243 = sadd.s32 %s241, %s242
      %s244 = smul.addr %s243, 4
      %s245 = scalar_lea.vmem %s4, %s244
      %p246 = pneg %p140
      %p247 = pneg %p137
      %p248 = pneg %p168
      %p249 = pneg %p165
      %s250 = smul.u32 8, %s21
      %p251 = scmp.lt.s32.totalorder %s20, 1
      %s252 = scalar_select %p251, %s20, 1
      %p253 = scmp.lt.s32.totalorder %s250, 7
      %s254 = scalar_select %p253, %s250, 7
      %s255 = smul.addr %s252, 8
      %s256 = sadd.s32 %s254, %s255
      %s257 = smul.addr %s256, 8
      %s258 = scalar_lea.vmem %s5, %s257
      %p259 = scmp.lt.s32.totalorder %s20, 1
      %s260 = scalar_select %p259, %s20, 1
      %s261 = smul.addr %s260, 8
      %s262 = smul.addr %s261, 4
      %s263 = scalar_lea.vmem %s0, %s262
      %s264 = smul.u32 8, %s21
      %p265 = scmp.lt.s32.totalorder %s20, 1
      %s266 = scalar_select %p265, %s20, 1
      %p267 = scmp.lt.s32.totalorder %s264, 7
      %s268 = scalar_select %p267, %s264, 7
      %s269 = smul.addr %s266, 8
      %s270 = sadd.s32 %s268, %s269
      %s271 = smul.addr %s270, 4
      %s272 = scalar_lea.vmem %s4, %s271
      %s273 = smul.u32 8, %s21
      %s274 = smul.u32 8, %s21
      %p275 = scmp.lt.s32.totalorder %s20, 1
      %s276 = scalar_select %p275, %s20, 1
      %p277 = scmp.lt.s32.totalorder %s274, 7
      %s278 = scalar_select %p277, %s274, 7
      %s279 = smul.addr %s276, 8
      %s280 = sadd.s32 %s278, %s279
      %s281 = smul.addr %s280, 8
      %s282 = scalar_lea.vmem %s5, %s281
      %s283 = smul.u32 8, %s21
      %s285 = smul.u32 %s21, 8
      %p286 = scmp.eq.s32.totalorder %s21, 0
      // Predicated region
      $region41: #{_lambda_.9} parent=39 // pred_check
        %p287 = pneg %p286
      $region42: #{_lambda_.9} parent=39 // pred_check_branch
        %289 = sbr.rel (%p287) target = $region44
      $region43: #{_lambda_.9} parent=39 // pred_region
        %290 = vst [vmem:[#allocation2] sm:$0xff] 0.0
        %291 = vst [vmem:[#allocation2 + $0x8] sm:$0x3] 0.0
        %292 = vst [vmem:[#allocation2 + $0x10] sm:$0xff] 0.0
        %293 = vst [vmem:[#allocation2 + $0x18] sm:$0x3] 0.0
        %294 = vst [vmem:[#allocation2 + $0x20] sm:$0xff] 0.0
        %295 = vst [vmem:[#allocation2 + $0x28] sm:$0x3] 0.0
        %296 = vst [vmem:[#allocation2 + $0x30] sm:$0xff] 0.0
        %297 = vst [vmem:[#allocation2 + $0x38] sm:$0x3] 0.0
        %298 = vst [vmem:[#allocation2 + $0x40] sm:$0xff] 0.0
        %299 = vst [vmem:[#allocation2 + $0x48] sm:$0x3] 0.0
        %300 = vst [vmem:[#allocation2 + $0x50] sm:$0xff] 0.0
        %301 = vst [vmem:[#allocation2 + $0x58] sm:$0x3] 0.0
        %302 = vst [vmem:[#allocation2 + $0x60] sm:$0xff] 0.0
        %303 = vst [vmem:[#allocation2 + $0x68] sm:$0x3] 0.0
        %304 = vst [vmem:[#allocation2 + $0x70] sm:$0xff] 0.0
        %305 = vst [vmem:[#allocation2 + $0x78] sm:$0x3] 0.0
        %306 = vst [vmem:[#allocation2 + $0x80] sm:$0xff] 0.0
        %307 = vst [vmem:[#allocation2 + $0x88] sm:$0x3] 0.0
        %308 = vst [vmem:[#allocation2 + $0x90] sm:$0xff] 0.0
        %309 = vst [vmem:[#allocation2 + $0x98] sm:$0x3] 0.0
        %v310 = vld [vmem:[%s263] sm:$0xf]
        %v311 = vld [vmem:[%s263 + $0x4] sm:$0xf]
        %v312 = vld [vmem:[%s263 + $0x8] sm:$0xf]
        %v313 = vld [vmem:[%s263 + $0xc] sm:$0xf]
        %v314 = vld [vmem:[%s263 + $0x10] sm:$0xf]
        %v315 = vld [vmem:[%s263 + $0x14] sm:$0xf]
        %v316 = vld [vmem:[%s263 + $0x18] sm:$0xf]
        %v317 = vld [vmem:[%s263 + $0x1c] sm:$0xf]
        %v318 = vunpack.c.l.bf16 %v310
        %v319 = vunpack.c.l.bf16 %v311
        %v320 = vunpack.c.l.bf16 %v312
        %v321 = vunpack.c.l.bf16 %v313
        %v322 = vunpack.c.l.bf16 %v314
        %v323 = vunpack.c.l.bf16 %v315
        %v324 = vunpack.c.l.bf16 %v316
        %v325 = vunpack.c.l.bf16 %v317
        %v326 = vld [vmem:[%s2] sm:$0x1]
        %v328 = vlaneseq
        %v329 = vshrl.u32 %v328, 7
        %v330 = vsub.s32 0, %v329
        %v331 = vrot.slane %v326, %v330
        %v333 = vmul.f32 %v318, %v331
        %v334 = vmul.f32 %v319, %v331
        %v335 = vmul.f32 %v320, %v331
        %v336 = vmul.f32 %v321, %v331
        %v337 = vmul.f32 %v322, %v331
        %v338 = vmul.f32 %v323, %v331
        %v339 = vmul.f32 %v324, %v331
        %v340 = vmul.f32 %v325, %v331
        %v341 = vld [vmem:[%s3] sm:$0x1]
        %v343 = vlaneseq
        %v344 = vshrl.u32 %v343, 7
        %v345 = vsub.s32 0, %v344
        %v346 = vrot.slane %v341, %v345
        %v348 = vadd.f32 %v333, %v346
        %v349 = vadd.f32 %v334, %v346
        %v350 = vadd.f32 %v335, %v346
        %v351 = vadd.f32 %v336, %v346
        %v352 = vadd.f32 %v337, %v346
        %v353 = vadd.f32 %v338, %v346
        %v354 = vadd.f32 %v339, %v346
        %v355 = vadd.f32 %v340, %v346
        %v356 = vmax.f32 %v348, 0.0
        %v357 = vmax.f32 %v349, 0.0
        %v358 = vmax.f32 %v350, 0.0
        %v359 = vmax.f32 %v351, 0.0
        %v360 = vmax.f32 %v352, 0.0
        %v361 = vmax.f32 %v353, 0.0
        %v362 = vmax.f32 %v354, 0.0
        %v363 = vmax.f32 %v355, 0.0
        %s364 = scalar_lea.vmem [#allocation2], 16
        %365 = vst [vmem:[%s364 + $0x1] sm:$0xff] %v356
        %366 = vst [vmem:[%s364 + $0x11] sm:$0xff] %v357
        %367 = vst [vmem:[%s364 + $0x21] sm:$0xff] %v358
        %368 = vst [vmem:[%s364 + $0x31] sm:$0xff] %v359
        %369 = vst [vmem:[%s364 + $0x41] sm:$0xff] %v360
        %370 = vst [vmem:[%s364 + $0x51] sm:$0xff] %v361
        %371 = vst [vmem:[%s364 + $0x61] sm:$0xff] %v362
        %372 = vst [vmem:[%s364 + $0x71] sm:$0xff] %v363
      $region44: #{_lambda_.9} parent=39 // pred_fallthru
        _
      %s373 = smul.u32 %s285, 16
      %s374 = scalar_lea.vmem [#allocation2], %s373
      %v375 = vld [vmem:[%s374] sm:$0xff]
      %v376 = vld [vmem:[%s374 + $0x10] sm:$0xff]
      %v377 = vld [vmem:[%s374 + $0x20] sm:$0xff]
      %v378 = vld [vmem:[%s374 + $0x30] sm:$0xff]
      %v379 = vld [vmem:[%s374 + $0x40] sm:$0xff]
      %v380 = vld [vmem:[%s374 + $0x50] sm:$0xff]
      %v381 = vld [vmem:[%s374 + $0x60] sm:$0xff]
      %v382 = vld [vmem:[%s374 + $0x70] sm:$0xff]
      %v383 = vpack.c.bf16 %v376, %v375
      %v384 = vpack.c.bf16 %v378, %v377
      %v385 = vpack.c.bf16 %v380, %v379
      %v386 = vpack.c.bf16 %v382, %v381
      %v387 = vld [vmem:[%s1] sm:$0xf]
      %v388 = vld [vmem:[%s1 + $0x4] sm:$0xf]
      %v389 = vld [vmem:[%s1 + $0x8] sm:$0xf]
      %v390 = vld [vmem:[%s1 + $0xc] sm:$0xf]
      %v391 = vld [vmem:[%s1 + $0x10] sm:$0xf]
      %v392 = vld [vmem:[%s1 + $0x14] sm:$0xf]
      %v393 = vld [vmem:[%s1 + $0x18] sm:$0xf]
      %v394 = vld [vmem:[%s1 + $0x1c] sm:$0xf]
      %v395 = vld [vmem:[%s1 + $0x20] sm:$0xf]
      %v396 = vld [vmem:[%s1 + $0x24] sm:$0xf]
      %v397 = vld [vmem:[%s1 + $0x28] sm:$0xf]
      %v398 = vld [vmem:[%s1 + $0x2c] sm:$0xf]
      %v399 = vld [vmem:[%s1 + $0x30] sm:$0xf]
      %v400 = vld [vmem:[%s1 + $0x34] sm:$0xf]
      %v401 = vld [vmem:[%s1 + $0x38] sm:$0xf]
      %v402 = vld [vmem:[%s1 + $0x3c] sm:$0xf]
      %v403 = vld [vmem:[%s374 + $0x1] sm:$0xff]
      %v404 = vld [vmem:[%s374 + $0x11] sm:$0xff]
      %v405 = vld [vmem:[%s374 + $0x21] sm:$0xff]
      %v406 = vld [vmem:[%s374 + $0x31] sm:$0xff]
      %v407 = vld [vmem:[%s374 + $0x41] sm:$0xff]
      %v408 = vld [vmem:[%s374 + $0x51] sm:$0xff]
      %v409 = vld [vmem:[%s374 + $0x61] sm:$0xff]
      %v410 = vld [vmem:[%s374 + $0x71] sm:$0xff]
      %v411 = vpack.c.bf16 %v404, %v403
      %v412 = vpack.c.bf16 %v406, %v405
      %v413 = vpack.c.bf16 %v408, %v407
      %v414 = vpack.c.bf16 %v410, %v409
      %s415 = scalar_lea.vmem %s1, 64
      %v416 = vld [vmem:[%s415] sm:$0xf]
      %v417 = vld [vmem:[%s415 + $0x4] sm:$0xf]
      %v418 = vld [vmem:[%s415 + $0x8] sm:$0xf]
      %v419 = vld [vmem:[%s415 + $0xc] sm:$0xf]
      %v420 = vld [vmem:[%s415 + $0x10] sm:$0xf]
      %v421 = vld [vmem:[%s415 + $0x14] sm:$0xf]
      %v422 = vld [vmem:[%s415 + $0x18] sm:$0xf]
      %v423 = vld [vmem:[%s415 + $0x1c] sm:$0xf]
      %v424 = vld [vmem:[%s415 + $0x20] sm:$0xf]
      %v425 = vld [vmem:[%s415 + $0x24] sm:$0xf]
      %v426 = vld [vmem:[%s415 + $0x28] sm:$0xf]
      %v427 = vld [vmem:[%s415 + $0x2c] sm:$0xf]
      %v428 = vld [vmem:[%s415 + $0x30] sm:$0xf]
      %v429 = vld [vmem:[%s415 + $0x34] sm:$0xf]
      %v430 = vld [vmem:[%s415 + $0x38] sm:$0xf]
      %v431 = vld [vmem:[%s415 + $0x3c] sm:$0xf]
      %v448 = vunpack.c.l.b16 %v416
      %v449 = vunpack.c.l.b16 %v417
      %v450 = vunpack.c.l.b16 %v418
      %v451 = vunpack.c.l.b16 %v419
      %v452 = vunpack.c.l.b16 %v420
      %v453 = vunpack.c.l.b16 %v421
      %v454 = vunpack.c.l.b16 %v422
      %v455 = vunpack.c.l.b16 %v423
      %v456 = vunpack.c.l.b16 %v424
      %v457 = vunpack.c.l.b16 %v425
      %v458 = vunpack.c.l.b16 %v426
      %v459 = vunpack.c.l.b16 %v427
      %v460 = vunpack.c.l.b16 %v428
      %v461 = vunpack.c.l.b16 %v429
      %v462 = vunpack.c.l.b16 %v430
      %v463 = vunpack.c.l.b16 %v431
      %v464 = vpack.c.b16 %v449, %v448
      %v465 = vpack.c.b16 %v451, %v450
      %v466 = vpack.c.b16 %v453, %v452
      %v467 = vpack.c.b16 %v455, %v454
      %v468 = vpack.c.b16 %v457, %v456
      %v469 = vpack.c.b16 %v459, %v458
      %v470 = vpack.c.b16 %v461, %v460
      %v471 = vpack.c.b16 %v463, %v462
      %480 = vmatprep.subr.bf16.mxu0 0
      %481 = vmatpush1.bf16.msra.mxu0 %v464
      %482 = vmatprep.subr.bf16.mxu0 0
      %483 = vmatpush1.bf16.msra.mxu0 %v465
      %484 = vmatprep.subr.bf16.mxu0 0
      %485 = vmatpush1.bf16.msra.mxu0 %v466
      %486 = vmatprep.subr.bf16.mxu0 0
      %487 = vmatpush1.bf16.msra.mxu0 %v467
      %488 = vmatprep.subr.bf16.mxu0 0
      %489 = vmatpush1.bf16.msra.mxu0 %v468
      %490 = vmatprep.subr.bf16.mxu0 0
      %491 = vmatpush1.bf16.msra.mxu0 %v469
      %492 = vmatprep.subr.bf16.mxu0 0
      %493 = vmatpush1.bf16.msra.mxu0 %v470
      %494 = vmatprep.subr.bf16.mxu0 0
      %495 = vmatpush1.bf16.msra.mxu0 %v471
      %496 = vmatprep.subr.bf16.mxu0 0
      %497 = vmatpush1.bf16.msra.mxu0 0
      %498 = vmatprep.subr.bf16.mxu0 0
      %499 = vmatpush1.bf16.msra.mxu0 0
      %500 = vmatprep.subr.bf16.mxu0 0
      %501 = vmatpush1.bf16.msra.mxu0 0
      %502 = vmatprep.subr.bf16.mxu0 0
      %503 = vmatpush1.bf16.msra.mxu0 0
      %504 = vmatprep.subr.bf16.mxu0 0
      %505 = vmatpush1.bf16.msra.mxu0 0
      %506 = vmatprep.subr.bf16.mxu0 0
      %507 = vmatpush1.bf16.msra.mxu0 0
      %508 = vmatprep.subr.bf16.mxu0 0
      %509 = vmatpush1.bf16.msra.mxu0 0
      %510 = vmatprep.subr.bf16.mxu0 0
      %511 = vmatpush1.bf16.msra.mxu0 0
      %512 = vmatprep.mubr.bf16.mxu0 0
      %513 = vmatmul.mubr.bf16.gmra.mrb[0].mxu0 %v411
      %v514 = vpop.f32.mrb[0].mxu0
      %v515 = vadd.f32 0.0, %v514
      %v516 = vpop.f32.mrb[0].mxu0
      %v517 = vpop.f32.mrb[0].mxu0
      %v518 = vadd.f32 0.0, %v517
      %v519 = vpop.f32.mrb[0].mxu0
      %520 = vmatprep.mubr.bf16.mxu0 0
      %521 = vmatmul.mubr.bf16.gmra.mrb[0].mxu0 %v412
      %v522 = vpop.f32.mrb[0].mxu0
      %v523 = vadd.f32 0.0, %v522
      %v524 = vpop.f32.mrb[0].mxu0
      %v525 = vpop.f32.mrb[0].mxu0
      %v526 = vadd.f32 0.0, %v525
      %v527 = vpop.f32.mrb[0].mxu0
      %528 = vmatprep.mubr.bf16.mxu0 0
      %529 = vmatmul.mubr.bf16.gmra.mrb[0].mxu0 %v413
      %v530 = vpop.f32.mrb[0].mxu0
      %v531 = vadd.f32 0.0, %v530
      %v532 = vpop.f32.mrb[0].mxu0
      %v533 = vpop.f32.mrb[0].mxu0
      %v534 = vadd.f32 0.0, %v533
      %v535 = vpop.f32.mrb[0].mxu0
      %536 = vmatprep.mubr.bf16.mxu0 0
      %537 = vmatmul.mubr.bf16.gmra.mrb[0].mxu0 %v414
      %v538 = vpop.f32.mrb[0].mxu0
      %v539 = vadd.f32 0.0, %v538
      %v540 = vpop.f32.mrb[0].mxu0
      %v541 = vpop.f32.mrb[0].mxu0
      %v542 = vadd.f32 0.0, %v541
      %v543 = vpop.f32.mrb[0].mxu0
      %544 = vdwg.mxu0
      %v561 = vunpack.c.l.b16 %v387
      %v562 = vunpack.c.l.b16 %v388
      %v563 = vunpack.c.l.b16 %v389
      %v564 = vunpack.c.l.b16 %v390
      %v565 = vunpack.c.l.b16 %v391
      %v566 = vunpack.c.l.b16 %v392
      %v567 = vunpack.c.l.b16 %v393
      %v568 = vunpack.c.l.b16 %v394
      %v569 = vunpack.c.l.b16 %v395
      %v570 = vunpack.c.l.b16 %v396
      %v571 = vunpack.c.l.b16 %v397
      %v572 = vunpack.c.l.b16 %v398
      %v573 = vunpack.c.l.b16 %v399
      %v574 = vunpack.c.l.b16 %v400
      %v575 = vunpack.c.l.b16 %v401
      %v576 = vunpack.c.l.b16 %v402
      %v577 = vpack.c.b16 %v562, %v561
      %v578 = vpack.c.b16 %v564, %v563
      %v579 = vpack.c.b16 %v566, %v565
      %v580 = vpack.c.b16 %v568, %v567
      %v581 = vpack.c.b16 %v570, %v569
      %v582 = vpack.c.b16 %v572, %v571
      %v583 = vpack.c.b16 %v574, %v573
      %v584 = vpack.c.b16 %v576, %v575
      %593 = vmatprep.subr.bf16.mxu0 0
      %594 = vmatpush1.bf16.msra.mxu0 %v577
      %595 = vmatprep.subr.bf16.mxu0 0
      %596 = vmatpush1.bf16.msra.mxu0 %v578
      %597 = vmatprep.subr.bf16.mxu0 0
      %598 = vmatpush1.bf16.msra.mxu0 %v579
      %599 = vmatprep.subr.bf16.mxu0 0
      %600 = vmatpush1.bf16.msra.mxu0 %v580
      %601 = vmatprep.subr.bf16.mxu0 0
      %602 = vmatpush1.bf16.msra.mxu0 %v581
      %603 = vmatprep.subr.bf16.mxu0 0
      %604 = vmatpush1.bf16.msra.mxu0 %v582
      %605 = vmatprep.subr.bf16.mxu0 0
      %606 = vmatpush1.bf16.msra.mxu0 %v583
      %607 = vmatprep.subr.bf16.mxu0 0
      %608 = vmatpush1.bf16.msra.mxu0 %v584
      %609 = vmatprep.subr.bf16.mxu0 0
      %610 = vmatpush1.bf16.msra.mxu0 0
      %611 = vmatprep.subr.bf16.mxu0 0
      %612 = vmatpush1.bf16.msra.mxu0 0
      %613 = vmatprep.subr.bf16.mxu0 0
      %614 = vmatpush1.bf16.msra.mxu0 0
      %615 = vmatprep.subr.bf16.mxu0 0
      %616 = vmatpush1.bf16.msra.mxu0 0
      %617 = vmatprep.subr.bf16.mxu0 0
      %618 = vmatpush1.bf16.msra.mxu0 0
      %619 = vmatprep.subr.bf16.mxu0 0
      %620 = vmatpush1.bf16.msra.mxu0 0
      %621 = vmatprep.subr.bf16.mxu0 0
      %622 = vmatpush1.bf16.msra.mxu0 0
      %623 = vmatprep.subr.bf16.mxu0 0
      %624 = vmatpush1.bf16.msra.mxu0 0
      %625 = vmatprep.mubr.bf16.mxu0 0
      %626 = vmatmul.mubr.bf16.gmra.mrb[0].mxu0 %v383
      %v627 = vpop.f32.mrb[0].mxu0
      %v628 = vadd.f32 %v515, %v627
      %v629 = vpop.f32.mrb[0].mxu0
      %v630 = vpop.f32.mrb[0].mxu0
      %v631 = vadd.f32 %v518, %v630
      %v632 = vpop.f32.mrb[0].mxu0
      %633 = vmatprep.mubr.bf16.mxu0 0
      %634 = vmatmul.mubr.bf16.gmra.mrb[0].mxu0 %v384
      %v635 = vpop.f32.mrb[0].mxu0
      %v636 = vadd.f32 %v523, %v635
      %v637 = vpop.f32.mrb[0].mxu0
      %v638 = vpop.f32.mrb[0].mxu0
      %v639 = vadd.f32 %v526, %v638
      %v640 = vpop.f32.mrb[0].mxu0
      %641 = vmatprep.mubr.bf16.mxu0 0
      %642 = vmatmul.mubr.bf16.gmra.mrb[0].mxu0 %v385
      %v643 = vpop.f32.mrb[0].mxu0
      %v644 = vadd.f32 %v531, %v643
      %v645 = vpop.f32.mrb[0].mxu0
      %v646 = vpop.f32.mrb[0].mxu0
      %v647 = vadd.f32 %v534, %v646
      %v648 = vpop.f32.mrb[0].mxu0
      %649 = vmatprep.mubr.bf16.mxu0 0
      %650 = vmatmul.mubr.bf16.gmra.mrb[0].mxu0 %v386
      %v651 = vpop.f32.mrb[0].mxu0
      %v652 = vadd.f32 %v539, %v651
      %v653 = vpop.f32.mrb[0].mxu0
      %v654 = vpop.f32.mrb[0].mxu0
      %v655 = vadd.f32 %v542, %v654
      %v656 = vpop.f32.mrb[0].mxu0
      %657 = vdwg.mxu0
      %v658 = vld [vmem:[%s374 + $0x2] sm:$0xff]
      %v659 = vld [vmem:[%s374 + $0x12] sm:$0xff]
      %v660 = vld [vmem:[%s374 + $0x22] sm:$0xff]
      %v661 = vld [vmem:[%s374 + $0x32] sm:$0xff]
      %v662 = vld [vmem:[%s374 + $0x42] sm:$0xff]
      %v663 = vld [vmem:[%s374 + $0x52] sm:$0xff]
      %v664 = vld [vmem:[%s374 + $0x62] sm:$0xff]
      %v665 = vld [vmem:[%s374 + $0x72] sm:$0xff]
      %v666 = vpack.c.bf16 %v659, %v658
      %v667 = vpack.c.bf16 %v661, %v660
      %v668 = vpack.c.bf16 %v663, %v662
      %v669 = vpack.c.bf16 %v665, %v664
      %s670 = scalar_lea.vmem %s1, 128
      %v671 = vld [vmem:[%s670] sm:$0xf]
      %v672 = vld [vmem:[%s670 + $0x4] sm:$0xf]
      %v673 = vld [vmem:[%s670 + $0x8] sm:$0xf]
      %v674 = vld [vmem:[%s670 + $0xc] sm:$0xf]
      %v675 = vld [vmem:[%s670 + $0x10] sm:$0xf]
      %v676 = vld [vmem:[%s670 + $0x14] sm:$0xf]
      %v677 = vld [vmem:[%s670 + $0x18] sm:$0xf]
      %v678 = vld [vmem:[%s670 + $0x1c] sm:$0xf]
      %v679 = vld [vmem:[%s670 + $0x20] sm:$0xf]
      %v680 = vld [vmem:[%s670 + $0x24] sm:$0xf]
      %v681 = vld [vmem:[%s670 + $0x28] sm:$0xf]
      %v682 = vld [vmem:[%s670 + $0x2c] sm:$0xf]
      %v683 = vld [vmem:[%s670 + $0x30] sm:$0xf]
      %v684 = vld [vmem:[%s670 + $0x34] sm:$0xf]
      %v685 = vld [vmem:[%s670 + $0x38] sm:$0xf]
      %v686 = vld [vmem:[%s670 + $0x3c] sm:$0xf]
      %v703 = vunpack.c.l.b16 %v671
      %v704 = vunpack.c.l.b16 %v672
      %v705 = vunpack.c.l.b16 %v673
      %v706 = vunpack.c.l.b16 %v674
      %v707 = vunpack.c.l.b16 %v675
      %v708 = vunpack.c.l.b16 %v676
      %v709 = vunpack.c.l.b16 %v677
      %v710 = vunpack.c.l.b16 %v678
      %v711 = vunpack.c.l.b16 %v679
      %v712 = vunpack.c.l.b16 %v680
      %v713 = vunpack.c.l.b16 %v681
      %v714 = vunpack.c.l.b16 %v682
      %v715 = vunpack.c.l.b16 %v683
      %v716 = vunpack.c.l.b16 %v684
      %v717 = vunpack.c.l.b16 %v685
      %v718 = vunpack.c.l.b16 %v686
      %v719 = vpack.c.b16 %v704, %v703
      %v720 = vpack.c.b16 %v706, %v705
      %v721 = vpack.c.b16 %v708, %v707
      %v722 = vpack.c.b16 %v710, %v709
      %v723 = vpack.c.b16 %v712, %v711
      %v724 = vpack.c.b16 %v714, %v713
      %v725 = vpack.c.b16 %v716, %v715
      %v726 = vpack.c.b16 %v718, %v717
      %735 = vmatprep.subr.bf16.mxu0 0
      %736 = vmatpush1.bf16.msra.mxu0 %v719
      %737 = vmatprep.subr.bf16.mxu0 0
      %738 = vmatpush1.bf16.msra.mxu0 %v720
      %739 = vmatprep.subr.bf16.mxu0 0
      %740 = vmatpush1.bf16.msra.mxu0 %v721
      %741 = vmatprep.subr.bf16.mxu0 0
      %742 = vmatpush1.bf16.msra.mxu0 %v722
      %743 = vmatprep.subr.bf16.mxu0 0
      %744 = vmatpush1.bf16.msra.mxu0 %v723
      %745 = vmatprep.subr.bf16.mxu0 0
      %746 = vmatpush1.bf16.msra.mxu0 %v724
      %747 = vmatprep.subr.bf16.mxu0 0
      %748 = vmatpush1.bf16.msra.mxu0 %v725
      %749 = vmatprep.subr.bf16.mxu0 0
      %750 = vmatpush1.bf16.msra.mxu0 %v726
      %751 = vmatprep.subr.bf16.mxu0 0
      %752 = vmatpush1.bf16.msra.mxu0 0
      %753 = vmatprep.subr.bf16.mxu0 0
      %754 = vmatpush1.bf16.msra.mxu0 0
      %755 = vmatprep.subr.bf16.mxu0 0
      %756 = vmatpush1.bf16.msra.mxu0 0
      %757 = vmatprep.subr.bf16.mxu0 0
      %758 = vmatpush1.bf16.msra.mxu0 0
      %759 = vmatprep.subr.bf16.mxu0 0
      %760 = vmatpush1.bf16.msra.mxu0 0
      %761 = vmatprep.subr.bf16.mxu0 0
      %762 = vmatpush1.bf16.msra.mxu0 0
      %763 = vmatprep.subr.bf16.mxu0 0
      %764 = vmatpush1.bf16.msra.mxu0 0
      %765 = vmatprep.subr.bf16.mxu0 0
      %766 = vmatpush1.bf16.msra.mxu0 0
      %767 = vmatprep.mubr.bf16.mxu0 0
      %768 = vmatmul.mubr.bf16.gmra.mrb[0].mxu0 %v666
      %v769 = vpop.f32.mrb[0].mxu0
      %v770 = vadd.f32 0.0, %v769
      %v771 = vpop.f32.mrb[0].mxu0
      %v772 = vpop.f32.mrb[0].mxu0
      %v773 = vadd.f32 0.0, %v772
      %v774 = vpop.f32.mrb[0].mxu0
      %775 = vmatprep.mubr.bf16.mxu0 0
      %776 = vmatmul.mubr.bf16.gmra.mrb[0].mxu0 %v667
      %v777 = vpop.f32.mrb[0].mxu0
      %v778 = vadd.f32 0.0, %v777
      %v779 = vpop.f32.mrb[0].mxu0
      %v780 = vpop.f32.mrb[0].mxu0
      %v781 = vadd.f32 0.0, %v780
      %v782 = vpop.f32.mrb[0].mxu0
      %783 = vmatprep.mubr.bf16.mxu0 0
      %784 = vmatmul.mubr.bf16.gmra.mrb[0].mxu0 %v668
      %v785 = vpop.f32.mrb[0].mxu0
      %v786 = vadd.f32 0.0, %v785
      %v787 = vpop.f32.mrb[0].mxu0
      %v788 = vpop.f32.mrb[0].mxu0
      %v789 = vadd.f32 0.0, %v788
      %v790 = vpop.f32.mrb[0].mxu0
      %791 = vmatprep.mubr.bf16.mxu0 0
      %792 = vmatmul.mubr.bf16.gmra.mrb[0].mxu0 %v669
      %v793 = vpop.f32.mrb[0].mxu0
      %v794 = vadd.f32 0.0, %v793
      %v795 = vpop.f32.mrb[0].mxu0
      %v796 = vpop.f32.mrb[0].mxu0
      %v797 = vadd.f32 0.0, %v796
      %v798 = vpop.f32.mrb[0].mxu0
      %799 = vdwg.mxu0
      %v800 = vadd.f32 %v628, %v770
      %v801 = vadd.f32 %v631, %v773
      %v802 = vadd.f32 %v636, %v778
      %v803 = vadd.f32 %v639, %v781
      %v804 = vadd.f32 %v644, %v786
      %v805 = vadd.f32 %v647, %v789
      %v806 = vadd.f32 %v652, %v794
      %v807 = vadd.f32 %v655, %v797
      %s808 = sadd.s32 %s285, 1
      %s809 = smul.u32 %s808, 16
      %s810 = scalar_lea.vmem [#allocation2], %s809
      %v811 = vld [vmem:[%s810] sm:$0xff]
      %v812 = vld [vmem:[%s810 + $0x10] sm:$0xff]
      %v813 = vld [vmem:[%s810 + $0x20] sm:$0xff]
      %v814 = vld [vmem:[%s810 + $0x30] sm:$0xff]
      %v815 = vld [vmem:[%s810 + $0x40] sm:$0xff]
      %v816 = vld [vmem:[%s810 + $0x50] sm:$0xff]
      %v817 = vld [vmem:[%s810 + $0x60] sm:$0xff]
      %v818 = vld [vmem:[%s810 + $0x70] sm:$0xff]
      %v819 = vpack.c.bf16 %v812, %v811
      %v820 = vpack.c.bf16 %v814, %v813
      %v821 = vpack.c.bf16 %v816, %v815
      %v822 = vpack.c.bf16 %v818, %v817
      %s823 = scalar_lea.vmem %s1, 192
      %v824 = vld [vmem:[%s823] sm:$0xf]
      %v825 = vld [vmem:[%s823 + $0x4] sm:$0xf]
      %v826 = vld [vmem:[%s823 + $0x8] sm:$0xf]
      %v827 = vld [vmem:[%s823 + $0xc] sm:$0xf]
      %v828 = vld [vmem:[%s823 + $0x10] sm:$0xf]
      %v829 = vld [vmem:[%s823 + $0x14] sm:$0xf]
      %v830 = vld [vmem:[%s823 + $0x18] sm:$0xf]
      %v831 = vld [vmem:[%s823 + $0x1c] sm:$0xf]
      %v832 = vld [vmem:[%s823 + $0x20] sm:$0xf]
      %v833 = vld [vmem:[%s823 + $0x24] sm:$0xf]
      %v834 = vld [vmem:[%s823 + $0x28] sm:$0xf]
      %v835 = vld [vmem:[%s823 + $0x2c] sm:$0xf]
      %v836 = vld [vmem:[%s823 + $0x30] sm:$0xf]
      %v837 = vld [vmem:[%s823 + $0x34] sm:$0xf]
      %v838 = vld [vmem:[%s823 + $0x38] sm:$0xf]
      %v839 = vld [vmem:[%s823 + $0x3c] sm:$0xf]
      %v856 = vunpack.c.l.b16 %v824
      %v857 = vunpack.c.l.b16 %v825
      %v858 = vunpack.c.l.b16 %v826
      %v859 = vunpack.c.l.b16 %v827
      %v860 = vunpack.c.l.b16 %v828
      %v861 = vunpack.c.l.b16 %v829
      %v862 = vunpack.c.l.b16 %v830
      %v863 = vunpack.c.l.b16 %v831
      %v864 = vunpack.c.l.b16 %v832
      %v865 = vunpack.c.l.b16 %v833
      %v866 = vunpack.c.l.b16 %v834
      %v867 = vunpack.c.l.b16 %v835
      %v868 = vunpack.c.l.b16 %v836
      %v869 = vunpack.c.l.b16 %v837
      %v870 = vunpack.c.l.b16 %v838
      %v871 = vunpack.c.l.b16 %v839
      %v872 = vpack.c.b16 %v857, %v856
      %v873 = vpack.c.b16 %v859, %v858
      %v874 = vpack.c.b16 %v861, %v860
      %v875 = vpack.c.b16 %v863, %v862
      %v876 = vpack.c.b16 %v865, %v864
      %v877 = vpack.c.b16 %v867, %v866
      %v878 = vpack.c.b16 %v869, %v868
      %v879 = vpack.c.b16 %v871, %v870
      %888 = vmatprep.subr.bf16.mxu0 0
      %889 = vmatpush1.bf16.msra.mxu0 %v872
      %890 = vmatprep.subr.bf16.mxu0 0
      %891 = vmatpush1.bf16.msra.mxu0 %v873
      %892 = vmatprep.subr.bf16.mxu0 0
      %893 = vmatpush1.bf16.msra.mxu0 %v874
      %894 = vmatprep.subr.bf16.mxu0 0
      %895 = vmatpush1.bf16.msra.mxu0 %v875
      %896 = vmatprep.subr.bf16.mxu0 0
      %897 = vmatpush1.bf16.msra.mxu0 %v876
      %898 = vmatprep.subr.bf16.mxu0 0
      %899 = vmatpush1.bf16.msra.mxu0 %v877
      %900 = vmatprep.subr.bf16.mxu0 0
      %901 = vmatpush1.bf16.msra.mxu0 %v878
      %902 = vmatprep.subr.bf16.mxu0 0
      %903 = vmatpush1.bf16.msra.mxu0 %v879
      %904 = vmatprep.subr.bf16.mxu0 0
      %905 = vmatpush1.bf16.msra.mxu0 0
      %906 = vmatprep.subr.bf16.mxu0 0
      %907 = vmatpush1.bf16.msra.mxu0 0
      %908 = vmatprep.subr.bf16.mxu0 0
      %909 = vmatpush1.bf16.msra.mxu0 0
      %910 = vmatprep.subr.bf16.mxu0 0
      %911 = vmatpush1.bf16.msra.mxu0 0
      %912 = vmatprep.subr.bf16.mxu0 0
      %913 = vmatpush1.bf16.msra.mxu0 0
      %914 = vmatprep.subr.bf16.mxu0 0
      %915 = vmatpush1.bf16.msra.mxu0 0
      %916 = vmatprep.subr.bf16.mxu0 0
      %917 = vmatpush1.bf16.msra.mxu0 0
      %918 = vmatprep.subr.bf16.mxu0 0
      %919 = vmatpush1.bf16.msra.mxu0 0
      %920 = vmatprep.mubr.bf16.mxu0 0
      %921 = vmatmul.mubr.bf16.gmra.mrb[0].mxu0 %v819
      %v922 = vpop.f32.mrb[0].mxu0
      %v923 = vadd.f32 0.0, %v922
      %v924 = vpop.f32.mrb[0].mxu0
      %v925 = vpop.f32.mrb[0].mxu0
      %v926 = vadd.f32 0.0, %v925
      %v927 = vpop.f32.mrb[0].mxu0
      %928 = vmatprep.mubr.bf16.mxu0 0
      %929 = vmatmul.mubr.bf16.gmra.mrb[0].mxu0 %v820
      %v930 = vpop.f32.mrb[0].mxu0
      %v931 = vadd.f32 0.0, %v930
      %v932 = vpop.f32.mrb[0].mxu0
      %v933 = vpop.f32.mrb[0].mxu0
      %v934 = vadd.f32 0.0, %v933
      %v935 = vpop.f32.mrb[0].mxu0
      %936 = vmatprep.mubr.bf16.mxu0 0
      %937 = vmatmul.mubr.bf16.gmra.mrb[0].mxu0 %v821
      %v938 = vpop.f32.mrb[0].mxu0
      %v939 = vadd.f32 0.0, %v938
      %v940 = vpop.f32.mrb[0].mxu0
      %v941 = vpop.f32.mrb[0].mxu0
      %v942 = vadd.f32 0.0, %v941
      %v943 = vpop.f32.mrb[0].mxu0
      %944 = vmatprep.mubr.bf16.mxu0 0
      %945 = vmatmul.mubr.bf16.gmra.mrb[0].mxu0 %v822
      %v946 = vpop.f32.mrb[0].mxu0
      %v947 = vadd.f32 0.0, %v946
      %v948 = vpop.f32.mrb[0].mxu0
      %v949 = vpop.f32.mrb[0].mxu0
      %v950 = vadd.f32 0.0, %v949
      %v951 = vpop.f32.mrb[0].mxu0
      %952 = vdwg.mxu0
      %v953 = vadd.f32 %v800, %v923
      %v954 = vadd.f32 %v801, %v926
      %v955 = vadd.f32 %v802, %v931
      %v956 = vadd.f32 %v803, %v934
      %v957 = vadd.f32 %v804, %v939
      %v958 = vadd.f32 %v805, %v942
      %v959 = vadd.f32 %v806, %v947
      %v960 = vadd.f32 %v807, %v950
      %v961 = vld [vmem:[%s810 + $0x1] sm:$0xff]
      %v962 = vld [vmem:[%s810 + $0x11] sm:$0xff]
      %v963 = vld [vmem:[%s810 + $0x21] sm:$0xff]
      %v964 = vld [vmem:[%s810 + $0x31] sm:$0xff]
      %v965 = vld [vmem:[%s810 + $0x41] sm:$0xff]
      %v966 = vld [vmem:[%s810 + $0x51] sm:$0xff]
      %v967 = vld [vmem:[%s810 + $0x61] sm:$0xff]
      %v968 = vld [vmem:[%s810 + $0x71] sm:$0xff]
      %v969 = vpack.c.bf16 %v962, %v961
      %v970 = vpack.c.bf16 %v964, %v963
      %v971 = vpack.c.bf16 %v966, %v965
      %v972 = vpack.c.bf16 %v968, %v967
      %s973 = scalar_lea.vmem %s1, 256
      %v974 = vld [vmem:[%s973] sm:$0xf]
      %v975 = vld [vmem:[%s973 + $0x4] sm:$0xf]
      %v976 = vld [vmem:[%s973 + $0x8] sm:$0xf]
      %v977 = vld [vmem:[%s973 + $0xc] sm:$0xf]
      %v978 = vld [vmem:[%s973 + $0x10] sm:$0xf]
      %v979 = vld [vmem:[%s973 + $0x14] sm:$0xf]
      %v980 = vld [vmem:[%s973 + $0x18] sm:$0xf]
      %v981 = vld [vmem:[%s973 + $0x1c] sm:$0xf]
      %v982 = vld [vmem:[%s973 + $0x20] sm:$0xf]
      %v983 = vld [vmem:[%s973 + $0x24] sm:$0xf]
      %v984 = vld [vmem:[%s973 + $0x28] sm:$0xf]
      %v985 = vld [vmem:[%s973 + $0x2c] sm:$0xf]
      %v986 = vld [vmem:[%s973 + $0x30] sm:$0xf]
      %v987 = vld [vmem:[%s973 + $0x34] sm:$0xf]
      %v988 = vld [vmem:[%s973 + $0x38] sm:$0xf]
      %v989 = vld [vmem:[%s973 + $0x3c] sm:$0xf]
      %v1006 = vunpack.c.l.b16 %v974
      %v1007 = vunpack.c.l.b16 %v975
      %v1008 = vunpack.c.l.b16 %v976
      %v1009 = vunpack.c.l.b16 %v977
      %v1010 = vunpack.c.l.b16 %v978
      %v1011 = vunpack.c.l.b16 %v979
      %v1012 = vunpack.c.l.b16 %v980
      %v1013 = vunpack.c.l.b16 %v981
      %v1014 = vunpack.c.l.b16 %v982
      %v1015 = vunpack.c.l.b16 %v983
      %v1016 = vunpack.c.l.b16 %v984
      %v1017 = vunpack.c.l.b16 %v985
      %v1018 = vunpack.c.l.b16 %v986
      %v1019 = vunpack.c.l.b16 %v987
      %v1020 = vunpack.c.l.b16 %v988
      %v1021 = vunpack.c.l.b16 %v989
      %v1022 = vpack.c.b16 %v1007, %v1006
      %v1023 = vpack.c.b16 %v1009, %v1008
      %v1024 = vpack.c.b16 %v1011, %v1010
      %v1025 = vpack.c.b16 %v1013, %v1012
      %v1026 = vpack.c.b16 %v1015, %v1014
      %v1027 = vpack.c.b16 %v1017, %v1016
      %v1028 = vpack.c.b16 %v1019, %v1018
      %v1029 = vpack.c.b16 %v1021, %v1020
      %1038 = vmatprep.subr.bf16.mxu0 0
      %1039 = vmatpush1.bf16.msra.mxu0 %v1022
      %1040 = vmatprep.subr.bf16.mxu0 0
      %1041 = vmatpush1.bf16.msra.mxu0 %v1023
      %1042 = vmatprep.subr.bf16.mxu0 0
      %1043 = vmatpush1.bf16.msra.mxu0 %v1024
      %1044 = vmatprep.subr.bf16.mxu0 0
      %1045 = vmatpush1.bf16.msra.mxu0 %v1025
      %1046 = vmatprep.subr.bf16.mxu0 0
      %1047 = vmatpush1.bf16.msra.mxu0 %v1026
      %1048 = vmatprep.subr.bf16.mxu0 0
      %1049 = vmatpush1.bf16.msra.mxu0 %v1027
      %1050 = vmatprep.subr.bf16.mxu0 0
      %1051 = vmatpush1.bf16.msra.mxu0 %v1028
      %1052 = vmatprep.subr.bf16.mxu0 0
      %1053 = vmatpush1.bf16.msra.mxu0 %v1029
      %1054 = vmatprep.subr.bf16.mxu0 0
      %1055 = vmatpush1.bf16.msra.mxu0 0
      %1056 = vmatprep.subr.bf16.mxu0 0
      %1057 = vmatpush1.bf16.msra.mxu0 0
      %1058 = vmatprep.subr.bf16.mxu0 0
      %1059 = vmatpush1.bf16.msra.mxu0 0
      %1060 = vmatprep.subr.bf16.mxu0 0
      %1061 = vmatpush1.bf16.msra.mxu0 0
      %1062 = vmatprep.subr.bf16.mxu0 0
      %1063 = vmatpush1.bf16.msra.mxu0 0
      %1064 = vmatprep.subr.bf16.mxu0 0
      %1065 = vmatpush1.bf16.msra.mxu0 0
      %1066 = vmatprep.subr.bf16.mxu0 0
      %1067 = vmatpush1.bf16.msra.mxu0 0
      %1068 = vmatprep.subr.bf16.mxu0 0
      %1069 = vmatpush1.bf16.msra.mxu0 0
      %1070 = vmatprep.mubr.bf16.mxu0 0
      %1071 = vmatmul.mubr.bf16.gmra.mrb[0].mxu0 %v969
      %v1072 = vpop.f32.mrb[0].mxu0
      %v1073 = vadd.f32 0.0, %v1072
      %v1074 = vpop.f32.mrb[0].mxu0
      %v1075 = vpop.f32.mrb[0].mxu0
      %v1076 = vadd.f32 0.0, %v1075
      %v1077 = vpop.f32.mrb[0].mxu0
      %1078 = vmatprep.mubr.bf16.mxu0 0
      %1079 = vmatmul.mubr.bf16.gmra.mrb[0].mxu0 %v970
      %v1080 = vpop.f32.mrb[0].mxu0
      %v1081 = vadd.f32 0.0, %v1080
      %v1082 = vpop.f32.mrb[0].mxu0
      %v1083 = vpop.f32.mrb[0].mxu0
      %v1084 = vadd.f32 0.0, %v1083
      %v1085 = vpop.f32.mrb[0].mxu0
      %1086 = vmatprep.mubr.bf16.mxu0 0
      %1087 = vmatmul.mubr.bf16.gmra.mrb[0].mxu0 %v971
      %v1088 = vpop.f32.mrb[0].mxu0
      %v1089 = vadd.f32 0.0, %v1088
      %v1090 = vpop.f32.mrb[0].mxu0
      %v1091 = vpop.f32.mrb[0].mxu0
      %v1092 = vadd.f32 0.0, %v1091
      %v1093 = vpop.f32.mrb[0].mxu0
      %1094 = vmatprep.mubr.bf16.mxu0 0
      %1095 = vmatmul.mubr.bf16.gmra.mrb[0].mxu0 %v972
      %v1096 = vpop.f32.mrb[0].mxu0
      %v1097 = vadd.f32 0.0, %v1096
      %v1098 = vpop.f32.mrb[0].mxu0
      %v1099 = vpop.f32.mrb[0].mxu0
      %v1100 = vadd.f32 0.0, %v1099
      %v1101 = vpop.f32.mrb[0].mxu0
      %1102 = vdwg.mxu0
      %v1103 = vadd.f32 %v953, %v1073
      %v1104 = vadd.f32 %v954, %v1076
      %v1105 = vadd.f32 %v955, %v1081
      %v1106 = vadd.f32 %v956, %v1084
      %v1107 = vadd.f32 %v957, %v1089
      %v1108 = vadd.f32 %v958, %v1092
      %v1109 = vadd.f32 %v959, %v1097
      %v1110 = vadd.f32 %v960, %v1100
      %v1111 = vld [vmem:[%s810 + $0x2] sm:$0xff]
      %v1112 = vld [vmem:[%s810 + $0x12] sm:$0xff]
      %v1113 = vld [vmem:[%s810 + $0x22] sm:$0xff]
      %v1114 = vld [vmem:[%s810 + $0x32] sm:$0xff]
      %v1115 = vld [vmem:[%s810 + $0x42] sm:$0xff]
      %v1116 = vld [vmem:[%s810 + $0x52] sm:$0xff]
      %v1117 = vld [vmem:[%s810 + $0x62] sm:$0xff]
      %v1118 = vld [vmem:[%s810 + $0x72] sm:$0xff]
      %v1119 = vpack.c.bf16 %v1112, %v1111
      %v1120 = vpack.c.bf16 %v1114, %v1113
      %v1121 = vpack.c.bf16 %v1116, %v1115
      %v1122 = vpack.c.bf16 %v1118, %v1117
      %s1123 = scalar_lea.vmem %s1, 320
      %v1124 = vld [vmem:[%s1123] sm:$0xf]
      %v1125 = vld [vmem:[%s1123 + $0x4] sm:$0xf]
      %v1126 = vld [vmem:[%s1123 + $0x8] sm:$0xf]
      %v1127 = vld [vmem:[%s1123 + $0xc] sm:$0xf]
      %v1128 = vld [vmem:[%s1123 + $0x10] sm:$0xf]
      %v1129 = vld [vmem:[%s1123 + $0x14] sm:$0xf]
      %v1130 = vld [vmem:[%s1123 + $0x18] sm:$0xf]
      %v1131 = vld [vmem:[%s1123 + $0x1c] sm:$0xf]
      %v1132 = vld [vmem:[%s1123 + $0x20] sm:$0xf]
      %v1133 = vld [vmem:[%s1123 + $0x24] sm:$0xf]
      %v1134 = vld [vmem:[%s1123 + $0x28] sm:$0xf]
      %v1135 = vld [vmem:[%s1123 + $0x2c] sm:$0xf]
      %v1136 = vld [vmem:[%s1123 + $0x30] sm:$0xf]
      %v1137 = vld [vmem:[%s1123 + $0x34] sm:$0xf]
      %v1138 = vld [vmem:[%s1123 + $0x38] sm:$0xf]
      %v1139 = vld [vmem:[%s1123 + $0x3c] sm:$0xf]
      %v1156 = vunpack.c.l.b16 %v1124
      %v1157 = vunpack.c.l.b16 %v1125
      %v1158 = vunpack.c.l.b16 %v1126
      %v1159 = vunpack.c.l.b16 %v1127
      %v1160 = vunpack.c.l.b16 %v1128
      %v1161 = vunpack.c.l.b16 %v1129
      %v1162 = vunpack.c.l.b16 %v1130
      %v1163 = vunpack.c.l.b16 %v1131
      %v1164 = vunpack.c.l.b16 %v1132
      %v1165 = vunpack.c.l.b16 %v1133
      %v1166 = vunpack.c.l.b16 %v1134
      %v1167 = vunpack.c.l.b16 %v1135
      %v1168 = vunpack.c.l.b16 %v1136
      %v1169 = vunpack.c.l.b16 %v1137
      %v1170 = vunpack.c.l.b16 %v1138
      %v1171 = vunpack.c.l.b16 %v1139
      %v1172 = vpack.c.b16 %v1157, %v1156
      %v1173 = vpack.c.b16 %v1159, %v1158
      %v1174 = vpack.c.b16 %v1161, %v1160
      %v1175 = vpack.c.b16 %v1163, %v1162
      %v1176 = vpack.c.b16 %v1165, %v1164
      %v1177 = vpack.c.b16 %v1167, %v1166
      %v1178 = vpack.c.b16 %v1169, %v1168
      %v1179 = vpack.c.b16 %v1171, %v1170
      %1188 = vmatprep.subr.bf16.mxu0 0
      %1189 = vmatpush1.bf16.msra.mxu0 %v1172
      %1190 = vmatprep.subr.bf16.mxu0 0
      %1191 = vmatpush1.bf16.msra.mxu0 %v1173
      %1192 = vmatprep.subr.bf16.mxu0 0
      %1193 = vmatpush1.bf16.msra.mxu0 %v1174
      %1194 = vmatprep.subr.bf16.mxu0 0
      %1195 = vmatpush1.bf16.msra.mxu0 %v1175
      %1196 = vmatprep.subr.bf16.mxu0 0
      %1197 = vmatpush1.bf16.msra.mxu0 %v1176
      %1198 = vmatprep.subr.bf16.mxu0 0
      %1199 = vmatpush1.bf16.msra.mxu0 %v1177
      %1200 = vmatprep.subr.bf16.mxu0 0
      %1201 = vmatpush1.bf16.msra.mxu0 %v1178
      %1202 = vmatprep.subr.bf16.mxu0 0
      %1203 = vmatpush1.bf16.msra.mxu0 %v1179
      %1204 = vmatprep.subr.bf16.mxu0 0
      %1205 = vmatpush1.bf16.msra.mxu0 0
      %1206 = vmatprep.subr.bf16.mxu0 0
      %1207 = vmatpush1.bf16.msra.mxu0 0
      %1208 = vmatprep.subr.bf16.mxu0 0
      %1209 = vmatpush1.bf16.msra.mxu0 0
      %1210 = vmatprep.subr.bf16.mxu0 0
      %1211 = vmatpush1.bf16.msra.mxu0 0
      %1212 = vmatprep.subr.bf16.mxu0 0
      %1213 = vmatpush1.bf16.msra.mxu0 0
      %1214 = vmatprep.subr.bf16.mxu0 0
      %1215 = vmatpush1.bf16.msra.mxu0 0
      %1216 = vmatprep.subr.bf16.mxu0 0
      %1217 = vmatpush1.bf16.msra.mxu0 0
      %1218 = vmatprep.subr.bf16.mxu0 0
      %1219 = vmatpush1.bf16.msra.mxu0 0
      %1220 = vmatprep.mubr.bf16.mxu0 0
      %1221 = vmatmul.mubr.bf16.gmra.mrb[0].mxu0 %v1119
      %v1222 = vpop.f32.mrb[0].mxu0
      %v1223 = vadd.f32 0.0, %v1222
      %v1224 = vpop.f32.mrb[0].mxu0
      %v1225 = vpop.f32.mrb[0].mxu0
      %v1226 = vadd.f32 0.0, %v1225
      %v1227 = vpop.f32.mrb[0].mxu0
      %1228 = vmatprep.mubr.bf16.mxu0 0
      %1229 = vmatmul.mubr.bf16.gmra.mrb[0].mxu0 %v1120
      %v1230 = vpop.f32.mrb[0].mxu0
      %v1231 = vadd.f32 0.0, %v1230
      %v1232 = vpop.f32.mrb[0].mxu0
      %v1233 = vpop.f32.mrb[0].mxu0
      %v1234 = vadd.f32 0.0, %v1233
      %v1235 = vpop.f32.mrb[0].mxu0
      %1236 = vmatprep.mubr.bf16.mxu0 0
      %1237 = vmatmul.mubr.bf16.gmra.mrb[0].mxu0 %v1121
      %v1238 = vpop.f32.mrb[0].mxu0
      %v1239 = vadd.f32 0.0, %v1238
      %v1240 = vpop.f32.mrb[0].mxu0
      %v1241 = vpop.f32.mrb[0].mxu0
      %v1242 = vadd.f32 0.0, %v1241
      %v1243 = vpop.f32.mrb[0].mxu0
      %1244 = vmatprep.mubr.bf16.mxu0 0
      %1245 = vmatmul.mubr.bf16.gmra.mrb[0].mxu0 %v1122
      %v1246 = vpop.f32.mrb[0].mxu0
      %v1247 = vadd.f32 0.0, %v1246
      %v1248 = vpop.f32.mrb[0].mxu0
      %v1249 = vpop.f32.mrb[0].mxu0
      %v1250 = vadd.f32 0.0, %v1249
      %v1251 = vpop.f32.mrb[0].mxu0
      %1252 = vdwg.mxu0
      %v1253 = vadd.f32 %v1103, %v1223
      %v1254 = vadd.f32 %v1104, %v1226
      %v1255 = vadd.f32 %v1105, %v1231
      %v1256 = vadd.f32 %v1106, %v1234
      %v1257 = vadd.f32 %v1107, %v1239
      %v1258 = vadd.f32 %v1108, %v1242
      %v1259 = vadd.f32 %v1109, %v1247
      %v1260 = vadd.f32 %v1110, %v1250
      %s1261 = sadd.s32 %s285, 2
      %s1262 = smul.u32 %s1261, 16
      %s1263 = scalar_lea.vmem [#allocation2], %s1262
      %v1264 = vld [vmem:[%s1263] sm:$0xff]
      %v1265 = vld [vmem:[%s1263 + $0x10] sm:$0xff]
      %v1266 = vld [vmem:[%s1263 + $0x20] sm:$0xff]
      %v1267 = vld [vmem:[%s1263 + $0x30] sm:$0xff]
      %v1268 = vld [vmem:[%s1263 + $0x40] sm:$0xff]
      %v1269 = vld [vmem:[%s1263 + $0x50] sm:$0xff]
      %v1270 = vld [vmem:[%s1263 + $0x60] sm:$0xff]
      %v1271 = vld [vmem:[%s1263 + $0x70] sm:$0xff]
      %v1272 = vpack.c.bf16 %v1265, %v1264
      %v1273 = vpack.c.bf16 %v1267, %v1266
      %v1274 = vpack.c.bf16 %v1269, %v1268
      %v1275 = vpack.c.bf16 %v1271, %v1270
      %s1276 = scalar_lea.vmem %s1, 384
      %v1277 = vld [vmem:[%s1276] sm:$0xf]
      %v1278 = vld [vmem:[%s1276 + $0x4] sm:$0xf]
      %v1279 = vld [vmem:[%s1276 + $0x8] sm:$0xf]
      %v1280 = vld [vmem:[%s1276 + $0xc] sm:$0xf]
      %v1281 = vld [vmem:[%s1276 + $0x10] sm:$0xf]
      %v1282 = vld [vmem:[%s1276 + $0x14] sm:$0xf]
      %v1283 = vld [vmem:[%s1276 + $0x18] sm:$0xf]
      %v1284 = vld [vmem:[%s1276 + $0x1c] sm:$0xf]
      %v1285 = vld [vmem:[%s1276 + $0x20] sm:$0xf]
      %v1286 = vld [vmem:[%s1276 + $0x24] sm:$0xf]
      %v1287 = vld [vmem:[%s1276 + $0x28] sm:$0xf]
      %v1288 = vld [vmem:[%s1276 + $0x2c] sm:$0xf]
      %v1289 = vld [vmem:[%s1276 + $0x30] sm:$0xf]
      %v1290 = vld [vmem:[%s1276 + $0x34] sm:$0xf]
      %v1291 = vld [vmem:[%s1276 + $0x38] sm:$0xf]
      %v1292 = vld [vmem:[%s1276 + $0x3c] sm:$0xf]
      %v1309 = vunpack.c.l.b16 %v1277
      %v1310 = vunpack.c.l.b16 %v1278
      %v1311 = vunpack.c.l.b16 %v1279
      %v1312 = vunpack.c.l.b16 %v1280
      %v1313 = vunpack.c.l.b16 %v1281
      %v1314 = vunpack.c.l.b16 %v1282
      %v1315 = vunpack.c.l.b16 %v1283
      %v1316 = vunpack.c.l.b16 %v1284
      %v1317 = vunpack.c.l.b16 %v1285
      %v1318 = vunpack.c.l.b16 %v1286
      %v1319 = vunpack.c.l.b16 %v1287
      %v1320 = vunpack.c.l.b16 %v1288
      %v1321 = vunpack.c.l.b16 %v1289
      %v1322 = vunpack.c.l.b16 %v1290
      %v1323 = vunpack.c.l.b16 %v1291
      %v1324 = vunpack.c.l.b16 %v1292
      %v1325 = vpack.c.b16 %v1310, %v1309
      %v1326 = vpack.c.b16 %v1312, %v1311
      %v1327 = vpack.c.b16 %v1314, %v1313
      %v1328 = vpack.c.b16 %v1316, %v1315
      %v1329 = vpack.c.b16 %v1318, %v1317
      %v1330 = vpack.c.b16 %v1320, %v1319
      %v1331 = vpack.c.b16 %v1322, %v1321
      %v1332 = vpack.c.b16 %v1324, %v1323
      %1341 = vmatprep.subr.bf16.mxu0 0
      %1342 = vmatpush1.bf16.msra.mxu0 %v1325
      %1343 = vmatprep.subr.bf16.mxu0 0
      %1344 = vmatpush1.bf16.msra.mxu0 %v1326
      %1345 = vmatprep.subr.bf16.mxu0 0
      %1346 = vmatpush1.bf16.msra.mxu0 %v1327
      %1347 = vmatprep.subr.bf16.mxu0 0
      %1348 = vmatpush1.bf16.msra.mxu0 %v1328
      %1349 = vmatprep.subr.bf16.mxu0 0
      %1350 = vmatpush1.bf16.msra.mxu0 %v1329
      %1351 = vmatprep.subr.bf16.mxu0 0
      %1352 = vmatpush1.bf16.msra.mxu0 %v1330
      %1353 = vmatprep.subr.bf16.mxu0 0
      %1354 = vmatpush1.bf16.msra.mxu0 %v1331
      %1355 = vmatprep.subr.bf16.mxu0 0
      %1356 = vmatpush1.bf16.msra.mxu0 %v1332
      %1357 = vmatprep.subr.bf16.mxu0 0
      %1358 = vmatpush1.bf16.msra.mxu0 0
      %1359 = vmatprep.subr.bf16.mxu0 0
      %1360 = vmatpush1.bf16.msra.mxu0 0
      %1361 = vmatprep.subr.bf16.mxu0 0
      %1362 = vmatpush1.bf16.msra.mxu0 0
      %1363 = vmatprep.subr.bf16.mxu0 0
      %1364 = vmatpush1.bf16.msra.mxu0 0
      %1365 = vmatprep.subr.bf16.mxu0 0
      %1366 = vmatpush1.bf16.msra.mxu0 0
      %1367 = vmatprep.subr.bf16.mxu0 0
      %1368 = vmatpush1.bf16.msra.mxu0 0
      %1369 = vmatprep.subr.bf16.mxu0 0
      %1370 = vmatpush1.bf16.msra.mxu0 0
      %1371 = vmatprep.subr.bf16.mxu0 0
      %1372 = vmatpush1.bf16.msra.mxu0 0
      %1373 = vmatprep.mubr.bf16.mxu0 0
      %1374 = vmatmul.mubr.bf16.gmra.mrb[0].mxu0 %v1272
      %v1375 = vpop.f32.mrb[0].mxu0
      %v1376 = vadd.f32 0.0, %v1375
      %v1377 = vpop.f32.mrb[0].mxu0
      %v1378 = vpop.f32.mrb[0].mxu0
      %v1379 = vadd.f32 0.0, %v1378
      %v1380 = vpop.f32.mrb[0].mxu0
      %1381 = vmatprep.mubr.bf16.mxu0 0
      %1382 = vmatmul.mubr.bf16.gmra.mrb[0].mxu0 %v1273
      %v1383 = vpop.f32.mrb[0].mxu0
      %v1384 = vadd.f32 0.0, %v1383
      %v1385 = vpop.f32.mrb[0].mxu0
      %v1386 = vpop.f32.mrb[0].mxu0
      %v1387 = vadd.f32 0.0, %v1386
      %v1388 = vpop.f32.mrb[0].mxu0
      %1389 = vmatprep.mubr.bf16.mxu0 0
      %1390 = vmatmul.mubr.bf16.gmra.mrb[0].mxu0 %v1274
      %v1391 = vpop.f32.mrb[0].mxu0
      %v1392 = vadd.f32 0.0, %v1391
      %v1393 = vpop.f32.mrb[0].mxu0
      %v1394 = vpop.f32.mrb[0].mxu0
      %v1395 = vadd.f32 0.0, %v1394
      %v1396 = vpop.f32.mrb[0].mxu0
      %1397 = vmatprep.mubr.bf16.mxu0 0
      %1398 = vmatmul.mubr.bf16.gmra.mrb[0].mxu0 %v1275
      %v1399 = vpop.f32.mrb[0].mxu0
      %v1400 = vadd.f32 0.0, %v1399
      %v1401 = vpop.f32.mrb[0].mxu0
      %v1402 = vpop.f32.mrb[0].mxu0
      %v1403 = vadd.f32 0.0, %v1402
      %v1404 = vpop.f32.mrb[0].mxu0
      %1405 = vdwg.mxu0
      %v1406 = vadd.f32 %v1253, %v1376
      %v1407 = vadd.f32 %v1254, %v1379
      %v1408 = vadd.f32 %v1255, %v1384
      %v1409 = vadd.f32 %v1256, %v1387
      %v1410 = vadd.f32 %v1257, %v1392
      %v1411 = vadd.f32 %v1258, %v1395
      %v1412 = vadd.f32 %v1259, %v1400
      %v1413 = vadd.f32 %v1260, %v1403
      %v1414 = vld [vmem:[%s1263 + $0x1] sm:$0xff]
      %v1415 = vld [vmem:[%s1263 + $0x11] sm:$0xff]
      %v1416 = vld [vmem:[%s1263 + $0x21] sm:$0xff]
      %v1417 = vld [vmem:[%s1263 + $0x31] sm:$0xff]
      %v1418 = vld [vmem:[%s1263 + $0x41] sm:$0xff]
      %v1419 = vld [vmem:[%s1263 + $0x51] sm:$0xff]
      %v1420 = vld [vmem:[%s1263 + $0x61] sm:$0xff]
      %v1421 = vld [vmem:[%s1263 + $0x71] sm:$0xff]
      %v1422 = vpack.c.bf16 %v1415, %v1414
      %v1423 = vpack.c.bf16 %v1417, %v1416
      %v1424 = vpack.c.bf16 %v1419, %v1418
      %v1425 = vpack.c.bf16 %v1421, %v1420
      %s1426 = scalar_lea.vmem %s1, 448
      %v1427 = vld [vmem:[%s1426] sm:$0xf]
      %v1428 = vld [vmem:[%s1426 + $0x4] sm:$0xf]
      %v1429 = vld [vmem:[%s1426 + $0x8] sm:$0xf]
      %v1430 = vld [vmem:[%s1426 + $0xc] sm:$0xf]
      %v1431 = vld [vmem:[%s1426 + $0x10] sm:$0xf]
      %v1432 = vld [vmem:[%s1426 + $0x14] sm:$0xf]
      %v1433 = vld [vmem:[%s1426 + $0x18] sm:$0xf]
      %v1434 = vld [vmem:[%s1426 + $0x1c] sm:$0xf]
      %v1435 = vld [vmem:[%s1426 + $0x20] sm:$0xf]
      %v1436 = vld [vmem:[%s1426 + $0x24] sm:$0xf]
      %v1437 = vld [vmem:[%s1426 + $0x28] sm:$0xf]
      %v1438 = vld [vmem:[%s1426 + $0x2c] sm:$0xf]
      %v1439 = vld [vmem:[%s1426 + $0x30] sm:$0xf]
      %v1440 = vld [vmem:[%s1426 + $0x34] sm:$0xf]
      %v1441 = vld [vmem:[%s1426 + $0x38] sm:$0xf]
      %v1442 = vld [vmem:[%s1426 + $0x3c] sm:$0xf]
      %v1459 = vunpack.c.l.b16 %v1427
      %v1460 = vunpack.c.l.b16 %v1428
      %v1461 = vunpack.c.l.b16 %v1429
      %v1462 = vunpack.c.l.b16 %v1430
      %v1463 = vunpack.c.l.b16 %v1431
      %v1464 = vunpack.c.l.b16 %v1432
      %v1465 = vunpack.c.l.b16 %v1433
      %v1466 = vunpack.c.l.b16 %v1434
      %v1467 = vunpack.c.l.b16 %v1435
      %v1468 = vunpack.c.l.b16 %v1436
      %v1469 = vunpack.c.l.b16 %v1437
      %v1470 = vunpack.c.l.b16 %v1438
      %v1471 = vunpack.c.l.b16 %v1439
      %v1472 = vunpack.c.l.b16 %v1440
      %v1473 = vunpack.c.l.b16 %v1441
      %v1474 = vunpack.c.l.b16 %v1442
      %v1475 = vpack.c.b16 %v1460, %v1459
      %v1476 = vpack.c.b16 %v1462, %v1461
      %v1477 = vpack.c.b16 %v1464, %v1463
      %v1478 = vpack.c.b16 %v1466, %v1465
      %v1479 = vpack.c.b16 %v1468, %v1467
      %v1480 = vpack.c.b16 %v1470, %v1469
      %v1481 = vpack.c.b16 %v1472, %v1471
      %v1482 = vpack.c.b16 %v1474, %v1473
      %1491 = vmatprep.subr.bf16.mxu0 0
      %1492 = vmatpush1.bf16.msra.mxu0 %v1475
      %1493 = vmatprep.subr.bf16.mxu0 0
      %1494 = vmatpush1.bf16.msra.mxu0 %v1476
      %1495 = vmatprep.subr.bf16.mxu0 0
      %1496 = vmatpush1.bf16.msra.mxu0 %v1477
      %1497 = vmatprep.subr.bf16.mxu0 0
      %1498 = vmatpush1.bf16.msra.mxu0 %v1478
      %1499 = vmatprep.subr.bf16.mxu0 0
      %1500 = vmatpush1.bf16.msra.mxu0 %v1479
      %1501 = vmatprep.subr.bf16.mxu0 0
      %1502 = vmatpush1.bf16.msra.mxu0 %v1480
      %1503 = vmatprep.subr.bf16.mxu0 0
      %1504 = vmatpush1.bf16.msra.mxu0 %v1481
      %1505 = vmatprep.subr.bf16.mxu0 0
      %1506 = vmatpush1.bf16.msra.mxu0 %v1482
      %1507 = vmatprep.subr.bf16.mxu0 0
      %1508 = vmatpush1.bf16.msra.mxu0 0
      %1509 = vmatprep.subr.bf16.mxu0 0
      %1510 = vmatpush1.bf16.msra.mxu0 0
      %1511 = vmatprep.subr.bf16.mxu0 0
      %1512 = vmatpush1.bf16.msra.mxu0 0
      %1513 = vmatprep.subr.bf16.mxu0 0
      %1514 = vmatpush1.bf16.msra.mxu0 0
      %1515 = vmatprep.subr.bf16.mxu0 0
      %1516 = vmatpush1.bf16.msra.mxu0 0
      %1517 = vmatprep.subr.bf16.mxu0 0
      %1518 = vmatpush1.bf16.msra.mxu0 0
      %1519 = vmatprep.subr.bf16.mxu0 0
      %1520 = vmatpush1.bf16.msra.mxu0 0
      %1521 = vmatprep.subr.bf16.mxu0 0
      %1522 = vmatpush1.bf16.msra.mxu0 0
      %1523 = vmatprep.mubr.bf16.mxu0 0
      %1524 = vmatmul.mubr.bf16.gmra.mrb[0].mxu0 %v1422
      %v1525 = vpop.f32.mrb[0].mxu0
      %v1526 = vadd.f32 0.0, %v1525
      %v1527 = vpop.f32.mrb[0].mxu0
      %v1528 = vpop.f32.mrb[0].mxu0
      %v1529 = vadd.f32 0.0, %v1528
      %v1530 = vpop.f32.mrb[0].mxu0
      %1531 = vmatprep.mubr.bf16.mxu0 0
      %1532 = vmatmul.mubr.bf16.gmra.mrb[0].mxu0 %v1423
      %v1533 = vpop.f32.mrb[0].mxu0
      %v1534 = vadd.f32 0.0, %v1533
      %v1535 = vpop.f32.mrb[0].mxu0
      %v1536 = vpop.f32.mrb[0].mxu0
      %v1537 = vadd.f32 0.0, %v1536
      %v1538 = vpop.f32.mrb[0].mxu0
      %1539 = vmatprep.mubr.bf16.mxu0 0
      %1540 = vmatmul.mubr.bf16.gmra.mrb[0].mxu0 %v1424
      %v1541 = vpop.f32.mrb[0].mxu0
      %v1542 = vadd.f32 0.0, %v1541
      %v1543 = vpop.f32.mrb[0].mxu0
      %v1544 = vpop.f32.mrb[0].mxu0
      %v1545 = vadd.f32 0.0, %v1544
      %v1546 = vpop.f32.mrb[0].mxu0
      %1547 = vmatprep.mubr.bf16.mxu0 0
      %1548 = vmatmul.mubr.bf16.gmra.mrb[0].mxu0 %v1425
      %v1549 = vpop.f32.mrb[0].mxu0
      %v1550 = vadd.f32 0.0, %v1549
      %v1551 = vpop.f32.mrb[0].mxu0
      %v1552 = vpop.f32.mrb[0].mxu0
      %v1553 = vadd.f32 0.0, %v1552
      %v1554 = vpop.f32.mrb[0].mxu0
      %1555 = vdwg.mxu0
      %v1556 = vadd.f32 %v1406, %v1526
      %v1557 = vadd.f32 %v1407, %v1529
      %v1558 = vadd.f32 %v1408, %v1534
      %v1559 = vadd.f32 %v1409, %v1537
      %v1560 = vadd.f32 %v1410, %v1542
      %v1561 = vadd.f32 %v1411, %v1545
      %v1562 = vadd.f32 %v1412, %v1550
      %v1563 = vadd.f32 %v1413, %v1553
      %v1564 = vld [vmem:[%s1263 + $0x2] sm:$0xff]
      %v1565 = vld [vmem:[%s1263 + $0x12] sm:$0xff]
      %v1566 = vld [vmem:[%s1263 + $0x22] sm:$0xff]
      %v1567 = vld [vmem:[%s1263 + $0x32] sm:$0xff]
      %v1568 = vld [vmem:[%s1263 + $0x42] sm:$0xff]
      %v1569 = vld [vmem:[%s1263 + $0x52] sm:$0xff]
      %v1570 = vld [vmem:[%s1263 + $0x62] sm:$0xff]
      %v1571 = vld [vmem:[%s1263 + $0x72] sm:$0xff]
      %v1572 = vpack.c.bf16 %v1565, %v1564
      %v1573 = vpack.c.bf16 %v1567, %v1566
      %v1574 = vpack.c.bf16 %v1569, %v1568
      %v1575 = vpack.c.bf16 %v1571, %v1570
      %s1576 = scalar_lea.vmem %s1, 512
      %v1577 = vld [vmem:[%s1576] sm:$0xf]
      %v1578 = vld [vmem:[%s1576 + $0x4] sm:$0xf]
      %v1579 = vld [vmem:[%s1576 + $0x8] sm:$0xf]
      %v1580 = vld [vmem:[%s1576 + $0xc] sm:$0xf]
      %v1581 = vld [vmem:[%s1576 + $0x10] sm:$0xf]
      %v1582 = vld [vmem:[%s1576 + $0x14] sm:$0xf]
      %v1583 = vld [vmem:[%s1576 + $0x18] sm:$0xf]
      %v1584 = vld [vmem:[%s1576 + $0x1c] sm:$0xf]
      %v1585 = vld [vmem:[%s1576 + $0x20] sm:$0xf]
      %v1586 = vld [vmem:[%s1576 + $0x24] sm:$0xf]
      %v1587 = vld [vmem:[%s1576 + $0x28] sm:$0xf]
      %v1588 = vld [vmem:[%s1576 + $0x2c] sm:$0xf]
      %v1589 = vld [vmem:[%s1576 + $0x30] sm:$0xf]
      %v1590 = vld [vmem:[%s1576 + $0x34] sm:$0xf]
      %v1591 = vld [vmem:[%s1576 + $0x38] sm:$0xf]
      %v1592 = vld [vmem:[%s1576 + $0x3c] sm:$0xf]
      %v1609 = vunpack.c.l.b16 %v1577
      %v1610 = vunpack.c.l.b16 %v1578
      %v1611 = vunpack.c.l.b16 %v1579
      %v1612 = vunpack.c.l.b16 %v1580
      %v1613 = vunpack.c.l.b16 %v1581
      %v1614 = vunpack.c.l.b16 %v1582
      %v1615 = vunpack.c.l.b16 %v1583
      %v1616 = vunpack.c.l.b16 %v1584
      %v1617 = vunpack.c.l.b16 %v1585
      %v1618 = vunpack.c.l.b16 %v1586
      %v1619 = vunpack.c.l.b16 %v1587
      %v1620 = vunpack.c.l.b16 %v1588
      %v1621 = vunpack.c.l.b16 %v1589
      %v1622 = vunpack.c.l.b16 %v1590
      %v1623 = vunpack.c.l.b16 %v1591
      %v1624 = vunpack.c.l.b16 %v1592
      %v1625 = vpack.c.b16 %v1610, %v1609
      %v1626 = vpack.c.b16 %v1612, %v1611
      %v1627 = vpack.c.b16 %v1614, %v1613
      %v1628 = vpack.c.b16 %v1616, %v1615
      %v1629 = vpack.c.b16 %v1618, %v1617
      %v1630 = vpack.c.b16 %v1620, %v1619
      %v1631 = vpack.c.b16 %v1622, %v1621
      %v1632 = vpack.c.b16 %v1624, %v1623
      %1641 = vmatprep.subr.bf16.mxu0 0
      %1642 = vmatpush1.bf16.msra.mxu0 %v1625
      %1643 = vmatprep.subr.bf16.mxu0 0
      %1644 = vmatpush1.bf16.msra.mxu0 %v1626
      %1645 = vmatprep.subr.bf16.mxu0 0
      %1646 = vmatpush1.bf16.msra.mxu0 %v1627
      %1647 = vmatprep.subr.bf16.mxu0 0
      %1648 = vmatpush1.bf16.msra.mxu0 %v1628
      %1649 = vmatprep.subr.bf16.mxu0 0
      %1650 = vmatpush1.bf16.msra.mxu0 %v1629
      %1651 = vmatprep.subr.bf16.mxu0 0
      %1652 = vmatpush1.bf16.msra.mxu0 %v1630
      %1653 = vmatprep.subr.bf16.mxu0 0
      %1654 = vmatpush1.bf16.msra.mxu0 %v1631
      %1655 = vmatprep.subr.bf16.mxu0 0
      %1656 = vmatpush1.bf16.msra.mxu0 %v1632
      %1657 = vmatprep.subr.bf16.mxu0 0
      %1658 = vmatpush1.bf16.msra.mxu0 0
      %1659 = vmatprep.subr.bf16.mxu0 0
      %1660 = vmatpush1.bf16.msra.mxu0 0
      %1661 = vmatprep.subr.bf16.mxu0 0
      %1662 = vmatpush1.bf16.msra.mxu0 0
      %1663 = vmatprep.subr.bf16.mxu0 0
      %1664 = vmatpush1.bf16.msra.mxu0 0
      %1665 = vmatprep.subr.bf16.mxu0 0
      %1666 = vmatpush1.bf16.msra.mxu0 0
      %1667 = vmatprep.subr.bf16.mxu0 0
      %1668 = vmatpush1.bf16.msra.mxu0 0
      %1669 = vmatprep.subr.bf16.mxu0 0
      %1670 = vmatpush1.bf16.msra.mxu0 0
      %1671 = vmatprep.subr.bf16.mxu0 0
      %1672 = vmatpush1.bf16.msra.mxu0 0
      %1673 = vmatprep.mubr.bf16.mxu0 0
      %1674 = vmatmul.mubr.bf16.gmra.mrb[0].mxu0 %v1572
      %v1675 = vpop.f32.mrb[0].mxu0
      %v1676 = vadd.f32 0.0, %v1675
      %v1677 = vpop.f32.mrb[0].mxu0
      %v1678 = vpop.f32.mrb[0].mxu0
      %v1679 = vadd.f32 0.0, %v1678
      %v1680 = vpop.f32.mrb[0].mxu0
      %1681 = vmatprep.mubr.bf16.mxu0 0
      %1682 = vmatmul.mubr.bf16.gmra.mrb[0].mxu0 %v1573
      %v1683 = vpop.f32.mrb[0].mxu0
      %v1684 = vadd.f32 0.0, %v1683
      %v1685 = vpop.f32.mrb[0].mxu0
      %v1686 = vpop.f32.mrb[0].mxu0
      %v1687 = vadd.f32 0.0, %v1686
      %v1688 = vpop.f32.mrb[0].mxu0
      %1689 = vmatprep.mubr.bf16.mxu0 0
      %1690 = vmatmul.mubr.bf16.gmra.mrb[0].mxu0 %v1574
      %v1691 = vpop.f32.mrb[0].mxu0
      %v1692 = vadd.f32 0.0, %v1691
      %v1693 = vpop.f32.mrb[0].mxu0
      %v1694 = vpop.f32.mrb[0].mxu0
      %v1695 = vadd.f32 0.0, %v1694
      %v1696 = vpop.f32.mrb[0].mxu0
      %1697 = vmatprep.mubr.bf16.mxu0 0
      %1698 = vmatmul.mubr.bf16.gmra.mrb[0].mxu0 %v1575
      %v1699 = vpop.f32.mrb[0].mxu0
      %v1700 = vadd.f32 0.0, %v1699
      %v1701 = vpop.f32.mrb[0].mxu0
      %v1702 = vpop.f32.mrb[0].mxu0
      %v1703 = vadd.f32 0.0, %v1702
      %v1704 = vpop.f32.mrb[0].mxu0
      %1705 = vdwg.mxu0
      %v1706 = vadd.f32 %v1556, %v1676
      %v1707 = vadd.f32 %v1557, %v1679
      %v1708 = vadd.f32 %v1558, %v1684
      %v1709 = vadd.f32 %v1559, %v1687
      %v1710 = vadd.f32 %v1560, %v1692
      %v1711 = vadd.f32 %v1561, %v1695
      %v1712 = vadd.f32 %v1562, %v1700
      %v1713 = vadd.f32 %v1563, %v1703
      %v1714 = vld [vmem:[%s272] sm:$0xf]
      %v1715 = vld [vmem:[%s272 + $0x4] sm:$0xf]
      %v1716 = vld [vmem:[%s272 + $0x8] sm:$0xf]
      %v1717 = vld [vmem:[%s272 + $0xc] sm:$0xf]
      %v1718 = vld [vmem:[%s272 + $0x10] sm:$0xf]
      %v1719 = vld [vmem:[%s272 + $0x14] sm:$0xf]
      %v1720 = vld [vmem:[%s272 + $0x18] sm:$0xf]
      %v1721 = vld [vmem:[%s272 + $0x1c] sm:$0xf]
      %v1722 = vunpack.c.l.bf16 %v1714
      %v1723 = vunpack.c.l.bf16 %v1715
      %v1724 = vunpack.c.l.bf16 %v1716
      %v1725 = vunpack.c.l.bf16 %v1717
      %v1726 = vunpack.c.l.bf16 %v1718
      %v1727 = vunpack.c.l.bf16 %v1719
      %v1728 = vunpack.c.l.bf16 %v1720
      %v1729 = vunpack.c.l.bf16 %v1721
      %v1730 = vadd.f32 %v1706, %v1722
      %v1731 = vadd.f32 %v1707, %v1723
      %v1732 = vadd.f32 %v1708, %v1724
      %v1733 = vadd.f32 %v1709, %v1725
      %v1734 = vadd.f32 %v1710, %v1726
      %v1735 = vadd.f32 %v1711, %v1727
      %v1736 = vadd.f32 %v1712, %v1728
      %v1737 = vadd.f32 %v1713, %v1729
      %1738 = vst [vmem:[%s282] sm:$0xff] %v1730
      %1739 = vst [vmem:[%s282 + $0x8] sm:$0xff] %v1731
      %1740 = vst [vmem:[%s282 + $0x10] sm:$0xff] %v1732
      %1741 = vst [vmem:[%s282 + $0x18] sm:$0xff] %v1733
      %1742 = vst [vmem:[%s282 + $0x20] sm:$0xff] %v1734
      %1743 = vst [vmem:[%s282 + $0x28] sm:$0xff] %v1735
      %1744 = vst [vmem:[%s282 + $0x30] sm:$0xff] %v1736
      %1745 = vst [vmem:[%s282 + $0x38] sm:$0xff] %v1737
      %s1746 = smul.u32 8, %s21
      %p1747 = scmp.lt.s32.totalorder %s20, 1
      %s1748 = scalar_select %p1747, %s20, 1
      %p1749 = scmp.lt.s32.totalorder %s1746, 7
      %s1750 = scalar_select %p1749, %s1746, 7
      %s1751 = smul.addr %s1748, 8
      %s1752 = sadd.s32 %s1750, %s1751
      %s1753 = smul.addr %s1752, 8
      %s1754 = scalar_lea.vmem %s5, %s1753
      // Predicated region
      $region45: #{_lambda_.9} parent=39 // pred_check
        %p1755 = pneg %p165
      $region46: #{_lambda_.9} parent=39 // pred_check_branch
        %1757 = sbr.rel (%p1755) target = $region48
      $region47: #{_lambda_.9} parent=39 // pred_region
        %s1758 = smul.u32 8, %s21
      $region48: #{_lambda_.9} parent=39 // pred_fallthru
        _
    $region40: #{_lambda_.9} parent=5 // pred_fallthru
      _
    %p1759 = scmp.le.s32.totalorder 2, %s11
    // Predicated region
    $region49: #{_lambda_.9} parent=5 // pred_check
      %p1760 = pneg %p1759
    $region50: #{_lambda_.9} parent=5 // pred_check_branch
      %1762 = sbr.rel (%p1760) target = $region52
    $region51: #{_lambda_.9} parent=5 // pred_region
      %s1763 = ssub.s32 %s11, 2
      // Predicated region
      $region53: #{_lambda_.9} parent=51 // pred_check
        %p1764 = pneg %p171
      $region54: #{_lambda_.9} parent=51 // pred_check_branch
        %1766 = sbr.rel (%p1764) target = $region56
      $region55: #{_lambda_.9} parent=51 // pred_region
        %s1767 = smul.u32 8, %s23
        %p1768 = scmp.lt.s32.totalorder %s22, 1
        %s1769 = scalar_select %p1768, %s22, 1
        %p1770 = scmp.lt.s32.totalorder %s1767, 7
        %s1771 = scalar_select %p1770, %s1767, 7
        %s1772 = smul.addr %s1769, 8
        %s1773 = sadd.s32 %s1771, %s1772
        %s1774 = smul.addr %s1773, 8
        %s1775 = scalar_lea.vmem %s5, %s1774
      $region56: #{_lambda_.9} parent=51 // pred_fallthru
        _
    $region52: #{_lambda_.9} parent=5 // pred_fallthru
      _
  $region6: #{_lambda_.9} parent=0 // loop_footer
    %s15 = sadd.s32 1, %s11
  $region7: #{_lambda_.9} parent=0 // loop_footer_branch
    %10 = sbr.rel target = $region3
  $region8: #{_lambda_.9} parent=0 // loop_exit
    _

// kernel: _lambda_.6
$region0: #{_lambda_.6}
  #allocation0 [shape = 'u32[]', space=smem, size = 0x4, offset = 0x4, fixed_abs, tag = 'smem constant byte address 0x4 - core index']
  #allocation1 [shape = 'u32[144,128]{1,0:T(1,128)}', space=vmem, size = 0x12000, scoped, tag = 'internal scratch']
  %s0 = inlined_call_operand.vmem [shape: bf16[2,9,9,128], index: 0, kind: input, shape index: {}]
  %s1 = inlined_call_operand.vmem [shape: bf16[2,9,9,128], index: 1, kind: input, shape index: {}]
  %s2 = inlined_call_operand.vmem [shape: bf16[2,9,9,128], index: 2, kind: input, shape index: {}]
  %s3 = inlined_call_operand.vmem [shape: bf16[2,9,9,128], index: 3, kind: input, shape index: {}]
  %s4 = inlined_call_operand.vmem [shape: bf16[9,128,128], index: 4, kind: input, shape index: {}]
  %s5 = inlined_call_operand.vmem [shape: f32[1,128], index: 5, kind: input, shape index: {}]
  %s6 = inlined_call_operand.vmem [shape: f32[1,128], index: 6, kind: input, shape index: {}]
  %s7 = inlined_call_operand.vmem [shape: bf16[128,128], index: 7, kind: input, shape index: {}]
  %s8 = inlined_call_operand.vmem [shape: bf16[2,8,8,128], index: 8, kind: output, shape index: {0}]
  %s9 = inlined_call_operand.vmem [shape: bf16[2,8,8,128], index: 9, kind: output, shape index: {1}]
  %10 = xla_tuple %s8, %s9
  %s11 = sld [smem:[#allocation0]]
  $region73: #{_lambda_.6} parent=0
    _
  %s13 = ssub.s32 1, %s11
  %s14 = scalar_select 0, %s13, %s11
  loop: start=0, step=1, limit=4
  $region2: #{_lambda_.6} parent=0 // loop_pre_header
    _
  $region3: #{_lambda_.6} parent=0 // loop_header
    %s16 = sphi 0, %s20
    %p17 = scmp.ge.s32.totalorder %s16, 4
    %s23 = sphi 0, %s35
    %s24 = sphi 0, %s31
    %s25 = sphi 0, %s23
    %s26 = sphi 0, %s24
    %s27 = sphi 0, %s25
    %s28 = sphi 0, %s26
    %s38 = sphi 0, %s40
    %s41 = sphi 0, %s38
    %s42 = sphi 0, %s41
    %s58 = sphi 0, %s42
    %s64 = sphi 0, %s66
    %s67 = sphi 0, %s64
    %s68 = sphi 0, %s67
    %s84 = sphi 0, %s68
    %s90 = sphi 0, %s92
    %s93 = sphi 0, %s90
    %s94 = sphi 0, %s93
    %s110 = sphi 0, %s94
    %s116 = sphi 0, %s118
    %s119 = sphi 0, %s116
    %s120 = sphi 0, %s119
    %s136 = sphi 0, %s120
    %s140 = sphi 0, %s140
    %s142 = sphi 0, %s140
    %s143 = sphi 0, %s142
    %s157 = sphi 0, %s143
    %s161 = sphi 0, %s161
    %s163 = sphi 0, %s161
    %s164 = sphi 0, %s163
    %s178 = sphi 0, %s164
    %s182 = sphi 0, %s182
    %s184 = sphi 0, %s182
    %s185 = sphi 0, %s184
    %s199 = sphi 0, %s185
    %s203 = sphi 0, %s203
    %s205 = sphi 0, %s203
    %s206 = sphi 0, %s205
    %s220 = sphi 0, %s206
    %s228 = sphi 0, %s230
    %s231 = sphi 0, %s228
    %s232 = sphi 0, %s231
    %s248 = sphi 0, %s232
    %s256 = sphi 0, %s258
    %s259 = sphi 0, %s256
    %s260 = sphi 0, %s259
    %s276 = sphi 0, %s260
  $region4: #{_lambda_.6} parent=0 // loop_header_branch
    %19 = sbr.rel (%p17) target = $region8
  $region5: #{_lambda_.6} parent=0 // loop_body
    %s21 = ssub.s32 %s16, 1
    %s22 = ssub.s32 %s16, 2
    %s29 = sadd.s32 1, %s24
    %p30 = scmp.ge.s32.totalorder %s29, 1
    %s31 = scalar_select %p30, 0, %s29
    %s32 = sadd.s32 1, %s23
    %s33 = scalar_select %p30, %s32, %s23
    %p34 = scmp.ge.s32.totalorder %s33, 2
    %s35 = scalar_select %p34, 0, %s33
    %s36 = ssub.s32 %s23, %s35
    %p37 = scmp.eq.s32.totalorder %s36, 0
    %s39 = sadd.s32 %s38, 1
    %s40 = scalar_select %p37, %s38, %s39
    %p43 = pneg %p37
    %p44 = scmp.eq.s32.totalorder %s16, 1
    %p45 = por %p43, %p44
    %p46 = scmp.ne.s32.totalorder %s38, %s41
    %p47 = scmp.eq.s32.totalorder %s16, 0
    %p48 = por %p46, %p47
    %p49 = scmp.ne.s32.totalorder %s38, %s41
    %p50 = scmp.eq.s32.totalorder %s21, 1
    %p51 = por %p49, %p50
    %p52 = scmp.ne.s32.totalorder %s41, %s42
    %p53 = scmp.eq.s32.totalorder %s21, 0
    %p54 = por %p52, %p53
    %p55 = scmp.ne.s32.totalorder %s41, %s42
    %p56 = scmp.eq.s32.totalorder %s22, 1
    %p57 = por %p55, %p56
    %p59 = scmp.ne.s32.totalorder %s42, %s58
    %p60 = scmp.eq.s32.totalorder %s22, 0
    %p61 = por %p59, %p60
    %s62 = ssub.s32 %s23, %s35
    %p63 = scmp.eq.s32.totalorder %s62, 0
    %s65 = sadd.s32 %s64, 1
    %s66 = scalar_select %p63, %s64, %s65
    %p69 = pneg %p63
    %p70 = scmp.eq.s32.totalorder %s16, 1
    %p71 = por %p69, %p70
    %p72 = scmp.ne.s32.totalorder %s64, %s67
    %p73 = scmp.eq.s32.totalorder %s16, 0
    %p74 = por %p72, %p73
    %p75 = scmp.ne.s32.totalorder %s64, %s67
    %p76 = scmp.eq.s32.totalorder %s21, 1
    %p77 = por %p75, %p76
    %p78 = scmp.ne.s32.totalorder %s67, %s68
    %p79 = scmp.eq.s32.totalorder %s21, 0
    %p80 = por %p78, %p79
    %p81 = scmp.ne.s32.totalorder %s67, %s68
    %p82 = scmp.eq.s32.totalorder %s22, 1
    %p83 = por %p81, %p82
    %p85 = scmp.ne.s32.totalorder %s68, %s84
    %p86 = scmp.eq.s32.totalorder %s22, 0
    %p87 = por %p85, %p86
    %s88 = ssub.s32 %s23, %s35
    %p89 = scmp.eq.s32.totalorder %s88, 0
    %s91 = sadd.s32 %s90, 1
    %s92 = scalar_select %p89, %s90, %s91
    %p95 = pneg %p89
    %p96 = scmp.eq.s32.totalorder %s16, 1
    %p97 = por %p95, %p96
    %p98 = scmp.ne.s32.totalorder %s90, %s93
    %p99 = scmp.eq.s32.totalorder %s16, 0
    %p100 = por %p98, %p99
    %p101 = scmp.ne.s32.totalorder %s90, %s93
    %p102 = scmp.eq.s32.totalorder %s21, 1
    %p103 = por %p101, %p102
    %p104 = scmp.ne.s32.totalorder %s93, %s94
    %p105 = scmp.eq.s32.totalorder %s21, 0
    %p106 = por %p104, %p105
    %p107 = scmp.ne.s32.totalorder %s93, %s94
    %p108 = scmp.eq.s32.totalorder %s22, 1
    %p109 = por %p107, %p108
    %p111 = scmp.ne.s32.totalorder %s94, %s110
    %p112 = scmp.eq.s32.totalorder %s22, 0
    %p113 = por %p111, %p112
    %s114 = ssub.s32 %s23, %s35
    %p115 = scmp.eq.s32.totalorder %s114, 0
    %s117 = sadd.s32 %s116, 1
    %s118 = scalar_select %p115, %s116, %s117
    %p121 = pneg %p115
    %p122 = scmp.eq.s32.totalorder %s16, 1
    %p123 = por %p121, %p122
    %p124 = scmp.ne.s32.totalorder %s116, %s119
    %p125 = scmp.eq.s32.totalorder %s16, 0
    %p126 = por %p124, %p125
    %p127 = scmp.ne.s32.totalorder %s116, %s119
    %p128 = scmp.eq.s32.totalorder %s21, 1
    %p129 = por %p127, %p128
    %p130 = scmp.ne.s32.totalorder %s119, %s120
    %p131 = scmp.eq.s32.totalorder %s21, 0
    %p132 = por %p130, %p131
    %p133 = scmp.ne.s32.totalorder %s119, %s120
    %p134 = scmp.eq.s32.totalorder %s22, 1
    %p135 = por %p133, %p134
    %p137 = scmp.ne.s32.totalorder %s120, %s136
    %p138 = scmp.eq.s32.totalorder %s22, 0
    %p139 = por %p137, %p138
    %s141 = sadd.s32 %s140, 1
    %p144 = scmp.eq.s32.totalorder %s16, 1
    %p145 = scmp.ne.s32.totalorder %s140, %s142
    %p146 = scmp.eq.s32.totalorder %s16, 0
    %p147 = por %p145, %p146
    %p148 = scmp.ne.s32.totalorder %s140, %s142
    %p149 = scmp.eq.s32.totalorder %s21, 1
    %p150 = por %p148, %p149
    %p151 = scmp.ne.s32.totalorder %s142, %s143
    %p152 = scmp.eq.s32.totalorder %s21, 0
    %p153 = por %p151, %p152
    %p154 = scmp.ne.s32.totalorder %s142, %s143
    %p155 = scmp.eq.s32.totalorder %s22, 1
    %p156 = por %p154, %p155
    %p158 = scmp.ne.s32.totalorder %s143, %s157
    %p159 = scmp.eq.s32.totalorder %s22, 0
    %p160 = por %p158, %p159
    %s162 = sadd.s32 %s161, 1
    %p165 = scmp.eq.s32.totalorder %s16, 1
    %p166 = scmp.ne.s32.totalorder %s161, %s163
    %p167 = scmp.eq.s32.totalorder %s16, 0
    %p168 = por %p166, %p167
    %p169 = scmp.ne.s32.totalorder %s161, %s163
    %p170 = scmp.eq.s32.totalorder %s21, 1
    %p171 = por %p169, %p170
    %p172 = scmp.ne.s32.totalorder %s163, %s164
    %p173 = scmp.eq.s32.totalorder %s21, 0
    %p174 = por %p172, %p173
    %p175 = scmp.ne.s32.totalorder %s163, %s164
    %p176 = scmp.eq.s32.totalorder %s22, 1
    %p177 = por %p175, %p176
    %p179 = scmp.ne.s32.totalorder %s164, %s178
    %p180 = scmp.eq.s32.totalorder %s22, 0
    %p181 = por %p179, %p180
    %s183 = sadd.s32 %s182, 1
    %p186 = scmp.eq.s32.totalorder %s16, 1
    %p187 = scmp.ne.s32.totalorder %s182, %s184
    %p188 = scmp.eq.s32.totalorder %s16, 0
    %p189 = por %p187, %p188
    %p190 = scmp.ne.s32.totalorder %s182, %s184
    %p191 = scmp.eq.s32.totalorder %s21, 1
    %p192 = por %p190, %p191
    %p193 = scmp.ne.s32.totalorder %s184, %s185
    %p194 = scmp.eq.s32.totalorder %s21, 0
    %p195 = por %p193, %p194
    %p196 = scmp.ne.s32.totalorder %s184, %s185
    %p197 = scmp.eq.s32.totalorder %s22, 1
    %p198 = por %p196, %p197
    %p200 = scmp.ne.s32.totalorder %s185, %s199
    %p201 = scmp.eq.s32.totalorder %s22, 0
    %p202 = por %p200, %p201
    %s204 = sadd.s32 %s203, 1
    %p207 = scmp.eq.s32.totalorder %s16, 1
    %p208 = scmp.ne.s32.totalorder %s203, %s205
    %p209 = scmp.eq.s32.totalorder %s16, 0
    %p210 = por %p208, %p209
    %p211 = scmp.ne.s32.totalorder %s203, %s205
    %p212 = scmp.eq.s32.totalorder %s21, 1
    %p213 = por %p211, %p212
    %p214 = scmp.ne.s32.totalorder %s205, %s206
    %p215 = scmp.eq.s32.totalorder %s21, 0
    %p216 = por %p214, %p215
    %p217 = scmp.ne.s32.totalorder %s205, %s206
    %p218 = scmp.eq.s32.totalorder %s22, 1
    %p219 = por %p217, %p218
    %p221 = scmp.ne.s32.totalorder %s206, %s220
    %p222 = scmp.eq.s32.totalorder %s22, 0
    %p223 = por %p221, %p222
    %s224 = ssub.s32 %s23, %s35
    %s225 = ssub.s32 %s24, %s31
    %s226 = sor.u32 %s224, %s225
    %p227 = scmp.eq.s32.totalorder %s226, 0
    %s229 = sadd.s32 %s228, 1
    %s230 = scalar_select %p227, %s228, %s229
    %p233 = pneg %p227
    %p234 = scmp.eq.s32.totalorder %s16, 1
    %p235 = por %p233, %p234
    %p236 = scmp.ne.s32.totalorder %s228, %s231
    %p237 = scmp.eq.s32.totalorder %s16, 0
    %p238 = por %p236, %p237
    %p239 = scmp.ne.s32.totalorder %s228, %s231
    %p240 = scmp.eq.s32.totalorder %s21, 1
    %p241 = por %p239, %p240
    %p242 = scmp.ne.s32.totalorder %s231, %s232
    %p243 = scmp.eq.s32.totalorder %s21, 0
    %p244 = por %p242, %p243
    %p245 = scmp.ne.s32.totalorder %s231, %s232
    %p246 = scmp.eq.s32.totalorder %s22, 1
    %p247 = por %p245, %p246
    %p249 = scmp.ne.s32.totalorder %s232, %s248
    %p250 = scmp.eq.s32.totalorder %s22, 0
    %p251 = por %p249, %p250
    %s252 = ssub.s32 %s23, %s35
    %s253 = ssub.s32 %s24, %s31
    %s254 = sor.u32 %s252, %s253
    %p255 = scmp.eq.s32.totalorder %s254, 0
    %s257 = sadd.s32 %s256, 1
    %s258 = scalar_select %p255, %s256, %s257
    %p261 = pneg %p255
    %p262 = scmp.eq.s32.totalorder %s16, 1
    %p263 = por %p261, %p262
    %p264 = scmp.ne.s32.totalorder %s256, %s259
    %p265 = scmp.eq.s32.totalorder %s16, 0
    %p266 = por %p264, %p265
    %p267 = scmp.ne.s32.totalorder %s256, %s259
    %p268 = scmp.eq.s32.totalorder %s21, 1
    %p269 = por %p267, %p268
    %p270 = scmp.ne.s32.totalorder %s259, %s260
    %p271 = scmp.eq.s32.totalorder %s21, 0
    %p272 = por %p270, %p271
    %p273 = scmp.ne.s32.totalorder %s259, %s260
    %p274 = scmp.eq.s32.totalorder %s22, 1
    %p275 = por %p273, %p274
    %p277 = scmp.ne.s32.totalorder %s260, %s276
    %p278 = scmp.eq.s32.totalorder %s22, 0
    %p279 = por %p277, %p278
    %p280 = scmp.le.s32.totalorder 1, %s16
    %p281 = scmp.lt.s32.totalorder %s16, 3
    %p282 = pnand %p280, %p281
    %p283 = pneg %p282
    // Predicated region
    $region9: #{_lambda_.6} parent=5 // pred_check
      _
    $region10: #{_lambda_.6} parent=5 // pred_check_branch
      %285 = sbr.rel (%p282) target = $region12
    $region11: #{_lambda_.6} parent=5 // pred_region
      %s286 = ssub.s32 %s16, 1
      // Predicated region
      $region13: #{_lambda_.6} parent=11 // pred_check
        %p287 = pneg %p153
      $region14: #{_lambda_.6} parent=11 // pred_check_branch
        %289 = sbr.rel (%p287) target = $region16
      $region15: #{_lambda_.6} parent=11 // pred_region
        _
      $region16: #{_lambda_.6} parent=11 // pred_fallthru
        _
      // Predicated region
      $region17: #{_lambda_.6} parent=11 // pred_check
        %p290 = pneg %p174
      $region18: #{_lambda_.6} parent=11 // pred_check_branch
        %292 = sbr.rel (%p290) target = $region20
      $region19: #{_lambda_.6} parent=11 // pred_region
        _
      $region20: #{_lambda_.6} parent=11 // pred_fallthru
        _
      // Predicated region
      $region21: #{_lambda_.6} parent=11 // pred_check
        %p293 = pneg %p195
      $region22: #{_lambda_.6} parent=11 // pred_check_branch
        %295 = sbr.rel (%p293) target = $region24
      $region23: #{_lambda_.6} parent=11 // pred_region
        _
      $region24: #{_lambda_.6} parent=11 // pred_fallthru
        _
      // Predicated region
      $region25: #{_lambda_.6} parent=11 // pred_check
        %p296 = pneg %p216
      $region26: #{_lambda_.6} parent=11 // pred_check_branch
        %298 = sbr.rel (%p296) target = $region28
      $region27: #{_lambda_.6} parent=11 // pred_region
        _
      $region28: #{_lambda_.6} parent=11 // pred_fallthru
        _
    $region12: #{_lambda_.6} parent=5 // pred_fallthru
      _
    %p299 = scmp.lt.s32.totalorder %s16, 2
    // Predicated region
    $region29: #{_lambda_.6} parent=5 // pred_check
      %p300 = pneg %p299
    $region30: #{_lambda_.6} parent=5 // pred_check_branch
      %302 = sbr.rel (%p300) target = $region32
    $region31: #{_lambda_.6} parent=5 // pred_region
      // Predicated region
      $region33: #{_lambda_.6} parent=31 // pred_check
        %p303 = pneg %p48
      $region34: #{_lambda_.6} parent=31 // pred_check_branch
        %305 = sbr.rel (%p303) target = $region36
      $region35: #{_lambda_.6} parent=31 // pred_region
        %p306 = scmp.lt.s32.totalorder %s23, 1
        %s307 = scalar_select %p306, %s23, 1
        %s308 = smul.addr %s307, 18
        %s309 = smul.addr %s308, 4
        %s310 = scalar_lea.vmem %s0, %s309
      $region36: #{_lambda_.6} parent=31 // pred_fallthru
        _
      // Predicated region
      $region37: #{_lambda_.6} parent=31 // pred_check
        %p311 = pneg %p74
      $region38: #{_lambda_.6} parent=31 // pred_check_branch
        %313 = sbr.rel (%p311) target = $region40
      $region39: #{_lambda_.6} parent=31 // pred_region
        %p314 = scmp.lt.s32.totalorder %s23, 1
        %s315 = scalar_select %p314, %s23, 1
        %s316 = smul.addr %s315, 18
        %s317 = smul.addr %s316, 4
        %s318 = scalar_lea.vmem %s1, %s317
      $region40: #{_lambda_.6} parent=31 // pred_fallthru
        _
      // Predicated region
      $region41: #{_lambda_.6} parent=31 // pred_check
        %p319 = pneg %p100
      $region42: #{_lambda_.6} parent=31 // pred_check_branch
        %321 = sbr.rel (%p319) target = $region44
      $region43: #{_lambda_.6} parent=31 // pred_region
        %p322 = scmp.lt.s32.totalorder %s23, 1
        %s323 = scalar_select %p322, %s23, 1
        %s324 = smul.addr %s323, 18
        %s325 = smul.addr %s324, 4
        %s326 = scalar_lea.vmem %s2, %s325
      $region44: #{_lambda_.6} parent=31 // pred_fallthru
        _
      // Predicated region
      $region45: #{_lambda_.6} parent=31 // pred_check
        %p327 = pneg %p126
      $region46: #{_lambda_.6} parent=31 // pred_check_branch
        %329 = sbr.rel (%p327) target = $region48
      $region47: #{_lambda_.6} parent=31 // pred_region
        %p330 = scmp.lt.s32.totalorder %s23, 1
        %s331 = scalar_select %p330, %s23, 1
        %s332 = smul.addr %s331, 18
        %s333 = smul.addr %s332, 4
        %s334 = scalar_lea.vmem %s3, %s333
      $region48: #{_lambda_.6} parent=31 // pred_fallthru
        _
    $region32: #{_lambda_.6} parent=5 // pred_fallthru
      _
    %p335 = scmp.le.s32.totalorder 1, %s16
    %p336 = scmp.lt.s32.totalorder %s16, 3
    %p337 = pnand %p335, %p336
    %p338 = pneg %p337
    // Predicated region
    $region49: #{_lambda_.6} parent=5 // pred_check
      _
    $region50: #{_lambda_.6} parent=5 // pred_check_branch
      %340 = sbr.rel (%p337) target = $region52
    $region51: #{_lambda_.6} parent=5 // pred_region
      %s341 = ssub.s32 %s16, 1
      %p342 = scmp.lt.s32.totalorder %s25, 1
      %s343 = scalar_select %p342, %s25, 1
      %s344 = smul.addr %s343, 18
      %s345 = smul.addr %s344, 4
      %s346 = scalar_lea.vmem %s0, %s345
      %p347 = pneg %p54
      %p348 = pneg %p51
      %p349 = scmp.lt.s32.totalorder %s25, 1
      %s350 = scalar_select %p349, %s25, 1
      %s351 = smul.addr %s350, 18
      %s352 = smul.addr %s351, 4
      %s353 = scalar_lea.vmem %s1, %s352
      %p354 = pneg %p80
      %p355 = pneg %p77
      %p356 = scmp.lt.s32.totalorder %s25, 1
      %s357 = scalar_select %p356, %s25, 1
      %s358 = smul.addr %s357, 18
      %s359 = smul.addr %s358, 4
      %s360 = scalar_lea.vmem %s2, %s359
      %p361 = pneg %p106
      %p362 = pneg %p103
      %p363 = scmp.lt.s32.totalorder %s25, 1
      %s364 = scalar_select %p363, %s25, 1
      %s365 = smul.addr %s364, 18
      %s366 = smul.addr %s365, 4
      %s367 = scalar_lea.vmem %s3, %s366
      %p368 = pneg %p132
      %p369 = pneg %p129
      %p370 = pneg %p153
      %p371 = pneg %p150
      %p372 = pneg %p174
      %p373 = pneg %p171
      %p374 = pneg %p195
      %p375 = pneg %p192
      %p376 = pneg %p216
      %p377 = pneg %p213
      %p378 = pneg %p244
      %p379 = pneg %p241
      %s380 = smul.u32 8, %s26
      %p381 = scmp.lt.s32.totalorder %s25, 1
      %s382 = scalar_select %p381, %s25, 1
      %p383 = scmp.lt.s32.totalorder %s380, 7
      %s384 = scalar_select %p383, %s380, 7
      %s385 = smul.addr %s382, 8
      %s386 = sadd.s32 %s384, %s385
      %s387 = smul.addr %s386, 4
      %s388 = scalar_lea.vmem %s8, %s387
      %p389 = pneg %p272
      %p390 = pneg %p269
      %s391 = smul.u32 8, %s26
      %p392 = scmp.lt.s32.totalorder %s25, 1
      %s393 = scalar_select %p392, %s25, 1
      %p394 = scmp.lt.s32.totalorder %s391, 7
      %s395 = scalar_select %p394, %s391, 7
      %s396 = smul.addr %s393, 8
      %s397 = sadd.s32 %s395, %s396
      %s398 = smul.addr %s397, 4
      %s399 = scalar_lea.vmem %s9, %s398
      %p400 = scmp.lt.s32.totalorder %s25, 1
      %s401 = scalar_select %p400, %s25, 1
      %s402 = smul.addr %s401, 18
      %s403 = smul.addr %s402, 4
      %s404 = scalar_lea.vmem %s0, %s403
      %p405 = scmp.lt.s32.totalorder %s25, 1
      %s406 = scalar_select %p405, %s25, 1
      %s407 = smul.addr %s406, 18
      %s408 = smul.addr %s407, 4
      %s409 = scalar_lea.vmem %s1, %s408
      %p410 = scmp.lt.s32.totalorder %s25, 1
      %s411 = scalar_select %p410, %s25, 1
      %s412 = smul.addr %s411, 18
      %s413 = smul.addr %s412, 4
      %s414 = scalar_lea.vmem %s2, %s413
      %p415 = scmp.lt.s32.totalorder %s25, 1
      %s416 = scalar_select %p415, %s25, 1
      %s417 = smul.addr %s416, 18
      %s418 = smul.addr %s417, 4
      %s419 = scalar_lea.vmem %s3, %s418
      %s420 = smul.u32 8, %s26
      %p421 = scmp.lt.s32.totalorder %s25, 1
      %s422 = scalar_select %p421, %s25, 1
      %p423 = scmp.lt.s32.totalorder %s420, 7
      %s424 = scalar_select %p423, %s420, 7
      %s425 = smul.addr %s422, 8
      %s426 = sadd.s32 %s424, %s425
      %s427 = smul.addr %s426, 4
      %s428 = scalar_lea.vmem %s8, %s427
      %s429 = smul.u32 8, %s26
      %s430 = smul.u32 8, %s26
      %p431 = scmp.lt.s32.totalorder %s25, 1
      %s432 = scalar_select %p431, %s25, 1
      %p433 = scmp.lt.s32.totalorder %s430, 7
      %s434 = scalar_select %p433, %s430, 7
      %s435 = smul.addr %s432, 8
      %s436 = sadd.s32 %s434, %s435
      %s437 = smul.addr %s436, 4
      %s438 = scalar_lea.vmem %s9, %s437
      %s439 = smul.u32 8, %s26
      %s441 = smul.u32 %s26, 8
      %s442 = smul.u32 %s441, 2
      %s443 = smul.addr %s442, 4
      %s444 = scalar_lea.vmem %s404, %s443
      %v445 = vld [vmem:[%s444] sm:$0xf]
      %v446 = vld [vmem:[%s444 + $0x8] sm:$0xf]
      %v447 = vld [vmem:[%s444 + $0x10] sm:$0xf]
      %v448 = vld [vmem:[%s444 + $0x18] sm:$0xf]
      %v449 = vld [vmem:[%s444 + $0x20] sm:$0xf]
      %v450 = vld [vmem:[%s444 + $0x28] sm:$0xf]
      %v451 = vld [vmem:[%s444 + $0x30] sm:$0xf]
      %v452 = vld [vmem:[%s444 + $0x38] sm:$0xf]
      %v453 = vld [vmem:[%s4] sm:$0xf]
      %v454 = vld [vmem:[%s4 + $0x4] sm:$0xf]
      %v455 = vld [vmem:[%s4 + $0x8] sm:$0xf]
      %v456 = vld [vmem:[%s4 + $0xc] sm:$0xf]
      %v457 = vld [vmem:[%s4 + $0x10] sm:$0xf]
      %v458 = vld [vmem:[%s4 + $0x14] sm:$0xf]
      %v459 = vld [vmem:[%s4 + $0x18] sm:$0xf]
      %v460 = vld [vmem:[%s4 + $0x1c] sm:$0xf]
      %v461 = vld [vmem:[%s4 + $0x20] sm:$0xf]
      %v462 = vld [vmem:[%s4 + $0x24] sm:$0xf]
      %v463 = vld [vmem:[%s4 + $0x28] sm:$0xf]
      %v464 = vld [vmem:[%s4 + $0x2c] sm:$0xf]
      %v465 = vld [vmem:[%s4 + $0x30] sm:$0xf]
      %v466 = vld [vmem:[%s4 + $0x34] sm:$0xf]
      %v467 = vld [vmem:[%s4 + $0x38] sm:$0xf]
      %v468 = vld [vmem:[%s4 + $0x3c] sm:$0xf]
      %s469 = smul.addr %s442, 4
      %s470 = scalar_lea.vmem %s409, %s469
      %v471 = vld [vmem:[%s470] sm:$0xf]
      %v472 = vld [vmem:[%s470 + $0x8] sm:$0xf]
      %v473 = vld [vmem:[%s470 + $0x10] sm:$0xf]
      %v474 = vld [vmem:[%s470 + $0x18] sm:$0xf]
      %v475 = vld [vmem:[%s470 + $0x20] sm:$0xf]
      %v476 = vld [vmem:[%s470 + $0x28] sm:$0xf]
      %v477 = vld [vmem:[%s470 + $0x30] sm:$0xf]
      %v478 = vld [vmem:[%s470 + $0x38] sm:$0xf]
      %s479 = scalar_lea.vmem %s4, 64
      %v480 = vld [vmem:[%s479] sm:$0xf]
      %v481 = vld [vmem:[%s479 + $0x4] sm:$0xf]
      %v482 = vld [vmem:[%s479 + $0x8] sm:$0xf]
      %v483 = vld [vmem:[%s479 + $0xc] sm:$0xf]
      %v484 = vld [vmem:[%s479 + $0x10] sm:$0xf]
      %v485 = vld [vmem:[%s479 + $0x14] sm:$0xf]
      %v486 = vld [vmem:[%s479 + $0x18] sm:$0xf]
      %v487 = vld [vmem:[%s479 + $0x1c] sm:$0xf]
      %v488 = vld [vmem:[%s479 + $0x20] sm:$0xf]
      %v489 = vld [vmem:[%s479 + $0x24] sm:$0xf]
      %v490 = vld [vmem:[%s479 + $0x28] sm:$0xf]
      %v491 = vld [vmem:[%s479 + $0x2c] sm:$0xf]
      %v492 = vld [vmem:[%s479 + $0x30] sm:$0xf]
      %v493 = vld [vmem:[%s479 + $0x34] sm:$0xf]
      %v494 = vld [vmem:[%s479 + $0x38] sm:$0xf]
      %v495 = vld [vmem:[%s479 + $0x3c] sm:$0xf]
      %v504 = vunpack.c.l.b16 %v471
      %v505 = vunpack.c.l.b16 %v472
      %v506 = vunpack.c.l.b16 %v473
      %v507 = vunpack.c.l.b16 %v474
      %v508 = vunpack.c.l.b16 %v475
      %v509 = vunpack.c.l.b16 %v476
      %v510 = vunpack.c.l.b16 %v477
      %v511 = vunpack.c.l.b16 %v478
      %v512 = vpack.c.b16 %v505, %v504
      %v513 = vpack.c.b16 %v507, %v506
      %v514 = vpack.c.b16 %v509, %v508
      %v515 = vpack.c.b16 %v511, %v510
      %v536 = vunpack.c.l.b16 %v480
      %v537 = vunpack.c.l.b16 %v481
      %v538 = vunpack.c.l.b16 %v482
      %v539 = vunpack.c.l.b16 %v483
      %v540 = vunpack.c.l.b16 %v484
      %v541 = vunpack.c.l.b16 %v485
      %v542 = vunpack.c.l.b16 %v486
      %v543 = vunpack.c.l.b16 %v487
      %v544 = vunpack.c.l.b16 %v488
      %v545 = vunpack.c.l.b16 %v489
      %v546 = vunpack.c.l.b16 %v490
      %v547 = vunpack.c.l.b16 %v491
      %v548 = vunpack.c.l.b16 %v492
      %v549 = vunpack.c.l.b16 %v493
      %v550 = vunpack.c.l.b16 %v494
      %v551 = vunpack.c.l.b16 %v495
      %v552 = vpack.c.b16 %v537, %v536
      %v553 = vpack.c.b16 %v539, %v538
      %v554 = vpack.c.b16 %v541, %v540
      %v555 = vpack.c.b16 %v543, %v542
      %v556 = vpack.c.b16 %v545, %v544
      %v557 = vpack.c.b16 %v547, %v546
      %v558 = vpack.c.b16 %v549, %v548
      %v559 = vpack.c.b16 %v551, %v550
      %568 = vmatprep.subr.bf16.mxu0 0
      %569 = vmatpush1.bf16.msra.mxu0 %v552
      %570 = vmatprep.subr.bf16.mxu0 0
      %571 = vmatpush1.bf16.msra.mxu0 %v553
      %572 = vmatprep.subr.bf16.mxu0 0
      %573 = vmatpush1.bf16.msra.mxu0 %v554
      %574 = vmatprep.subr.bf16.mxu0 0
      %575 = vmatpush1.bf16.msra.mxu0 %v555
      %576 = vmatprep.subr.bf16.mxu0 0
      %577 = vmatpush1.bf16.msra.mxu0 %v556
      %578 = vmatprep.subr.bf16.mxu0 0
      %579 = vmatpush1.bf16.msra.mxu0 %v557
      %580 = vmatprep.subr.bf16.mxu0 0
      %581 = vmatpush1.bf16.msra.mxu0 %v558
      %582 = vmatprep.subr.bf16.mxu0 0
      %583 = vmatpush1.bf16.msra.mxu0 %v559
      %584 = vmatprep.subr.bf16.mxu0 0
      %585 = vmatpush1.bf16.msra.mxu0 0
      %586 = vmatprep.subr.bf16.mxu0 0
      %587 = vmatpush1.bf16.msra.mxu0 0
      %588 = vmatprep.subr.bf16.mxu0 0
      %589 = vmatpush1.bf16.msra.mxu0 0
      %590 = vmatprep.subr.bf16.mxu0 0
      %591 = vmatpush1.bf16.msra.mxu0 0
      %592 = vmatprep.subr.bf16.mxu0 0
      %593 = vmatpush1.bf16.msra.mxu0 0
      %594 = vmatprep.subr.bf16.mxu0 0
      %595 = vmatpush1.bf16.msra.mxu0 0
      %596 = vmatprep.subr.bf16.mxu0 0
      %597 = vmatpush1.bf16.msra.mxu0 0
      %598 = vmatprep.subr.bf16.mxu0 0
      %599 = vmatpush1.bf16.msra.mxu0 0
      %600 = vmatprep.mubr.bf16.mxu0 0
      %601 = vmatmul.mubr.bf16.gmra.mrb[0].mxu0 %v512
      %v602 = vpop.f32.mrb[0].mxu0
      %v603 = vadd.f32 0.0, %v602
      %v604 = vpop.f32.mrb[0].mxu0
      %v605 = vpop.f32.mrb[0].mxu0
      %v606 = vadd.f32 0.0, %v605
      %v607 = vpop.f32.mrb[0].mxu0
      %608 = vmatprep.mubr.bf16.mxu0 0
      %609 = vmatmul.mubr.bf16.gmra.mrb[0].mxu0 %v513
      %v610 = vpop.f32.mrb[0].mxu0
      %v611 = vadd.f32 0.0, %v610
      %v612 = vpop.f32.mrb[0].mxu0
      %v613 = vpop.f32.mrb[0].mxu0
      %v614 = vadd.f32 0.0, %v613
      %v615 = vpop.f32.mrb[0].mxu0
      %616 = vmatprep.mubr.bf16.mxu0 0
      %617 = vmatmul.mubr.bf16.gmra.mrb[0].mxu0 %v514
      %v618 = vpop.f32.mrb[0].mxu0
      %v619 = vadd.f32 0.0, %v618
      %v620 = vpop.f32.mrb[0].mxu0
      %v621 = vpop.f32.mrb[0].mxu0
      %v622 = vadd.f32 0.0, %v621
      %v623 = vpop.f32.mrb[0].mxu0
      %624 = vmatprep.mubr.bf16.mxu0 0
      %625 = vmatmul.mubr.bf16.gmra.mrb[0].mxu0 %v515
      %v626 = vpop.f32.mrb[0].mxu0
      %v627 = vadd.f32 0.0, %v626
      %v628 = vpop.f32.mrb[0].mxu0
      %v629 = vpop.f32.mrb[0].mxu0
      %v630 = vadd.f32 0.0, %v629
      %v631 = vpop.f32.mrb[0].mxu0
      %632 = vdwg.mxu0
      %v641 = vunpack.c.l.b16 %v445
      %v642 = vunpack.c.l.b16 %v446
      %v643 = vunpack.c.l.b16 %v447
      %v644 = vunpack.c.l.b16 %v448
      %v645 = vunpack.c.l.b16 %v449
      %v646 = vunpack.c.l.b16 %v450
      %v647 = vunpack.c.l.b16 %v451
      %v648 = vunpack.c.l.b16 %v452
      %v649 = vpack.c.b16 %v642, %v641
      %v650 = vpack.c.b16 %v644, %v643
      %v651 = vpack.c.b16 %v646, %v645
      %v652 = vpack.c.b16 %v648, %v647
      %v673 = vunpack.c.l.b16 %v453
      %v674 = vunpack.c.l.b16 %v454
      %v675 = vunpack.c.l.b16 %v455
      %v676 = vunpack.c.l.b16 %v456
      %v677 = vunpack.c.l.b16 %v457
      %v678 = vunpack.c.l.b16 %v458
      %v679 = vunpack.c.l.b16 %v459
      %v680 = vunpack.c.l.b16 %v460
      %v681 = vunpack.c.l.b16 %v461
      %v682 = vunpack.c.l.b16 %v462
      %v683 = vunpack.c.l.b16 %v463
      %v684 = vunpack.c.l.b16 %v464
      %v685 = vunpack.c.l.b16 %v465
      %v686 = vunpack.c.l.b16 %v466
      %v687 = vunpack.c.l.b16 %v467
      %v688 = vunpack.c.l.b16 %v468
      %v689 = vpack.c.b16 %v674, %v673
      %v690 = vpack.c.b16 %v676, %v675
      %v691 = vpack.c.b16 %v678, %v677
      %v692 = vpack.c.b16 %v680, %v679
      %v693 = vpack.c.b16 %v682, %v681
      %v694 = vpack.c.b16 %v684, %v683
      %v695 = vpack.c.b16 %v686, %v685
      %v696 = vpack.c.b16 %v688, %v687
      %705 = vmatprep.subr.bf16.mxu0 0
      %706 = vmatpush1.bf16.msra.mxu0 %v689
      %707 = vmatprep.subr.bf16.mxu0 0
      %708 = vmatpush1.bf16.msra.mxu0 %v690
      %709 = vmatprep.subr.bf16.mxu0 0
      %710 = vmatpush1.bf16.msra.mxu0 %v691
      %711 = vmatprep.subr.bf16.mxu0 0
      %712 = vmatpush1.bf16.msra.mxu0 %v692
      %713 = vmatprep.subr.bf16.mxu0 0
      %714 = vmatpush1.bf16.msra.mxu0 %v693
      %715 = vmatprep.subr.bf16.mxu0 0
      %716 = vmatpush1.bf16.msra.mxu0 %v694
      %717 = vmatprep.subr.bf16.mxu0 0
      %718 = vmatpush1.bf16.msra.mxu0 %v695
      %719 = vmatprep.subr.bf16.mxu0 0
      %720 = vmatpush1.bf16.msra.mxu0 %v696
      %721 = vmatprep.subr.bf16.mxu0 0
      %722 = vmatpush1.bf16.msra.mxu0 0
      %723 = vmatprep.subr.bf16.mxu0 0
      %724 = vmatpush1.bf16.msra.mxu0 0
      %725 = vmatprep.subr.bf16.mxu0 0
      %726 = vmatpush1.bf16.msra.mxu0 0
      %727 = vmatprep.subr.bf16.mxu0 0
      %728 = vmatpush1.bf16.msra.mxu0 0
      %729 = vmatprep.subr.bf16.mxu0 0
      %730 = vmatpush1.bf16.msra.mxu0 0
      %731 = vmatprep.subr.bf16.mxu0 0
      %732 = vmatpush1.bf16.msra.mxu0 0
      %733 = vmatprep.subr.bf16.mxu0 0
      %734 = vmatpush1.bf16.msra.mxu0 0
      %735 = vmatprep.subr.bf16.mxu0 0
      %736 = vmatpush1.bf16.msra.mxu0 0
      %737 = vmatprep.mubr.bf16.mxu0 0
      %738 = vmatmul.mubr.bf16.gmra.mrb[0].mxu0 %v649
      %v739 = vpop.f32.mrb[0].mxu0
      %v740 = vadd.f32 %v603, %v739
      %v741 = vpop.f32.mrb[0].mxu0
      %v742 = vpop.f32.mrb[0].mxu0
      %v743 = vadd.f32 %v606, %v742
      %v744 = vpop.f32.mrb[0].mxu0
      %745 = vmatprep.mubr.bf16.mxu0 0
      %746 = vmatmul.mubr.bf16.gmra.mrb[0].mxu0 %v650
      %v747 = vpop.f32.mrb[0].mxu0
      %v748 = vadd.f32 %v611, %v747
      %v749 = vpop.f32.mrb[0].mxu0
      %v750 = vpop.f32.mrb[0].mxu0
      %v751 = vadd.f32 %v614, %v750
      %v752 = vpop.f32.mrb[0].mxu0
      %753 = vmatprep.mubr.bf16.mxu0 0
      %754 = vmatmul.mubr.bf16.gmra.mrb[0].mxu0 %v651
      %v755 = vpop.f32.mrb[0].mxu0
      %v756 = vadd.f32 %v619, %v755
      %v757 = vpop.f32.mrb[0].mxu0
      %v758 = vpop.f32.mrb[0].mxu0
      %v759 = vadd.f32 %v622, %v758
      %v760 = vpop.f32.mrb[0].mxu0
      %761 = vmatprep.mubr.bf16.mxu0 0
      %762 = vmatmul.mubr.bf16.gmra.mrb[0].mxu0 %v652
      %v763 = vpop.f32.mrb[0].mxu0
      %v764 = vadd.f32 %v627, %v763
      %v765 = vpop.f32.mrb[0].mxu0
      %v766 = vpop.f32.mrb[0].mxu0
      %v767 = vadd.f32 %v630, %v766
      %v768 = vpop.f32.mrb[0].mxu0
      %769 = vdwg.mxu0
      %v770 = vld [vmem:[%s444] sm:$0xf]
      %v771 = vld [vmem:[%s444 + $0x4] sm:$0x1]
      %v772 = vld [vmem:[%s444 + $0x8] sm:$0xf]
      %v773 = vld [vmem:[%s444 + $0xc] sm:$0x1]
      %v774 = vld [vmem:[%s444 + $0x10] sm:$0xf]
      %v775 = vld [vmem:[%s444 + $0x14] sm:$0x1]
      %v776 = vld [vmem:[%s444 + $0x18] sm:$0xf]
      %v777 = vld [vmem:[%s444 + $0x1c] sm:$0x1]
      %v778 = vld [vmem:[%s444 + $0x20] sm:$0xf]
      %v779 = vld [vmem:[%s444 + $0x24] sm:$0x1]
      %v780 = vld [vmem:[%s444 + $0x28] sm:$0xf]
      %v781 = vld [vmem:[%s444 + $0x2c] sm:$0x1]
      %v782 = vld [vmem:[%s444 + $0x30] sm:$0xf]
      %v783 = vld [vmem:[%s444 + $0x34] sm:$0x1]
      %v784 = vld [vmem:[%s444 + $0x38] sm:$0xf]
      %v785 = vld [vmem:[%s444 + $0x3c] sm:$0x1]
      %vm786 = vsmask.f32 3328
      %vm787 = vsmask.f32 7440
      %vm788 = vmor %vm786, %vm787
      %v790 = vshrl.u32 %v770, 16
      %v792 = vrot.slane %v790, 4
      %v793 = vshll.u32 %v770, 16
      %v795 = vrot.slane %v793, 5
      %v796 = vor.u32 %v792, %v795
      %v797 = vrot.slane %v796, 4
      %v799 = vshll.u32 %v771, 16
      %v801 = vrot.slane %v799, 5
      %v802 = vsel %vm788, %v797, %v801
      %v804 = vshrl.u32 %v772, 16
      %v806 = vrot.slane %v804, 4
      %v807 = vshll.u32 %v772, 16
      %v809 = vrot.slane %v807, 5
      %v810 = vor.u32 %v806, %v809
      %v811 = vrot.slane %v810, 4
      %v813 = vshll.u32 %v773, 16
      %v815 = vrot.slane %v813, 5
      %v816 = vsel %vm788, %v811, %v815
      %v818 = vshrl.u32 %v774, 16
      %v820 = vrot.slane %v818, 4
      %v821 = vshll.u32 %v774, 16
      %v823 = vrot.slane %v821, 5
      %v824 = vor.u32 %v820, %v823
      %v825 = vrot.slane %v824, 4
      %v827 = vshll.u32 %v775, 16
      %v829 = vrot.slane %v827, 5
      %v830 = vsel %vm788, %v825, %v829
      %v832 = vshrl.u32 %v776, 16
      %v834 = vrot.slane %v832, 4
      %v835 = vshll.u32 %v776, 16
      %v837 = vrot.slane %v835, 5
      %v838 = vor.u32 %v834, %v837
      %v839 = vrot.slane %v838, 4
      %v841 = vshll.u32 %v777, 16
      %v843 = vrot.slane %v841, 5
      %v844 = vsel %vm788, %v839, %v843
      %v846 = vshrl.u32 %v778, 16
      %v848 = vrot.slane %v846, 4
      %v849 = vshll.u32 %v778, 16
      %v851 = vrot.slane %v849, 5
      %v852 = vor.u32 %v848, %v851
      %v853 = vrot.slane %v852, 4
      %v855 = vshll.u32 %v779, 16
      %v857 = vrot.slane %v855, 5
      %v858 = vsel %vm788, %v853, %v857
      %v860 = vshrl.u32 %v780, 16
      %v862 = vrot.slane %v860, 4
      %v863 = vshll.u32 %v780, 16
      %v865 = vrot.slane %v863, 5
      %v866 = vor.u32 %v862, %v865
      %v867 = vrot.slane %v866, 4
      %v869 = vshll.u32 %v781, 16
      %v871 = vrot.slane %v869, 5
      %v872 = vsel %vm788, %v867, %v871
      %v874 = vshrl.u32 %v782, 16
      %v876 = vrot.slane %v874, 4
      %v877 = vshll.u32 %v782, 16
      %v879 = vrot.slane %v877, 5
      %v880 = vor.u32 %v876, %v879
      %v881 = vrot.slane %v880, 4
      %v883 = vshll.u32 %v783, 16
      %v885 = vrot.slane %v883, 5
      %v886 = vsel %vm788, %v881, %v885
      %v888 = vshrl.u32 %v784, 16
      %v890 = vrot.slane %v888, 4
      %v891 = vshll.u32 %v784, 16
      %v893 = vrot.slane %v891, 5
      %v894 = vor.u32 %v890, %v893
      %v895 = vrot.slane %v894, 4
      %v897 = vshll.u32 %v785, 16
      %v899 = vrot.slane %v897, 5
      %v900 = vsel %vm788, %v895, %v899
      %s901 = scalar_lea.vmem %s4, 128
      %v902 = vld [vmem:[%s901] sm:$0xf]
      %v903 = vld [vmem:[%s901 + $0x4] sm:$0xf]
      %v904 = vld [vmem:[%s901 + $0x8] sm:$0xf]
      %v905 = vld [vmem:[%s901 + $0xc] sm:$0xf]
      %v906 = vld [vmem:[%s901 + $0x10] sm:$0xf]
      %v907 = vld [vmem:[%s901 + $0x14] sm:$0xf]
      %v908 = vld [vmem:[%s901 + $0x18] sm:$0xf]
      %v909 = vld [vmem:[%s901 + $0x1c] sm:$0xf]
      %v910 = vld [vmem:[%s901 + $0x20] sm:$0xf]
      %v911 = vld [vmem:[%s901 + $0x24] sm:$0xf]
      %v912 = vld [vmem:[%s901 + $0x28] sm:$0xf]
      %v913 = vld [vmem:[%s901 + $0x2c] sm:$0xf]
      %v914 = vld [vmem:[%s901 + $0x30] sm:$0xf]
      %v915 = vld [vmem:[%s901 + $0x34] sm:$0xf]
      %v916 = vld [vmem:[%s901 + $0x38] sm:$0xf]
      %v917 = vld [vmem:[%s901 + $0x3c] sm:$0xf]
      %v918 = vunpack.c.l.b16 %v802
      %v919 = vunpack.c.l.b16 %v816
      %v920 = vunpack.c.l.b16 %v830
      %v921 = vunpack.c.l.b16 %v844
      %v922 = vunpack.c.l.b16 %v858
      %v923 = vunpack.c.l.b16 %v872
      %v924 = vunpack.c.l.b16 %v886
      %v925 = vunpack.c.l.b16 %v900
      %v926 = vpack.c.b16 %v919, %v918
      %v927 = vpack.c.b16 %v921, %v920
      %v928 = vpack.c.b16 %v923, %v922
      %v929 = vpack.c.b16 %v925, %v924
      %v950 = vunpack.c.l.b16 %v902
      %v951 = vunpack.c.l.b16 %v903
      %v952 = vunpack.c.l.b16 %v904
      %v953 = vunpack.c.l.b16 %v905
      %v954 = vunpack.c.l.b16 %v906
      %v955 = vunpack.c.l.b16 %v907
      %v956 = vunpack.c.l.b16 %v908
      %v957 = vunpack.c.l.b16 %v909
      %v958 = vunpack.c.l.b16 %v910
      %v959 = vunpack.c.l.b16 %v911
      %v960 = vunpack.c.l.b16 %v912
      %v961 = vunpack.c.l.b16 %v913
      %v962 = vunpack.c.l.b16 %v914
      %v963 = vunpack.c.l.b16 %v915
      %v964 = vunpack.c.l.b16 %v916
      %v965 = vunpack.c.l.b16 %v917
      %v966 = vpack.c.b16 %v951, %v950
      %v967 = vpack.c.b16 %v953, %v952
      %v968 = vpack.c.b16 %v955, %v954
      %v969 = vpack.c.b16 %v957, %v956
      %v970 = vpack.c.b16 %v959, %v958
      %v971 = vpack.c.b16 %v961, %v960
      %v972 = vpack.c.b16 %v963, %v962
      %v973 = vpack.c.b16 %v965, %v964
      %982 = vmatprep.subr.bf16.mxu0 0
      %983 = vmatpush1.bf16.msra.mxu0 %v966
      %984 = vmatprep.subr.bf16.mxu0 0
      %985 = vmatpush1.bf16.msra.mxu0 %v967
      %986 = vmatprep.subr.bf16.mxu0 0
      %987 = vmatpush1.bf16.msra.mxu0 %v968
      %988 = vmatprep.subr.bf16.mxu0 0
      %989 = vmatpush1.bf16.msra.mxu0 %v969
      %990 = vmatprep.subr.bf16.mxu0 0
      %991 = vmatpush1.bf16.msra.mxu0 %v970
      %992 = vmatprep.subr.bf16.mxu0 0
      %993 = vmatpush1.bf16.msra.mxu0 %v971
      %994 = vmatprep.subr.bf16.mxu0 0
      %995 = vmatpush1.bf16.msra.mxu0 %v972
      %996 = vmatprep.subr.bf16.mxu0 0
      %997 = vmatpush1.bf16.msra.mxu0 %v973
      %998 = vmatprep.subr.bf16.mxu0 0
      %999 = vmatpush1.bf16.msra.mxu0 0
      %1000 = vmatprep.subr.bf16.mxu0 0
      %1001 = vmatpush1.bf16.msra.mxu0 0
      %1002 = vmatprep.subr.bf16.mxu0 0
      %1003 = vmatpush1.bf16.msra.mxu0 0
      %1004 = vmatprep.subr.bf16.mxu0 0
      %1005 = vmatpush1.bf16.msra.mxu0 0
      %1006 = vmatprep.subr.bf16.mxu0 0
      %1007 = vmatpush1.bf16.msra.mxu0 0
      %1008 = vmatprep.subr.bf16.mxu0 0
      %1009 = vmatpush1.bf16.msra.mxu0 0
      %1010 = vmatprep.subr.bf16.mxu0 0
      %1011 = vmatpush1.bf16.msra.mxu0 0
      %1012 = vmatprep.subr.bf16.mxu0 0
      %1013 = vmatpush1.bf16.msra.mxu0 0
      %1014 = vmatprep.mubr.bf16.mxu0 0
      %1015 = vmatmul.mubr.bf16.gmra.mrb[0].mxu0 %v926
      %v1016 = vpop.f32.mrb[0].mxu0
      %v1017 = vadd.f32 0.0, %v1016
      %v1018 = vpop.f32.mrb[0].mxu0
      %v1019 = vpop.f32.mrb[0].mxu0
      %v1020 = vadd.f32 0.0, %v1019
      %v1021 = vpop.f32.mrb[0].mxu0
      %1022 = vmatprep.mubr.bf16.mxu0 0
      %1023 = vmatmul.mubr.bf16.gmra.mrb[0].mxu0 %v927
      %v1024 = vpop.f32.mrb[0].mxu0
      %v1025 = vadd.f32 0.0, %v1024
      %v1026 = vpop.f32.mrb[0].mxu0
      %v1027 = vpop.f32.mrb[0].mxu0
      %v1028 = vadd.f32 0.0, %v1027
      %v1029 = vpop.f32.mrb[0].mxu0
      %1030 = vmatprep.mubr.bf16.mxu0 0
      %1031 = vmatmul.mubr.bf16.gmra.mrb[0].mxu0 %v928
      %v1032 = vpop.f32.mrb[0].mxu0
      %v1033 = vadd.f32 0.0, %v1032
      %v1034 = vpop.f32.mrb[0].mxu0
      %v1035 = vpop.f32.mrb[0].mxu0
      %v1036 = vadd.f32 0.0, %v1035
      %v1037 = vpop.f32.mrb[0].mxu0
      %1038 = vmatprep.mubr.bf16.mxu0 0
      %1039 = vmatmul.mubr.bf16.gmra.mrb[0].mxu0 %v929
      %v1040 = vpop.f32.mrb[0].mxu0
      %v1041 = vadd.f32 0.0, %v1040
      %v1042 = vpop.f32.mrb[0].mxu0
      %v1043 = vpop.f32.mrb[0].mxu0
      %v1044 = vadd.f32 0.0, %v1043
      %v1045 = vpop.f32.mrb[0].mxu0
      %1046 = vdwg.mxu0
      %v1047 = vadd.f32 %v740, %v1017
      %v1048 = vadd.f32 %v743, %v1020
      %v1049 = vadd.f32 %v748, %v1025
      %v1050 = vadd.f32 %v751, %v1028
      %v1051 = vadd.f32 %v756, %v1033
      %v1052 = vadd.f32 %v759, %v1036
      %v1053 = vadd.f32 %v764, %v1041
      %v1054 = vadd.f32 %v767, %v1044
      %s1055 = smul.addr %s442, 4
      %s1056 = scalar_lea.vmem %s414, %s1055
      %v1057 = vld [vmem:[%s1056] sm:$0xf]
      %v1058 = vld [vmem:[%s1056 + $0x8] sm:$0xf]
      %v1059 = vld [vmem:[%s1056 + $0x10] sm:$0xf]
      %v1060 = vld [vmem:[%s1056 + $0x18] sm:$0xf]
      %v1061 = vld [vmem:[%s1056 + $0x20] sm:$0xf]
      %v1062 = vld [vmem:[%s1056 + $0x28] sm:$0xf]
      %v1063 = vld [vmem:[%s1056 + $0x30] sm:$0xf]
      %v1064 = vld [vmem:[%s1056 + $0x38] sm:$0xf]
      %s1065 = scalar_lea.vmem %s4, 192
      %v1066 = vld [vmem:[%s1065] sm:$0xf]
      %v1067 = vld [vmem:[%s1065 + $0x4] sm:$0xf]
      %v1068 = vld [vmem:[%s1065 + $0x8] sm:$0xf]
      %v1069 = vld [vmem:[%s1065 + $0xc] sm:$0xf]
      %v1070 = vld [vmem:[%s1065 + $0x10] sm:$0xf]
      %v1071 = vld [vmem:[%s1065 + $0x14] sm:$0xf]
      %v1072 = vld [vmem:[%s1065 + $0x18] sm:$0xf]
      %v1073 = vld [vmem:[%s1065 + $0x1c] sm:$0xf]
      %v1074 = vld [vmem:[%s1065 + $0x20] sm:$0xf]
      %v1075 = vld [vmem:[%s1065 + $0x24] sm:$0xf]
      %v1076 = vld [vmem:[%s1065 + $0x28] sm:$0xf]
      %v1077 = vld [vmem:[%s1065 + $0x2c] sm:$0xf]
      %v1078 = vld [vmem:[%s1065 + $0x30] sm:$0xf]
      %v1079 = vld [vmem:[%s1065 + $0x34] sm:$0xf]
      %v1080 = vld [vmem:[%s1065 + $0x38] sm:$0xf]
      %v1081 = vld [vmem:[%s1065 + $0x3c] sm:$0xf]
      %v1090 = vunpack.c.l.b16 %v1057
      %v1091 = vunpack.c.l.b16 %v1058
      %v1092 = vunpack.c.l.b16 %v1059
      %v1093 = vunpack.c.l.b16 %v1060
      %v1094 = vunpack.c.l.b16 %v1061
      %v1095 = vunpack.c.l.b16 %v1062
      %v1096 = vunpack.c.l.b16 %v1063
      %v1097 = vunpack.c.l.b16 %v1064
      %v1098 = vpack.c.b16 %v1091, %v1090
      %v1099 = vpack.c.b16 %v1093, %v1092
      %v1100 = vpack.c.b16 %v1095, %v1094
      %v1101 = vpack.c.b16 %v1097, %v1096
      %v1122 = vunpack.c.l.b16 %v1066
      %v1123 = vunpack.c.l.b16 %v1067
      %v1124 = vunpack.c.l.b16 %v1068
      %v1125 = vunpack.c.l.b16 %v1069
      %v1126 = vunpack.c.l.b16 %v1070
      %v1127 = vunpack.c.l.b16 %v1071
      %v1128 = vunpack.c.l.b16 %v1072
      %v1129 = vunpack.c.l.b16 %v1073
      %v1130 = vunpack.c.l.b16 %v1074
      %v1131 = vunpack.c.l.b16 %v1075
      %v1132 = vunpack.c.l.b16 %v1076
      %v1133 = vunpack.c.l.b16 %v1077
      %v1134 = vunpack.c.l.b16 %v1078
      %v1135 = vunpack.c.l.b16 %v1079
      %v1136 = vunpack.c.l.b16 %v1080
      %v1137 = vunpack.c.l.b16 %v1081
      %v1138 = vpack.c.b16 %v1123, %v1122
      %v1139 = vpack.c.b16 %v1125, %v1124
      %v1140 = vpack.c.b16 %v1127, %v1126
      %v1141 = vpack.c.b16 %v1129, %v1128
      %v1142 = vpack.c.b16 %v1131, %v1130
      %v1143 = vpack.c.b16 %v1133, %v1132
      %v1144 = vpack.c.b16 %v1135, %v1134
      %v1145 = vpack.c.b16 %v1137, %v1136
      %1154 = vmatprep.subr.bf16.mxu0 0
      %1155 = vmatpush1.bf16.msra.mxu0 %v1138
      %1156 = vmatprep.subr.bf16.mxu0 0
      %1157 = vmatpush1.bf16.msra.mxu0 %v1139
      %1158 = vmatprep.subr.bf16.mxu0 0
      %1159 = vmatpush1.bf16.msra.mxu0 %v1140
      %1160 = vmatprep.subr.bf16.mxu0 0
      %1161 = vmatpush1.bf16.msra.mxu0 %v1141
      %1162 = vmatprep.subr.bf16.mxu0 0
      %1163 = vmatpush1.bf16.msra.mxu0 %v1142
      %1164 = vmatprep.subr.bf16.mxu0 0
      %1165 = vmatpush1.bf16.msra.mxu0 %v1143
      %1166 = vmatprep.subr.bf16.mxu0 0
      %1167 = vmatpush1.bf16.msra.mxu0 %v1144
      %1168 = vmatprep.subr.bf16.mxu0 0
      %1169 = vmatpush1.bf16.msra.mxu0 %v1145
      %1170 = vmatprep.subr.bf16.mxu0 0
      %1171 = vmatpush1.bf16.msra.mxu0 0
      %1172 = vmatprep.subr.bf16.mxu0 0
      %1173 = vmatpush1.bf16.msra.mxu0 0
      %1174 = vmatprep.subr.bf16.mxu0 0
      %1175 = vmatpush1.bf16.msra.mxu0 0
      %1176 = vmatprep.subr.bf16.mxu0 0
      %1177 = vmatpush1.bf16.msra.mxu0 0
      %1178 = vmatprep.subr.bf16.mxu0 0
      %1179 = vmatpush1.bf16.msra.mxu0 0
      %1180 = vmatprep.subr.bf16.mxu0 0
      %1181 = vmatpush1.bf16.msra.mxu0 0
      %1182 = vmatprep.subr.bf16.mxu0 0
      %1183 = vmatpush1.bf16.msra.mxu0 0
      %1184 = vmatprep.subr.bf16.mxu0 0
      %1185 = vmatpush1.bf16.msra.mxu0 0
      %1186 = vmatprep.mubr.bf16.mxu0 0
      %1187 = vmatmul.mubr.bf16.gmra.mrb[0].mxu0 %v1098
      %v1188 = vpop.f32.mrb[0].mxu0
      %v1189 = vadd.f32 0.0, %v1188
      %v1190 = vpop.f32.mrb[0].mxu0
      %v1191 = vpop.f32.mrb[0].mxu0
      %v1192 = vadd.f32 0.0, %v1191
      %v1193 = vpop.f32.mrb[0].mxu0
      %1194 = vmatprep.mubr.bf16.mxu0 0
      %1195 = vmatmul.mubr.bf16.gmra.mrb[0].mxu0 %v1099
      %v1196 = vpop.f32.mrb[0].mxu0
      %v1197 = vadd.f32 0.0, %v1196
      %v1198 = vpop.f32.mrb[0].mxu0
      %v1199 = vpop.f32.mrb[0].mxu0
      %v1200 = vadd.f32 0.0, %v1199
      %v1201 = vpop.f32.mrb[0].mxu0
      %1202 = vmatprep.mubr.bf16.mxu0 0
      %1203 = vmatmul.mubr.bf16.gmra.mrb[0].mxu0 %v1100
      %v1204 = vpop.f32.mrb[0].mxu0
      %v1205 = vadd.f32 0.0, %v1204
      %v1206 = vpop.f32.mrb[0].mxu0
      %v1207 = vpop.f32.mrb[0].mxu0
      %v1208 = vadd.f32 0.0, %v1207
      %v1209 = vpop.f32.mrb[0].mxu0
      %1210 = vmatprep.mubr.bf16.mxu0 0
      %1211 = vmatmul.mubr.bf16.gmra.mrb[0].mxu0 %v1101
      %v1212 = vpop.f32.mrb[0].mxu0
      %v1213 = vadd.f32 0.0, %v1212
      %v1214 = vpop.f32.mrb[0].mxu0
      %v1215 = vpop.f32.mrb[0].mxu0
      %v1216 = vadd.f32 0.0, %v1215
      %v1217 = vpop.f32.mrb[0].mxu0
      %1218 = vdwg.mxu0
      %v1219 = vadd.f32 %v1047, %v1189
      %v1220 = vadd.f32 %v1048, %v1192
      %v1221 = vadd.f32 %v1049, %v1197
      %v1222 = vadd.f32 %v1050, %v1200
      %v1223 = vadd.f32 %v1051, %v1205
      %v1224 = vadd.f32 %v1052, %v1208
      %v1225 = vadd.f32 %v1053, %v1213
      %v1226 = vadd.f32 %v1054, %v1216
      %s1227 = smul.addr %s442, 4
      %s1228 = scalar_lea.vmem %s419, %s1227
      %v1229 = vld [vmem:[%s1228] sm:$0xf]
      %v1230 = vld [vmem:[%s1228 + $0x8] sm:$0xf]
      %v1231 = vld [vmem:[%s1228 + $0x10] sm:$0xf]
      %v1232 = vld [vmem:[%s1228 + $0x18] sm:$0xf]
      %v1233 = vld [vmem:[%s1228 + $0x20] sm:$0xf]
      %v1234 = vld [vmem:[%s1228 + $0x28] sm:$0xf]
      %v1235 = vld [vmem:[%s1228 + $0x30] sm:$0xf]
      %v1236 = vld [vmem:[%s1228 + $0x38] sm:$0xf]
      %s1237 = scalar_lea.vmem %s4, 256
      %v1238 = vld [vmem:[%s1237] sm:$0xf]
      %v1239 = vld [vmem:[%s1237 + $0x4] sm:$0xf]
      %v1240 = vld [vmem:[%s1237 + $0x8] sm:$0xf]
      %v1241 = vld [vmem:[%s1237 + $0xc] sm:$0xf]
      %v1242 = vld [vmem:[%s1237 + $0x10] sm:$0xf]
      %v1243 = vld [vmem:[%s1237 + $0x14] sm:$0xf]
      %v1244 = vld [vmem:[%s1237 + $0x18] sm:$0xf]
      %v1245 = vld [vmem:[%s1237 + $0x1c] sm:$0xf]
      %v1246 = vld [vmem:[%s1237 + $0x20] sm:$0xf]
      %v1247 = vld [vmem:[%s1237 + $0x24] sm:$0xf]
      %v1248 = vld [vmem:[%s1237 + $0x28] sm:$0xf]
      %v1249 = vld [vmem:[%s1237 + $0x2c] sm:$0xf]
      %v1250 = vld [vmem:[%s1237 + $0x30] sm:$0xf]
      %v1251 = vld [vmem:[%s1237 + $0x34] sm:$0xf]
      %v1252 = vld [vmem:[%s1237 + $0x38] sm:$0xf]
      %v1253 = vld [vmem:[%s1237 + $0x3c] sm:$0xf]
      %v1262 = vunpack.c.l.b16 %v1229
      %v1263 = vunpack.c.l.b16 %v1230
      %v1264 = vunpack.c.l.b16 %v1231
      %v1265 = vunpack.c.l.b16 %v1232
      %v1266 = vunpack.c.l.b16 %v1233
      %v1267 = vunpack.c.l.b16 %v1234
      %v1268 = vunpack.c.l.b16 %v1235
      %v1269 = vunpack.c.l.b16 %v1236
      %v1270 = vpack.c.b16 %v1263, %v1262
      %v1271 = vpack.c.b16 %v1265, %v1264
      %v1272 = vpack.c.b16 %v1267, %v1266
      %v1273 = vpack.c.b16 %v1269, %v1268
      %v1294 = vunpack.c.l.b16 %v1238
      %v1295 = vunpack.c.l.b16 %v1239
      %v1296 = vunpack.c.l.b16 %v1240
      %v1297 = vunpack.c.l.b16 %v1241
      %v1298 = vunpack.c.l.b16 %v1242
      %v1299 = vunpack.c.l.b16 %v1243
      %v1300 = vunpack.c.l.b16 %v1244
      %v1301 = vunpack.c.l.b16 %v1245
      %v1302 = vunpack.c.l.b16 %v1246
      %v1303 = vunpack.c.l.b16 %v1247
      %v1304 = vunpack.c.l.b16 %v1248
      %v1305 = vunpack.c.l.b16 %v1249
      %v1306 = vunpack.c.l.b16 %v1250
      %v1307 = vunpack.c.l.b16 %v1251
      %v1308 = vunpack.c.l.b16 %v1252
      %v1309 = vunpack.c.l.b16 %v1253
      %v1310 = vpack.c.b16 %v1295, %v1294
      %v1311 = vpack.c.b16 %v1297, %v1296
      %v1312 = vpack.c.b16 %v1299, %v1298
      %v1313 = vpack.c.b16 %v1301, %v1300
      %v1314 = vpack.c.b16 %v1303, %v1302
      %v1315 = vpack.c.b16 %v1305, %v1304
      %v1316 = vpack.c.b16 %v1307, %v1306
      %v1317 = vpack.c.b16 %v1309, %v1308
      %1326 = vmatprep.subr.bf16.mxu0 0
      %1327 = vmatpush1.bf16.msra.mxu0 %v1310
      %1328 = vmatprep.subr.bf16.mxu0 0
      %1329 = vmatpush1.bf16.msra.mxu0 %v1311
      %1330 = vmatprep.subr.bf16.mxu0 0
      %1331 = vmatpush1.bf16.msra.mxu0 %v1312
      %1332 = vmatprep.subr.bf16.mxu0 0
      %1333 = vmatpush1.bf16.msra.mxu0 %v1313
      %1334 = vmatprep.subr.bf16.mxu0 0
      %1335 = vmatpush1.bf16.msra.mxu0 %v1314
      %1336 = vmatprep.subr.bf16.mxu0 0
      %1337 = vmatpush1.bf16.msra.mxu0 %v1315
      %1338 = vmatprep.subr.bf16.mxu0 0
      %1339 = vmatpush1.bf16.msra.mxu0 %v1316
      %1340 = vmatprep.subr.bf16.mxu0 0
      %1341 = vmatpush1.bf16.msra.mxu0 %v1317
      %1342 = vmatprep.subr.bf16.mxu0 0
      %1343 = vmatpush1.bf16.msra.mxu0 0
      %1344 = vmatprep.subr.bf16.mxu0 0
      %1345 = vmatpush1.bf16.msra.mxu0 0
      %1346 = vmatprep.subr.bf16.mxu0 0
      %1347 = vmatpush1.bf16.msra.mxu0 0
      %1348 = vmatprep.subr.bf16.mxu0 0
      %1349 = vmatpush1.bf16.msra.mxu0 0
      %1350 = vmatprep.subr.bf16.mxu0 0
      %1351 = vmatpush1.bf16.msra.mxu0 0
      %1352 = vmatprep.subr.bf16.mxu0 0
      %1353 = vmatpush1.bf16.msra.mxu0 0
      %1354 = vmatprep.subr.bf16.mxu0 0
      %1355 = vmatpush1.bf16.msra.mxu0 0
      %1356 = vmatprep.subr.bf16.mxu0 0
      %1357 = vmatpush1.bf16.msra.mxu0 0
      %1358 = vmatprep.mubr.bf16.mxu0 0
      %1359 = vmatmul.mubr.bf16.gmra.mrb[0].mxu0 %v1270
      %v1360 = vpop.f32.mrb[0].mxu0
      %v1361 = vadd.f32 0.0, %v1360
      %v1362 = vpop.f32.mrb[0].mxu0
      %v1363 = vpop.f32.mrb[0].mxu0
      %v1364 = vadd.f32 0.0, %v1363
      %v1365 = vpop.f32.mrb[0].mxu0
      %1366 = vmatprep.mubr.bf16.mxu0 0
      %1367 = vmatmul.mubr.bf16.gmra.mrb[0].mxu0 %v1271
      %v1368 = vpop.f32.mrb[0].mxu0
      %v1369 = vadd.f32 0.0, %v1368
      %v1370 = vpop.f32.mrb[0].mxu0
      %v1371 = vpop.f32.mrb[0].mxu0
      %v1372 = vadd.f32 0.0, %v1371
      %v1373 = vpop.f32.mrb[0].mxu0
      %1374 = vmatprep.mubr.bf16.mxu0 0
      %1375 = vmatmul.mubr.bf16.gmra.mrb[0].mxu0 %v1272
      %v1376 = vpop.f32.mrb[0].mxu0
      %v1377 = vadd.f32 0.0, %v1376
      %v1378 = vpop.f32.mrb[0].mxu0
      %v1379 = vpop.f32.mrb[0].mxu0
      %v1380 = vadd.f32 0.0, %v1379
      %v1381 = vpop.f32.mrb[0].mxu0
      %1382 = vmatprep.mubr.bf16.mxu0 0
      %1383 = vmatmul.mubr.bf16.gmra.mrb[0].mxu0 %v1273
      %v1384 = vpop.f32.mrb[0].mxu0
      %v1385 = vadd.f32 0.0, %v1384
      %v1386 = vpop.f32.mrb[0].mxu0
      %v1387 = vpop.f32.mrb[0].mxu0
      %v1388 = vadd.f32 0.0, %v1387
      %v1389 = vpop.f32.mrb[0].mxu0
      %1390 = vdwg.mxu0
      %v1391 = vadd.f32 %v1219, %v1361
      %v1392 = vadd.f32 %v1220, %v1364
      %v1393 = vadd.f32 %v1221, %v1369
      %v1394 = vadd.f32 %v1222, %v1372
      %v1395 = vadd.f32 %v1223, %v1377
      %v1396 = vadd.f32 %v1224, %v1380
      %v1397 = vadd.f32 %v1225, %v1385
      %v1398 = vadd.f32 %v1226, %v1388
      %v1399 = vld [vmem:[%s1056] sm:$0xf]
      %v1400 = vld [vmem:[%s1056 + $0x4] sm:$0x1]
      %v1401 = vld [vmem:[%s1056 + $0x8] sm:$0xf]
      %v1402 = vld [vmem:[%s1056 + $0xc] sm:$0x1]
      %v1403 = vld [vmem:[%s1056 + $0x10] sm:$0xf]
      %v1404 = vld [vmem:[%s1056 + $0x14] sm:$0x1]
      %v1405 = vld [vmem:[%s1056 + $0x18] sm:$0xf]
      %v1406 = vld [vmem:[%s1056 + $0x1c] sm:$0x1]
      %v1407 = vld [vmem:[%s1056 + $0x20] sm:$0xf]
      %v1408 = vld [vmem:[%s1056 + $0x24] sm:$0x1]
      %v1409 = vld [vmem:[%s1056 + $0x28] sm:$0xf]
      %v1410 = vld [vmem:[%s1056 + $0x2c] sm:$0x1]
      %v1411 = vld [vmem:[%s1056 + $0x30] sm:$0xf]
      %v1412 = vld [vmem:[%s1056 + $0x34] sm:$0x1]
      %v1413 = vld [vmem:[%s1056 + $0x38] sm:$0xf]
      %v1414 = vld [vmem:[%s1056 + $0x3c] sm:$0x1]
      %v1416 = vshrl.u32 %v1399, 16
      %v1418 = vrot.slane %v1416, 4
      %v1419 = vshll.u32 %v1399, 16
      %v1421 = vrot.slane %v1419, 5
      %v1422 = vor.u32 %v1418, %v1421
      %v1423 = vrot.slane %v1422, 4
      %v1425 = vshll.u32 %v1400, 16
      %v1427 = vrot.slane %v1425, 5
      %v1428 = vsel %vm788, %v1423, %v1427
      %v1430 = vshrl.u32 %v1401, 16
      %v1432 = vrot.slane %v1430, 4
      %v1433 = vshll.u32 %v1401, 16
      %v1435 = vrot.slane %v1433, 5
      %v1436 = vor.u32 %v1432, %v1435
      %v1437 = vrot.slane %v1436, 4
      %v1439 = vshll.u32 %v1402, 16
      %v1441 = vrot.slane %v1439, 5
      %v1442 = vsel %vm788, %v1437, %v1441
      %v1444 = vshrl.u32 %v1403, 16
      %v1446 = vrot.slane %v1444, 4
      %v1447 = vshll.u32 %v1403, 16
      %v1449 = vrot.slane %v1447, 5
      %v1450 = vor.u32 %v1446, %v1449
      %v1451 = vrot.slane %v1450, 4
      %v1453 = vshll.u32 %v1404, 16
      %v1455 = vrot.slane %v1453, 5
      %v1456 = vsel %vm788, %v1451, %v1455
      %v1458 = vshrl.u32 %v1405, 16
      %v1460 = vrot.slane %v1458, 4
      %v1461 = vshll.u32 %v1405, 16
      %v1463 = vrot.slane %v1461, 5
      %v1464 = vor.u32 %v1460, %v1463
      %v1465 = vrot.slane %v1464, 4
      %v1467 = vshll.u32 %v1406, 16
      %v1469 = vrot.slane %v1467, 5
      %v1470 = vsel %vm788, %v1465, %v1469
      %v1472 = vshrl.u32 %v1407, 16
      %v1474 = vrot.slane %v1472, 4
      %v1475 = vshll.u32 %v1407, 16
      %v1477 = vrot.slane %v1475, 5
      %v1478 = vor.u32 %v1474, %v1477
      %v1479 = vrot.slane %v1478, 4
      %v1481 = vshll.u32 %v1408, 16
      %v1483 = vrot.slane %v1481, 5
      %v1484 = vsel %vm788, %v1479, %v1483
      %v1486 = vshrl.u32 %v1409, 16
      %v1488 = vrot.slane %v1486, 4
      %v1489 = vshll.u32 %v1409, 16
      %v1491 = vrot.slane %v1489, 5
      %v1492 = vor.u32 %v1488, %v1491
      %v1493 = vrot.slane %v1492, 4
      %v1495 = vshll.u32 %v1410, 16
      %v1497 = vrot.slane %v1495, 5
      %v1498 = vsel %vm788, %v1493, %v1497
      %v1500 = vshrl.u32 %v1411, 16
      %v1502 = vrot.slane %v1500, 4
      %v1503 = vshll.u32 %v1411, 16
      %v1505 = vrot.slane %v1503, 5
      %v1506 = vor.u32 %v1502, %v1505
      %v1507 = vrot.slane %v1506, 4
      %v1509 = vshll.u32 %v1412, 16
      %v1511 = vrot.slane %v1509, 5
      %v1512 = vsel %vm788, %v1507, %v1511
      %v1514 = vshrl.u32 %v1413, 16
      %v1516 = vrot.slane %v1514, 4
      %v1517 = vshll.u32 %v1413, 16
      %v1519 = vrot.slane %v1517, 5
      %v1520 = vor.u32 %v1516, %v1519
      %v1521 = vrot.slane %v1520, 4
      %v1523 = vshll.u32 %v1414, 16
      %v1525 = vrot.slane %v1523, 5
      %v1526 = vsel %vm788, %v1521, %v1525
      %s1527 = scalar_lea.vmem %s4, 320
      %v1528 = vld [vmem:[%s1527] sm:$0xf]
      %v1529 = vld [vmem:[%s1527 + $0x4] sm:$0xf]
      %v1530 = vld [vmem:[%s1527 + $0x8] sm:$0xf]
      %v1531 = vld [vmem:[%s1527 + $0xc] sm:$0xf]
      %v1532 = vld [vmem:[%s1527 + $0x10] sm:$0xf]
      %v1533 = vld [vmem:[%s1527 + $0x14] sm:$0xf]
      %v1534 = vld [vmem:[%s1527 + $0x18] sm:$0xf]
      %v1535 = vld [vmem:[%s1527 + $0x1c] sm:$0xf]
      %v1536 = vld [vmem:[%s1527 + $0x20] sm:$0xf]
      %v1537 = vld [vmem:[%s1527 + $0x24] sm:$0xf]
      %v1538 = vld [vmem:[%s1527 + $0x28] sm:$0xf]
      %v1539 = vld [vmem:[%s1527 + $0x2c] sm:$0xf]
      %v1540 = vld [vmem:[%s1527 + $0x30] sm:$0xf]
      %v1541 = vld [vmem:[%s1527 + $0x34] sm:$0xf]
      %v1542 = vld [vmem:[%s1527 + $0x38] sm:$0xf]
      %v1543 = vld [vmem:[%s1527 + $0x3c] sm:$0xf]
      %v1544 = vunpack.c.l.b16 %v1428
      %v1545 = vunpack.c.l.b16 %v1442
      %v1546 = vunpack.c.l.b16 %v1456
      %v1547 = vunpack.c.l.b16 %v1470
      %v1548 = vunpack.c.l.b16 %v1484
      %v1549 = vunpack.c.l.b16 %v1498
      %v1550 = vunpack.c.l.b16 %v1512
      %v1551 = vunpack.c.l.b16 %v1526
      %v1552 = vpack.c.b16 %v1545, %v1544
      %v1553 = vpack.c.b16 %v1547, %v1546
      %v1554 = vpack.c.b16 %v1549, %v1548
      %v1555 = vpack.c.b16 %v1551, %v1550
      %v1576 = vunpack.c.l.b16 %v1528
      %v1577 = vunpack.c.l.b16 %v1529
      %v1578 = vunpack.c.l.b16 %v1530
      %v1579 = vunpack.c.l.b16 %v1531
      %v1580 = vunpack.c.l.b16 %v1532
      %v1581 = vunpack.c.l.b16 %v1533
      %v1582 = vunpack.c.l.b16 %v1534
      %v1583 = vunpack.c.l.b16 %v1535
      %v1584 = vunpack.c.l.b16 %v1536
      %v1585 = vunpack.c.l.b16 %v1537
      %v1586 = vunpack.c.l.b16 %v1538
      %v1587 = vunpack.c.l.b16 %v1539
      %v1588 = vunpack.c.l.b16 %v1540
      %v1589 = vunpack.c.l.b16 %v1541
      %v1590 = vunpack.c.l.b16 %v1542
      %v1591 = vunpack.c.l.b16 %v1543
      %v1592 = vpack.c.b16 %v1577, %v1576
      %v1593 = vpack.c.b16 %v1579, %v1578
      %v1594 = vpack.c.b16 %v1581, %v1580
      %v1595 = vpack.c.b16 %v1583, %v1582
      %v1596 = vpack.c.b16 %v1585, %v1584
      %v1597 = vpack.c.b16 %v1587, %v1586
      %v1598 = vpack.c.b16 %v1589, %v1588
      %v1599 = vpack.c.b16 %v1591, %v1590
      %1608 = vmatprep.subr.bf16.mxu0 0
      %1609 = vmatpush1.bf16.msra.mxu0 %v1592
      %1610 = vmatprep.subr.bf16.mxu0 0
      %1611 = vmatpush1.bf16.msra.mxu0 %v1593
      %1612 = vmatprep.subr.bf16.mxu0 0
      %1613 = vmatpush1.bf16.msra.mxu0 %v1594
      %1614 = vmatprep.subr.bf16.mxu0 0
      %1615 = vmatpush1.bf16.msra.mxu0 %v1595
      %1616 = vmatprep.subr.bf16.mxu0 0
      %1617 = vmatpush1.bf16.msra.mxu0 %v1596
      %1618 = vmatprep.subr.bf16.mxu0 0
      %1619 = vmatpush1.bf16.msra.mxu0 %v1597
      %1620 = vmatprep.subr.bf16.mxu0 0
      %1621 = vmatpush1.bf16.msra.mxu0 %v1598
      %1622 = vmatprep.subr.bf16.mxu0 0
      %1623 = vmatpush1.bf16.msra.mxu0 %v1599
      %1624 = vmatprep.subr.bf16.mxu0 0
      %1625 = vmatpush1.bf16.msra.mxu0 0
      %1626 = vmatprep.subr.bf16.mxu0 0
      %1627 = vmatpush1.bf16.msra.mxu0 0
      %1628 = vmatprep.subr.bf16.mxu0 0
      %1629 = vmatpush1.bf16.msra.mxu0 0
      %1630 = vmatprep.subr.bf16.mxu0 0
      %1631 = vmatpush1.bf16.msra.mxu0 0
      %1632 = vmatprep.subr.bf16.mxu0 0
      %1633 = vmatpush1.bf16.msra.mxu0 0
      %1634 = vmatprep.subr.bf16.mxu0 0
      %1635 = vmatpush1.bf16.msra.mxu0 0
      %1636 = vmatprep.subr.bf16.mxu0 0
      %1637 = vmatpush1.bf16.msra.mxu0 0
      %1638 = vmatprep.subr.bf16.mxu0 0
      %1639 = vmatpush1.bf16.msra.mxu0 0
      %1640 = vmatprep.mubr.bf16.mxu0 0
      %1641 = vmatmul.mubr.bf16.gmra.mrb[0].mxu0 %v1552
      %v1642 = vpop.f32.mrb[0].mxu0
      %v1643 = vadd.f32 0.0, %v1642
      %v1644 = vpop.f32.mrb[0].mxu0
      %v1645 = vpop.f32.mrb[0].mxu0
      %v1646 = vadd.f32 0.0, %v1645
      %v1647 = vpop.f32.mrb[0].mxu0
      %1648 = vmatprep.mubr.bf16.mxu0 0
      %1649 = vmatmul.mubr.bf16.gmra.mrb[0].mxu0 %v1553
      %v1650 = vpop.f32.mrb[0].mxu0
      %v1651 = vadd.f32 0.0, %v1650
      %v1652 = vpop.f32.mrb[0].mxu0
      %v1653 = vpop.f32.mrb[0].mxu0
      %v1654 = vadd.f32 0.0, %v1653
      %v1655 = vpop.f32.mrb[0].mxu0
      %1656 = vmatprep.mubr.bf16.mxu0 0
      %1657 = vmatmul.mubr.bf16.gmra.mrb[0].mxu0 %v1554
      %v1658 = vpop.f32.mrb[0].mxu0
      %v1659 = vadd.f32 0.0, %v1658
      %v1660 = vpop.f32.mrb[0].mxu0
      %v1661 = vpop.f32.mrb[0].mxu0
      %v1662 = vadd.f32 0.0, %v1661
      %v1663 = vpop.f32.mrb[0].mxu0
      %1664 = vmatprep.mubr.bf16.mxu0 0
      %1665 = vmatmul.mubr.bf16.gmra.mrb[0].mxu0 %v1555
      %v1666 = vpop.f32.mrb[0].mxu0
      %v1667 = vadd.f32 0.0, %v1666
      %v1668 = vpop.f32.mrb[0].mxu0
      %v1669 = vpop.f32.mrb[0].mxu0
      %v1670 = vadd.f32 0.0, %v1669
      %v1671 = vpop.f32.mrb[0].mxu0
      %1672 = vdwg.mxu0
      %v1673 = vadd.f32 %v1391, %v1643
      %v1674 = vadd.f32 %v1392, %v1646
      %v1675 = vadd.f32 %v1393, %v1651
      %v1676 = vadd.f32 %v1394, %v1654
      %v1677 = vadd.f32 %v1395, %v1659
      %v1678 = vadd.f32 %v1396, %v1662
      %v1679 = vadd.f32 %v1397, %v1667
      %v1680 = vadd.f32 %v1398, %v1670
      %s1681 = sadd.s32 %s441, 1
      %s1682 = smul.u32 %s1681, 2
      %s1683 = smul.addr %s1682, 4
      %s1684 = scalar_lea.vmem %s404, %s1683
      %v1685 = vld [vmem:[%s1684] sm:$0xf]
      %v1686 = vld [vmem:[%s1684 + $0x8] sm:$0xf]
      %v1687 = vld [vmem:[%s1684 + $0x10] sm:$0xf]
      %v1688 = vld [vmem:[%s1684 + $0x18] sm:$0xf]
      %v1689 = vld [vmem:[%s1684 + $0x20] sm:$0xf]
      %v1690 = vld [vmem:[%s1684 + $0x28] sm:$0xf]
      %v1691 = vld [vmem:[%s1684 + $0x30] sm:$0xf]
      %v1692 = vld [vmem:[%s1684 + $0x38] sm:$0xf]
      %s1693 = scalar_lea.vmem %s4, 384
      %v1694 = vld [vmem:[%s1693] sm:$0xf]
      %v1695 = vld [vmem:[%s1693 + $0x4] sm:$0xf]
      %v1696 = vld [vmem:[%s1693 + $0x8] sm:$0xf]
      %v1697 = vld [vmem:[%s1693 + $0xc] sm:$0xf]
      %v1698 = vld [vmem:[%s1693 + $0x10] sm:$0xf]
      %v1699 = vld [vmem:[%s1693 + $0x14] sm:$0xf]
      %v1700 = vld [vmem:[%s1693 + $0x18] sm:$0xf]
      %v1701 = vld [vmem:[%s1693 + $0x1c] sm:$0xf]
      %v1702 = vld [vmem:[%s1693 + $0x20] sm:$0xf]
      %v1703 = vld [vmem:[%s1693 + $0x24] sm:$0xf]
      %v1704 = vld [vmem:[%s1693 + $0x28] sm:$0xf]
      %v1705 = vld [vmem:[%s1693 + $0x2c] sm:$0xf]
      %v1706 = vld [vmem:[%s1693 + $0x30] sm:$0xf]
      %v1707 = vld [vmem:[%s1693 + $0x34] sm:$0xf]
      %v1708 = vld [vmem:[%s1693 + $0x38] sm:$0xf]
      %v1709 = vld [vmem:[%s1693 + $0x3c] sm:$0xf]
      %v1718 = vunpack.c.l.b16 %v1685
      %v1719 = vunpack.c.l.b16 %v1686
      %v1720 = vunpack.c.l.b16 %v1687
      %v1721 = vunpack.c.l.b16 %v1688
      %v1722 = vunpack.c.l.b16 %v1689
      %v1723 = vunpack.c.l.b16 %v1690
      %v1724 = vunpack.c.l.b16 %v1691
      %v1725 = vunpack.c.l.b16 %v1692
      %v1726 = vpack.c.b16 %v1719, %v1718
      %v1727 = vpack.c.b16 %v1721, %v1720
      %v1728 = vpack.c.b16 %v1723, %v1722
      %v1729 = vpack.c.b16 %v1725, %v1724
      %v1750 = vunpack.c.l.b16 %v1694
      %v1751 = vunpack.c.l.b16 %v1695
      %v1752 = vunpack.c.l.b16 %v1696
      %v1753 = vunpack.c.l.b16 %v1697
      %v1754 = vunpack.c.l.b16 %v1698
      %v1755 = vunpack.c.l.b16 %v1699
      %v1756 = vunpack.c.l.b16 %v1700
      %v1757 = vunpack.c.l.b16 %v1701
      %v1758 = vunpack.c.l.b16 %v1702
      %v1759 = vunpack.c.l.b16 %v1703
      %v1760 = vunpack.c.l.b16 %v1704
      %v1761 = vunpack.c.l.b16 %v1705
      %v1762 = vunpack.c.l.b16 %v1706
      %v1763 = vunpack.c.l.b16 %v1707
      %v1764 = vunpack.c.l.b16 %v1708
      %v1765 = vunpack.c.l.b16 %v1709
      %v1766 = vpack.c.b16 %v1751, %v1750
      %v1767 = vpack.c.b16 %v1753, %v1752
      %v1768 = vpack.c.b16 %v1755, %v1754
      %v1769 = vpack.c.b16 %v1757, %v1756
      %v1770 = vpack.c.b16 %v1759, %v1758
      %v1771 = vpack.c.b16 %v1761, %v1760
      %v1772 = vpack.c.b16 %v1763, %v1762
      %v1773 = vpack.c.b16 %v1765, %v1764
      %1782 = vmatprep.subr.bf16.mxu0 0
      %1783 = vmatpush1.bf16.msra.mxu0 %v1766
      %1784 = vmatprep.subr.bf16.mxu0 0
      %1785 = vmatpush1.bf16.msra.mxu0 %v1767
      %1786 = vmatprep.subr.bf16.mxu0 0
      %1787 = vmatpush1.bf16.msra.mxu0 %v1768
      %1788 = vmatprep.subr.bf16.mxu0 0
      %1789 = vmatpush1.bf16.msra.mxu0 %v1769
      %1790 = vmatprep.subr.bf16.mxu0 0
      %1791 = vmatpush1.bf16.msra.mxu0 %v1770
      %1792 = vmatprep.subr.bf16.mxu0 0
      %1793 = vmatpush1.bf16.msra.mxu0 %v1771
      %1794 = vmatprep.subr.bf16.mxu0 0
      %1795 = vmatpush1.bf16.msra.mxu0 %v1772
      %1796 = vmatprep.subr.bf16.mxu0 0
      %1797 = vmatpush1.bf16.msra.mxu0 %v1773
      %1798 = vmatprep.subr.bf16.mxu0 0
      %1799 = vmatpush1.bf16.msra.mxu0 0
      %1800 = vmatprep.subr.bf16.mxu0 0
      %1801 = vmatpush1.bf16.msra.mxu0 0
      %1802 = vmatprep.subr.bf16.mxu0 0
      %1803 = vmatpush1.bf16.msra.mxu0 0
      %1804 = vmatprep.subr.bf16.mxu0 0
      %1805 = vmatpush1.bf16.msra.mxu0 0
      %1806 = vmatprep.subr.bf16.mxu0 0
      %1807 = vmatpush1.bf16.msra.mxu0 0
      %1808 = vmatprep.subr.bf16.mxu0 0
      %1809 = vmatpush1.bf16.msra.mxu0 0
      %1810 = vmatprep.subr.bf16.mxu0 0
      %1811 = vmatpush1.bf16.msra.mxu0 0
      %1812 = vmatprep.subr.bf16.mxu0 0
      %1813 = vmatpush1.bf16.msra.mxu0 0
      %1814 = vmatprep.mubr.bf16.mxu0 0
      %1815 = vmatmul.mubr.bf16.gmra.mrb[0].mxu0 %v1726
      %v1816 = vpop.f32.mrb[0].mxu0
      %v1817 = vadd.f32 0.0, %v1816
      %v1818 = vpop.f32.mrb[0].mxu0
      %v1819 = vpop.f32.mrb[0].mxu0
      %v1820 = vadd.f32 0.0, %v1819
      %v1821 = vpop.f32.mrb[0].mxu0
      %1822 = vmatprep.mubr.bf16.mxu0 0
      %1823 = vmatmul.mubr.bf16.gmra.mrb[0].mxu0 %v1727
      %v1824 = vpop.f32.mrb[0].mxu0
      %v1825 = vadd.f32 0.0, %v1824
      %v1826 = vpop.f32.mrb[0].mxu0
      %v1827 = vpop.f32.mrb[0].mxu0
      %v1828 = vadd.f32 0.0, %v1827
      %v1829 = vpop.f32.mrb[0].mxu0
      %1830 = vmatprep.mubr.bf16.mxu0 0
      %1831 = vmatmul.mubr.bf16.gmra.mrb[0].mxu0 %v1728
      %v1832 = vpop.f32.mrb[0].mxu0
      %v1833 = vadd.f32 0.0, %v1832
      %v1834 = vpop.f32.mrb[0].mxu0
      %v1835 = vpop.f32.mrb[0].mxu0
      %v1836 = vadd.f32 0.0, %v1835
      %v1837 = vpop.f32.mrb[0].mxu0
      %1838 = vmatprep.mubr.bf16.mxu0 0
      %1839 = vmatmul.mubr.bf16.gmra.mrb[0].mxu0 %v1729
      %v1840 = vpop.f32.mrb[0].mxu0
      %v1841 = vadd.f32 0.0, %v1840
      %v1842 = vpop.f32.mrb[0].mxu0
      %v1843 = vpop.f32.mrb[0].mxu0
      %v1844 = vadd.f32 0.0, %v1843
      %v1845 = vpop.f32.mrb[0].mxu0
      %1846 = vdwg.mxu0
      %v1847 = vadd.f32 %v1673, %v1817
      %v1848 = vadd.f32 %v1674, %v1820
      %v1849 = vadd.f32 %v1675, %v1825
      %v1850 = vadd.f32 %v1676, %v1828
      %v1851 = vadd.f32 %v1677, %v1833
      %v1852 = vadd.f32 %v1678, %v1836
      %v1853 = vadd.f32 %v1679, %v1841
      %v1854 = vadd.f32 %v1680, %v1844
      %s1855 = smul.addr %s1682, 4
      %s1856 = scalar_lea.vmem %s409, %s1855
      %v1857 = vld [vmem:[%s1856] sm:$0xf]
      %v1858 = vld [vmem:[%s1856 + $0x8] sm:$0xf]
      %v1859 = vld [vmem:[%s1856 + $0x10] sm:$0xf]
      %v1860 = vld [vmem:[%s1856 + $0x18] sm:$0xf]
      %v1861 = vld [vmem:[%s1856 + $0x20] sm:$0xf]
      %v1862 = vld [vmem:[%s1856 + $0x28] sm:$0xf]
      %v1863 = vld [vmem:[%s1856 + $0x30] sm:$0xf]
      %v1864 = vld [vmem:[%s1856 + $0x38] sm:$0xf]
      %s1865 = scalar_lea.vmem %s4, 448
      %v1866 = vld [vmem:[%s1865] sm:$0xf]
      %v1867 = vld [vmem:[%s1865 + $0x4] sm:$0xf]
      %v1868 = vld [vmem:[%s1865 + $0x8] sm:$0xf]
      %v1869 = vld [vmem:[%s1865 + $0xc] sm:$0xf]
      %v1870 = vld [vmem:[%s1865 + $0x10] sm:$0xf]
      %v1871 = vld [vmem:[%s1865 + $0x14] sm:$0xf]
      %v1872 = vld [vmem:[%s1865 + $0x18] sm:$0xf]
      %v1873 = vld [vmem:[%s1865 + $0x1c] sm:$0xf]
      %v1874 = vld [vmem:[%s1865 + $0x20] sm:$0xf]
      %v1875 = vld [vmem:[%s1865 + $0x24] sm:$0xf]
      %v1876 = vld [vmem:[%s1865 + $0x28] sm:$0xf]
      %v1877 = vld [vmem:[%s1865 + $0x2c] sm:$0xf]
      %v1878 = vld [vmem:[%s1865 + $0x30] sm:$0xf]
      %v1879 = vld [vmem:[%s1865 + $0x34] sm:$0xf]
      %v1880 = vld [vmem:[%s1865 + $0x38] sm:$0xf]
      %v1881 = vld [vmem:[%s1865 + $0x3c] sm:$0xf]
      %v1890 = vunpack.c.l.b16 %v1857
      %v1891 = vunpack.c.l.b16 %v1858
      %v1892 = vunpack.c.l.b16 %v1859
      %v1893 = vunpack.c.l.b16 %v1860
      %v1894 = vunpack.c.l.b16 %v1861
      %v1895 = vunpack.c.l.b16 %v1862
      %v1896 = vunpack.c.l.b16 %v1863
      %v1897 = vunpack.c.l.b16 %v1864
      %v1898 = vpack.c.b16 %v1891, %v1890
      %v1899 = vpack.c.b16 %v1893, %v1892
      %v1900 = vpack.c.b16 %v1895, %v1894
      %v1901 = vpack.c.b16 %v1897, %v1896
      %v1922 = vunpack.c.l.b16 %v1866
      %v1923 = vunpack.c.l.b16 %v1867
      %v1924 = vunpack.c.l.b16 %v1868
      %v1925 = vunpack.c.l.b16 %v1869
      %v1926 = vunpack.c.l.b16 %v1870
      %v1927 = vunpack.c.l.b16 %v1871
      %v1928 = vunpack.c.l.b16 %v1872
      %v1929 = vunpack.c.l.b16 %v1873
      %v1930 = vunpack.c.l.b16 %v1874
      %v1931 = vunpack.c.l.b16 %v1875
      %v1932 = vunpack.c.l.b16 %v1876
      %v1933 = vunpack.c.l.b16 %v1877
      %v1934 = vunpack.c.l.b16 %v1878
      %v1935 = vunpack.c.l.b16 %v1879
      %v1936 = vunpack.c.l.b16 %v1880
      %v1937 = vunpack.c.l.b16 %v1881
      %v1938 = vpack.c.b16 %v1923, %v1922
      %v1939 = vpack.c.b16 %v1925, %v1924
      %v1940 = vpack.c.b16 %v1927, %v1926
      %v1941 = vpack.c.b16 %v1929, %v1928
      %v1942 = vpack.c.b16 %v1931, %v1930
      %v1943 = vpack.c.b16 %v1933, %v1932
      %v1944 = vpack.c.b16 %v1935, %v1934
      %v1945 = vpack.c.b16 %v1937, %v1936
      %1954 = vmatprep.subr.bf16.mxu0 0
      %1955 = vmatpush1.bf16.msra.mxu0 %v1938
      %1956 = vmatprep.subr.bf16.mxu0 0
      %1957 = vmatpush1.bf16.msra.mxu0 %v1939
      %1958 = vmatprep.subr.bf16.mxu0 0
      %1959 = vmatpush1.bf16.msra.mxu0 %v1940
      %1960 = vmatprep.subr.bf16.mxu0 0
      %1961 = vmatpush1.bf16.msra.mxu0 %v1941
      %1962 = vmatprep.subr.bf16.mxu0 0
      %1963 = vmatpush1.bf16.msra.mxu0 %v1942
      %1964 = vmatprep.subr.bf16.mxu0 0
      %1965 = vmatpush1.bf16.msra.mxu0 %v1943
      %1966 = vmatprep.subr.bf16.mxu0 0
      %1967 = vmatpush1.bf16.msra.mxu0 %v1944
      %1968 = vmatprep.subr.bf16.mxu0 0
      %1969 = vmatpush1.bf16.msra.mxu0 %v1945
      %1970 = vmatprep.subr.bf16.mxu0 0
      %1971 = vmatpush1.bf16.msra.mxu0 0
      %1972 = vmatprep.subr.bf16.mxu0 0
      %1973 = vmatpush1.bf16.msra.mxu0 0
      %1974 = vmatprep.subr.bf16.mxu0 0
      %1975 = vmatpush1.bf16.msra.mxu0 0
      %1976 = vmatprep.subr.bf16.mxu0 0
      %1977 = vmatpush1.bf16.msra.mxu0 0
      %1978 = vmatprep.subr.bf16.mxu0 0
      %1979 = vmatpush1.bf16.msra.mxu0 0
      %1980 = vmatprep.subr.bf16.mxu0 0
      %1981 = vmatpush1.bf16.msra.mxu0 0
      %1982 = vmatprep.subr.bf16.mxu0 0
      %1983 = vmatpush1.bf16.msra.mxu0 0
      %1984 = vmatprep.subr.bf16.mxu0 0
      %1985 = vmatpush1.bf16.msra.mxu0 0
      %1986 = vmatprep.mubr.bf16.mxu0 0
      %1987 = vmatmul.mubr.bf16.gmra.mrb[0].mxu0 %v1898
      %v1988 = vpop.f32.mrb[0].mxu0
      %v1989 = vadd.f32 0.0, %v1988
      %v1990 = vpop.f32.mrb[0].mxu0
      %v1991 = vpop.f32.mrb[0].mxu0
      %v1992 = vadd.f32 0.0, %v1991
      %v1993 = vpop.f32.mrb[0].mxu0
      %1994 = vmatprep.mubr.bf16.mxu0 0
      %1995 = vmatmul.mubr.bf16.gmra.mrb[0].mxu0 %v1899
      %v1996 = vpop.f32.mrb[0].mxu0
      %v1997 = vadd.f32 0.0, %v1996
      %v1998 = vpop.f32.mrb[0].mxu0
      %v1999 = vpop.f32.mrb[0].mxu0
      %v2000 = vadd.f32 0.0, %v1999
      %v2001 = vpop.f32.mrb[0].mxu0
      %2002 = vmatprep.mubr.bf16.mxu0 0
      %2003 = vmatmul.mubr.bf16.gmra.mrb[0].mxu0 %v1900
      %v2004 = vpop.f32.mrb[0].mxu0
      %v2005 = vadd.f32 0.0, %v2004
      %v2006 = vpop.f32.mrb[0].mxu0
      %v2007 = vpop.f32.mrb[0].mxu0
      %v2008 = vadd.f32 0.0, %v2007
      %v2009 = vpop.f32.mrb[0].mxu0
      %2010 = vmatprep.mubr.bf16.mxu0 0
      %2011 = vmatmul.mubr.bf16.gmra.mrb[0].mxu0 %v1901
      %v2012 = vpop.f32.mrb[0].mxu0
      %v2013 = vadd.f32 0.0, %v2012
      %v2014 = vpop.f32.mrb[0].mxu0
      %v2015 = vpop.f32.mrb[0].mxu0
      %v2016 = vadd.f32 0.0, %v2015
      %v2017 = vpop.f32.mrb[0].mxu0
      %2018 = vdwg.mxu0
      %v2019 = vadd.f32 %v1847, %v1989
      %v2020 = vadd.f32 %v1848, %v1992
      %v2021 = vadd.f32 %v1849, %v1997
      %v2022 = vadd.f32 %v1850, %v2000
      %v2023 = vadd.f32 %v1851, %v2005
      %v2024 = vadd.f32 %v1852, %v2008
      %v2025 = vadd.f32 %v1853, %v2013
      %v2026 = vadd.f32 %v1854, %v2016
      %v2027 = vld [vmem:[%s1684] sm:$0xf]
      %v2028 = vld [vmem:[%s1684 + $0x4] sm:$0x1]
      %v2029 = vld [vmem:[%s1684 + $0x8] sm:$0xf]
      %v2030 = vld [vmem:[%s1684 + $0xc] sm:$0x1]
      %v2031 = vld [vmem:[%s1684 + $0x10] sm:$0xf]
      %v2032 = vld [vmem:[%s1684 + $0x14] sm:$0x1]
      %v2033 = vld [vmem:[%s1684 + $0x18] sm:$0xf]
      %v2034 = vld [vmem:[%s1684 + $0x1c] sm:$0x1]
      %v2035 = vld [vmem:[%s1684 + $0x20] sm:$0xf]
      %v2036 = vld [vmem:[%s1684 + $0x24] sm:$0x1]
      %v2037 = vld [vmem:[%s1684 + $0x28] sm:$0xf]
      %v2038 = vld [vmem:[%s1684 + $0x2c] sm:$0x1]
      %v2039 = vld [vmem:[%s1684 + $0x30] sm:$0xf]
      %v2040 = vld [vmem:[%s1684 + $0x34] sm:$0x1]
      %v2041 = vld [vmem:[%s1684 + $0x38] sm:$0xf]
      %v2042 = vld [vmem:[%s1684 + $0x3c] sm:$0x1]
      %v2044 = vshrl.u32 %v2027, 16
      %v2046 = vrot.slane %v2044, 4
      %v2047 = vshll.u32 %v2027, 16
      %v2049 = vrot.slane %v2047, 5
      %v2050 = vor.u32 %v2046, %v2049
      %v2051 = vrot.slane %v2050, 4
      %v2053 = vshll.u32 %v2028, 16
      %v2055 = vrot.slane %v2053, 5
      %v2056 = vsel %vm788, %v2051, %v2055
      %v2058 = vshrl.u32 %v2029, 16
      %v2060 = vrot.slane %v2058, 4
      %v2061 = vshll.u32 %v2029, 16
      %v2063 = vrot.slane %v2061, 5
      %v2064 = vor.u32 %v2060, %v2063
      %v2065 = vrot.slane %v2064, 4
      %v2067 = vshll.u32 %v2030, 16
      %v2069 = vrot.slane %v2067, 5
      %v2070 = vsel %vm788, %v2065, %v2069
      %v2072 = vshrl.u32 %v2031, 16
      %v2074 = vrot.slane %v2072, 4
      %v2075 = vshll.u32 %v2031, 16
      %v2077 = vrot.slane %v2075, 5
      %v2078 = vor.u32 %v2074, %v2077
      %v2079 = vrot.slane %v2078, 4
      %v2081 = vshll.u32 %v2032, 16
      %v2083 = vrot.slane %v2081, 5
      %v2084 = vsel %vm788, %v2079, %v2083
      %v2086 = vshrl.u32 %v2033, 16
      %v2088 = vrot.slane %v2086, 4
      %v2089 = vshll.u32 %v2033, 16
      %v2091 = vrot.slane %v2089, 5
      %v2092 = vor.u32 %v2088, %v2091
      %v2093 = vrot.slane %v2092, 4
      %v2095 = vshll.u32 %v2034, 16
      %v2097 = vrot.slane %v2095, 5
      %v2098 = vsel %vm788, %v2093, %v2097
      %v2100 = vshrl.u32 %v2035, 16
      %v2102 = vrot.slane %v2100, 4
      %v2103 = vshll.u32 %v2035, 16
      %v2105 = vrot.slane %v2103, 5
      %v2106 = vor.u32 %v2102, %v2105
      %v2107 = vrot.slane %v2106, 4
      %v2109 = vshll.u32 %v2036, 16
      %v2111 = vrot.slane %v2109, 5
      %v2112 = vsel %vm788, %v2107, %v2111
      %v2114 = vshrl.u32 %v2037, 16
      %v2116 = vrot.slane %v2114, 4
      %v2117 = vshll.u32 %v2037, 16
      %v2119 = vrot.slane %v2117, 5
      %v2120 = vor.u32 %v2116, %v2119
      %v2121 = vrot.slane %v2120, 4
      %v2123 = vshll.u32 %v2038, 16
      %v2125 = vrot.slane %v2123, 5
      %v2126 = vsel %vm788, %v2121, %v2125
      %v2128 = vshrl.u32 %v2039, 16
      %v2130 = vrot.slane %v2128, 4
      %v2131 = vshll.u32 %v2039, 16
      %v2133 = vrot.slane %v2131, 5
      %v2134 = vor.u32 %v2130, %v2133
      %v2135 = vrot.slane %v2134, 4
      %v2137 = vshll.u32 %v2040, 16
      %v2139 = vrot.slane %v2137, 5
      %v2140 = vsel %vm788, %v2135, %v2139
      %v2142 = vshrl.u32 %v2041, 16
      %v2144 = vrot.slane %v2142, 4
      %v2145 = vshll.u32 %v2041, 16
      %v2147 = vrot.slane %v2145, 5
      %v2148 = vor.u32 %v2144, %v2147
      %v2149 = vrot.slane %v2148, 4
      %v2151 = vshll.u32 %v2042, 16
      %v2153 = vrot.slane %v2151, 5
      %v2154 = vsel %vm788, %v2149, %v2153
      %s2155 = scalar_lea.vmem %s4, 512
      %v2156 = vld [vmem:[%s2155] sm:$0xf]
      %v2157 = vld [vmem:[%s2155 + $0x4] sm:$0xf]
      %v2158 = vld [vmem:[%s2155 + $0x8] sm:$0xf]
      %v2159 = vld [vmem:[%s2155 + $0xc] sm:$0xf]
      %v2160 = vld [vmem:[%s2155 + $0x10] sm:$0xf]
      %v2161 = vld [vmem:[%s2155 + $0x14] sm:$0xf]
      %v2162 = vld [vmem:[%s2155 + $0x18] sm:$0xf]
      %v2163 = vld [vmem:[%s2155 + $0x1c] sm:$0xf]
      %v2164 = vld [vmem:[%s2155 + $0x20] sm:$0xf]
      %v2165 = vld [vmem:[%s2155 + $0x24] sm:$0xf]
      %v2166 = vld [vmem:[%s2155 + $0x28] sm:$0xf]
      %v2167 = vld [vmem:[%s2155 + $0x2c] sm:$0xf]
      %v2168 = vld [vmem:[%s2155 + $0x30] sm:$0xf]
      %v2169 = vld [vmem:[%s2155 + $0x34] sm:$0xf]
      %v2170 = vld [vmem:[%s2155 + $0x38] sm:$0xf]
      %v2171 = vld [vmem:[%s2155 + $0x3c] sm:$0xf]
      %v2172 = vunpack.c.l.b16 %v2056
      %v2173 = vunpack.c.l.b16 %v2070
      %v2174 = vunpack.c.l.b16 %v2084
      %v2175 = vunpack.c.l.b16 %v2098
      %v2176 = vunpack.c.l.b16 %v2112
      %v2177 = vunpack.c.l.b16 %v2126
      %v2178 = vunpack.c.l.b16 %v2140
      %v2179 = vunpack.c.l.b16 %v2154
      %v2180 = vpack.c.b16 %v2173, %v2172
      %v2181 = vpack.c.b16 %v2175, %v2174
      %v2182 = vpack.c.b16 %v2177, %v2176
      %v2183 = vpack.c.b16 %v2179, %v2178
      %v2204 = vunpack.c.l.b16 %v2156
      %v2205 = vunpack.c.l.b16 %v2157
      %v2206 = vunpack.c.l.b16 %v2158
      %v2207 = vunpack.c.l.b16 %v2159
      %v2208 = vunpack.c.l.b16 %v2160
      %v2209 = vunpack.c.l.b16 %v2161
      %v2210 = vunpack.c.l.b16 %v2162
      %v2211 = vunpack.c.l.b16 %v2163
      %v2212 = vunpack.c.l.b16 %v2164
      %v2213 = vunpack.c.l.b16 %v2165
      %v2214 = vunpack.c.l.b16 %v2166
      %v2215 = vunpack.c.l.b16 %v2167
      %v2216 = vunpack.c.l.b16 %v2168
      %v2217 = vunpack.c.l.b16 %v2169
      %v2218 = vunpack.c.l.b16 %v2170
      %v2219 = vunpack.c.l.b16 %v2171
      %v2220 = vpack.c.b16 %v2205, %v2204
      %v2221 = vpack.c.b16 %v2207, %v2206
      %v2222 = vpack.c.b16 %v2209, %v2208
      %v2223 = vpack.c.b16 %v2211, %v2210
      %v2224 = vpack.c.b16 %v2213, %v2212
      %v2225 = vpack.c.b16 %v2215, %v2214
      %v2226 = vpack.c.b16 %v2217, %v2216
      %v2227 = vpack.c.b16 %v2219, %v2218
      %2236 = vmatprep.subr.bf16.mxu0 0
      %2237 = vmatpush1.bf16.msra.mxu0 %v2220
      %2238 = vmatprep.subr.bf16.mxu0 0
      %2239 = vmatpush1.bf16.msra.mxu0 %v2221
      %2240 = vmatprep.subr.bf16.mxu0 0
      %2241 = vmatpush1.bf16.msra.mxu0 %v2222
      %2242 = vmatprep.subr.bf16.mxu0 0
      %2243 = vmatpush1.bf16.msra.mxu0 %v2223
      %2244 = vmatprep.subr.bf16.mxu0 0
      %2245 = vmatpush1.bf16.msra.mxu0 %v2224
      %2246 = vmatprep.subr.bf16.mxu0 0
      %2247 = vmatpush1.bf16.msra.mxu0 %v2225
      %2248 = vmatprep.subr.bf16.mxu0 0
      %2249 = vmatpush1.bf16.msra.mxu0 %v2226
      %2250 = vmatprep.subr.bf16.mxu0 0
      %2251 = vmatpush1.bf16.msra.mxu0 %v2227
      %2252 = vmatprep.subr.bf16.mxu0 0
      %2253 = vmatpush1.bf16.msra.mxu0 0
      %2254 = vmatprep.subr.bf16.mxu0 0
      %2255 = vmatpush1.bf16.msra.mxu0 0
      %2256 = vmatprep.subr.bf16.mxu0 0
      %2257 = vmatpush1.bf16.msra.mxu0 0
      %2258 = vmatprep.subr.bf16.mxu0 0
      %2259 = vmatpush1.bf16.msra.mxu0 0
      %2260 = vmatprep.subr.bf16.mxu0 0
      %2261 = vmatpush1.bf16.msra.mxu0 0
      %2262 = vmatprep.subr.bf16.mxu0 0
      %2263 = vmatpush1.bf16.msra.mxu0 0
      %2264 = vmatprep.subr.bf16.mxu0 0
      %2265 = vmatpush1.bf16.msra.mxu0 0
      %2266 = vmatprep.subr.bf16.mxu0 0
      %2267 = vmatpush1.bf16.msra.mxu0 0
      %2268 = vmatprep.mubr.bf16.mxu0 0
      %2269 = vmatmul.mubr.bf16.gmra.mrb[0].mxu0 %v2180
      %v2270 = vpop.f32.mrb[0].mxu0
      %v2271 = vadd.f32 0.0, %v2270
      %v2272 = vpop.f32.mrb[0].mxu0
      %v2273 = vpop.f32.mrb[0].mxu0
      %v2274 = vadd.f32 0.0, %v2273
      %v2275 = vpop.f32.mrb[0].mxu0
      %2276 = vmatprep.mubr.bf16.mxu0 0
      %2277 = vmatmul.mubr.bf16.gmra.mrb[0].mxu0 %v2181
      %v2278 = vpop.f32.mrb[0].mxu0
      %v2279 = vadd.f32 0.0, %v2278
      %v2280 = vpop.f32.mrb[0].mxu0
      %v2281 = vpop.f32.mrb[0].mxu0
      %v2282 = vadd.f32 0.0, %v2281
      %v2283 = vpop.f32.mrb[0].mxu0
      %2284 = vmatprep.mubr.bf16.mxu0 0
      %2285 = vmatmul.mubr.bf16.gmra.mrb[0].mxu0 %v2182
      %v2286 = vpop.f32.mrb[0].mxu0
      %v2287 = vadd.f32 0.0, %v2286
      %v2288 = vpop.f32.mrb[0].mxu0
      %v2289 = vpop.f32.mrb[0].mxu0
      %v2290 = vadd.f32 0.0, %v2289
      %v2291 = vpop.f32.mrb[0].mxu0
      %2292 = vmatprep.mubr.bf16.mxu0 0
      %2293 = vmatmul.mubr.bf16.gmra.mrb[0].mxu0 %v2183
      %v2294 = vpop.f32.mrb[0].mxu0
      %v2295 = vadd.f32 0.0, %v2294
      %v2296 = vpop.f32.mrb[0].mxu0
      %v2297 = vpop.f32.mrb[0].mxu0
      %v2298 = vadd.f32 0.0, %v2297
      %v2299 = vpop.f32.mrb[0].mxu0
      %2300 = vdwg.mxu0
      %v2301 = vadd.f32 %v2019, %v2271
      %v2302 = vadd.f32 %v2020, %v2274
      %v2303 = vadd.f32 %v2021, %v2279
      %v2304 = vadd.f32 %v2022, %v2282
      %v2305 = vadd.f32 %v2023, %v2287
      %v2306 = vadd.f32 %v2024, %v2290
      %v2307 = vadd.f32 %v2025, %v2295
      %v2308 = vadd.f32 %v2026, %v2298
      %v2309 = vld [vmem:[%s5] sm:$0x1]
      %v2311 = vlaneseq
      %v2312 = vshrl.u32 %v2311, 7
      %v2313 = vsub.s32 0, %v2312
      %v2314 = vrot.slane %v2309, %v2313
      %v2316 = vmul.f32 %v2301, %v2314
      %v2317 = vmul.f32 %v2302, %v2314
      %v2318 = vmul.f32 %v2303, %v2314
      %v2319 = vmul.f32 %v2304, %v2314
      %v2320 = vmul.f32 %v2305, %v2314
      %v2321 = vmul.f32 %v2306, %v2314
      %v2322 = vmul.f32 %v2307, %v2314
      %v2323 = vmul.f32 %v2308, %v2314
      %v2324 = vld [vmem:[%s6] sm:$0x1]
      %v2326 = vlaneseq
      %v2327 = vshrl.u32 %v2326, 7
      %v2328 = vsub.s32 0, %v2327
      %v2329 = vrot.slane %v2324, %v2328
      %v2331 = vadd.f32 %v2316, %v2329
      %v2332 = vadd.f32 %v2317, %v2329
      %v2333 = vadd.f32 %v2318, %v2329
      %v2334 = vadd.f32 %v2319, %v2329
      %v2335 = vadd.f32 %v2320, %v2329
      %v2336 = vadd.f32 %v2321, %v2329
      %v2337 = vadd.f32 %v2322, %v2329
      %v2338 = vadd.f32 %v2323, %v2329
      %v2339 = vmax.f32 %v2331, 0.0
      %v2340 = vmax.f32 %v2332, 0.0
      %v2341 = vmax.f32 %v2333, 0.0
      %v2342 = vmax.f32 %v2334, 0.0
      %v2343 = vmax.f32 %v2335, 0.0
      %v2344 = vmax.f32 %v2336, 0.0
      %v2345 = vmax.f32 %v2337, 0.0
      %v2346 = vmax.f32 %v2338, 0.0
      %v2347 = vpack.c.bf16 %v2339, %v2339
      %v2348 = vpack.c.bf16 %v2340, %v2340
      %v2349 = vpack.c.bf16 %v2341, %v2341
      %v2350 = vpack.c.bf16 %v2342, %v2342
      %v2351 = vpack.c.bf16 %v2343, %v2343
      %v2352 = vpack.c.bf16 %v2344, %v2344
      %v2353 = vpack.c.bf16 %v2345, %v2345
      %v2354 = vpack.c.bf16 %v2346, %v2346
      %2355 = vst [vmem:[%s428] sm:$0xf] %v2347
      %2356 = vst [vmem:[%s428 + $0x4] sm:$0xf] %v2348
      %2357 = vst [vmem:[%s428 + $0x8] sm:$0xf] %v2349
      %2358 = vst [vmem:[%s428 + $0xc] sm:$0xf] %v2350
      %2359 = vst [vmem:[%s428 + $0x10] sm:$0xf] %v2351
      %2360 = vst [vmem:[%s428 + $0x14] sm:$0xf] %v2352
      %2361 = vst [vmem:[%s428 + $0x18] sm:$0xf] %v2353
      %2362 = vst [vmem:[%s428 + $0x1c] sm:$0xf] %v2354
      %v2363 = vld [vmem:[%s1228] sm:$0xf]
      %v2364 = vld [vmem:[%s1228 + $0x8] sm:$0xf]
      %v2365 = vld [vmem:[%s1228 + $0x10] sm:$0xf]
      %v2366 = vld [vmem:[%s1228 + $0x18] sm:$0xf]
      %v2367 = vld [vmem:[%s1228 + $0x20] sm:$0xf]
      %v2368 = vld [vmem:[%s1228 + $0x28] sm:$0xf]
      %v2369 = vld [vmem:[%s1228 + $0x30] sm:$0xf]
      %v2370 = vld [vmem:[%s1228 + $0x38] sm:$0xf]
      %v2371 = vld [vmem:[%s7] sm:$0xf]
      %v2372 = vld [vmem:[%s7 + $0x4] sm:$0xf]
      %v2373 = vld [vmem:[%s7 + $0x8] sm:$0xf]
      %v2374 = vld [vmem:[%s7 + $0xc] sm:$0xf]
      %v2375 = vld [vmem:[%s7 + $0x10] sm:$0xf]
      %v2376 = vld [vmem:[%s7 + $0x14] sm:$0xf]
      %v2377 = vld [vmem:[%s7 + $0x18] sm:$0xf]
      %v2378 = vld [vmem:[%s7 + $0x1c] sm:$0xf]
      %v2379 = vld [vmem:[%s7 + $0x20] sm:$0xf]
      %v2380 = vld [vmem:[%s7 + $0x24] sm:$0xf]
      %v2381 = vld [vmem:[%s7 + $0x28] sm:$0xf]
      %v2382 = vld [vmem:[%s7 + $0x2c] sm:$0xf]
      %v2383 = vld [vmem:[%s7 + $0x30] sm:$0xf]
      %v2384 = vld [vmem:[%s7 + $0x34] sm:$0xf]
      %v2385 = vld [vmem:[%s7 + $0x38] sm:$0xf]
      %v2386 = vld [vmem:[%s7 + $0x3c] sm:$0xf]
      %v2395 = vunpack.c.l.b16 %v2363
      %v2396 = vunpack.c.l.b16 %v2364
      %v2397 = vunpack.c.l.b16 %v2365
      %v2398 = vunpack.c.l.b16 %v2366
      %v2399 = vunpack.c.l.b16 %v2367
      %v2400 = vunpack.c.l.b16 %v2368
      %v2401 = vunpack.c.l.b16 %v2369
      %v2402 = vunpack.c.l.b16 %v2370
      %v2403 = vpack.c.b16 %v2396, %v2395
      %v2404 = vpack.c.b16 %v2398, %v2397
      %v2405 = vpack.c.b16 %v2400, %v2399
      %v2406 = vpack.c.b16 %v2402, %v2401
      %v2427 = vunpack.c.l.b16 %v2371
      %v2428 = vunpack.c.l.b16 %v2372
      %v2429 = vunpack.c.l.b16 %v2373
      %v2430 = vunpack.c.l.b16 %v2374
      %v2431 = vunpack.c.l.b16 %v2375
      %v2432 = vunpack.c.l.b16 %v2376
      %v2433 = vunpack.c.l.b16 %v2377
      %v2434 = vunpack.c.l.b16 %v2378
      %v2435 = vunpack.c.l.b16 %v2379
      %v2436 = vunpack.c.l.b16 %v2380
      %v2437 = vunpack.c.l.b16 %v2381
      %v2438 = vunpack.c.l.b16 %v2382
      %v2439 = vunpack.c.l.b16 %v2383
      %v2440 = vunpack.c.l.b16 %v2384
      %v2441 = vunpack.c.l.b16 %v2385
      %v2442 = vunpack.c.l.b16 %v2386
      %v2443 = vpack.c.b16 %v2428, %v2427
      %v2444 = vpack.c.b16 %v2430, %v2429
      %v2445 = vpack.c.b16 %v2432, %v2431
      %v2446 = vpack.c.b16 %v2434, %v2433
      %v2447 = vpack.c.b16 %v2436, %v2435
      %v2448 = vpack.c.b16 %v2438, %v2437
      %v2449 = vpack.c.b16 %v2440, %v2439
      %v2450 = vpack.c.b16 %v2442, %v2441
      %2459 = vmatprep.subr.bf16.mxu0 0
      %2460 = vmatpush1.bf16.msra.mxu0 %v2443
      %2461 = vmatprep.subr.bf16.mxu0 0
      %2462 = vmatpush1.bf16.msra.mxu0 %v2444
      %2463 = vmatprep.subr.bf16.mxu0 0
      %2464 = vmatpush1.bf16.msra.mxu0 %v2445
      %2465 = vmatprep.subr.bf16.mxu0 0
      %2466 = vmatpush1.bf16.msra.mxu0 %v2446
      %2467 = vmatprep.subr.bf16.mxu0 0
      %2468 = vmatpush1.bf16.msra.mxu0 %v2447
      %2469 = vmatprep.subr.bf16.mxu0 0
      %2470 = vmatpush1.bf16.msra.mxu0 %v2448
      %2471 = vmatprep.subr.bf16.mxu0 0
      %2472 = vmatpush1.bf16.msra.mxu0 %v2449
      %2473 = vmatprep.subr.bf16.mxu0 0
      %2474 = vmatpush1.bf16.msra.mxu0 %v2450
      %2475 = vmatprep.subr.bf16.mxu0 0
      %2476 = vmatpush1.bf16.msra.mxu0 0
      %2477 = vmatprep.subr.bf16.mxu0 0
      %2478 = vmatpush1.bf16.msra.mxu0 0
      %2479 = vmatprep.subr.bf16.mxu0 0
      %2480 = vmatpush1.bf16.msra.mxu0 0
      %2481 = vmatprep.subr.bf16.mxu0 0
      %2482 = vmatpush1.bf16.msra.mxu0 0
      %2483 = vmatprep.subr.bf16.mxu0 0
      %2484 = vmatpush1.bf16.msra.mxu0 0
      %2485 = vmatprep.subr.bf16.mxu0 0
      %2486 = vmatpush1.bf16.msra.mxu0 0
      %2487 = vmatprep.subr.bf16.mxu0 0
      %2488 = vmatpush1.bf16.msra.mxu0 0
      %2489 = vmatprep.subr.bf16.mxu0 0
      %2490 = vmatpush1.bf16.msra.mxu0 0
      %2491 = vmatprep.mubr.bf16.mxu0 0
      %2492 = vmatmul.mubr.bf16.gmra.mrb[0].mxu0 %v2403
      %v2493 = vpop.f32.mrb[0].mxu0
      %v2494 = vadd.f32 0.0, %v2493
      %v2495 = vpop.f32.mrb[0].mxu0
      %v2496 = vpop.f32.mrb[0].mxu0
      %v2497 = vadd.f32 0.0, %v2496
      %v2498 = vpop.f32.mrb[0].mxu0
      %2499 = vmatprep.mubr.bf16.mxu0 0
      %2500 = vmatmul.mubr.bf16.gmra.mrb[0].mxu0 %v2404
      %v2501 = vpop.f32.mrb[0].mxu0
      %v2502 = vadd.f32 0.0, %v2501
      %v2503 = vpop.f32.mrb[0].mxu0
      %v2504 = vpop.f32.mrb[0].mxu0
      %v2505 = vadd.f32 0.0, %v2504
      %v2506 = vpop.f32.mrb[0].mxu0
      %2507 = vmatprep.mubr.bf16.mxu0 0
      %2508 = vmatmul.mubr.bf16.gmra.mrb[0].mxu0 %v2405
      %v2509 = vpop.f32.mrb[0].mxu0
      %v2510 = vadd.f32 0.0, %v2509
      %v2511 = vpop.f32.mrb[0].mxu0
      %v2512 = vpop.f32.mrb[0].mxu0
      %v2513 = vadd.f32 0.0, %v2512
      %v2514 = vpop.f32.mrb[0].mxu0
      %2515 = vmatprep.mubr.bf16.mxu0 0
      %2516 = vmatmul.mubr.bf16.gmra.mrb[0].mxu0 %v2406
      %v2517 = vpop.f32.mrb[0].mxu0
      %v2518 = vadd.f32 0.0, %v2517
      %v2519 = vpop.f32.mrb[0].mxu0
      %v2520 = vpop.f32.mrb[0].mxu0
      %v2521 = vadd.f32 0.0, %v2520
      %v2522 = vpop.f32.mrb[0].mxu0
      %2523 = vdwg.mxu0
      %v2524 = vpack.c.bf16 %v2494, %v2494
      %v2525 = vpack.c.bf16 %v2497, %v2497
      %v2526 = vpack.c.bf16 %v2502, %v2502
      %v2527 = vpack.c.bf16 %v2505, %v2505
      %v2528 = vpack.c.bf16 %v2510, %v2510
      %v2529 = vpack.c.bf16 %v2513, %v2513
      %v2530 = vpack.c.bf16 %v2518, %v2518
      %v2531 = vpack.c.bf16 %v2521, %v2521
      %2532 = vst [vmem:[%s438] sm:$0xf] %v2524
      %2533 = vst [vmem:[%s438 + $0x4] sm:$0xf] %v2525
      %2534 = vst [vmem:[%s438 + $0x8] sm:$0xf] %v2526
      %2535 = vst [vmem:[%s438 + $0xc] sm:$0xf] %v2527
      %2536 = vst [vmem:[%s438 + $0x10] sm:$0xf] %v2528
      %2537 = vst [vmem:[%s438 + $0x14] sm:$0xf] %v2529
      %2538 = vst [vmem:[%s438 + $0x18] sm:$0xf] %v2530
      %2539 = vst [vmem:[%s438 + $0x1c] sm:$0xf] %v2531
      %s2540 = smul.u32 8, %s26
      %p2541 = scmp.lt.s32.totalorder %s25, 1
      %s2542 = scalar_select %p2541, %s25, 1
      %p2543 = scmp.lt.s32.totalorder %s2540, 7
      %s2544 = scalar_select %p2543, %s2540, 7
      %s2545 = smul.addr %s2542, 8
      %s2546 = sadd.s32 %s2544, %s2545
      %s2547 = smul.addr %s2546, 4
      %s2548 = scalar_lea.vmem %s8, %s2547
      %s2549 = smul.u32 8, %s26
      %p2550 = scmp.lt.s32.totalorder %s25, 1
      %s2551 = scalar_select %p2550, %s25, 1
      %p2552 = scmp.lt.s32.totalorder %s2549, 7
      %s2553 = scalar_select %p2552, %s2549, 7
      %s2554 = smul.addr %s2551, 8
      %s2555 = sadd.s32 %s2553, %s2554
      %s2556 = smul.addr %s2555, 4
      %s2557 = scalar_lea.vmem %s9, %s2556
      // Predicated region
      $region53: #{_lambda_.6} parent=51 // pred_check
        %p2558 = pneg %p241
      $region54: #{_lambda_.6} parent=51 // pred_check_branch
        %2560 = sbr.rel (%p2558) target = $region56
      $region55: #{_lambda_.6} parent=51 // pred_region
        %s2561 = smul.u32 8, %s26
      $region56: #{_lambda_.6} parent=51 // pred_fallthru
        _
      // Predicated region
      $region57: #{_lambda_.6} parent=51 // pred_check
        %p2562 = pneg %p269
      $region58: #{_lambda_.6} parent=51 // pred_check_branch
        %2564 = sbr.rel (%p2562) target = $region60
      $region59: #{_lambda_.6} parent=51 // pred_region
        %s2565 = smul.u32 8, %s26
      $region60: #{_lambda_.6} parent=51 // pred_fallthru
        _
    $region52: #{_lambda_.6} parent=5 // pred_fallthru
      _
    %p2566 = scmp.le.s32.totalorder 2, %s16
    // Predicated region
    $region61: #{_lambda_.6} parent=5 // pred_check
      %p2567 = pneg %p2566
    $region62: #{_lambda_.6} parent=5 // pred_check_branch
      %2569 = sbr.rel (%p2567) target = $region64
    $region63: #{_lambda_.6} parent=5 // pred_region
      %s2570 = ssub.s32 %s16, 2
      // Predicated region
      $region65: #{_lambda_.6} parent=63 // pred_check
        %p2571 = pneg %p247
      $region66: #{_lambda_.6} parent=63 // pred_check_branch
        %2573 = sbr.rel (%p2571) target = $region68
      $region67: #{_lambda_.6} parent=63 // pred_region
        %s2574 = smul.u32 8, %s28
        %p2575 = scmp.lt.s32.totalorder %s27, 1
        %s2576 = scalar_select %p2575, %s27, 1
        %p2577 = scmp.lt.s32.totalorder %s2574, 7
        %s2578 = scalar_select %p2577, %s2574, 7
        %s2579 = smul.addr %s2576, 8
        %s2580 = sadd.s32 %s2578, %s2579
        %s2581 = smul.addr %s2580, 4
        %s2582 = scalar_lea.vmem %s8, %s2581
      $region68: #{_lambda_.6} parent=63 // pred_fallthru
        _
      // Predicated region
      $region69: #{_lambda_.6} parent=63 // pred_check
        %p2583 = pneg %p275
      $region70: #{_lambda_.6} parent=63 // pred_check_branch
        %2585 = sbr.rel (%p2583) target = $region72
      $region71: #{_lambda_.6} parent=63 // pred_region
        %s2586 = smul.u32 8, %s28
        %p2587 = scmp.lt.s32.totalorder %s27, 1
        %s2588 = scalar_select %p2587, %s27, 1
        %p2589 = scmp.lt.s32.totalorder %s2586, 7
        %s2590 = scalar_select %p2589, %s2586, 7
        %s2591 = smul.addr %s2588, 8
        %s2592 = sadd.s32 %s2590, %s2591
        %s2593 = smul.addr %s2592, 4
        %s2594 = scalar_lea.vmem %s9, %s2593
      $region72: #{_lambda_.6} parent=63 // pred_fallthru
        _
    $region64: #{_lambda_.6} parent=5 // pred_fallthru
      _
  $region6: #{_lambda_.6} parent=0 // loop_footer
    %s20 = sadd.s32 1, %s16
  $region7: #{_lambda_.6} parent=0 // loop_footer_branch
    %15 = sbr.rel target = $region3
  $region8: #{_lambda_.6} parent=0 // loop_exit
    _

</llo_original>
